<compile_context>
chip_gen: v5e
topology: v5e:2x2
jax: 0.10.0
libtpu: 0.0.40
codegen_flags: <defaults>
</compile_context>

<pallas_src>
import functools

import jax
import jax.numpy as jnp
from jax.experimental import pallas as pl
from jax.experimental.pallas import tpu as pltpu

EPS = 1e-5
EXPANSION = 4
LANE = 128


def _round_up(x, m):
    return (x + m - 1) // m * m


def _pick_tm(M):
    # Largest sublane-dense tile that still yields >= 2 grid blocks.
    for tm in (512, 256, 128, 64):
        if M >= 2 * tm:
            return tm
    return 64


def _pick_tk(K):
    for tk in (512, 256, 128):
        if K % tk == 0:
            return tk
    return K  # small / ragged K: single full-K block


def _pick_tc(C, cap):
    """Largest multiple-of-128 tile <= cap that divides C (C is a 128-multiple)."""
    tc = min(C, cap)
    while C % tc:
        tc -= LANE
    return tc


@functools.lru_cache(maxsize=None)
def _vmem_limit_bytes():
    # Raise the scoped-VMEM limit, but never past ~3/4 of the chip's physical
    # VMEM (64 MiB/TC on v7x, 128 MiB on v5e/v6e).
    try:
        cap = int(pltpu.get_tpu_info().vmem_capacity_bytes)
    except Exception:
        cap = 64 * 1024 * 1024
    return int(min((cap * 3) // 4, 96 * 1024 * 1024))


# ----------------------------- Pallas kernels ------------------------------ #

def _gemm_bn_kernel(x_ref, w_ref, b_ref, *rest, relu):
    """K-tiled GEMM:  acc += X@W ;  last K step: + bias [+ residual] [relu]."""
    if len(rest) == 3:
        r_ref, o_ref, acc_ref = rest
    else:
        o_ref, acc_ref = rest
        r_ref = None
    k = pl.program_id(2)

    @pl.when(k == 0)
    def _():
        acc_ref[...] = jnp.zeros_like(acc_ref)

    acc_ref[...] += jnp.dot(x_ref[...], w_ref[...],
                            preferred_element_type=jnp.float32)

    @pl.when(k == pl.num_programs(2) - 1)
    def _():
        out = acc_ref[...] + b_ref[...]                      # folded-BN bias (f32)
        if r_ref is not None:
            out = out + r_ref[...].astype(jnp.float32)       # residual add (bf16 -> f32)
        if relu:
            out = jnp.maximum(out, 0.0)
        o_ref[...] = out.astype(o_ref.dtype)


def _conv3x3_kernel(x_ref, w_ref, b_ref, o_ref, acc_ref, *, Ho, Wo, Wps, stride, relu):
    """Fused 3x3 conv for one image x one Cout tile.

    x_ref  : (s*s, Rflat, C)   flat per-phase zero-padded image (bf16)
    w_ref  : (9, C, tc)        folded per-tap weights (bf16)
    b_ref  : (1, tc)           folded BN bias (f32)
    o_ref  : (Ho, Wo, tc)      output tile
    acc_ref: (Ho*Wps, tc) f32  accumulator in the flat padded-W layout

    Each tap's LHS is a *contiguous* row-offset slice of the flat slab
    (no reshape / relayout); wrap garbage lands only in the j >= Wo columns,
    which the epilogue never reads.
    """
    rows = Ho * Wps
    tap = 0
    for kh in range(3):
        for kw in range(3):
            phase = (kh % stride) * stride + (kw % stride)
            off = (kh // stride) * Wps + (kw // stride)
            lhs = x_ref[phase, off:off + rows, :]            # contiguous row slab
            contrib = jnp.dot(lhs, w_ref[tap],
                              preferred_element_type=jnp.float32)
            if tap == 0:
                acc_ref[...] = contrib
            else:
                acc_ref[...] += contrib
            tap += 1

    bias = b_ref[...]
    # Epilogue: per output row, drop the (Wps - Wo) wrap/pad columns and store.
    for i in range(Ho):
        row = acc_ref[i * Wps:i * Wps + Wo, :] + bias
        if relu:
            row = jnp.maximum(row, 0.0)
        o_ref[i, :, :] = row.astype(o_ref.dtype)


# ------------------------------ kernel wrappers ----------------------------- #

def matmul_bn(x, w, bias, residual=None, relu=False, out_dtype=jnp.bfloat16):
    """out = relu?((x @ w) + bias [+ residual]);  x:[M,K], w:[K,C] -> [M,C].

    bf16 operands, f32 accumulation.  M is NOT padded (ragged last block is
    masked by Pallas); C (lane dim) is a 128 multiple (lane-dense stores) and is
    tiled when very wide so blocks fit v7x's VMEM and feed both TensorCores.
    """
    M, K = x.shape
    _, C = w.shape
    x = x.astype(jnp.bfloat16)
    w = w.astype(jnp.bfloat16)
    bias = bias.astype(jnp.float32)

    tm = _pick_tm(M)
    tk = _pick_tk(K)
    tc = _pick_tc(C, 1024)
    grid = (pl.cdiv(M, tm), C // tc, K // tk)

    in_specs = [
        pl.BlockSpec((tm, tk), lambda m, c, k: (m, k)),   # streamed activation tile
        pl.BlockSpec((tk, tc), lambda m, c, k: (k, c)),   # streamed weight slab
        pl.BlockSpec((1, tc), lambda m, c, k: (0, c)),    # folded BN bias
    ]
    args = [x, w, bias]
    if residual is not None:
        residual = residual.astype(jnp.bfloat16)          # bf16 residual stream
        in_specs.append(pl.BlockSpec((tm, tc), lambda m, c, k: (m, c)))
        args.append(residual)

    cost = pl.CostEstimate(
        flops=2 * M * K * C, transcendentals=0,
        bytes_accessed=(M * K * 2 + K * C * 2
                        + M * C * jnp.dtype(out_dtype).itemsize
                        + (M * C * 2 if residual is not None else 0)))

    return pl.pallas_call(
        functools.partial(_gemm_bn_kernel, relu=relu),
        out_shape=jax.ShapeDtypeStruct((M, C), out_dtype),
        grid=grid,
        in_specs=in_specs,
        out_specs=pl.BlockSpec((tm, tc), lambda m, c, k: (m, c)),
        scratch_shapes=[pltpu.VMEM((tm, tc), jnp.float32)],
        compiler_params=pltpu.CompilerParams(
            dimension_semantics=("parallel", "parallel", "arbitrary"),
            vmem_limit_bytes=_vmem_limit_bytes()),
        cost_estimate=cost,
    )(*args)


def _to_flat_phases(x, stride):
    """Flat stride-phase view of the zero-padded activation.

    [N,H,W,C] -> [N, s*s, Rflat, C] with
      phases[n, p*s+q, i*Wps + j] = x_pad[n, s*i+p, s*j+q]
    plus enough trailing zero rows that every tap's row-offset slice of length
    Ho*Wps stays in bounds.  Built in one XLA pad+transpose+reshape pass."""
    N, H, W, C = x.shape
    k, pad, s = 3, 1, stride
    Ho = (H + 2 * pad - k) // s + 1
    Wo = (W + 2 * pad - k) // s + 1
    d = (k - 1) // s                     # max per-phase tap offset (2 for s=1, 1 for s=2)
    Wps = Wo + d
    Hpad = (Ho + d) + d + 1              # extra bottom rows keep flat tap slices in bounds
    xp = jnp.pad(x, ((0, 0), (pad, s * Hpad - H - pad),
                     (pad, s * Wps - W - pad), (0, 0)))
    xr = xp.reshape(N, Hpad, s, Wps, s, C)
    ph = jnp.transpose(xr, (0, 2, 4, 1, 3, 5)).reshape(N, s * s, Hpad * Wps, C)
    return ph, Ho, Wo, Wps


def conv3x3_bn(x, w_tap, bias, stride, relu=True, out_dtype=jnp.bfloat16):
    """3x3 / pad-1 / stride-s conv + folded BN (+relu), fused 9-tap reduction.

    Grid = (image, Cout tile); the flat phase view of one image is resident in
    VMEM while the 9 tap GEMMs accumulate into a flat f32 scratch; the epilogue
    stores only the interior columns (lane-dense output)."""
    N = x.shape[0]
    C, Coutp = w_tap.shape[1], w_tap.shape[2]
    ph, Ho, Wo, Wps = _to_flat_phases(x.astype(jnp.bfloat16), stride)
    s2 = stride * stride
    Rflat = ph.shape[2]
    tc = _pick_tc(Coutp, 512)
    ncb = Coutp // tc

    cost = pl.CostEstimate(
        flops=2 * 9 * N * Ho * Wps * C * Coutp, transcendentals=0,
        bytes_accessed=(ph.size * 2 + w_tap.size * 2
                        + N * Ho * Wo * Coutp * jnp.dtype(out_dtype).itemsize))

    out = pl.pallas_call(
        functools.partial(_conv3x3_kernel, Ho=Ho, Wo=Wo, Wps=Wps,
                          stride=stride, relu=relu),
        out_shape=jax.ShapeDtypeStruct((N, Ho, Wo, Coutp), out_dtype),
        grid=(N, ncb),
        in_specs=[
            pl.BlockSpec((None, s2, Rflat, C), lambda n, c: (n, 0, 0, 0)),
            pl.BlockSpec((9, C, tc), lambda n, c: (0, 0, c)),
            pl.BlockSpec((1, tc), lambda n, c: (0, c)),
        ],
        out_specs=pl.BlockSpec((None, Ho, Wo, tc), lambda n, c: (n, 0, 0, c)),
        scratch_shapes=[pltpu.VMEM((Ho * Wps, tc), jnp.float32)],
        compiler_params=pltpu.CompilerParams(
            dimension_semantics=("parallel", "parallel"),
            vmem_limit_bytes=_vmem_limit_bytes()),
        cost_estimate=cost,
    )(ph, w_tap.astype(jnp.bfloat16), bias.astype(jnp.float32))
    return out


# --------------------------- parameter folding (JAX) ------------------------ #

def _fold_bn(bn):
    gamma, beta, mean, var = bn
    scale = gamma / jnp.sqrt(var + EPS)
    return scale, beta - mean * scale


def fold_conv1x1(w, bn, cout_pad, cin_pad):
    """[Cout,Cin,1,1] + BN -> bf16 weight [cin_pad, cout_pad], f32 bias [1, cout_pad]."""
    cout, cin = w.shape[0], w.shape[1]
    scale, bias = _fold_bn(bn)
    wm = (w[:, :, 0, 0] * scale[:, None]).T
    wm = jnp.pad(wm, ((0, cin_pad - cin), (0, cout_pad - cout))).astype(jnp.bfloat16)
    b = jnp.pad(bias, (0, cout_pad - cout)).reshape(1, -1).astype(jnp.float32)
    return wm, b


def fold_conv3x3(w, bn, cin_pad, cout_pad):
    """[Cout,Cin,3,3] + BN -> per-tap bf16 weights [9, cin_pad, cout_pad], f32 bias."""
    cout, cin = w.shape[0], w.shape[1]
    scale, bias = _fold_bn(bn)
    ws = w * scale[:, None, None, None]
    w_tap = jnp.stack([
        jnp.pad(ws[:, :, kh, kw].T, ((0, cin_pad - cin), (0, cout_pad - cout)))
        for kh in range(3) for kw in range(3)]).astype(jnp.bfloat16)
    b = jnp.pad(bias, (0, cout_pad - cout)).reshape(1, -1).astype(jnp.float32)
    return w_tap, b


# ------------------------------ forward pass -------------------------------- #

def bottleneck_forward_nhwc(x, params, stride):
    """Bottleneck forward on channels-last (NHWC) activations (bf16 internally).
    Channel dims are padded to multiples of 128 and the padding is carried
    between kernels (padded channels are exactly zero), sliced off at the end."""
    N, H, W, Cin = x.shape
    planes = params["w1"].shape[0]
    cout = EXPANSION * planes
    cinp = _round_up(Cin, LANE)        # lane-dense K for conv1 / shortcut
    cp = _round_up(planes, LANE)       # padded width of the narrow (planes) stream
    cop = _round_up(cout, LANE)        # padded width of the expansion stream

    x = x.astype(jnp.bfloat16)
    if cinp != Cin:
        x = jnp.pad(x, ((0, 0), (0, 0), (0, 0), (0, cinp - Cin)))

    # conv1: 1x1 -> planes, bn1, relu
    w1, b1 = fold_conv1x1(params["w1"], params["bn1"], cp, cin_pad=cinp)
    out1 = matmul_bn(x.reshape(-1, cinp), w1, b1, relu=True)
    out1 = out1.reshape(N, H, W, cp)

    # conv2: 3x3 stride s -> planes, bn2, relu   (fused 9-tap reduction, no im2col)
    w2, b2 = fold_conv3x3(params["w2"], params["bn2"], cp, cp)
    out2 = conv3x3_bn(out1, w2, b2, stride, relu=True)
    Ho, Wo = out2.shape[1], out2.shape[2]

    # shortcut branch (1x1 stride-s conv + bn, or identity), carried as bf16
    if stride != 1 or Cin != cout:
        wsc, bsc = fold_conv1x1(params["wsc"], params["bnsc"], cop, cin_pad=cinp)
        # TODO(synk): fold this strided slice into the shortcut GEMM (extra HBM pass).
        xs = x[:, ::stride, ::stride, :]
        res = matmul_bn(xs.reshape(-1, cinp), wsc, bsc, relu=False,
                        out_dtype=jnp.bfloat16)
    else:
        res = x.reshape(-1, cinp)      # identity: cinp == cop, already bf16 + padded

    # conv3: 1x1 -> 4*planes, bn3, + shortcut, relu   (residual add fused, bf16 out)
    w3, b3 = fold_conv1x1(params["w3"], params["bn3"], cop, cin_pad=cp)
    out3 = matmul_bn(out2.reshape(-1, cp), w3, b3,
                     residual=res, relu=True, out_dtype=jnp.bfloat16)

    return out3.reshape(N, Ho, Wo, cop)[..., :cout]


def bottleneck_forward(x_nchw, params, stride):
    # NCHW <-> NHWC only at the module boundary; stacked blocks should call
    # bottleneck_forward_nhwc directly and keep NHWC / bf16 throughout.
    x = jnp.transpose(x_nchw, (0, 2, 3, 1))
    out = bottleneck_forward_nhwc(x, params, stride)
    return jnp.transpose(out, (0, 3, 1, 2)).astype(jnp.float32)


# ------------------------------ reference ----------------------------------- #
# Mirrors the kernels' precision policy (bf16 operands, BN scale folded into the
# weights before the bf16 cast, f32 accumulation, bf16 inter-kernel activations,
# bf16 shortcut, bf16 final output) using XLA convs, so the tolerance only has to
# cover accumulation-order differences (+/- a couple of bf16 ULPs).

def _ref_fold(w, bn):
    gamma, beta, mean, var = bn
    s = gamma / jnp.sqrt(var + EPS)
    return (w * s[:, None, None, None]).astype(jnp.bfloat16), beta - mean * s


def _ref_conv(x, w_bf16, stride, pad):
    return jax.lax.conv_general_dilated(
        x.astype(jnp.bfloat16), w_bf16, (stride, stride),
        [(pad, pad), (pad, pad)],
        dimension_numbers=("NCHW", "OIHW", "NCHW"),
        preferred_element_type=jnp.float32)


def ref_forward(x, params, stride):
    planes = params["w1"].shape[0]
    cout = EXPANSION * planes
    w1, b1 = _ref_fold(params["w1"], params["bn1"])
    w2, b2 = _ref_fold(params["w2"], params["bn2"])
    w3, b3 = _ref_fold(params["w3"], params["bn3"])
    out = jax.nn.relu(_ref_conv(x, w1, 1, 0) + b1[None, :, None, None])
    out = out.astype(jnp.bfloat16)
    out = jax.nn.relu(_ref_conv(out, w2, stride, 1) + b2[None, :, None, None])
    out = out.astype(jnp.bfloat16)
    out3 = _ref_conv(out, w3, 1, 0) + b3[None, :, None, None]
    if stride != 1 or x.shape[1] != cout:
        wsc, bsc = _ref_fold(params["wsc"], params["bnsc"])
        sc = (_ref_conv(x, wsc, stride, 0) + bsc[None, :, None, None]).astype(jnp.bfloat16)
    else:
        sc = x.astype(jnp.bfloat16)
    out = jax.nn.relu(out3 + sc.astype(jnp.float32))
    return out.astype(jnp.bfloat16).astype(jnp.float32)


# --------------------------------- main -------------------------------------- #

def init_params(key, in_planes, planes):
    ks = jax.random.split(key, 8)

    def bn(k, c):
        k1, k2, k3, k4 = jax.random.split(k, 4)
        return (jax.random.uniform(k1, (c,), jnp.float32, 0.5, 1.5),
                0.1 * jax.random.normal(k2, (c,), jnp.float32),
                0.1 * jax.random.normal(k3, (c,), jnp.float32),
                jax.random.uniform(k4, (c,), jnp.float32, 0.5, 1.5))

    exp = EXPANSION
    return {
        "w1": 0.1 * jax.random.normal(ks[0], (planes, in_planes, 1, 1), jnp.float32),
        "bn1": bn(ks[1], planes),
        "w2": 0.1 * jax.random.normal(ks[2], (planes, planes, 3, 3), jnp.float32),
        "bn2": bn(ks[3], planes),
        "w3": 0.1 * jax.random.normal(ks[4], (exp * planes, planes, 1, 1), jnp.float32),
        "bn3": bn(ks[5], exp * planes),
        "wsc": 0.1 * jax.random.normal(ks[6], (exp * planes, in_planes, 1, 1), jnp.float32),
        "bnsc": bn(ks[7], exp * planes),
    }


if __name__ == "__main__":
    key = jax.random.PRNGKey(0)
    k_x, k_p = jax.random.split(key)

    N, in_planes, planes, H, W = 2, 4, 8, 16, 16
    x = jax.random.normal(k_x, (N, in_planes, H, W), jnp.float32)   # NCHW input
    params = init_params(k_p, in_planes, planes)

    for stride in (1, 2):
        fwd = jax.jit(functools.partial(bottleneck_forward, params=params, stride=stride))
        out = jax.block_until_ready(fwd(x))
        ref = jax.block_until_ready(ref_forward(x, params, stride))
        Ho = (H + 2 - 3) // stride + 1
        assert out.shape == (N, EXPANSION * planes, Ho, Ho), out.shape
        err = float(jnp.max(jnp.abs(out - ref)))
        # Output is bf16 (per perf review); allow a couple of bf16 ULPs at the
        # output magnitude on top of accumulation-order noise.
        tol = 2e-2 + 2e-2 * float(jnp.max(jnp.abs(ref)))
        assert err < tol, f"stride={stride}: max abs err {err} (tol {tol})"

    print("KERNEL_OK")
</pallas_src>

<mosaic_0001>
module attributes {stable_mosaic.version = 11 : i64} {
  func.func @_gemm_bn_kernel(%arg0: i32, %arg1: i32, %arg2: i32, %arg3: memref<256x128xbf16, #tpu.memory_space<vmem>>, %arg4: memref<128x128xbf16, #tpu.memory_space<vmem>>, %arg5: memref<1x128xf32, #tpu.memory_space<vmem>>, %arg6: memref<256x128xbf16, #tpu.memory_space<vmem>>, %arg7: memref<256x128xf32, #tpu.memory_space<vmem>>) attributes {dimension_semantics = [#tpu.dimension_semantics<parallel>, #tpu.dimension_semantics<parallel>, #tpu.dimension_semantics<arbitrary>], iteration_bounds = array<i64: 2, 1, 1>, scalar_prefetch = 0 : i64, scratch_operands = 1 : i64, tpu.core_type = #tpu.core_type<tc>, window_params = [{transform_indices = @transform_0, window_bounds = array<i64: 256, 128>}, {transform_indices = @transform_1, window_bounds = array<i64: 128, 128>}, {transform_indices = @transform_2, window_bounds = array<i64: 1, 128>}, {transform_indices = @transform_3, window_bounds = array<i64: 256, 128>}]} {
    %c0_i32 = arith.constant 0 : i32
    %0 = arith.cmpi eq, %arg2, %c0_i32 : i32
    %1 = arith.extui %0 : i1 to i32
    %c0_i32_0 = arith.constant 0 : i32
    %2 = arith.cmpi ne, %1, %c0_i32_0 : i32
    scf.if %2 {
      %cst_10 = arith.constant 0.000000e+00 : f32
      %12 = vector.broadcast %cst_10 : f32 to vector<256x128xf32>
      %c0_11 = arith.constant 0 : index
      %c0_12 = arith.constant 0 : index
      %13 = vector.load %arg7[%c0_11, %c0_12] : memref<256x128xf32, #tpu.memory_space<vmem>>, vector<256x128xf32>
      tpu.vector_store %arg7[%c0_11, %c0_12], %12 {strides = array<i32>} : memref<256x128xf32, #tpu.memory_space<vmem>>, vector<256x128xf32>,
    } else {
    }
    %c0 = arith.constant 0 : index
    %c0_1 = arith.constant 0 : index
    %3 = vector.load %arg7[%c0, %c0_1] : memref<256x128xf32, #tpu.memory_space<vmem>>, vector<256x128xf32>
    %c0_2 = arith.constant 0 : index
    %c0_3 = arith.constant 0 : index
    %4 = vector.load %arg3[%c0_2, %c0_3] : memref<256x128xbf16, #tpu.memory_space<vmem>>, vector<256x128xbf16>
    %c0_4 = arith.constant 0 : index
    %c0_5 = arith.constant 0 : index
    %5 = vector.load %arg4[%c0_4, %c0_5] : memref<128x128xbf16, #tpu.memory_space<vmem>>, vector<128x128xbf16>
    %cst = arith.constant dense<0.000000e+00> : vector<256x128xf32>
    %6 = tpu.matmul %4, %5, %cst {dimension_numbers = #tpu.dot_dimension_numbers<[1], [0], [0], [1], [0, 0, 1, 1], [], []>} : vector<256x128xbf16>, vector<128x128xbf16>, vector<256x128xf32> -> vector<256x128xf32>
    %7 = arith.addf %3, %6 : vector<256x128xf32>
    %c0_6 = arith.constant 0 : index
    %c0_7 = arith.constant 0 : index
    %8 = vector.load %arg7[%c0_6, %c0_7] : memref<256x128xf32, #tpu.memory_space<vmem>>, vector<256x128xf32>
    tpu.vector_store %arg7[%c0_6, %c0_7], %7 {strides = array<i32>} : memref<256x128xf32, #tpu.memory_space<vmem>>, vector<256x128xf32>,
    %c0_i32_8 = arith.constant 0 : i32
    %9 = arith.cmpi eq, %arg2, %c0_i32_8 : i32
    %10 = arith.extui %9 : i1 to i32
    %c0_i32_9 = arith.constant 0 : i32
    %11 = arith.cmpi ne, %10, %c0_i32_9 : i32
    scf.if %11 {
      %c0_10 = arith.constant 0 : index
      %c0_11 = arith.constant 0 : index
      %12 = vector.load %arg7[%c0_10, %c0_11] : memref<256x128xf32, #tpu.memory_space<vmem>>, vector<256x128xf32>
      %c0_12 = arith.constant 0 : index
      %c0_13 = arith.constant 0 : index
      %13 = vector.load %arg5[%c0_12, %c0_13] : memref<1x128xf32, #tpu.memory_space<vmem>>, vector<1x128xf32>
      %14 = vector.broadcast %13 : vector<1x128xf32> to vector<256x128xf32>
      %15 = arith.addf %12, %14 : vector<256x128xf32>
      %16 = arith.truncf %15 : vector<256x128xf32> to vector<256x128xbf16>
      %c0_14 = arith.constant 0 : index
      %c0_15 = arith.constant 0 : index
      %17 = vector.load %arg6[%c0_14, %c0_15] : memref<256x128xbf16, #tpu.memory_space<vmem>>, vector<256x128xbf16>
      tpu.vector_store %arg6[%c0_14, %c0_15], %16 {strides = array<i32>} : memref<256x128xbf16, #tpu.memory_space<vmem>>, vector<256x128xbf16>,
    } else {
    }
    return
  }
  func.func @transform_0(%arg0: i32, %arg1: i32, %arg2: i32) -> (i32, i32) {
    %c0_i32 = arith.constant 0 : i32
    return %arg0, %arg2 : i32, i32
  }
  func.func @transform_1(%arg0: i32, %arg1: i32, %arg2: i32) -> (i32, i32) {
    %c0_i32 = arith.constant 0 : i32
    return %arg2, %arg1 : i32, i32
  }
  func.func @transform_2(%arg0: i32, %arg1: i32, %arg2: i32) -> (i32, i32) {
    %c0_i32 = arith.constant 0 : i32
    %c0_i32_0 = arith.constant 0 : i32
    return %c0_i32, %arg1 : i32, i32
  }
  func.func @transform_3(%arg0: i32, %arg1: i32, %arg2: i32) -> (i32, i32) {
    %c0_i32 = arith.constant 0 : i32
    return %arg0, %arg1 : i32, i32
  }
}

module attributes {stable_mosaic.version = 11 : i64} {
  func.func @_gemm_bn_kernel(%arg0: i32, %arg1: i32, %arg2: i32, %arg3: memref<256x128xbf16, #tpu.memory_space<vmem>>, %arg4: memref<128x128xbf16, #tpu.memory_space<vmem>>, %arg5: memref<1x128xf32, #tpu.memory_space<vmem>>, %arg6: memref<256x128xbf16, #tpu.memory_space<vmem>>, %arg7: memref<256x128xf32, #tpu.memory_space<vmem>>) attributes {dimension_semantics = [#tpu.dimension_semantics<parallel>, #tpu.dimension_semantics<parallel>, #tpu.dimension_semantics<arbitrary>], iteration_bounds = array<i64: 2, 1, 1>, scalar_prefetch = 0 : i64, scratch_operands = 1 : i64, tpu.core_type = #tpu.core_type<tc>, window_params = [{transform_indices = @transform_0, window_bounds = array<i64: 256, 128>}, {transform_indices = @transform_1, window_bounds = array<i64: 128, 128>}, {transform_indices = @transform_2, window_bounds = array<i64: 1, 128>}, {transform_indices = @transform_3, window_bounds = array<i64: 256, 128>}]} {
    %c0_i32 = arith.constant 0 : i32
    %0 = arith.cmpi eq, %arg2, %c0_i32 : i32
    %1 = arith.extui %0 : i1 to i32
    %c0_i32_0 = arith.constant 0 : i32
    %2 = arith.cmpi ne, %1, %c0_i32_0 : i32
    scf.if %2 {
      %cst_10 = arith.constant 0.000000e+00 : f32
      %12 = vector.broadcast %cst_10 : f32 to vector<256x128xf32>
      %c0_11 = arith.constant 0 : index
      %c0_12 = arith.constant 0 : index
      %13 = vector.load %arg7[%c0_11, %c0_12] : memref<256x128xf32, #tpu.memory_space<vmem>>, vector<256x128xf32>
      tpu.vector_store %arg7[%c0_11, %c0_12], %12 {strides = array<i32>} : memref<256x128xf32, #tpu.memory_space<vmem>>, vector<256x128xf32>,
    } else {
    }
    %c0 = arith.constant 0 : index
    %c0_1 = arith.constant 0 : index
    %3 = vector.load %arg7[%c0, %c0_1] : memref<256x128xf32, #tpu.memory_space<vmem>>, vector<256x128xf32>
    %c0_2 = arith.constant 0 : index
    %c0_3 = arith.constant 0 : index
    %4 = vector.load %arg3[%c0_2, %c0_3] : memref<256x128xbf16, #tpu.memory_space<vmem>>, vector<256x128xbf16>
    %c0_4 = arith.constant 0 : index
    %c0_5 = arith.constant 0 : index
    %5 = vector.load %arg4[%c0_4, %c0_5] : memref<128x128xbf16, #tpu.memory_space<vmem>>, vector<128x128xbf16>
    %cst = arith.constant dense<0.000000e+00> : vector<256x128xf32>
    %6 = tpu.matmul %4, %5, %cst {dimension_numbers = #tpu.dot_dimension_numbers<[1], [0], [0], [1], [0, 0, 1, 1], [], []>} : vector<256x128xbf16>, vector<128x128xbf16>, vector<256x128xf32> -> vector<256x128xf32>
    %7 = arith.addf %3, %6 : vector<256x128xf32>
    %c0_6 = arith.constant 0 : index
    %c0_7 = arith.constant 0 : index
    %8 = vector.load %arg7[%c0_6, %c0_7] : memref<256x128xf32, #tpu.memory_space<vmem>>, vector<256x128xf32>
    tpu.vector_store %arg7[%c0_6, %c0_7], %7 {strides = array<i32>} : memref<256x128xf32, #tpu.memory_space<vmem>>, vector<256x128xf32>,
    %c0_i32_8 = arith.constant 0 : i32
    %9 = arith.cmpi eq, %arg2, %c0_i32_8 : i32
    %10 = arith.extui %9 : i1 to i32
    %c0_i32_9 = arith.constant 0 : i32
    %11 = arith.cmpi ne, %10, %c0_i32_9 : i32
    scf.if %11 {
      %c0_10 = arith.constant 0 : index
      %c0_11 = arith.constant 0 : index
      %12 = vector.load %arg7[%c0_10, %c0_11] : memref<256x128xf32, #tpu.memory_space<vmem>>, vector<256x128xf32>
      %c0_12 = arith.constant 0 : index
      %c0_13 = arith.constant 0 : index
      %13 = vector.load %arg5[%c0_12, %c0_13] : memref<1x128xf32, #tpu.memory_space<vmem>>, vector<1x128xf32>
      %14 = vector.broadcast %13 : vector<1x128xf32> to vector<256x128xf32>
      %15 = arith.addf %12, %14 : vector<256x128xf32>
      %cst_14 = arith.constant 0.000000e+00 : f32
      %16 = vector.broadcast %cst_14 : f32 to vector<256x128xf32>
      %17 = arith.maximumf %15, %16 : vector<256x128xf32>
      %18 = arith.truncf %17 : vector<256x128xf32> to vector<256x128xbf16>
      %c0_15 = arith.constant 0 : index
      %c0_16 = arith.constant 0 : index
      %19 = vector.load %arg6[%c0_15, %c0_16] : memref<256x128xbf16, #tpu.memory_space<vmem>>, vector<256x128xbf16>
      tpu.vector_store %arg6[%c0_15, %c0_16], %18 {strides = array<i32>} : memref<256x128xbf16, #tpu.memory_space<vmem>>, vector<256x128xbf16>,
    } else {
    }
    return
  }
  func.func @transform_0(%arg0: i32, %arg1: i32, %arg2: i32) -> (i32, i32) {
    %c0_i32 = arith.constant 0 : i32
    return %arg0, %arg2 : i32, i32
  }
  func.func @transform_1(%arg0: i32, %arg1: i32, %arg2: i32) -> (i32, i32) {
    %c0_i32 = arith.constant 0 : i32
    return %arg2, %arg1 : i32, i32
  }
  func.func @transform_2(%arg0: i32, %arg1: i32, %arg2: i32) -> (i32, i32) {
    %c0_i32 = arith.constant 0 : i32
    %c0_i32_0 = arith.constant 0 : i32
    return %c0_i32, %arg1 : i32, i32
  }
  func.func @transform_3(%arg0: i32, %arg1: i32, %arg2: i32) -> (i32, i32) {
    %c0_i32 = arith.constant 0 : i32
    return %arg0, %arg1 : i32, i32
  }
}

module attributes {stable_mosaic.version = 11 : i64} {
  func.func @_gemm_bn_kernel(%arg0: i32, %arg1: i32, %arg2: i32, %arg3: memref<256x128xbf16, #tpu.memory_space<vmem>>, %arg4: memref<128x128xbf16, #tpu.memory_space<vmem>>, %arg5: memref<1x128xf32, #tpu.memory_space<vmem>>, %arg6: memref<256x128xbf16, #tpu.memory_space<vmem>>, %arg7: memref<256x128xbf16, #tpu.memory_space<vmem>>, %arg8: memref<256x128xf32, #tpu.memory_space<vmem>>) attributes {dimension_semantics = [#tpu.dimension_semantics<parallel>, #tpu.dimension_semantics<parallel>, #tpu.dimension_semantics<arbitrary>], iteration_bounds = array<i64: 2, 1, 1>, scalar_prefetch = 0 : i64, scratch_operands = 1 : i64, tpu.core_type = #tpu.core_type<tc>, window_params = [{transform_indices = @transform_0, window_bounds = array<i64: 256, 128>}, {transform_indices = @transform_1, window_bounds = array<i64: 128, 128>}, {transform_indices = @transform_2, window_bounds = array<i64: 1, 128>}, {transform_indices = @transform_3, window_bounds = array<i64: 256, 128>}, {transform_indices = @transform_4, window_bounds = array<i64: 256, 128>}]} {
    %c0_i32 = arith.constant 0 : i32
    %0 = arith.cmpi eq, %arg2, %c0_i32 : i32
    %1 = arith.extui %0 : i1 to i32
    %c0_i32_0 = arith.constant 0 : i32
    %2 = arith.cmpi ne, %1, %c0_i32_0 : i32
    scf.if %2 {
      %cst_10 = arith.constant 0.000000e+00 : f32
      %12 = vector.broadcast %cst_10 : f32 to vector<256x128xf32>
      %c0_11 = arith.constant 0 : index
      %c0_12 = arith.constant 0 : index
      %13 = vector.load %arg8[%c0_11, %c0_12] : memref<256x128xf32, #tpu.memory_space<vmem>>, vector<256x128xf32>
      tpu.vector_store %arg8[%c0_11, %c0_12], %12 {strides = array<i32>} : memref<256x128xf32, #tpu.memory_space<vmem>>, vector<256x128xf32>,
    } else {
    }
    %c0 = arith.constant 0 : index
    %c0_1 = arith.constant 0 : index
    %3 = vector.load %arg8[%c0, %c0_1] : memref<256x128xf32, #tpu.memory_space<vmem>>, vector<256x128xf32>
    %c0_2 = arith.constant 0 : index
    %c0_3 = arith.constant 0 : index
    %4 = vector.load %arg3[%c0_2, %c0_3] : memref<256x128xbf16, #tpu.memory_space<vmem>>, vector<256x128xbf16>
    %c0_4 = arith.constant 0 : index
    %c0_5 = arith.constant 0 : index
    %5 = vector.load %arg4[%c0_4, %c0_5] : memref<128x128xbf16, #tpu.memory_space<vmem>>, vector<128x128xbf16>
    %cst = arith.constant dense<0.000000e+00> : vector<256x128xf32>
    %6 = tpu.matmul %4, %5, %cst {dimension_numbers = #tpu.dot_dimension_numbers<[1], [0], [0], [1], [0, 0, 1, 1], [], []>} : vector<256x128xbf16>, vector<128x128xbf16>, vector<256x128xf32> -> vector<256x128xf32>
    %7 = arith.addf %3, %6 : vector<256x128xf32>
    %c0_6 = arith.constant 0 : index
    %c0_7 = arith.constant 0 : index
    %8 = vector.load %arg8[%c0_6, %c0_7] : memref<256x128xf32, #tpu.memory_space<vmem>>, vector<256x128xf32>
    tpu.vector_store %arg8[%c0_6, %c0_7], %7 {strides = array<i32>} : memref<256x128xf32, #tpu.memory_space<vmem>>, vector<256x128xf32>,
    %c0_i32_8 = arith.constant 0 : i32
    %9 = arith.cmpi eq, %arg2, %c0_i32_8 : i32
    %10 = arith.extui %9 : i1 to i32
    %c0_i32_9 = arith.constant 0 : i32
    %11 = arith.cmpi ne, %10, %c0_i32_9 : i32
    scf.if %11 {
      %c0_10 = arith.constant 0 : index
      %c0_11 = arith.constant 0 : index
      %12 = vector.load %arg8[%c0_10, %c0_11] : memref<256x128xf32, #tpu.memory_space<vmem>>, vector<256x128xf32>
      %c0_12 = arith.constant 0 : index
      %c0_13 = arith.constant 0 : index
      %13 = vector.load %arg5[%c0_12, %c0_13] : memref<1x128xf32, #tpu.memory_space<vmem>>, vector<1x128xf32>
      %14 = vector.broadcast %13 : vector<1x128xf32> to vector<256x128xf32>
      %15 = arith.addf %12, %14 : vector<256x128xf32>
      %c0_14 = arith.constant 0 : index
      %c0_15 = arith.constant 0 : index
      %16 = vector.load %arg6[%c0_14, %c0_15] : memref<256x128xbf16, #tpu.memory_space<vmem>>, vector<256x128xbf16>
      %17 = arith.extf %16 : vector<256x128xbf16> to vector<256x128xf32>
      %18 = arith.addf %15, %17 : vector<256x128xf32>
      %cst_16 = arith.constant 0.000000e+00 : f32
      %19 = vector.broadcast %cst_16 : f32 to vector<256x128xf32>
      %20 = arith.maximumf %18, %19 : vector<256x128xf32>
      %21 = arith.truncf %20 : vector<256x128xf32> to vector<256x128xbf16>
      %c0_17 = arith.constant 0 : index
      %c0_18 = arith.constant 0 : index
      %22 = vector.load %arg7[%c0_17, %c0_18] : memref<256x128xbf16, #tpu.memory_space<vmem>>, vector<256x128xbf16>
      tpu.vector_store %arg7[%c0_17, %c0_18], %21 {strides = array<i32>} : memref<256x128xbf16, #tpu.memory_space<vmem>>, vector<256x128xbf16>,
    } else {
    }
    return
  }
  func.func @transform_0(%arg0: i32, %arg1: i32, %arg2: i32) -> (i32, i32) {
    %c0_i32 = arith.constant 0 : i32
    return %arg0, %arg2 : i32, i32
  }
  func.func @transform_1(%arg0: i32, %arg1: i32, %arg2: i32) -> (i32, i32) {
    %c0_i32 = arith.constant 0 : i32
    return %arg2, %arg1 : i32, i32
  }
  func.func @transform_2(%arg0: i32, %arg1: i32, %arg2: i32) -> (i32, i32) {
    %c0_i32 = arith.constant 0 : i32
    %c0_i32_0 = arith.constant 0 : i32
    return %c0_i32, %arg1 : i32, i32
  }
  func.func @transform_3(%arg0: i32, %arg1: i32, %arg2: i32) -> (i32, i32) {
    %c0_i32 = arith.constant 0 : i32
    return %arg0, %arg1 : i32, i32
  }
  func.func @transform_4(%arg0: i32, %arg1: i32, %arg2: i32) -> (i32, i32) {
    %c0_i32 = arith.constant 0 : i32
    return %arg0, %arg1 : i32, i32
  }
}

module attributes {stable_mosaic.version = 11 : i64} {
  func.func @_conv3x3_kernel(%arg0: i32, %arg1: i32, %arg2: memref<1x1x378x128xbf16, #tpu.memory_space<vmem>>, %arg3: memref<9x128x128xbf16, #tpu.memory_space<vmem>>, %arg4: memref<1x128xf32, #tpu.memory_space<vmem>>, %arg5: memref<1x16x16x128xbf16, #tpu.memory_space<vmem>>, %arg6: memref<288x128xf32, #tpu.memory_space<vmem>>) attributes {dimension_semantics = [#tpu.dimension_semantics<parallel>, #tpu.dimension_semantics<parallel>], iteration_bounds = array<i64: 2, 1>, scalar_prefetch = 0 : i64, scratch_operands = 1 : i64, tpu.core_type = #tpu.core_type<tc>, window_params = [{transform_indices = @transform_0, window_bounds = array<i64: 1, 1, 378, 128>}, {transform_indices = @transform_1, window_bounds = array<i64: 9, 128, 128>}, {transform_indices = @transform_2, window_bounds = array<i64: 1, 128>}, {transform_indices = @transform_3, window_bounds = array<i64: 1, 16, 16, 128>}]} {
    %c0 = arith.constant 0 : index
    %c0_0 = arith.constant 0 : index
    %c0_1 = arith.constant 0 : index
    %c0_2 = arith.constant 0 : index
    %0 = vector.load %arg2[%c0, %c0_0, %c0_1, %c0_2] : memref<1x1x378x128xbf16, #tpu.memory_space<vmem>>, vector<1x1x288x128xbf16>
    %1 = vector.shape_cast %0 : vector<1x1x288x128xbf16> to vector<288x128xbf16>
    %c0_3 = arith.constant 0 : index
    %c0_4 = arith.constant 0 : index
    %c0_5 = arith.constant 0 : index
    %2 = vector.load %arg3[%c0_3, %c0_4, %c0_5] : memref<9x128x128xbf16, #tpu.memory_space<vmem>>, vector<1x128x128xbf16>
    %3 = vector.shape_cast %2 : vector<1x128x128xbf16> to vector<128x128xbf16>
    %cst = arith.constant dense<0.000000e+00> : vector<288x128xf32>
    %4 = tpu.matmul %1, %3, %cst {dimension_numbers = #tpu.dot_dimension_numbers<[1], [0], [0], [1], [0, 0, 1, 1], [], []>} : vector<288x128xbf16>, vector<128x128xbf16>, vector<288x128xf32> -> vector<288x128xf32>
    %c0_6 = arith.constant 0 : index
    %c0_7 = arith.constant 0 : index
    %5 = vector.load %arg6[%c0_6, %c0_7] : memref<288x128xf32, #tpu.memory_space<vmem>>, vector<288x128xf32>
    tpu.vector_store %arg6[%c0_6, %c0_7], %4 {strides = array<i32>} : memref<288x128xf32, #tpu.memory_space<vmem>>, vector<288x128xf32>,
    %c0_8 = arith.constant 0 : index
    %c0_9 = arith.constant 0 : index
    %c1 = arith.constant 1 : index
    %c0_10 = arith.constant 0 : index
    %6 = vector.load %arg2[%c0_8, %c0_9, %c1, %c0_10] : memref<1x1x378x128xbf16, #tpu.memory_space<vmem>>, vector<1x1x288x128xbf16>
    %7 = vector.shape_cast %6 : vector<1x1x288x128xbf16> to vector<288x128xbf16>
    %c1_11 = arith.constant 1 : index
    %c0_12 = arith.constant 0 : index
    %c0_13 = arith.constant 0 : index
    %8 = vector.load %arg3[%c1_11, %c0_12, %c0_13] : memref<9x128x128xbf16, #tpu.memory_space<vmem>>, vector<1x128x128xbf16>
    %9 = vector.shape_cast %8 : vector<1x128x128xbf16> to vector<128x128xbf16>
    %cst_14 = arith.constant dense<0.000000e+00> : vector<288x128xf32>
    %10 = tpu.matmul %7, %9, %cst_14 {dimension_numbers = #tpu.dot_dimension_numbers<[1], [0], [0], [1], [0, 0, 1, 1], [], []>} : vector<288x128xbf16>, vector<128x128xbf16>, vector<288x128xf32> -> vector<288x128xf32>
    %c0_15 = arith.constant 0 : index
    %c0_16 = arith.constant 0 : index
    %11 = vector.load %arg6[%c0_15, %c0_16] : memref<288x128xf32, #tpu.memory_space<vmem>>, vector<288x128xf32>
    %12 = arith.addf %11, %10 : vector<288x128xf32>
    %c0_17 = arith.constant 0 : index
    %c0_18 = arith.constant 0 : index
    %13 = vector.load %arg6[%c0_17, %c0_18] : memref<288x128xf32, #tpu.memory_space<vmem>>, vector<288x128xf32>
    tpu.vector_store %arg6[%c0_17, %c0_18], %12 {strides = array<i32>} : memref<288x128xf32, #tpu.memory_space<vmem>>, vector<288x128xf32>,
    %c0_19 = arith.constant 0 : index
    %c0_20 = arith.constant 0 : index
    %c2 = arith.constant 2 : index
    %c0_21 = arith.constant 0 : index
    %14 = vector.load %arg2[%c0_19, %c0_20, %c2, %c0_21] : memref<1x1x378x128xbf16, #tpu.memory_space<vmem>>, vector<1x1x288x128xbf16>
    %15 = vector.shape_cast %14 : vector<1x1x288x128xbf16> to vector<288x128xbf16>
    %c2_22 = arith.constant 2 : index
    %c0_23 = arith.constant 0 : index
    %c0_24 = arith.constant 0 : index
    %16 = vector.load %arg3[%c2_22, %c0_23, %c0_24] : memref<9x128x128xbf16, #tpu.memory_space<vmem>>, vector<1x128x128xbf16>
    %17 = vector.shape_cast %16 : vector<1x128x128xbf16> to vector<128x128xbf16>
    %cst_25 = arith.constant dense<0.000000e+00> : vector<288x128xf32>
    %18 = tpu.matmul %15, %17, %cst_25 {dimension_numbers = #tpu.dot_dimension_numbers<[1], [0], [0], [1], [0, 0, 1, 1], [], []>} : vector<288x128xbf16>, vector<128x128xbf16>, vector<288x128xf32> -> vector<288x128xf32>
    %c0_26 = arith.constant 0 : index
    %c0_27 = arith.constant 0 : index
    %19 = vector.load %arg6[%c0_26, %c0_27] : memref<288x128xf32, #tpu.memory_space<vmem>>, vector<288x128xf32>
    %20 = arith.addf %19, %18 : vector<288x128xf32>
    %c0_28 = arith.constant 0 : index
    %c0_29 = arith.constant 0 : index
    %21 = vector.load %arg6[%c0_28, %c0_29] : memref<288x128xf32, #tpu.memory_space<vmem>>, vector<288x128xf32>
    tpu.vector_store %arg6[%c0_28, %c0_29], %20 {strides = array<i32>} : memref<288x128xf32, #tpu.memory_space<vmem>>, vector<288x128xf32>,
    %c0_30 = arith.constant 0 : index
    %c0_31 = arith.constant 0 : index
    %c18 = arith.constant 18 : index
    %c0_32 = arith.constant 0 : index
    %22 = vector.load %arg2[%c0_30, %c0_31, %c18, %c0_32] : memref<1x1x378x128xbf16, #tpu.memory_space<vmem>>, vector<1x1x288x128xbf16>
    %23 = vector.shape_cast %22 : vector<1x1x288x128xbf16> to vector<288x128xbf16>
    %c3 = arith.constant 3 : index
    %c0_33 = arith.constant 0 : index
    %c0_34 = arith.constant 0 : index
    %24 = vector.load %arg3[%c3, %c0_33, %c0_34] : memref<9x128x128xbf16, #tpu.memory_space<vmem>>, vector<1x128x128xbf16>
    %25 = vector.shape_cast %24 : vector<1x128x128xbf16> to vector<128x128xbf16>
    %cst_35 = arith.constant dense<0.000000e+00> : vector<288x128xf32>
    %26 = tpu.matmul %23, %25, %cst_35 {dimension_numbers = #tpu.dot_dimension_numbers<[1], [0], [0], [1], [0, 0, 1, 1], [], []>} : vector<288x128xbf16>, vector<128x128xbf16>, vector<288x128xf32> -> vector<288x128xf32>
    %c0_36 = arith.constant 0 : index
    %c0_37 = arith.constant 0 : index
    %27 = vector.load %arg6[%c0_36, %c0_37] : memref<288x128xf32, #tpu.memory_space<vmem>>, vector<288x128xf32>
    %28 = arith.addf %27, %26 : vector<288x128xf32>
    %c0_38 = arith.constant 0 : index
    %c0_39 = arith.constant 0 : index
    %29 = vector.load %arg6[%c0_38, %c0_39] : memref<288x128xf32, #tpu.memory_space<vmem>>, vector<288x128xf32>
    tpu.vector_store %arg6[%c0_38, %c0_39], %28 {strides = array<i32>} : memref<288x128xf32, #tpu.memory_space<vmem>>, vector<288x128xf32>,
    %c0_40 = arith.constant 0 : index
    %c0_41 = arith.constant 0 : index
    %c19 = arith.constant 19 : index
    %c0_42 = arith.constant 0 : index
    %30 = vector.load %arg2[%c0_40, %c0_41, %c19, %c0_42] : memref<1x1x378x128xbf16, #tpu.memory_space<vmem>>, vector<1x1x288x128xbf16>
    %31 = vector.shape_cast %30 : vector<1x1x288x128xbf16> to vector<288x128xbf16>
    %c4 = arith.constant 4 : index
    %c0_43 = arith.constant 0 : index
    %c0_44 = arith.constant 0 : index
    %32 = vector.load %arg3[%c4, %c0_43, %c0_44] : memref<9x128x128xbf16, #tpu.memory_space<vmem>>, vector<1x128x128xbf16>
    %33 = vector.shape_cast %32 : vector<1x128x128xbf16> to vector<128x128xbf16>
    %cst_45 = arith.constant dense<0.000000e+00> : vector<288x128xf32>
    %34 = tpu.matmul %31, %33, %cst_45 {dimension_numbers = #tpu.dot_dimension_numbers<[1], [0], [0], [1], [0, 0, 1, 1], [], []>} : vector<288x128xbf16>, vector<128x128xbf16>, vector<288x128xf32> -> vector<288x128xf32>
    %c0_46 = arith.constant 0 : index
    %c0_47 = arith.constant 0 : index
    %35 = vector.load %arg6[%c0_46, %c0_47] : memref<288x128xf32, #tpu.memory_space<vmem>>, vector<288x128xf32>
    %36 = arith.addf %35, %34 : vector<288x128xf32>
    %c0_48 = arith.constant 0 : index
    %c0_49 = arith.constant 0 : index
    %37 = vector.load %arg6[%c0_48, %c0_49] : memref<288x128xf32, #tpu.memory_space<vmem>>, vector<288x128xf32>
    tpu.vector_store %arg6[%c0_48, %c0_49], %36 {strides = array<i32>} : memref<288x128xf32, #tpu.memory_space<vmem>>, vector<288x128xf32>,
    %c0_50 = arith.constant 0 : index
    %c0_51 = arith.constant 0 : index
    %c20 = arith.constant 20 : index
    %c0_52 = arith.constant 0 : index
    %38 = vector.load %arg2[%c0_50, %c0_51, %c20, %c0_52] : memref<1x1x378x128xbf16, #tpu.memory_space<vmem>>, vector<1x1x288x128xbf16>
    %39 = vector.shape_cast %38 : vector<1x1x288x128xbf16> to vector<288x128xbf16>
    %c5 = arith.constant 5 : index
    %c0_53 = arith.constant 0 : index
    %c0_54 = arith.constant 0 : index
    %40 = vector.load %arg3[%c5, %c0_53, %c0_54] : memref<9x128x128xbf16, #tpu.memory_space<vmem>>, vector<1x128x128xbf16>
    %41 = vector.shape_cast %40 : vector<1x128x128xbf16> to vector<128x128xbf16>
    %cst_55 = arith.constant dense<0.000000e+00> : vector<288x128xf32>
    %42 = tpu.matmul %39, %41, %cst_55 {dimension_numbers = #tpu.dot_dimension_numbers<[1], [0], [0], [1], [0, 0, 1, 1], [], []>} : vector<288x128xbf16>, vector<128x128xbf16>, vector<288x128xf32> -> vector<288x128xf32>
    %c0_56 = arith.constant 0 : index
    %c0_57 = arith.constant 0 : index
    %43 = vector.load %arg6[%c0_56, %c0_57] : memref<288x128xf32, #tpu.memory_space<vmem>>, vector<288x128xf32>
    %44 = arith.addf %43, %42 : vector<288x128xf32>
    %c0_58 = arith.constant 0 : index
    %c0_59 = arith.constant 0 : index
    %45 = vector.load %arg6[%c0_58, %c0_59] : memref<288x128xf32, #tpu.memory_space<vmem>>, vector<288x128xf32>
    tpu.vector_store %arg6[%c0_58, %c0_59], %44 {strides = array<i32>} : memref<288x128xf32, #tpu.memory_space<vmem>>, vector<288x128xf32>,
    %c0_60 = arith.constant 0 : index
    %c0_61 = arith.constant 0 : index
    %c36 = arith.constant 36 : index
    %c0_62 = arith.constant 0 : index
    %46 = vector.load %arg2[%c0_60, %c0_61, %c36, %c0_62] : memref<1x1x378x128xbf16, #tpu.memory_space<vmem>>, vector<1x1x288x128xbf16>
    %47 = vector.shape_cast %46 : vector<1x1x288x128xbf16> to vector<288x128xbf16>
    %c6 = arith.constant 6 : index
    %c0_63 = arith.constant 0 : index
    %c0_64 = arith.constant 0 : index
    %48 = vector.load %arg3[%c6, %c0_63, %c0_64] : memref<9x128x128xbf16, #tpu.memory_space<vmem>>, vector<1x128x128xbf16>
    %49 = vector.shape_cast %48 : vector<1x128x128xbf16> to vector<128x128xbf16>
    %cst_65 = arith.constant dense<0.000000e+00> : vector<288x128xf32>
    %50 = tpu.matmul %47, %49, %cst_65 {dimension_numbers = #tpu.dot_dimension_numbers<[1], [0], [0], [1], [0, 0, 1, 1], [], []>} : vector<288x128xbf16>, vector<128x128xbf16>, vector<288x128xf32> -> vector<288x128xf32>
    %c0_66 = arith.constant 0 : index
    %c0_67 = arith.constant 0 : index
    %51 = vector.load %arg6[%c0_66, %c0_67] : memref<288x128xf32, #tpu.memory_space<vmem>>, vector<288x128xf32>
    %52 = arith.addf %51, %50 : vector<288x128xf32>
    %c0_68 = arith.constant 0 : index
    %c0_69 = arith.constant 0 : index
    %53 = vector.load %arg6[%c0_68, %c0_69] : memref<288x128xf32, #tpu.memory_space<vmem>>, vector<288x128xf32>
    tpu.vector_store %arg6[%c0_68, %c0_69], %52 {strides = array<i32>} : memref<288x128xf32, #tpu.memory_space<vmem>>, vector<288x128xf32>,
    %c0_70 = arith.constant 0 : index
    %c0_71 = arith.constant 0 : index
    %c37 = arith.constant 37 : index
    %c0_72 = arith.constant 0 : index
    %54 = vector.load %arg2[%c0_70, %c0_71, %c37, %c0_72] : memref<1x1x378x128xbf16, #tpu.memory_space<vmem>>, vector<1x1x288x128xbf16>
    %55 = vector.shape_cast %54 : vector<1x1x288x128xbf16> to vector<288x128xbf16>
    %c7 = arith.constant 7 : index
    %c0_73 = arith.constant 0 : index
    %c0_74 = arith.constant 0 : index
    %56 = vector.load %arg3[%c7, %c0_73, %c0_74] : memref<9x128x128xbf16, #tpu.memory_space<vmem>>, vector<1x128x128xbf16>
    %57 = vector.shape_cast %56 : vector<1x128x128xbf16> to vector<128x128xbf16>
    %cst_75 = arith.constant dense<0.000000e+00> : vector<288x128xf32>
    %58 = tpu.matmul %55, %57, %cst_75 {dimension_numbers = #tpu.dot_dimension_numbers<[1], [0], [0], [1], [0, 0, 1, 1], [], []>} : vector<288x128xbf16>, vector<128x128xbf16>, vector<288x128xf32> -> vector<288x128xf32>
    %c0_76 = arith.constant 0 : index
    %c0_77 = arith.constant 0 : index
    %59 = vector.load %arg6[%c0_76, %c0_77] : memref<288x128xf32, #tpu.memory_space<vmem>>, vector<288x128xf32>
    %60 = arith.addf %59, %58 : vector<288x128xf32>
    %c0_78 = arith.constant 0 : index
    %c0_79 = arith.constant 0 : index
    %61 = vector.load %arg6[%c0_78, %c0_79] : memref<288x128xf32, #tpu.memory_space<vmem>>, vector<288x128xf32>
    tpu.vector_store %arg6[%c0_78, %c0_79], %60 {strides = array<i32>} : memref<288x128xf32, #tpu.memory_space<vmem>>, vector<288x128xf32>,
    %c0_80 = arith.constant 0 : index
    %c0_81 = arith.constant 0 : index
    %c38 = arith.constant 38 : index
    %c0_82 = arith.constant 0 : index
    %62 = vector.load %arg2[%c0_80, %c0_81, %c38, %c0_82] : memref<1x1x378x128xbf16, #tpu.memory_space<vmem>>, vector<1x1x288x128xbf16>
    %63 = vector.shape_cast %62 : vector<1x1x288x128xbf16> to vector<288x128xbf16>
    %c8 = arith.constant 8 : index
    %c0_83 = arith.constant 0 : index
    %c0_84 = arith.constant 0 : index
    %64 = vector.load %arg3[%c8, %c0_83, %c0_84] : memref<9x128x128xbf16, #tpu.memory_space<vmem>>, vector<1x128x128xbf16>
    %65 = vector.shape_cast %64 : vector<1x128x128xbf16> to vector<128x128xbf16>
    %cst_85 = arith.constant dense<0.000000e+00> : vector<288x128xf32>
    %66 = tpu.matmul %63, %65, %cst_85 {dimension_numbers = #tpu.dot_dimension_numbers<[1], [0], [0], [1], [0, 0, 1, 1], [], []>} : vector<288x128xbf16>, vector<128x128xbf16>, vector<288x128xf32> -> vector<288x128xf32>
    %c0_86 = arith.constant 0 : index
    %c0_87 = arith.constant 0 : index
    %67 = vector.load %arg6[%c0_86, %c0_87] : memref<288x128xf32, #tpu.memory_space<vmem>>, vector<288x128xf32>
    %68 = arith.addf %67, %66 : vector<288x128xf32>
    %c0_88 = arith.constant 0 : index
    %c0_89 = arith.constant 0 : index
    %69 = vector.load %arg6[%c0_88, %c0_89] : memref<288x128xf32, #tpu.memory_space<vmem>>, vector<288x128xf32>
    tpu.vector_store %arg6[%c0_88, %c0_89], %68 {strides = array<i32>} : memref<288x128xf32, #tpu.memory_space<vmem>>, vector<288x128xf32>,
    %c0_90 = arith.constant 0 : index
    %c0_91 = arith.constant 0 : index
    %70 = vector.load %arg4[%c0_90, %c0_91] : memref<1x128xf32, #tpu.memory_space<vmem>>, vector<1x128xf32>
    %c0_92 = arith.constant 0 : index
    %c0_93 = arith.constant 0 : index
    %71 = vector.load %arg6[%c0_92, %c0_93] : memref<288x128xf32, #tpu.memory_space<vmem>>, vector<16x128xf32>
    %72 = vector.broadcast %70 : vector<1x128xf32> to vector<16x128xf32>
    %73 = arith.addf %71, %72 : vector<16x128xf32>
    %cst_94 = arith.constant 0.000000e+00 : f32
    %74 = vector.broadcast %cst_94 : f32 to vector<16x128xf32>
    %75 = arith.maximumf %73, %74 : vector<16x128xf32>
    %76 = arith.truncf %75 : vector<16x128xf32> to vector<16x128xbf16>
    %c0_95 = arith.constant 0 : index
    %c0_96 = arith.constant 0 : index
    %c0_97 = arith.constant 0 : index
    %c0_98 = arith.constant 0 : index
    %77 = vector.load %arg5[%c0_95, %c0_96, %c0_97, %c0_98] : memref<1x16x16x128xbf16, #tpu.memory_space<vmem>>, vector<1x1x16x128xbf16>
    %78 = vector.shape_cast %77 : vector<1x1x16x128xbf16> to vector<16x128xbf16>
    %79 = vector.shape_cast %76 : vector<16x128xbf16> to vector<1x1x16x128xbf16>
    tpu.vector_store %arg5[%c0_95, %c0_96, %c0_97, %c0_98], %79 {strides = array<i32>} : memref<1x16x16x128xbf16, #tpu.memory_space<vmem>>, vector<1x1x16x128xbf16>,
    %c18_99 = arith.constant 18 : index
    %c0_100 = arith.constant 0 : index
    %80 = vector.load %arg6[%c18_99, %c0_100] : memref<288x128xf32, #tpu.memory_space<vmem>>, vector<16x128xf32>
    %81 = vector.broadcast %70 : vector<1x128xf32> to vector<16x128xf32>
    %82 = arith.addf %80, %81 : vector<16x128xf32>
    %cst_101 = arith.constant 0.000000e+00 : f32
    %83 = vector.broadcast %cst_101 : f32 to vector<16x128xf32>
    %84 = arith.maximumf %82, %83 : vector<16x128xf32>
    %85 = arith.truncf %84 : vector<16x128xf32> to vector<16x128xbf16>
    %c0_102 = arith.constant 0 : index
    %c1_103 = arith.constant 1 : index
    %c0_104 = arith.constant 0 : index
    %c0_105 = arith.constant 0 : index
    %86 = vector.load %arg5[%c0_102, %c1_103, %c0_104, %c0_105] : memref<1x16x16x128xbf16, #tpu.memory_space<vmem>>, vector<1x1x16x128xbf16>
    %87 = vector.shape_cast %86 : vector<1x1x16x128xbf16> to vector<16x128xbf16>
    %88 = vector.shape_cast %85 : vector<16x128xbf16> to vector<1x1x16x128xbf16>
    tpu.vector_store %arg5[%c0_102, %c1_103, %c0_104, %c0_105], %88 {strides = array<i32>} : memref<1x16x16x128xbf16, #tpu.memory_space<vmem>>, vector<1x1x16x128xbf16>,
    %c36_106 = arith.constant 36 : index
    %c0_107 = arith.constant 0 : index
    %89 = vector.load %arg6[%c36_106, %c0_107] : memref<288x128xf32, #tpu.memory_space<vmem>>, vector<16x128xf32>
    %90 = vector.broadcast %70 : vector<1x128xf32> to vector<16x128xf32>
    %91 = arith.addf %89, %90 : vector<16x128xf32>
    %cst_108 = arith.constant 0.000000e+00 : f32
    %92 = vector.broadcast %cst_108 : f32 to vector<16x128xf32>
    %93 = arith.maximumf %91, %92 : vector<16x128xf32>
    %94 = arith.truncf %93 : vector<16x128xf32> to vector<16x128xbf16>
    %c0_109 = arith.constant 0 : index
    %c2_110 = arith.constant 2 : index
    %c0_111 = arith.constant 0 : index
    %c0_112 = arith.constant 0 : index
    %95 = vector.load %arg5[%c0_109, %c2_110, %c0_111, %c0_112] : memref<1x16x16x128xbf16, #tpu.memory_space<vmem>>, vector<1x1x16x128xbf16>
    %96 = vector.shape_cast %95 : vector<1x1x16x128xbf16> to vector<16x128xbf16>
    %97 = vector.shape_cast %94 : vector<16x128xbf16> to vector<1x1x16x128xbf16>
    tpu.vector_store %arg5[%c0_109, %c2_110, %c0_111, %c0_112], %97 {strides = array<i32>} : memref<1x16x16x128xbf16, #tpu.memory_space<vmem>>, vector<1x1x16x128xbf16>,
    %c54 = arith.constant 54 : index
    %c0_113 = arith.constant 0 : index
    %98 = vector.load %arg6[%c54, %c0_113] : memref<288x128xf32, #tpu.memory_space<vmem>>, vector<16x128xf32>
    %99 = vector.broadcast %70 : vector<1x128xf32> to vector<16x128xf32>
    %100 = arith.addf %98, %99 : vector<16x128xf32>
    %cst_114 = arith.constant 0.000000e+00 : f32
    %101 = vector.broadcast %cst_114 : f32 to vector<16x128xf32>
    %102 = arith.maximumf %100, %101 : vector<16x128xf32>
    %103 = arith.truncf %102 : vector<16x128xf32> to vector<16x128xbf16>
    %c0_115 = arith.constant 0 : index
    %c3_116 = arith.constant 3 : index
    %c0_117 = arith.constant 0 : index
    %c0_118 = arith.constant 0 : index
    %104 = vector.load %arg5[%c0_115, %c3_116, %c0_117, %c0_118] : memref<1x16x16x128xbf16, #tpu.memory_space<vmem>>, vector<1x1x16x128xbf16>
    %105 = vector.shape_cast %104 : vector<1x1x16x128xbf16> to vector<16x128xbf16>
    %106 = vector.shape_cast %103 : vector<16x128xbf16> to vector<1x1x16x128xbf16>
    tpu.vector_store %arg5[%c0_115, %c3_116, %c0_117, %c0_118], %106 {strides = array<i32>} : memref<1x16x16x128xbf16, #tpu.memory_space<vmem>>, vector<1x1x16x128xbf16>,
    %c72 = arith.constant 72 : index
    %c0_119 = arith.constant 0 : index
    %107 = vector.load %arg6[%c72, %c0_119] : memref<288x128xf32, #tpu.memory_space<vmem>>, vector<16x128xf32>
    %108 = vector.broadcast %70 : vector<1x128xf32> to vector<16x128xf32>
    %109 = arith.addf %107, %108 : vector<16x128xf32>
    %cst_120 = arith.constant 0.000000e+00 : f32
    %110 = vector.broadcast %cst_120 : f32 to vector<16x128xf32>
    %111 = arith.maximumf %109, %110 : vector<16x128xf32>
    %112 = arith.truncf %111 : vector<16x128xf32> to vector<16x128xbf16>
    %c0_121 = arith.constant 0 : index
    %c4_122 = arith.constant 4 : index
    %c0_123 = arith.constant 0 : index
    %c0_124 = arith.constant 0 : index
    %113 = vector.load %arg5[%c0_121, %c4_122, %c0_123, %c0_124] : memref<1x16x16x128xbf16, #tpu.memory_space<vmem>>, vector<1x1x16x128xbf16>
    %114 = vector.shape_cast %113 : vector<1x1x16x128xbf16> to vector<16x128xbf16>
    %115 = vector.shape_cast %112 : vector<16x128xbf16> to vector<1x1x16x128xbf16>
    tpu.vector_store %arg5[%c0_121, %c4_122, %c0_123, %c0_124], %115 {strides = array<i32>} : memref<1x16x16x128xbf16, #tpu.memory_space<vmem>>, vector<1x1x16x128xbf16>,
    %c90 = arith.constant 90 : index
    %c0_125 = arith.constant 0 : index
    %116 = vector.load %arg6[%c90, %c0_125] : memref<288x128xf32, #tpu.memory_space<vmem>>, vector<16x128xf32>
    %117 = vector.broadcast %70 : vector<1x128xf32> to vector<16x128xf32>
    %118 = arith.addf %116, %117 : vector<16x128xf32>
    %cst_126 = arith.constant 0.000000e+00 : f32
    %119 = vector.broadcast %cst_126 : f32 to vector<16x128xf32>
    %120 = arith.maximumf %118, %119 : vector<16x128xf32>
    %121 = arith.truncf %120 : vector<16x128xf32> to vector<16x128xbf16>
    %c0_127 = arith.constant 0 : index
    %c5_128 = arith.constant 5 : index
    %c0_129 = arith.constant 0 : index
    %c0_130 = arith.constant 0 : index
    %122 = vector.load %arg5[%c0_127, %c5_128, %c0_129, %c0_130] : memref<1x16x16x128xbf16, #tpu.memory_space<vmem>>, vector<1x1x16x128xbf16>
    %123 = vector.shape_cast %122 : vector<1x1x16x128xbf16> to vector<16x128xbf16>
    %124 = vector.shape_cast %121 : vector<16x128xbf16> to vector<1x1x16x128xbf16>
    tpu.vector_store %arg5[%c0_127, %c5_128, %c0_129, %c0_130], %124 {strides = array<i32>} : memref<1x16x16x128xbf16, #tpu.memory_space<vmem>>, vector<1x1x16x128xbf16>,
    %c108 = arith.constant 108 : index
    %c0_131 = arith.constant 0 : index
    %125 = vector.load %arg6[%c108, %c0_131] : memref<288x128xf32, #tpu.memory_space<vmem>>, vector<16x128xf32>
    %126 = vector.broadcast %70 : vector<1x128xf32> to vector<16x128xf32>
    %127 = arith.addf %125, %126 : vector<16x128xf32>
    %cst_132 = arith.constant 0.000000e+00 : f32
    %128 = vector.broadcast %cst_132 : f32 to vector<16x128xf32>
    %129 = arith.maximumf %127, %128 : vector<16x128xf32>
    %130 = arith.truncf %129 : vector<16x128xf32> to vector<16x128xbf16>
    %c0_133 = arith.constant 0 : index
    %c6_134 = arith.constant 6 : index
    %c0_135 = arith.constant 0 : index
    %c0_136 = arith.constant 0 : index
    %131 = vector.load %arg5[%c0_133, %c6_134, %c0_135, %c0_136] : memref<1x16x16x128xbf16, #tpu.memory_space<vmem>>, vector<1x1x16x128xbf16>
    %132 = vector.shape_cast %131 : vector<1x1x16x128xbf16> to vector<16x128xbf16>
    %133 = vector.shape_cast %130 : vector<16x128xbf16> to vector<1x1x16x128xbf16>
    tpu.vector_store %arg5[%c0_133, %c6_134, %c0_135, %c0_136], %133 {strides = array<i32>} : memref<1x16x16x128xbf16, #tpu.memory_space<vmem>>, vector<1x1x16x128xbf16>,
    %c126 = arith.constant 126 : index
    %c0_137 = arith.constant 0 : index
    %134 = vector.load %arg6[%c126, %c0_137] : memref<288x128xf32, #tpu.memory_space<vmem>>, vector<16x128xf32>
    %135 = vector.broadcast %70 : vector<1x128xf32> to vector<16x128xf32>
    %136 = arith.addf %134, %135 : vector<16x128xf32>
    %cst_138 = arith.constant 0.000000e+00 : f32
    %137 = vector.broadcast %cst_138 : f32 to vector<16x128xf32>
    %138 = arith.maximumf %136, %137 : vector<16x128xf32>
    %139 = arith.truncf %138 : vector<16x128xf32> to vector<16x128xbf16>
    %c0_139 = arith.constant 0 : index
    %c7_140 = arith.constant 7 : index
    %c0_141 = arith.constant 0 : index
    %c0_142 = arith.constant 0 : index
    %140 = vector.load %arg5[%c0_139, %c7_140, %c0_141, %c0_142] : memref<1x16x16x128xbf16, #tpu.memory_space<vmem>>, vector<1x1x16x128xbf16>
    %141 = vector.shape_cast %140 : vector<1x1x16x128xbf16> to vector<16x128xbf16>
    %142 = vector.shape_cast %139 : vector<16x128xbf16> to vector<1x1x16x128xbf16>
    tpu.vector_store %arg5[%c0_139, %c7_140, %c0_141, %c0_142], %142 {strides = array<i32>} : memref<1x16x16x128xbf16, #tpu.memory_space<vmem>>, vector<1x1x16x128xbf16>,
    %c144 = arith.constant 144 : index
    %c0_143 = arith.constant 0 : index
    %143 = vector.load %arg6[%c144, %c0_143] : memref<288x128xf32, #tpu.memory_space<vmem>>, vector<16x128xf32>
    %144 = vector.broadcast %70 : vector<1x128xf32> to vector<16x128xf32>
    %145 = arith.addf %143, %144 : vector<16x128xf32>
    %cst_144 = arith.constant 0.000000e+00 : f32
    %146 = vector.broadcast %cst_144 : f32 to vector<16x128xf32>
    %147 = arith.maximumf %145, %146 : vector<16x128xf32>
    %148 = arith.truncf %147 : vector<16x128xf32> to vector<16x128xbf16>
    %c0_145 = arith.constant 0 : index
    %c8_146 = arith.constant 8 : index
    %c0_147 = arith.constant 0 : index
    %c0_148 = arith.constant 0 : index
    %149 = vector.load %arg5[%c0_145, %c8_146, %c0_147, %c0_148] : memref<1x16x16x128xbf16, #tpu.memory_space<vmem>>, vector<1x1x16x128xbf16>
    %150 = vector.shape_cast %149 : vector<1x1x16x128xbf16> to vector<16x128xbf16>
    %151 = vector.shape_cast %148 : vector<16x128xbf16> to vector<1x1x16x128xbf16>
    tpu.vector_store %arg5[%c0_145, %c8_146, %c0_147, %c0_148], %151 {strides = array<i32>} : memref<1x16x16x128xbf16, #tpu.memory_space<vmem>>, vector<1x1x16x128xbf16>,
    %c162 = arith.constant 162 : index
    %c0_149 = arith.constant 0 : index
    %152 = vector.load %arg6[%c162, %c0_149] : memref<288x128xf32, #tpu.memory_space<vmem>>, vector<16x128xf32>
    %153 = vector.broadcast %70 : vector<1x128xf32> to vector<16x128xf32>
    %154 = arith.addf %152, %153 : vector<16x128xf32>
    %cst_150 = arith.constant 0.000000e+00 : f32
    %155 = vector.broadcast %cst_150 : f32 to vector<16x128xf32>
    %156 = arith.maximumf %154, %155 : vector<16x128xf32>
    %157 = arith.truncf %156 : vector<16x128xf32> to vector<16x128xbf16>
    %c0_151 = arith.constant 0 : index
    %c9 = arith.constant 9 : index
    %c0_152 = arith.constant 0 : index
    %c0_153 = arith.constant 0 : index
    %158 = vector.load %arg5[%c0_151, %c9, %c0_152, %c0_153] : memref<1x16x16x128xbf16, #tpu.memory_space<vmem>>, vector<1x1x16x128xbf16>
    %159 = vector.shape_cast %158 : vector<1x1x16x128xbf16> to vector<16x128xbf16>
    %160 = vector.shape_cast %157 : vector<16x128xbf16> to vector<1x1x16x128xbf16>
    tpu.vector_store %arg5[%c0_151, %c9, %c0_152, %c0_153], %160 {strides = array<i32>} : memref<1x16x16x128xbf16, #tpu.memory_space<vmem>>, vector<1x1x16x128xbf16>,
    %c180 = arith.constant 180 : index
    %c0_154 = arith.constant 0 : index
    %161 = vector.load %arg6[%c180, %c0_154] : memref<288x128xf32, #tpu.memory_space<vmem>>, vector<16x128xf32>
    %162 = vector.broadcast %70 : vector<1x128xf32> to vector<16x128xf32>
    %163 = arith.addf %161, %162 : vector<16x128xf32>
    %cst_155 = arith.constant 0.000000e+00 : f32
    %164 = vector.broadcast %cst_155 : f32 to vector<16x128xf32>
    %165 = arith.maximumf %163, %164 : vector<16x128xf32>
    %166 = arith.truncf %165 : vector<16x128xf32> to vector<16x128xbf16>
    %c0_156 = arith.constant 0 : index
    %c10 = arith.constant 10 : index
    %c0_157 = arith.constant 0 : index
    %c0_158 = arith.constant 0 : index
    %167 = vector.load %arg5[%c0_156, %c10, %c0_157, %c0_158] : memref<1x16x16x128xbf16, #tpu.memory_space<vmem>>, vector<1x1x16x128xbf16>
    %168 = vector.shape_cast %167 : vector<1x1x16x128xbf16> to vector<16x128xbf16>
    %169 = vector.shape_cast %166 : vector<16x128xbf16> to vector<1x1x16x128xbf16>
    tpu.vector_store %arg5[%c0_156, %c10, %c0_157, %c0_158], %169 {strides = array<i32>} : memref<1x16x16x128xbf16, #tpu.memory_space<vmem>>, vector<1x1x16x128xbf16>,
    %c198 = arith.constant 198 : index
    %c0_159 = arith.constant 0 : index
    %170 = vector.load %arg6[%c198, %c0_159] : memref<288x128xf32, #tpu.memory_space<vmem>>, vector<16x128xf32>
    %171 = vector.broadcast %70 : vector<1x128xf32> to vector<16x128xf32>
    %172 = arith.addf %170, %171 : vector<16x128xf32>
    %cst_160 = arith.constant 0.000000e+00 : f32
    %173 = vector.broadcast %cst_160 : f32 to vector<16x128xf32>
    %174 = arith.maximumf %172, %173 : vector<16x128xf32>
    %175 = arith.truncf %174 : vector<16x128xf32> to vector<16x128xbf16>
    %c0_161 = arith.constant 0 : index
    %c11 = arith.constant 11 : index
    %c0_162 = arith.constant 0 : index
    %c0_163 = arith.constant 0 : index
    %176 = vector.load %arg5[%c0_161, %c11, %c0_162, %c0_163] : memref<1x16x16x128xbf16, #tpu.memory_space<vmem>>, vector<1x1x16x128xbf16>
    %177 = vector.shape_cast %176 : vector<1x1x16x128xbf16> to vector<16x128xbf16>
    %178 = vector.shape_cast %175 : vector<16x128xbf16> to vector<1x1x16x128xbf16>
    tpu.vector_store %arg5[%c0_161, %c11, %c0_162, %c0_163], %178 {strides = array<i32>} : memref<1x16x16x128xbf16, #tpu.memory_space<vmem>>, vector<1x1x16x128xbf16>,
    %c216 = arith.constant 216 : index
    %c0_164 = arith.constant 0 : index
    %179 = vector.load %arg6[%c216, %c0_164] : memref<288x128xf32, #tpu.memory_space<vmem>>, vector<16x128xf32>
    %180 = vector.broadcast %70 : vector<1x128xf32> to vector<16x128xf32>
    %181 = arith.addf %179, %180 : vector<16x128xf32>
    %cst_165 = arith.constant 0.000000e+00 : f32
    %182 = vector.broadcast %cst_165 : f32 to vector<16x128xf32>
    %183 = arith.maximumf %181, %182 : vector<16x128xf32>
    %184 = arith.truncf %183 : vector<16x128xf32> to vector<16x128xbf16>
    %c0_166 = arith.constant 0 : index
    %c12 = arith.constant 12 : index
    %c0_167 = arith.constant 0 : index
    %c0_168 = arith.constant 0 : index
    %185 = vector.load %arg5[%c0_166, %c12, %c0_167, %c0_168] : memref<1x16x16x128xbf16, #tpu.memory_space<vmem>>, vector<1x1x16x128xbf16>
    %186 = vector.shape_cast %185 : vector<1x1x16x128xbf16> to vector<16x128xbf16>
    %187 = vector.shape_cast %184 : vector<16x128xbf16> to vector<1x1x16x128xbf16>
    tpu.vector_store %arg5[%c0_166, %c12, %c0_167, %c0_168], %187 {strides = array<i32>} : memref<1x16x16x128xbf16, #tpu.memory_space<vmem>>, vector<1x1x16x128xbf16>,
    %c234 = arith.constant 234 : index
    %c0_169 = arith.constant 0 : index
    %188 = vector.load %arg6[%c234, %c0_169] : memref<288x128xf32, #tpu.memory_space<vmem>>, vector<16x128xf32>
    %189 = vector.broadcast %70 : vector<1x128xf32> to vector<16x128xf32>
    %190 = arith.addf %188, %189 : vector<16x128xf32>
    %cst_170 = arith.constant 0.000000e+00 : f32
    %191 = vector.broadcast %cst_170 : f32 to vector<16x128xf32>
    %192 = arith.maximumf %190, %191 : vector<16x128xf32>
    %193 = arith.truncf %192 : vector<16x128xf32> to vector<16x128xbf16>
    %c0_171 = arith.constant 0 : index
    %c13 = arith.constant 13 : index
    %c0_172 = arith.constant 0 : index
    %c0_173 = arith.constant 0 : index
    %194 = vector.load %arg5[%c0_171, %c13, %c0_172, %c0_173] : memref<1x16x16x128xbf16, #tpu.memory_space<vmem>>, vector<1x1x16x128xbf16>
    %195 = vector.shape_cast %194 : vector<1x1x16x128xbf16> to vector<16x128xbf16>
    %196 = vector.shape_cast %193 : vector<16x128xbf16> to vector<1x1x16x128xbf16>
    tpu.vector_store %arg5[%c0_171, %c13, %c0_172, %c0_173], %196 {strides = array<i32>} : memref<1x16x16x128xbf16, #tpu.memory_space<vmem>>, vector<1x1x16x128xbf16>,
    %c252 = arith.constant 252 : index
    %c0_174 = arith.constant 0 : index
    %197 = vector.load %arg6[%c252, %c0_174] : memref<288x128xf32, #tpu.memory_space<vmem>>, vector<16x128xf32>
    %198 = vector.broadcast %70 : vector<1x128xf32> to vector<16x128xf32>
    %199 = arith.addf %197, %198 : vector<16x128xf32>
    %cst_175 = arith.constant 0.000000e+00 : f32
    %200 = vector.broadcast %cst_175 : f32 to vector<16x128xf32>
    %201 = arith.maximumf %199, %200 : vector<16x128xf32>
    %202 = arith.truncf %201 : vector<16x128xf32> to vector<16x128xbf16>
    %c0_176 = arith.constant 0 : index
    %c14 = arith.constant 14 : index
    %c0_177 = arith.constant 0 : index
    %c0_178 = arith.constant 0 : index
    %203 = vector.load %arg5[%c0_176, %c14, %c0_177, %c0_178] : memref<1x16x16x128xbf16, #tpu.memory_space<vmem>>, vector<1x1x16x128xbf16>
    %204 = vector.shape_cast %203 : vector<1x1x16x128xbf16> to vector<16x128xbf16>
    %205 = vector.shape_cast %202 : vector<16x128xbf16> to vector<1x1x16x128xbf16>
    tpu.vector_store %arg5[%c0_176, %c14, %c0_177, %c0_178], %205 {strides = array<i32>} : memref<1x16x16x128xbf16, #tpu.memory_space<vmem>>, vector<1x1x16x128xbf16>,
    %c270 = arith.constant 270 : index
    %c0_179 = arith.constant 0 : index
    %206 = vector.load %arg6[%c270, %c0_179] : memref<288x128xf32, #tpu.memory_space<vmem>>, vector<16x128xf32>
    %207 = vector.broadcast %70 : vector<1x128xf32> to vector<16x128xf32>
    %208 = arith.addf %206, %207 : vector<16x128xf32>
    %cst_180 = arith.constant 0.000000e+00 : f32
    %209 = vector.broadcast %cst_180 : f32 to vector<16x128xf32>
    %210 = arith.maximumf %208, %209 : vector<16x128xf32>
    %211 = arith.truncf %210 : vector<16x128xf32> to vector<16x128xbf16>
    %c0_181 = arith.constant 0 : index
    %c15 = arith.constant 15 : index
    %c0_182 = arith.constant 0 : index
    %c0_183 = arith.constant 0 : index
    %212 = vector.load %arg5[%c0_181, %c15, %c0_182, %c0_183] : memref<1x16x16x128xbf16, #tpu.memory_space<vmem>>, vector<1x1x16x128xbf16>
    %213 = vector.shape_cast %212 : vector<1x1x16x128xbf16> to vector<16x128xbf16>
    %214 = vector.shape_cast %211 : vector<16x128xbf16> to vector<1x1x16x128xbf16>
    tpu.vector_store %arg5[%c0_181, %c15, %c0_182, %c0_183], %214 {strides = array<i32>} : memref<1x16x16x128xbf16, #tpu.memory_space<vmem>>, vector<1x1x16x128xbf16>,
    return
  }
  func.func @transform_0(%arg0: i32, %arg1: i32) -> (i32, i32, i32, i32) {
    %c0_i32 = arith.constant 0 : i32
    %c0_i32_0 = arith.constant 0 : i32
    %c0_i32_1 = arith.constant 0 : i32
    %c0_i32_2 = arith.constant 0 : i32
    return %arg0, %c0_i32, %c0_i32_0, %c0_i32_1 : i32, i32, i32, i32
  }
  func.func @transform_1(%arg0: i32, %arg1: i32) -> (i32, i32, i32) {
    %c0_i32 = arith.constant 0 : i32
    %c0_i32_0 = arith.constant 0 : i32
    %c0_i32_1 = arith.constant 0 : i32
    return %c0_i32, %c0_i32_0, %arg1 : i32, i32, i32
  }
  func.func @transform_2(%arg0: i32, %arg1: i32) -> (i32, i32) {
    %c0_i32 = arith.constant 0 : i32
    %c0_i32_0 = arith.constant 0 : i32
    return %c0_i32, %arg1 : i32, i32
  }
  func.func @transform_3(%arg0: i32, %arg1: i32) -> (i32, i32, i32, i32) {
    %c0_i32 = arith.constant 0 : i32
    %c0_i32_0 = arith.constant 0 : i32
    %c0_i32_1 = arith.constant 0 : i32
    return %arg0, %c0_i32, %c0_i32_0, %arg1 : i32, i32, i32, i32
  }
}

</mosaic_0001>

<llo_original>
// kernel: bottleneck_forward.6
$region0: #{bottleneck_forward.6}
  #allocation0 [shape = 'u32[]', space=smem, size = 0x4, offset = 0x4, fixed_abs, tag = 'smem constant byte address 0x4 - core index']
  #allocation1 [shape = 'u32[72,128]{1,0:T(1,128)}', space=vmem, size = 0x9000, scoped, tag = 'internal scratch']
  #allocation2 [shape = 'f32[256,128]{1,0:T(8,128)}', space=vmem, size = 0x20000, scoped, tag = 'scratch operand']
  %s0 = inlined_call_operand.vmem [shape: bf16[512,128], index: 0, kind: input, shape index: {}]
  %s1 = inlined_call_operand.vmem [shape: bf16[128,128], index: 1, kind: input, shape index: {}]
  %s2 = inlined_call_operand.vmem [shape: f32[1,128], index: 2, kind: input, shape index: {}]
  %s3 = inlined_call_operand.vmem [shape: bf16[512,128], index: 3, kind: output, shape index: {}]
  %s4 = sld [smem:[#allocation0]]
  $region53: #{bottleneck_forward.6} parent=0
    _
  %s6 = ssub.s32 1, %s4
  %s7 = scalar_select 0, %s6, %s4
  loop: start=0, step=1, limit=4
  $region2: #{bottleneck_forward.6} parent=0 // loop_pre_header
    _
  $region3: #{bottleneck_forward.6} parent=0 // loop_header
    %s9 = sphi 0, %s13
    %p10 = scmp.ge.s32.totalorder %s9, 4
    %s16 = sphi 0, %s35
    %s17 = sphi 0, %s31
    %s18 = sphi 0, %s27
    %s19 = sphi 0, %s16
    %s20 = sphi 0, %s17
    %s21 = sphi 0, %s18
    %s22 = sphi 0, %s19
    %s23 = sphi 0, %s20
    %s24 = sphi 0, %s21
    %s40 = sphi 0, %s42
    %s43 = sphi 0, %s40
    %s44 = sphi 0, %s43
    %s60 = sphi 0, %s44
    %s68 = sphi 0, %s70
    %s71 = sphi 0, %s68
    %s72 = sphi 0, %s71
    %s88 = sphi 0, %s72
    %s94 = sphi 0, %s96
    %s97 = sphi 0, %s94
    %s98 = sphi 0, %s97
    %s114 = sphi 0, %s98
    %s122 = sphi 0, %s124
    %s125 = sphi 0, %s122
    %s126 = sphi 0, %s125
    %s142 = sphi 0, %s126
  $region4: #{bottleneck_forward.6} parent=0 // loop_header_branch
    %12 = sbr.rel (%p10) target = $region8
  $region5: #{bottleneck_forward.6} parent=0 // loop_body
    %s14 = ssub.s32 %s9, 1
    %s15 = ssub.s32 %s9, 2
    %s25 = sadd.s32 1, %s18
    %p26 = scmp.ge.s32.totalorder %s25, 1
    %s27 = scalar_select %p26, 0, %s25
    %s28 = sadd.s32 1, %s17
    %s29 = scalar_select %p26, %s28, %s17
    %p30 = scmp.ge.s32.totalorder %s29, 1
    %s31 = scalar_select %p30, 0, %s29
    %s32 = sadd.s32 1, %s16
    %s33 = scalar_select %p30, %s32, %s16
    %p34 = scmp.ge.s32.totalorder %s33, 2
    %s35 = scalar_select %p34, 0, %s33
    %s36 = ssub.s32 %s16, %s35
    %s37 = ssub.s32 %s18, %s27
    %s38 = sor.u32 %s36, %s37
    %p39 = scmp.eq.s32.totalorder %s38, 0
    %s41 = sadd.s32 %s40, 1
    %s42 = scalar_select %p39, %s40, %s41
    %p45 = pneg %p39
    %p46 = scmp.eq.s32.totalorder %s9, 1
    %p47 = por %p45, %p46
    %p48 = scmp.ne.s32.totalorder %s40, %s43
    %p49 = scmp.eq.s32.totalorder %s9, 0
    %p50 = por %p48, %p49
    %p51 = scmp.ne.s32.totalorder %s40, %s43
    %p52 = scmp.eq.s32.totalorder %s14, 1
    %p53 = por %p51, %p52
    %p54 = scmp.ne.s32.totalorder %s43, %s44
    %p55 = scmp.eq.s32.totalorder %s14, 0
    %p56 = por %p54, %p55
    %p57 = scmp.ne.s32.totalorder %s43, %s44
    %p58 = scmp.eq.s32.totalorder %s15, 1
    %p59 = por %p57, %p58
    %p61 = scmp.ne.s32.totalorder %s44, %s60
    %p62 = scmp.eq.s32.totalorder %s15, 0
    %p63 = por %p61, %p62
    %s64 = ssub.s32 %s18, %s27
    %s65 = ssub.s32 %s17, %s31
    %s66 = sor.u32 %s64, %s65
    %p67 = scmp.eq.s32.totalorder %s66, 0
    %s69 = sadd.s32 %s68, 1
    %s70 = scalar_select %p67, %s68, %s69
    %p73 = pneg %p67
    %p74 = scmp.eq.s32.totalorder %s9, 1
    %p75 = por %p73, %p74
    %p76 = scmp.ne.s32.totalorder %s68, %s71
    %p77 = scmp.eq.s32.totalorder %s9, 0
    %p78 = por %p76, %p77
    %p79 = scmp.ne.s32.totalorder %s68, %s71
    %p80 = scmp.eq.s32.totalorder %s14, 1
    %p81 = por %p79, %p80
    %p82 = scmp.ne.s32.totalorder %s71, %s72
    %p83 = scmp.eq.s32.totalorder %s14, 0
    %p84 = por %p82, %p83
    %p85 = scmp.ne.s32.totalorder %s71, %s72
    %p86 = scmp.eq.s32.totalorder %s15, 1
    %p87 = por %p85, %p86
    %p89 = scmp.ne.s32.totalorder %s72, %s88
    %p90 = scmp.eq.s32.totalorder %s15, 0
    %p91 = por %p89, %p90
    %s92 = ssub.s32 %s17, %s31
    %p93 = scmp.eq.s32.totalorder %s92, 0
    %s95 = sadd.s32 %s94, 1
    %s96 = scalar_select %p93, %s94, %s95
    %p99 = pneg %p93
    %p100 = scmp.eq.s32.totalorder %s9, 1
    %p101 = por %p99, %p100
    %p102 = scmp.ne.s32.totalorder %s94, %s97
    %p103 = scmp.eq.s32.totalorder %s9, 0
    %p104 = por %p102, %p103
    %p105 = scmp.ne.s32.totalorder %s94, %s97
    %p106 = scmp.eq.s32.totalorder %s14, 1
    %p107 = por %p105, %p106
    %p108 = scmp.ne.s32.totalorder %s97, %s98
    %p109 = scmp.eq.s32.totalorder %s14, 0
    %p110 = por %p108, %p109
    %p111 = scmp.ne.s32.totalorder %s97, %s98
    %p112 = scmp.eq.s32.totalorder %s15, 1
    %p113 = por %p111, %p112
    %p115 = scmp.ne.s32.totalorder %s98, %s114
    %p116 = scmp.eq.s32.totalorder %s15, 0
    %p117 = por %p115, %p116
    %s118 = ssub.s32 %s16, %s35
    %s119 = ssub.s32 %s17, %s31
    %s120 = sor.u32 %s118, %s119
    %p121 = scmp.eq.s32.totalorder %s120, 0
    %s123 = sadd.s32 %s122, 1
    %s124 = scalar_select %p121, %s122, %s123
    %p127 = pneg %p121
    %p128 = scmp.eq.s32.totalorder %s9, 1
    %p129 = por %p127, %p128
    %p130 = scmp.ne.s32.totalorder %s122, %s125
    %p131 = scmp.eq.s32.totalorder %s9, 0
    %p132 = por %p130, %p131
    %p133 = scmp.ne.s32.totalorder %s122, %s125
    %p134 = scmp.eq.s32.totalorder %s14, 1
    %p135 = por %p133, %p134
    %p136 = scmp.ne.s32.totalorder %s125, %s126
    %p137 = scmp.eq.s32.totalorder %s14, 0
    %p138 = por %p136, %p137
    %p139 = scmp.ne.s32.totalorder %s125, %s126
    %p140 = scmp.eq.s32.totalorder %s15, 1
    %p141 = por %p139, %p140
    %p143 = scmp.ne.s32.totalorder %s126, %s142
    %p144 = scmp.eq.s32.totalorder %s15, 0
    %p145 = por %p143, %p144
    %p146 = scmp.le.s32.totalorder 1, %s9
    %p147 = scmp.lt.s32.totalorder %s9, 3
    %p148 = pnand %p146, %p147
    %p149 = pneg %p148
    // Predicated region
    $region9: #{bottleneck_forward.6} parent=5 // pred_check
      _
    $region10: #{bottleneck_forward.6} parent=5 // pred_check_branch
      %151 = sbr.rel (%p148) target = $region12
    $region11: #{bottleneck_forward.6} parent=5 // pred_region
      %s152 = ssub.s32 %s9, 1
      // Predicated region
      $region13: #{bottleneck_forward.6} parent=11 // pred_check
        %p153 = pneg %p84
      $region14: #{bottleneck_forward.6} parent=11 // pred_check_branch
        %155 = sbr.rel (%p153) target = $region16
      $region15: #{bottleneck_forward.6} parent=11 // pred_region
        %s156 = smul.u32 16, %s21
        %p157 = scmp.lt.s32.totalorder %s156, 15
        %s158 = scalar_select %p157, %s156, 15
        %p159 = scmp.lt.s32.totalorder %s20, 0
        %s160 = scalar_select %p159, %s20, 0
        %s161 = sadd.s32 %s160, %s158
        %s162 = smul.addr %s161, 4
        %s163 = scalar_lea.vmem %s1, %s162
        %s164 = smul.u32 16, %s21
      $region16: #{bottleneck_forward.6} parent=11 // pred_fallthru
        _
      // Predicated region
      $region17: #{bottleneck_forward.6} parent=11 // pred_check
        %p165 = pneg %p110
      $region18: #{bottleneck_forward.6} parent=11 // pred_check_branch
        %167 = sbr.rel (%p165) target = $region20
      $region19: #{bottleneck_forward.6} parent=11 // pred_region
        %p168 = scmp.lt.s32.totalorder %s20, 0
        %s169 = scalar_select %p168, %s20, 0
        %s170 = scalar_lea.vmem %s2, %s169
      $region20: #{bottleneck_forward.6} parent=11 // pred_fallthru
        _
    $region12: #{bottleneck_forward.6} parent=5 // pred_fallthru
      _
    %p171 = scmp.lt.s32.totalorder %s9, 2
    // Predicated region
    $region21: #{bottleneck_forward.6} parent=5 // pred_check
      %p172 = pneg %p171
    $region22: #{bottleneck_forward.6} parent=5 // pred_check_branch
      %174 = sbr.rel (%p172) target = $region24
    $region23: #{bottleneck_forward.6} parent=5 // pred_region
      // Predicated region
      $region25: #{bottleneck_forward.6} parent=23 // pred_check
        %p175 = pneg %p50
      $region26: #{bottleneck_forward.6} parent=23 // pred_check_branch
        %177 = sbr.rel (%p175) target = $region28
      $region27: #{bottleneck_forward.6} parent=23 // pred_region
        %s178 = smul.u32 32, %s16
        %p179 = scmp.lt.s32.totalorder %s178, 63
        %s180 = scalar_select %p179, %s178, 63
        %p181 = scmp.lt.s32.totalorder %s18, 0
        %s182 = scalar_select %p181, %s18, 0
        %s183 = sadd.s32 %s182, %s180
        %s184 = smul.addr %s183, 4
        %s185 = scalar_lea.vmem %s0, %s184
        %s186 = smul.u32 32, %s16
      $region28: #{bottleneck_forward.6} parent=23 // pred_fallthru
        _
    $region24: #{bottleneck_forward.6} parent=5 // pred_fallthru
      _
    %p187 = scmp.le.s32.totalorder 1, %s9
    %p188 = scmp.lt.s32.totalorder %s9, 3
    %p189 = pnand %p187, %p188
    %p190 = pneg %p189
    // Predicated region
    $region29: #{bottleneck_forward.6} parent=5 // pred_check
      _
    $region30: #{bottleneck_forward.6} parent=5 // pred_check_branch
      %192 = sbr.rel (%p189) target = $region32
    $region31: #{bottleneck_forward.6} parent=5 // pred_region
      %s193 = ssub.s32 %s9, 1
      %s194 = smul.u32 32, %s19
      %p195 = scmp.lt.s32.totalorder %s194, 63
      %s196 = scalar_select %p195, %s194, 63
      %p197 = scmp.lt.s32.totalorder %s21, 0
      %s198 = scalar_select %p197, %s21, 0
      %s199 = sadd.s32 %s198, %s196
      %s200 = smul.addr %s199, 4
      %s201 = scalar_lea.vmem %s0, %s200
      %p202 = pneg %p56
      %p203 = pneg %p53
      %s204 = smul.u32 16, %s21
      %p205 = scmp.lt.s32.totalorder %s204, 15
      %s206 = scalar_select %p205, %s204, 15
      %p207 = scmp.lt.s32.totalorder %s20, 0
      %s208 = scalar_select %p207, %s20, 0
      %s209 = sadd.s32 %s208, %s206
      %s210 = smul.addr %s209, 4
      %s211 = scalar_lea.vmem %s1, %s210
      %p212 = pneg %p84
      %p213 = pneg %p81
      %p214 = scmp.lt.s32.totalorder %s20, 0
      %s215 = scalar_select %p214, %s20, 0
      %s216 = scalar_lea.vmem %s2, %s215
      %p217 = pneg %p110
      %p218 = pneg %p107
      %p219 = pneg %p138
      %p220 = pneg %p135
      %s221 = smul.u32 32, %s19
      %p222 = scmp.lt.s32.totalorder %s221, 63
      %s223 = scalar_select %p222, %s221, 63
      %p224 = scmp.lt.s32.totalorder %s20, 0
      %s225 = scalar_select %p224, %s20, 0
      %s226 = sadd.s32 %s225, %s223
      %s227 = smul.addr %s226, 4
      %s228 = scalar_lea.vmem %s3, %s227
      %s229 = smul.u32 32, %s19
      %p230 = scmp.lt.s32.totalorder %s229, 63
      %s231 = scalar_select %p230, %s229, 63
      %p232 = scmp.lt.s32.totalorder %s21, 0
      %s233 = scalar_select %p232, %s21, 0
      %s234 = sadd.s32 %s233, %s231
      %s235 = smul.addr %s234, 4
      %s236 = scalar_lea.vmem %s0, %s235
      %s237 = smul.u32 32, %s19
      %s238 = smul.u32 16, %s21
      %p239 = scmp.lt.s32.totalorder %s238, 15
      %s240 = scalar_select %p239, %s238, 15
      %p241 = scmp.lt.s32.totalorder %s20, 0
      %s242 = scalar_select %p241, %s20, 0
      %s243 = sadd.s32 %s242, %s240
      %s244 = smul.addr %s243, 4
      %s245 = scalar_lea.vmem %s1, %s244
      %s246 = smul.u32 16, %s21
      %p247 = scmp.lt.s32.totalorder %s20, 0
      %s248 = scalar_select %p247, %s20, 0
      %s249 = scalar_lea.vmem %s2, %s248
      %s250 = smul.u32 32, %s19
      %p251 = scmp.lt.s32.totalorder %s250, 63
      %s252 = scalar_select %p251, %s250, 63
      %p253 = scmp.lt.s32.totalorder %s20, 0
      %s254 = scalar_select %p253, %s20, 0
      %s255 = sadd.s32 %s254, %s252
      %s256 = smul.addr %s255, 4
      %s257 = scalar_lea.vmem %s3, %s256
      %s258 = smul.u32 32, %s19
      %p259 = scmp.eq.s32.totalorder %s21, 0
      // Predicated region
      $region33: #{bottleneck_forward.6} parent=31 // pred_check
        %p260 = pneg %p259
      $region34: #{bottleneck_forward.6} parent=31 // pred_check_branch
        %262 = sbr.rel (%p260) target = $region36
      $region35: #{bottleneck_forward.6} parent=31 // pred_region
        %263 = vst [vmem:[#allocation2] sm:$0xff] 0.0
        %264 = vst [vmem:[#allocation2 + $0x8] sm:$0xff] 0.0
        %265 = vst [vmem:[#allocation2 + $0x10] sm:$0xff] 0.0
        %266 = vst [vmem:[#allocation2 + $0x18] sm:$0xff] 0.0
        %267 = vst [vmem:[#allocation2 + $0x20] sm:$0xff] 0.0
        %268 = vst [vmem:[#allocation2 + $0x28] sm:$0xff] 0.0
        %269 = vst [vmem:[#allocation2 + $0x30] sm:$0xff] 0.0
        %270 = vst [vmem:[#allocation2 + $0x38] sm:$0xff] 0.0
        %271 = vst [vmem:[#allocation2 + $0x40] sm:$0xff] 0.0
        %272 = vst [vmem:[#allocation2 + $0x48] sm:$0xff] 0.0
        %273 = vst [vmem:[#allocation2 + $0x50] sm:$0xff] 0.0
        %274 = vst [vmem:[#allocation2 + $0x58] sm:$0xff] 0.0
        %275 = vst [vmem:[#allocation2 + $0x60] sm:$0xff] 0.0
        %276 = vst [vmem:[#allocation2 + $0x68] sm:$0xff] 0.0
        %277 = vst [vmem:[#allocation2 + $0x70] sm:$0xff] 0.0
        %278 = vst [vmem:[#allocation2 + $0x78] sm:$0xff] 0.0
        %279 = vst [vmem:[#allocation2 + $0x80] sm:$0xff] 0.0
        %280 = vst [vmem:[#allocation2 + $0x88] sm:$0xff] 0.0
        %281 = vst [vmem:[#allocation2 + $0x90] sm:$0xff] 0.0
        %282 = vst [vmem:[#allocation2 + $0x98] sm:$0xff] 0.0
        %283 = vst [vmem:[#allocation2 + $0xa0] sm:$0xff] 0.0
        %284 = vst [vmem:[#allocation2 + $0xa8] sm:$0xff] 0.0
        %285 = vst [vmem:[#allocation2 + $0xb0] sm:$0xff] 0.0
        %286 = vst [vmem:[#allocation2 + $0xb8] sm:$0xff] 0.0
        %287 = vst [vmem:[#allocation2 + $0xc0] sm:$0xff] 0.0
        %288 = vst [vmem:[#allocation2 + $0xc8] sm:$0xff] 0.0
        %289 = vst [vmem:[#allocation2 + $0xd0] sm:$0xff] 0.0
        %290 = vst [vmem:[#allocation2 + $0xd8] sm:$0xff] 0.0
        %291 = vst [vmem:[#allocation2 + $0xe0] sm:$0xff] 0.0
        %292 = vst [vmem:[#allocation2 + $0xe8] sm:$0xff] 0.0
        %293 = vst [vmem:[#allocation2 + $0xf0] sm:$0xff] 0.0
        %294 = vst [vmem:[#allocation2 + $0xf8] sm:$0xff] 0.0
      $region36: #{bottleneck_forward.6} parent=31 // pred_fallthru
        _
      %v295 = vld [vmem:[#allocation2] sm:$0xff]
      %v296 = vld [vmem:[#allocation2 + $0x8] sm:$0xff]
      %v297 = vld [vmem:[#allocation2 + $0x10] sm:$0xff]
      %v298 = vld [vmem:[#allocation2 + $0x18] sm:$0xff]
      %v299 = vld [vmem:[#allocation2 + $0x20] sm:$0xff]
      %v300 = vld [vmem:[#allocation2 + $0x28] sm:$0xff]
      %v301 = vld [vmem:[#allocation2 + $0x30] sm:$0xff]
      %v302 = vld [vmem:[#allocation2 + $0x38] sm:$0xff]
      %v303 = vld [vmem:[#allocation2 + $0x40] sm:$0xff]
      %v304 = vld [vmem:[#allocation2 + $0x48] sm:$0xff]
      %v305 = vld [vmem:[#allocation2 + $0x50] sm:$0xff]
      %v306 = vld [vmem:[#allocation2 + $0x58] sm:$0xff]
      %v307 = vld [vmem:[#allocation2 + $0x60] sm:$0xff]
      %v308 = vld [vmem:[#allocation2 + $0x68] sm:$0xff]
      %v309 = vld [vmem:[#allocation2 + $0x70] sm:$0xff]
      %v310 = vld [vmem:[#allocation2 + $0x78] sm:$0xff]
      %v311 = vld [vmem:[#allocation2 + $0x80] sm:$0xff]
      %v312 = vld [vmem:[#allocation2 + $0x88] sm:$0xff]
      %v313 = vld [vmem:[#allocation2 + $0x90] sm:$0xff]
      %v314 = vld [vmem:[#allocation2 + $0x98] sm:$0xff]
      %v315 = vld [vmem:[#allocation2 + $0xa0] sm:$0xff]
      %v316 = vld [vmem:[#allocation2 + $0xa8] sm:$0xff]
      %v317 = vld [vmem:[#allocation2 + $0xb0] sm:$0xff]
      %v318 = vld [vmem:[#allocation2 + $0xb8] sm:$0xff]
      %v319 = vld [vmem:[#allocation2 + $0xc0] sm:$0xff]
      %v320 = vld [vmem:[#allocation2 + $0xc8] sm:$0xff]
      %v321 = vld [vmem:[#allocation2 + $0xd0] sm:$0xff]
      %v322 = vld [vmem:[#allocation2 + $0xd8] sm:$0xff]
      %v323 = vld [vmem:[#allocation2 + $0xe0] sm:$0xff]
      %v324 = vld [vmem:[#allocation2 + $0xe8] sm:$0xff]
      %v325 = vld [vmem:[#allocation2 + $0xf0] sm:$0xff]
      %v326 = vld [vmem:[#allocation2 + $0xf8] sm:$0xff]
      %v327 = vld [vmem:[%s236] sm:$0xf]
      %v328 = vld [vmem:[%s236 + $0x4] sm:$0xf]
      %v329 = vld [vmem:[%s236 + $0x8] sm:$0xf]
      %v330 = vld [vmem:[%s236 + $0xc] sm:$0xf]
      %v331 = vld [vmem:[%s236 + $0x10] sm:$0xf]
      %v332 = vld [vmem:[%s236 + $0x14] sm:$0xf]
      %v333 = vld [vmem:[%s236 + $0x18] sm:$0xf]
      %v334 = vld [vmem:[%s236 + $0x1c] sm:$0xf]
      %v335 = vld [vmem:[%s236 + $0x20] sm:$0xf]
      %v336 = vld [vmem:[%s236 + $0x24] sm:$0xf]
      %v337 = vld [vmem:[%s236 + $0x28] sm:$0xf]
      %v338 = vld [vmem:[%s236 + $0x2c] sm:$0xf]
      %v339 = vld [vmem:[%s236 + $0x30] sm:$0xf]
      %v340 = vld [vmem:[%s236 + $0x34] sm:$0xf]
      %v341 = vld [vmem:[%s236 + $0x38] sm:$0xf]
      %v342 = vld [vmem:[%s236 + $0x3c] sm:$0xf]
      %v343 = vld [vmem:[%s236 + $0x40] sm:$0xf]
      %v344 = vld [vmem:[%s236 + $0x44] sm:$0xf]
      %v345 = vld [vmem:[%s236 + $0x48] sm:$0xf]
      %v346 = vld [vmem:[%s236 + $0x4c] sm:$0xf]
      %v347 = vld [vmem:[%s236 + $0x50] sm:$0xf]
      %v348 = vld [vmem:[%s236 + $0x54] sm:$0xf]
      %v349 = vld [vmem:[%s236 + $0x58] sm:$0xf]
      %v350 = vld [vmem:[%s236 + $0x5c] sm:$0xf]
      %v351 = vld [vmem:[%s236 + $0x60] sm:$0xf]
      %v352 = vld [vmem:[%s236 + $0x64] sm:$0xf]
      %v353 = vld [vmem:[%s236 + $0x68] sm:$0xf]
      %v354 = vld [vmem:[%s236 + $0x6c] sm:$0xf]
      %v355 = vld [vmem:[%s236 + $0x70] sm:$0xf]
      %v356 = vld [vmem:[%s236 + $0x74] sm:$0xf]
      %v357 = vld [vmem:[%s236 + $0x78] sm:$0xf]
      %v358 = vld [vmem:[%s236 + $0x7c] sm:$0xf]
      %v359 = vld [vmem:[%s245] sm:$0xf]
      %v360 = vld [vmem:[%s245 + $0x4] sm:$0xf]
      %v361 = vld [vmem:[%s245 + $0x8] sm:$0xf]
      %v362 = vld [vmem:[%s245 + $0xc] sm:$0xf]
      %v363 = vld [vmem:[%s245 + $0x10] sm:$0xf]
      %v364 = vld [vmem:[%s245 + $0x14] sm:$0xf]
      %v365 = vld [vmem:[%s245 + $0x18] sm:$0xf]
      %v366 = vld [vmem:[%s245 + $0x1c] sm:$0xf]
      %v367 = vld [vmem:[%s245 + $0x20] sm:$0xf]
      %v368 = vld [vmem:[%s245 + $0x24] sm:$0xf]
      %v369 = vld [vmem:[%s245 + $0x28] sm:$0xf]
      %v370 = vld [vmem:[%s245 + $0x2c] sm:$0xf]
      %v371 = vld [vmem:[%s245 + $0x30] sm:$0xf]
      %v372 = vld [vmem:[%s245 + $0x34] sm:$0xf]
      %v373 = vld [vmem:[%s245 + $0x38] sm:$0xf]
      %v374 = vld [vmem:[%s245 + $0x3c] sm:$0xf]
      %v407 = vunpack.c.l.b16 %v327
      %v408 = vunpack.c.l.b16 %v328
      %v409 = vunpack.c.l.b16 %v329
      %v410 = vunpack.c.l.b16 %v330
      %v411 = vunpack.c.l.b16 %v331
      %v412 = vunpack.c.l.b16 %v332
      %v413 = vunpack.c.l.b16 %v333
      %v414 = vunpack.c.l.b16 %v334
      %v415 = vunpack.c.l.b16 %v335
      %v416 = vunpack.c.l.b16 %v336
      %v417 = vunpack.c.l.b16 %v337
      %v418 = vunpack.c.l.b16 %v338
      %v419 = vunpack.c.l.b16 %v339
      %v420 = vunpack.c.l.b16 %v340
      %v421 = vunpack.c.l.b16 %v341
      %v422 = vunpack.c.l.b16 %v342
      %v423 = vunpack.c.l.b16 %v343
      %v424 = vunpack.c.l.b16 %v344
      %v425 = vunpack.c.l.b16 %v345
      %v426 = vunpack.c.l.b16 %v346
      %v427 = vunpack.c.l.b16 %v347
      %v428 = vunpack.c.l.b16 %v348
      %v429 = vunpack.c.l.b16 %v349
      %v430 = vunpack.c.l.b16 %v350
      %v431 = vunpack.c.l.b16 %v351
      %v432 = vunpack.c.l.b16 %v352
      %v433 = vunpack.c.l.b16 %v353
      %v434 = vunpack.c.l.b16 %v354
      %v435 = vunpack.c.l.b16 %v355
      %v436 = vunpack.c.l.b16 %v356
      %v437 = vunpack.c.l.b16 %v357
      %v438 = vunpack.c.l.b16 %v358
      %v439 = vpack.c.b16 %v408, %v407
      %v440 = vpack.c.b16 %v410, %v409
      %v441 = vpack.c.b16 %v412, %v411
      %v442 = vpack.c.b16 %v414, %v413
      %v443 = vpack.c.b16 %v416, %v415
      %v444 = vpack.c.b16 %v418, %v417
      %v445 = vpack.c.b16 %v420, %v419
      %v446 = vpack.c.b16 %v422, %v421
      %v447 = vpack.c.b16 %v424, %v423
      %v448 = vpack.c.b16 %v426, %v425
      %v449 = vpack.c.b16 %v428, %v427
      %v450 = vpack.c.b16 %v430, %v429
      %v451 = vpack.c.b16 %v432, %v431
      %v452 = vpack.c.b16 %v434, %v433
      %v453 = vpack.c.b16 %v436, %v435
      %v454 = vpack.c.b16 %v438, %v437
      %v487 = vunpack.c.l.b16 %v359
      %v488 = vunpack.c.l.b16 %v360
      %v489 = vunpack.c.l.b16 %v361
      %v490 = vunpack.c.l.b16 %v362
      %v491 = vunpack.c.l.b16 %v363
      %v492 = vunpack.c.l.b16 %v364
      %v493 = vunpack.c.l.b16 %v365
      %v494 = vunpack.c.l.b16 %v366
      %v495 = vunpack.c.l.b16 %v367
      %v496 = vunpack.c.l.b16 %v368
      %v497 = vunpack.c.l.b16 %v369
      %v498 = vunpack.c.l.b16 %v370
      %v499 = vunpack.c.l.b16 %v371
      %v500 = vunpack.c.l.b16 %v372
      %v501 = vunpack.c.l.b16 %v373
      %v502 = vunpack.c.l.b16 %v374
      %v503 = vpack.c.b16 %v488, %v487
      %v504 = vpack.c.b16 %v490, %v489
      %v505 = vpack.c.b16 %v492, %v491
      %v506 = vpack.c.b16 %v494, %v493
      %v507 = vpack.c.b16 %v496, %v495
      %v508 = vpack.c.b16 %v498, %v497
      %v509 = vpack.c.b16 %v500, %v499
      %v510 = vpack.c.b16 %v502, %v501
      %519 = vmatpush.bf16.msra.mxu0 %v510
      %520 = vmatpush.bf16.msra.mxu0 %v509
      %521 = vmatpush.bf16.msra.mxu0 %v508
      %522 = vmatpush.bf16.msra.mxu0 %v507
      %523 = vmatpush.bf16.msra.mxu0 %v506
      %524 = vmatpush.bf16.msra.mxu0 %v505
      %525 = vmatpush.bf16.msra.mxu0 %v504
      %526 = vmatpush.bf16.msra.mxu0 %v503
      %527 = vmatmul.bf16.gmra.mxu0 %v439
      %v528 = vpop.f32.mrf.mxu0
      %v529 = vadd.f32 0.0, %v528
      %v530 = vpop.f32.mrf.mxu0
      %v531 = vadd.f32 0.0, %v530
      %532 = vmatmul.bf16.gmra.mxu0 %v440
      %v533 = vpop.f32.mrf.mxu0
      %v534 = vadd.f32 0.0, %v533
      %v535 = vpop.f32.mrf.mxu0
      %v536 = vadd.f32 0.0, %v535
      %537 = vmatmul.bf16.gmra.mxu0 %v441
      %v538 = vpop.f32.mrf.mxu0
      %v539 = vadd.f32 0.0, %v538
      %v540 = vpop.f32.mrf.mxu0
      %v541 = vadd.f32 0.0, %v540
      %542 = vmatmul.bf16.gmra.mxu0 %v442
      %v543 = vpop.f32.mrf.mxu0
      %v544 = vadd.f32 0.0, %v543
      %v545 = vpop.f32.mrf.mxu0
      %v546 = vadd.f32 0.0, %v545
      %547 = vmatmul.bf16.gmra.mxu0 %v443
      %v548 = vpop.f32.mrf.mxu0
      %v549 = vadd.f32 0.0, %v548
      %v550 = vpop.f32.mrf.mxu0
      %v551 = vadd.f32 0.0, %v550
      %552 = vmatmul.bf16.gmra.mxu0 %v444
      %v553 = vpop.f32.mrf.mxu0
      %v554 = vadd.f32 0.0, %v553
      %v555 = vpop.f32.mrf.mxu0
      %v556 = vadd.f32 0.0, %v555
      %557 = vmatmul.bf16.gmra.mxu0 %v445
      %v558 = vpop.f32.mrf.mxu0
      %v559 = vadd.f32 0.0, %v558
      %v560 = vpop.f32.mrf.mxu0
      %v561 = vadd.f32 0.0, %v560
      %562 = vmatmul.bf16.gmra.mxu0 %v446
      %v563 = vpop.f32.mrf.mxu0
      %v564 = vadd.f32 0.0, %v563
      %v565 = vpop.f32.mrf.mxu0
      %v566 = vadd.f32 0.0, %v565
      %567 = vmatmul.bf16.gmra.mxu0 %v447
      %v568 = vpop.f32.mrf.mxu0
      %v569 = vadd.f32 0.0, %v568
      %v570 = vpop.f32.mrf.mxu0
      %v571 = vadd.f32 0.0, %v570
      %572 = vmatmul.bf16.gmra.mxu0 %v448
      %v573 = vpop.f32.mrf.mxu0
      %v574 = vadd.f32 0.0, %v573
      %v575 = vpop.f32.mrf.mxu0
      %v576 = vadd.f32 0.0, %v575
      %577 = vmatmul.bf16.gmra.mxu0 %v449
      %v578 = vpop.f32.mrf.mxu0
      %v579 = vadd.f32 0.0, %v578
      %v580 = vpop.f32.mrf.mxu0
      %v581 = vadd.f32 0.0, %v580
      %582 = vmatmul.bf16.gmra.mxu0 %v450
      %v583 = vpop.f32.mrf.mxu0
      %v584 = vadd.f32 0.0, %v583
      %v585 = vpop.f32.mrf.mxu0
      %v586 = vadd.f32 0.0, %v585
      %587 = vmatmul.bf16.gmra.mxu0 %v451
      %v588 = vpop.f32.mrf.mxu0
      %v589 = vadd.f32 0.0, %v588
      %v590 = vpop.f32.mrf.mxu0
      %v591 = vadd.f32 0.0, %v590
      %592 = vmatmul.bf16.gmra.mxu0 %v452
      %v593 = vpop.f32.mrf.mxu0
      %v594 = vadd.f32 0.0, %v593
      %v595 = vpop.f32.mrf.mxu0
      %v596 = vadd.f32 0.0, %v595
      %597 = vmatmul.bf16.gmra.mxu0 %v453
      %v598 = vpop.f32.mrf.mxu0
      %v599 = vadd.f32 0.0, %v598
      %v600 = vpop.f32.mrf.mxu0
      %v601 = vadd.f32 0.0, %v600
      %602 = vmatmul.bf16.gmra.mxu0 %v454
      %v603 = vpop.f32.mrf.mxu0
      %v604 = vadd.f32 0.0, %v603
      %v605 = vpop.f32.mrf.mxu0
      %v606 = vadd.f32 0.0, %v605
      %607 = vdwg.mxu0
      %v608 = vadd.f32 %v295, %v529
      %v609 = vadd.f32 %v296, %v531
      %v610 = vadd.f32 %v297, %v534
      %v611 = vadd.f32 %v298, %v536
      %v612 = vadd.f32 %v299, %v539
      %v613 = vadd.f32 %v300, %v541
      %v614 = vadd.f32 %v301, %v544
      %v615 = vadd.f32 %v302, %v546
      %v616 = vadd.f32 %v303, %v549
      %v617 = vadd.f32 %v304, %v551
      %v618 = vadd.f32 %v305, %v554
      %v619 = vadd.f32 %v306, %v556
      %v620 = vadd.f32 %v307, %v559
      %v621 = vadd.f32 %v308, %v561
      %v622 = vadd.f32 %v309, %v564
      %v623 = vadd.f32 %v310, %v566
      %v624 = vadd.f32 %v311, %v569
      %v625 = vadd.f32 %v312, %v571
      %v626 = vadd.f32 %v313, %v574
      %v627 = vadd.f32 %v314, %v576
      %v628 = vadd.f32 %v315, %v579
      %v629 = vadd.f32 %v316, %v581
      %v630 = vadd.f32 %v317, %v584
      %v631 = vadd.f32 %v318, %v586
      %v632 = vadd.f32 %v319, %v589
      %v633 = vadd.f32 %v320, %v591
      %v634 = vadd.f32 %v321, %v594
      %v635 = vadd.f32 %v322, %v596
      %v636 = vadd.f32 %v323, %v599
      %v637 = vadd.f32 %v324, %v601
      %v638 = vadd.f32 %v325, %v604
      %v639 = vadd.f32 %v326, %v606
      %640 = vst [vmem:[#allocation2] sm:$0xff] %v608
      %641 = vst [vmem:[#allocation2 + $0x8] sm:$0xff] %v609
      %642 = vst [vmem:[#allocation2 + $0x10] sm:$0xff] %v610
      %643 = vst [vmem:[#allocation2 + $0x18] sm:$0xff] %v611
      %644 = vst [vmem:[#allocation2 + $0x20] sm:$0xff] %v612
      %645 = vst [vmem:[#allocation2 + $0x28] sm:$0xff] %v613
      %646 = vst [vmem:[#allocation2 + $0x30] sm:$0xff] %v614
      %647 = vst [vmem:[#allocation2 + $0x38] sm:$0xff] %v615
      %648 = vst [vmem:[#allocation2 + $0x40] sm:$0xff] %v616
      %649 = vst [vmem:[#allocation2 + $0x48] sm:$0xff] %v617
      %650 = vst [vmem:[#allocation2 + $0x50] sm:$0xff] %v618
      %651 = vst [vmem:[#allocation2 + $0x58] sm:$0xff] %v619
      %652 = vst [vmem:[#allocation2 + $0x60] sm:$0xff] %v620
      %653 = vst [vmem:[#allocation2 + $0x68] sm:$0xff] %v621
      %654 = vst [vmem:[#allocation2 + $0x70] sm:$0xff] %v622
      %655 = vst [vmem:[#allocation2 + $0x78] sm:$0xff] %v623
      %656 = vst [vmem:[#allocation2 + $0x80] sm:$0xff] %v624
      %657 = vst [vmem:[#allocation2 + $0x88] sm:$0xff] %v625
      %658 = vst [vmem:[#allocation2 + $0x90] sm:$0xff] %v626
      %659 = vst [vmem:[#allocation2 + $0x98] sm:$0xff] %v627
      %660 = vst [vmem:[#allocation2 + $0xa0] sm:$0xff] %v628
      %661 = vst [vmem:[#allocation2 + $0xa8] sm:$0xff] %v629
      %662 = vst [vmem:[#allocation2 + $0xb0] sm:$0xff] %v630
      %663 = vst [vmem:[#allocation2 + $0xb8] sm:$0xff] %v631
      %664 = vst [vmem:[#allocation2 + $0xc0] sm:$0xff] %v632
      %665 = vst [vmem:[#allocation2 + $0xc8] sm:$0xff] %v633
      %666 = vst [vmem:[#allocation2 + $0xd0] sm:$0xff] %v634
      %667 = vst [vmem:[#allocation2 + $0xd8] sm:$0xff] %v635
      %668 = vst [vmem:[#allocation2 + $0xe0] sm:$0xff] %v636
      %669 = vst [vmem:[#allocation2 + $0xe8] sm:$0xff] %v637
      %670 = vst [vmem:[#allocation2 + $0xf0] sm:$0xff] %v638
      %671 = vst [vmem:[#allocation2 + $0xf8] sm:$0xff] %v639
      // Predicated region
      $region37: #{bottleneck_forward.6} parent=31 // pred_check
        %p672 = pneg %p259
      $region38: #{bottleneck_forward.6} parent=31 // pred_check_branch
        %674 = sbr.rel (%p672) target = $region40
      $region39: #{bottleneck_forward.6} parent=31 // pred_region
        %v675 = vld [vmem:[#allocation2] sm:$0xff]
        %v676 = vld [vmem:[#allocation2 + $0x8] sm:$0xff]
        %v677 = vld [vmem:[#allocation2 + $0x10] sm:$0xff]
        %v678 = vld [vmem:[#allocation2 + $0x18] sm:$0xff]
        %v679 = vld [vmem:[#allocation2 + $0x20] sm:$0xff]
        %v680 = vld [vmem:[#allocation2 + $0x28] sm:$0xff]
        %v681 = vld [vmem:[#allocation2 + $0x30] sm:$0xff]
        %v682 = vld [vmem:[#allocation2 + $0x38] sm:$0xff]
        %v683 = vld [vmem:[#allocation2 + $0x40] sm:$0xff]
        %v684 = vld [vmem:[#allocation2 + $0x48] sm:$0xff]
        %v685 = vld [vmem:[#allocation2 + $0x50] sm:$0xff]
        %v686 = vld [vmem:[#allocation2 + $0x58] sm:$0xff]
        %v687 = vld [vmem:[#allocation2 + $0x60] sm:$0xff]
        %v688 = vld [vmem:[#allocation2 + $0x68] sm:$0xff]
        %v689 = vld [vmem:[#allocation2 + $0x70] sm:$0xff]
        %v690 = vld [vmem:[#allocation2 + $0x78] sm:$0xff]
        %v691 = vld [vmem:[#allocation2 + $0x80] sm:$0xff]
        %v692 = vld [vmem:[#allocation2 + $0x88] sm:$0xff]
        %v693 = vld [vmem:[#allocation2 + $0x90] sm:$0xff]
        %v694 = vld [vmem:[#allocation2 + $0x98] sm:$0xff]
        %v695 = vld [vmem:[#allocation2 + $0xa0] sm:$0xff]
        %v696 = vld [vmem:[#allocation2 + $0xa8] sm:$0xff]
        %v697 = vld [vmem:[#allocation2 + $0xb0] sm:$0xff]
        %v698 = vld [vmem:[#allocation2 + $0xb8] sm:$0xff]
        %v699 = vld [vmem:[#allocation2 + $0xc0] sm:$0xff]
        %v700 = vld [vmem:[#allocation2 + $0xc8] sm:$0xff]
        %v701 = vld [vmem:[#allocation2 + $0xd0] sm:$0xff]
        %v702 = vld [vmem:[#allocation2 + $0xd8] sm:$0xff]
        %v703 = vld [vmem:[#allocation2 + $0xe0] sm:$0xff]
        %v704 = vld [vmem:[#allocation2 + $0xe8] sm:$0xff]
        %v705 = vld [vmem:[#allocation2 + $0xf0] sm:$0xff]
        %v706 = vld [vmem:[#allocation2 + $0xf8] sm:$0xff]
        %v707 = vld [vmem:[%s249] sm:$0x1]
        %v709 = vperm.slane %v707, 0
        %v711 = vadd.f32 %v675, %v709
        %v712 = vadd.f32 %v676, %v709
        %v713 = vadd.f32 %v677, %v709
        %v714 = vadd.f32 %v678, %v709
        %v715 = vadd.f32 %v679, %v709
        %v716 = vadd.f32 %v680, %v709
        %v717 = vadd.f32 %v681, %v709
        %v718 = vadd.f32 %v682, %v709
        %v719 = vadd.f32 %v683, %v709
        %v720 = vadd.f32 %v684, %v709
        %v721 = vadd.f32 %v685, %v709
        %v722 = vadd.f32 %v686, %v709
        %v723 = vadd.f32 %v687, %v709
        %v724 = vadd.f32 %v688, %v709
        %v725 = vadd.f32 %v689, %v709
        %v726 = vadd.f32 %v690, %v709
        %v727 = vadd.f32 %v691, %v709
        %v728 = vadd.f32 %v692, %v709
        %v729 = vadd.f32 %v693, %v709
        %v730 = vadd.f32 %v694, %v709
        %v731 = vadd.f32 %v695, %v709
        %v732 = vadd.f32 %v696, %v709
        %v733 = vadd.f32 %v697, %v709
        %v734 = vadd.f32 %v698, %v709
        %v735 = vadd.f32 %v699, %v709
        %v736 = vadd.f32 %v700, %v709
        %v737 = vadd.f32 %v701, %v709
        %v738 = vadd.f32 %v702, %v709
        %v739 = vadd.f32 %v703, %v709
        %v740 = vadd.f32 %v704, %v709
        %v741 = vadd.f32 %v705, %v709
        %v742 = vadd.f32 %v706, %v709
        %v743 = vpack.c.bf16 %v711, %v711
        %v744 = vpack.c.bf16 %v712, %v712
        %v745 = vpack.c.bf16 %v713, %v713
        %v746 = vpack.c.bf16 %v714, %v714
        %v747 = vpack.c.bf16 %v715, %v715
        %v748 = vpack.c.bf16 %v716, %v716
        %v749 = vpack.c.bf16 %v717, %v717
        %v750 = vpack.c.bf16 %v718, %v718
        %v751 = vpack.c.bf16 %v719, %v719
        %v752 = vpack.c.bf16 %v720, %v720
        %v753 = vpack.c.bf16 %v721, %v721
        %v754 = vpack.c.bf16 %v722, %v722
        %v755 = vpack.c.bf16 %v723, %v723
        %v756 = vpack.c.bf16 %v724, %v724
        %v757 = vpack.c.bf16 %v725, %v725
        %v758 = vpack.c.bf16 %v726, %v726
        %v759 = vpack.c.bf16 %v727, %v727
        %v760 = vpack.c.bf16 %v728, %v728
        %v761 = vpack.c.bf16 %v729, %v729
        %v762 = vpack.c.bf16 %v730, %v730
        %v763 = vpack.c.bf16 %v731, %v731
        %v764 = vpack.c.bf16 %v732, %v732
        %v765 = vpack.c.bf16 %v733, %v733
        %v766 = vpack.c.bf16 %v734, %v734
        %v767 = vpack.c.bf16 %v735, %v735
        %v768 = vpack.c.bf16 %v736, %v736
        %v769 = vpack.c.bf16 %v737, %v737
        %v770 = vpack.c.bf16 %v738, %v738
        %v771 = vpack.c.bf16 %v739, %v739
        %v772 = vpack.c.bf16 %v740, %v740
        %v773 = vpack.c.bf16 %v741, %v741
        %v774 = vpack.c.bf16 %v742, %v742
        %775 = vst [vmem:[%s257] sm:$0xf] %v743
        %776 = vst [vmem:[%s257 + $0x4] sm:$0xf] %v744
        %777 = vst [vmem:[%s257 + $0x8] sm:$0xf] %v745
        %778 = vst [vmem:[%s257 + $0xc] sm:$0xf] %v746
        %779 = vst [vmem:[%s257 + $0x10] sm:$0xf] %v747
        %780 = vst [vmem:[%s257 + $0x14] sm:$0xf] %v748
        %781 = vst [vmem:[%s257 + $0x18] sm:$0xf] %v749
        %782 = vst [vmem:[%s257 + $0x1c] sm:$0xf] %v750
        %783 = vst [vmem:[%s257 + $0x20] sm:$0xf] %v751
        %784 = vst [vmem:[%s257 + $0x24] sm:$0xf] %v752
        %785 = vst [vmem:[%s257 + $0x28] sm:$0xf] %v753
        %786 = vst [vmem:[%s257 + $0x2c] sm:$0xf] %v754
        %787 = vst [vmem:[%s257 + $0x30] sm:$0xf] %v755
        %788 = vst [vmem:[%s257 + $0x34] sm:$0xf] %v756
        %789 = vst [vmem:[%s257 + $0x38] sm:$0xf] %v757
        %790 = vst [vmem:[%s257 + $0x3c] sm:$0xf] %v758
        %791 = vst [vmem:[%s257 + $0x40] sm:$0xf] %v759
        %792 = vst [vmem:[%s257 + $0x44] sm:$0xf] %v760
        %793 = vst [vmem:[%s257 + $0x48] sm:$0xf] %v761
        %794 = vst [vmem:[%s257 + $0x4c] sm:$0xf] %v762
        %795 = vst [vmem:[%s257 + $0x50] sm:$0xf] %v763
        %796 = vst [vmem:[%s257 + $0x54] sm:$0xf] %v764
        %797 = vst [vmem:[%s257 + $0x58] sm:$0xf] %v765
        %798 = vst [vmem:[%s257 + $0x5c] sm:$0xf] %v766
        %799 = vst [vmem:[%s257 + $0x60] sm:$0xf] %v767
        %800 = vst [vmem:[%s257 + $0x64] sm:$0xf] %v768
        %801 = vst [vmem:[%s257 + $0x68] sm:$0xf] %v769
        %802 = vst [vmem:[%s257 + $0x6c] sm:$0xf] %v770
        %803 = vst [vmem:[%s257 + $0x70] sm:$0xf] %v771
        %804 = vst [vmem:[%s257 + $0x74] sm:$0xf] %v772
        %805 = vst [vmem:[%s257 + $0x78] sm:$0xf] %v773
        %806 = vst [vmem:[%s257 + $0x7c] sm:$0xf] %v774
      $region40: #{bottleneck_forward.6} parent=31 // pred_fallthru
        _
      %s807 = smul.u32 32, %s19
      %p808 = scmp.lt.s32.totalorder %s807, 63
      %s809 = scalar_select %p808, %s807, 63
      %p810 = scmp.lt.s32.totalorder %s20, 0
      %s811 = scalar_select %p810, %s20, 0
      %s812 = sadd.s32 %s811, %s809
      %s813 = smul.addr %s812, 4
      %s814 = scalar_lea.vmem %s3, %s813
      // Predicated region
      $region41: #{bottleneck_forward.6} parent=31 // pred_check
        %p815 = pneg %p135
      $region42: #{bottleneck_forward.6} parent=31 // pred_check_branch
        %817 = sbr.rel (%p815) target = $region44
      $region43: #{bottleneck_forward.6} parent=31 // pred_region
        %s818 = smul.u32 32, %s19
      $region44: #{bottleneck_forward.6} parent=31 // pred_fallthru
        _
    $region32: #{bottleneck_forward.6} parent=5 // pred_fallthru
      _
    %p819 = scmp.le.s32.totalorder 2, %s9
    // Predicated region
    $region45: #{bottleneck_forward.6} parent=5 // pred_check
      %p820 = pneg %p819
    $region46: #{bottleneck_forward.6} parent=5 // pred_check_branch
      %822 = sbr.rel (%p820) target = $region48
    $region47: #{bottleneck_forward.6} parent=5 // pred_region
      %s823 = ssub.s32 %s9, 2
      // Predicated region
      $region49: #{bottleneck_forward.6} parent=47 // pred_check
        %p824 = pneg %p141
      $region50: #{bottleneck_forward.6} parent=47 // pred_check_branch
        %826 = sbr.rel (%p824) target = $region52
      $region51: #{bottleneck_forward.6} parent=47 // pred_region
        %s827 = smul.u32 32, %s22
        %p828 = scmp.lt.s32.totalorder %s827, 63
        %s829 = scalar_select %p828, %s827, 63
        %p830 = scmp.lt.s32.totalorder %s23, 0
        %s831 = scalar_select %p830, %s23, 0
        %s832 = sadd.s32 %s831, %s829
        %s833 = smul.addr %s832, 4
        %s834 = scalar_lea.vmem %s3, %s833
      $region52: #{bottleneck_forward.6} parent=47 // pred_fallthru
        _
    $region48: #{bottleneck_forward.6} parent=5 // pred_fallthru
      _
  $region6: #{bottleneck_forward.6} parent=0 // loop_footer
    %s13 = sadd.s32 1, %s9
  $region7: #{bottleneck_forward.6} parent=0 // loop_footer_branch
    %8 = sbr.rel target = $region3
  $region8: #{bottleneck_forward.6} parent=0 // loop_exit
    _

// kernel: bottleneck_forward.4
$region0: #{bottleneck_forward.4}
  #allocation0 [shape = 'u32[]', space=smem, size = 0x4, offset = 0x4, fixed_abs, tag = 'smem constant byte address 0x4 - core index']
  #allocation1 [shape = 'u32[72,128]{1,0:T(1,128)}', space=vmem, size = 0x9000, scoped, tag = 'internal scratch']
  #allocation2 [shape = 'f32[256,128]{1,0:T(8,128)}', space=vmem, size = 0x20000, scoped, tag = 'scratch operand']
  %s0 = inlined_call_operand.vmem [shape: bf16[512,128], index: 0, kind: input, shape index: {}]
  %s1 = inlined_call_operand.vmem [shape: bf16[128,128], index: 1, kind: input, shape index: {}]
  %s2 = inlined_call_operand.vmem [shape: f32[1,128], index: 2, kind: input, shape index: {}]
  %s3 = inlined_call_operand.vmem [shape: bf16[512,128], index: 3, kind: output, shape index: {}]
  %s4 = sld [smem:[#allocation0]]
  $region53: #{bottleneck_forward.4} parent=0
    _
  %s6 = ssub.s32 1, %s4
  %s7 = scalar_select 0, %s6, %s4
  loop: start=0, step=1, limit=4
  $region2: #{bottleneck_forward.4} parent=0 // loop_pre_header
    _
  $region3: #{bottleneck_forward.4} parent=0 // loop_header
    %s9 = sphi 0, %s13
    %p10 = scmp.ge.s32.totalorder %s9, 4
    %s16 = sphi 0, %s35
    %s17 = sphi 0, %s31
    %s18 = sphi 0, %s27
    %s19 = sphi 0, %s16
    %s20 = sphi 0, %s17
    %s21 = sphi 0, %s18
    %s22 = sphi 0, %s19
    %s23 = sphi 0, %s20
    %s24 = sphi 0, %s21
    %s40 = sphi 0, %s42
    %s43 = sphi 0, %s40
    %s44 = sphi 0, %s43
    %s60 = sphi 0, %s44
    %s68 = sphi 0, %s70
    %s71 = sphi 0, %s68
    %s72 = sphi 0, %s71
    %s88 = sphi 0, %s72
    %s94 = sphi 0, %s96
    %s97 = sphi 0, %s94
    %s98 = sphi 0, %s97
    %s114 = sphi 0, %s98
    %s122 = sphi 0, %s124
    %s125 = sphi 0, %s122
    %s126 = sphi 0, %s125
    %s142 = sphi 0, %s126
  $region4: #{bottleneck_forward.4} parent=0 // loop_header_branch
    %12 = sbr.rel (%p10) target = $region8
  $region5: #{bottleneck_forward.4} parent=0 // loop_body
    %s14 = ssub.s32 %s9, 1
    %s15 = ssub.s32 %s9, 2
    %s25 = sadd.s32 1, %s18
    %p26 = scmp.ge.s32.totalorder %s25, 1
    %s27 = scalar_select %p26, 0, %s25
    %s28 = sadd.s32 1, %s17
    %s29 = scalar_select %p26, %s28, %s17
    %p30 = scmp.ge.s32.totalorder %s29, 1
    %s31 = scalar_select %p30, 0, %s29
    %s32 = sadd.s32 1, %s16
    %s33 = scalar_select %p30, %s32, %s16
    %p34 = scmp.ge.s32.totalorder %s33, 2
    %s35 = scalar_select %p34, 0, %s33
    %s36 = ssub.s32 %s16, %s35
    %s37 = ssub.s32 %s18, %s27
    %s38 = sor.u32 %s36, %s37
    %p39 = scmp.eq.s32.totalorder %s38, 0
    %s41 = sadd.s32 %s40, 1
    %s42 = scalar_select %p39, %s40, %s41
    %p45 = pneg %p39
    %p46 = scmp.eq.s32.totalorder %s9, 1
    %p47 = por %p45, %p46
    %p48 = scmp.ne.s32.totalorder %s40, %s43
    %p49 = scmp.eq.s32.totalorder %s9, 0
    %p50 = por %p48, %p49
    %p51 = scmp.ne.s32.totalorder %s40, %s43
    %p52 = scmp.eq.s32.totalorder %s14, 1
    %p53 = por %p51, %p52
    %p54 = scmp.ne.s32.totalorder %s43, %s44
    %p55 = scmp.eq.s32.totalorder %s14, 0
    %p56 = por %p54, %p55
    %p57 = scmp.ne.s32.totalorder %s43, %s44
    %p58 = scmp.eq.s32.totalorder %s15, 1
    %p59 = por %p57, %p58
    %p61 = scmp.ne.s32.totalorder %s44, %s60
    %p62 = scmp.eq.s32.totalorder %s15, 0
    %p63 = por %p61, %p62
    %s64 = ssub.s32 %s18, %s27
    %s65 = ssub.s32 %s17, %s31
    %s66 = sor.u32 %s64, %s65
    %p67 = scmp.eq.s32.totalorder %s66, 0
    %s69 = sadd.s32 %s68, 1
    %s70 = scalar_select %p67, %s68, %s69
    %p73 = pneg %p67
    %p74 = scmp.eq.s32.totalorder %s9, 1
    %p75 = por %p73, %p74
    %p76 = scmp.ne.s32.totalorder %s68, %s71
    %p77 = scmp.eq.s32.totalorder %s9, 0
    %p78 = por %p76, %p77
    %p79 = scmp.ne.s32.totalorder %s68, %s71
    %p80 = scmp.eq.s32.totalorder %s14, 1
    %p81 = por %p79, %p80
    %p82 = scmp.ne.s32.totalorder %s71, %s72
    %p83 = scmp.eq.s32.totalorder %s14, 0
    %p84 = por %p82, %p83
    %p85 = scmp.ne.s32.totalorder %s71, %s72
    %p86 = scmp.eq.s32.totalorder %s15, 1
    %p87 = por %p85, %p86
    %p89 = scmp.ne.s32.totalorder %s72, %s88
    %p90 = scmp.eq.s32.totalorder %s15, 0
    %p91 = por %p89, %p90
    %s92 = ssub.s32 %s17, %s31
    %p93 = scmp.eq.s32.totalorder %s92, 0
    %s95 = sadd.s32 %s94, 1
    %s96 = scalar_select %p93, %s94, %s95
    %p99 = pneg %p93
    %p100 = scmp.eq.s32.totalorder %s9, 1
    %p101 = por %p99, %p100
    %p102 = scmp.ne.s32.totalorder %s94, %s97
    %p103 = scmp.eq.s32.totalorder %s9, 0
    %p104 = por %p102, %p103
    %p105 = scmp.ne.s32.totalorder %s94, %s97
    %p106 = scmp.eq.s32.totalorder %s14, 1
    %p107 = por %p105, %p106
    %p108 = scmp.ne.s32.totalorder %s97, %s98
    %p109 = scmp.eq.s32.totalorder %s14, 0
    %p110 = por %p108, %p109
    %p111 = scmp.ne.s32.totalorder %s97, %s98
    %p112 = scmp.eq.s32.totalorder %s15, 1
    %p113 = por %p111, %p112
    %p115 = scmp.ne.s32.totalorder %s98, %s114
    %p116 = scmp.eq.s32.totalorder %s15, 0
    %p117 = por %p115, %p116
    %s118 = ssub.s32 %s16, %s35
    %s119 = ssub.s32 %s17, %s31
    %s120 = sor.u32 %s118, %s119
    %p121 = scmp.eq.s32.totalorder %s120, 0
    %s123 = sadd.s32 %s122, 1
    %s124 = scalar_select %p121, %s122, %s123
    %p127 = pneg %p121
    %p128 = scmp.eq.s32.totalorder %s9, 1
    %p129 = por %p127, %p128
    %p130 = scmp.ne.s32.totalorder %s122, %s125
    %p131 = scmp.eq.s32.totalorder %s9, 0
    %p132 = por %p130, %p131
    %p133 = scmp.ne.s32.totalorder %s122, %s125
    %p134 = scmp.eq.s32.totalorder %s14, 1
    %p135 = por %p133, %p134
    %p136 = scmp.ne.s32.totalorder %s125, %s126
    %p137 = scmp.eq.s32.totalorder %s14, 0
    %p138 = por %p136, %p137
    %p139 = scmp.ne.s32.totalorder %s125, %s126
    %p140 = scmp.eq.s32.totalorder %s15, 1
    %p141 = por %p139, %p140
    %p143 = scmp.ne.s32.totalorder %s126, %s142
    %p144 = scmp.eq.s32.totalorder %s15, 0
    %p145 = por %p143, %p144
    %p146 = scmp.le.s32.totalorder 1, %s9
    %p147 = scmp.lt.s32.totalorder %s9, 3
    %p148 = pnand %p146, %p147
    %p149 = pneg %p148
    // Predicated region
    $region9: #{bottleneck_forward.4} parent=5 // pred_check
      _
    $region10: #{bottleneck_forward.4} parent=5 // pred_check_branch
      %151 = sbr.rel (%p148) target = $region12
    $region11: #{bottleneck_forward.4} parent=5 // pred_region
      %s152 = ssub.s32 %s9, 1
      // Predicated region
      $region13: #{bottleneck_forward.4} parent=11 // pred_check
        %p153 = pneg %p84
      $region14: #{bottleneck_forward.4} parent=11 // pred_check_branch
        %155 = sbr.rel (%p153) target = $region16
      $region15: #{bottleneck_forward.4} parent=11 // pred_region
        %s156 = smul.u32 16, %s21
        %p157 = scmp.lt.s32.totalorder %s156, 15
        %s158 = scalar_select %p157, %s156, 15
        %p159 = scmp.lt.s32.totalorder %s20, 0
        %s160 = scalar_select %p159, %s20, 0
        %s161 = sadd.s32 %s160, %s158
        %s162 = smul.addr %s161, 4
        %s163 = scalar_lea.vmem %s1, %s162
        %s164 = smul.u32 16, %s21
      $region16: #{bottleneck_forward.4} parent=11 // pred_fallthru
        _
      // Predicated region
      $region17: #{bottleneck_forward.4} parent=11 // pred_check
        %p165 = pneg %p110
      $region18: #{bottleneck_forward.4} parent=11 // pred_check_branch
        %167 = sbr.rel (%p165) target = $region20
      $region19: #{bottleneck_forward.4} parent=11 // pred_region
        %p168 = scmp.lt.s32.totalorder %s20, 0
        %s169 = scalar_select %p168, %s20, 0
        %s170 = scalar_lea.vmem %s2, %s169
      $region20: #{bottleneck_forward.4} parent=11 // pred_fallthru
        _
    $region12: #{bottleneck_forward.4} parent=5 // pred_fallthru
      _
    %p171 = scmp.lt.s32.totalorder %s9, 2
    // Predicated region
    $region21: #{bottleneck_forward.4} parent=5 // pred_check
      %p172 = pneg %p171
    $region22: #{bottleneck_forward.4} parent=5 // pred_check_branch
      %174 = sbr.rel (%p172) target = $region24
    $region23: #{bottleneck_forward.4} parent=5 // pred_region
      // Predicated region
      $region25: #{bottleneck_forward.4} parent=23 // pred_check
        %p175 = pneg %p50
      $region26: #{bottleneck_forward.4} parent=23 // pred_check_branch
        %177 = sbr.rel (%p175) target = $region28
      $region27: #{bottleneck_forward.4} parent=23 // pred_region
        %s178 = smul.u32 32, %s16
        %p179 = scmp.lt.s32.totalorder %s178, 63
        %s180 = scalar_select %p179, %s178, 63
        %p181 = scmp.lt.s32.totalorder %s18, 0
        %s182 = scalar_select %p181, %s18, 0
        %s183 = sadd.s32 %s182, %s180
        %s184 = smul.addr %s183, 4
        %s185 = scalar_lea.vmem %s0, %s184
        %s186 = smul.u32 32, %s16
      $region28: #{bottleneck_forward.4} parent=23 // pred_fallthru
        _
    $region24: #{bottleneck_forward.4} parent=5 // pred_fallthru
      _
    %p187 = scmp.le.s32.totalorder 1, %s9
    %p188 = scmp.lt.s32.totalorder %s9, 3
    %p189 = pnand %p187, %p188
    %p190 = pneg %p189
    // Predicated region
    $region29: #{bottleneck_forward.4} parent=5 // pred_check
      _
    $region30: #{bottleneck_forward.4} parent=5 // pred_check_branch
      %192 = sbr.rel (%p189) target = $region32
    $region31: #{bottleneck_forward.4} parent=5 // pred_region
      %s193 = ssub.s32 %s9, 1
      %s194 = smul.u32 32, %s19
      %p195 = scmp.lt.s32.totalorder %s194, 63
      %s196 = scalar_select %p195, %s194, 63
      %p197 = scmp.lt.s32.totalorder %s21, 0
      %s198 = scalar_select %p197, %s21, 0
      %s199 = sadd.s32 %s198, %s196
      %s200 = smul.addr %s199, 4
      %s201 = scalar_lea.vmem %s0, %s200
      %p202 = pneg %p56
      %p203 = pneg %p53
      %s204 = smul.u32 16, %s21
      %p205 = scmp.lt.s32.totalorder %s204, 15
      %s206 = scalar_select %p205, %s204, 15
      %p207 = scmp.lt.s32.totalorder %s20, 0
      %s208 = scalar_select %p207, %s20, 0
      %s209 = sadd.s32 %s208, %s206
      %s210 = smul.addr %s209, 4
      %s211 = scalar_lea.vmem %s1, %s210
      %p212 = pneg %p84
      %p213 = pneg %p81
      %p214 = scmp.lt.s32.totalorder %s20, 0
      %s215 = scalar_select %p214, %s20, 0
      %s216 = scalar_lea.vmem %s2, %s215
      %p217 = pneg %p110
      %p218 = pneg %p107
      %p219 = pneg %p138
      %p220 = pneg %p135
      %s221 = smul.u32 32, %s19
      %p222 = scmp.lt.s32.totalorder %s221, 63
      %s223 = scalar_select %p222, %s221, 63
      %p224 = scmp.lt.s32.totalorder %s20, 0
      %s225 = scalar_select %p224, %s20, 0
      %s226 = sadd.s32 %s225, %s223
      %s227 = smul.addr %s226, 4
      %s228 = scalar_lea.vmem %s3, %s227
      %s229 = smul.u32 32, %s19
      %p230 = scmp.lt.s32.totalorder %s229, 63
      %s231 = scalar_select %p230, %s229, 63
      %p232 = scmp.lt.s32.totalorder %s21, 0
      %s233 = scalar_select %p232, %s21, 0
      %s234 = sadd.s32 %s233, %s231
      %s235 = smul.addr %s234, 4
      %s236 = scalar_lea.vmem %s0, %s235
      %s237 = smul.u32 32, %s19
      %s238 = smul.u32 16, %s21
      %p239 = scmp.lt.s32.totalorder %s238, 15
      %s240 = scalar_select %p239, %s238, 15
      %p241 = scmp.lt.s32.totalorder %s20, 0
      %s242 = scalar_select %p241, %s20, 0
      %s243 = sadd.s32 %s242, %s240
      %s244 = smul.addr %s243, 4
      %s245 = scalar_lea.vmem %s1, %s244
      %s246 = smul.u32 16, %s21
      %p247 = scmp.lt.s32.totalorder %s20, 0
      %s248 = scalar_select %p247, %s20, 0
      %s249 = scalar_lea.vmem %s2, %s248
      %s250 = smul.u32 32, %s19
      %p251 = scmp.lt.s32.totalorder %s250, 63
      %s252 = scalar_select %p251, %s250, 63
      %p253 = scmp.lt.s32.totalorder %s20, 0
      %s254 = scalar_select %p253, %s20, 0
      %s255 = sadd.s32 %s254, %s252
      %s256 = smul.addr %s255, 4
      %s257 = scalar_lea.vmem %s3, %s256
      %s258 = smul.u32 32, %s19
      %p259 = scmp.eq.s32.totalorder %s21, 0
      // Predicated region
      $region33: #{bottleneck_forward.4} parent=31 // pred_check
        %p260 = pneg %p259
      $region34: #{bottleneck_forward.4} parent=31 // pred_check_branch
        %262 = sbr.rel (%p260) target = $region36
      $region35: #{bottleneck_forward.4} parent=31 // pred_region
        %263 = vst [vmem:[#allocation2] sm:$0xff] 0.0
        %264 = vst [vmem:[#allocation2 + $0x8] sm:$0xff] 0.0
        %265 = vst [vmem:[#allocation2 + $0x10] sm:$0xff] 0.0
        %266 = vst [vmem:[#allocation2 + $0x18] sm:$0xff] 0.0
        %267 = vst [vmem:[#allocation2 + $0x20] sm:$0xff] 0.0
        %268 = vst [vmem:[#allocation2 + $0x28] sm:$0xff] 0.0
        %269 = vst [vmem:[#allocation2 + $0x30] sm:$0xff] 0.0
        %270 = vst [vmem:[#allocation2 + $0x38] sm:$0xff] 0.0
        %271 = vst [vmem:[#allocation2 + $0x40] sm:$0xff] 0.0
        %272 = vst [vmem:[#allocation2 + $0x48] sm:$0xff] 0.0
        %273 = vst [vmem:[#allocation2 + $0x50] sm:$0xff] 0.0
        %274 = vst [vmem:[#allocation2 + $0x58] sm:$0xff] 0.0
        %275 = vst [vmem:[#allocation2 + $0x60] sm:$0xff] 0.0
        %276 = vst [vmem:[#allocation2 + $0x68] sm:$0xff] 0.0
        %277 = vst [vmem:[#allocation2 + $0x70] sm:$0xff] 0.0
        %278 = vst [vmem:[#allocation2 + $0x78] sm:$0xff] 0.0
        %279 = vst [vmem:[#allocation2 + $0x80] sm:$0xff] 0.0
        %280 = vst [vmem:[#allocation2 + $0x88] sm:$0xff] 0.0
        %281 = vst [vmem:[#allocation2 + $0x90] sm:$0xff] 0.0
        %282 = vst [vmem:[#allocation2 + $0x98] sm:$0xff] 0.0
        %283 = vst [vmem:[#allocation2 + $0xa0] sm:$0xff] 0.0
        %284 = vst [vmem:[#allocation2 + $0xa8] sm:$0xff] 0.0
        %285 = vst [vmem:[#allocation2 + $0xb0] sm:$0xff] 0.0
        %286 = vst [vmem:[#allocation2 + $0xb8] sm:$0xff] 0.0
        %287 = vst [vmem:[#allocation2 + $0xc0] sm:$0xff] 0.0
        %288 = vst [vmem:[#allocation2 + $0xc8] sm:$0xff] 0.0
        %289 = vst [vmem:[#allocation2 + $0xd0] sm:$0xff] 0.0
        %290 = vst [vmem:[#allocation2 + $0xd8] sm:$0xff] 0.0
        %291 = vst [vmem:[#allocation2 + $0xe0] sm:$0xff] 0.0
        %292 = vst [vmem:[#allocation2 + $0xe8] sm:$0xff] 0.0
        %293 = vst [vmem:[#allocation2 + $0xf0] sm:$0xff] 0.0
        %294 = vst [vmem:[#allocation2 + $0xf8] sm:$0xff] 0.0
      $region36: #{bottleneck_forward.4} parent=31 // pred_fallthru
        _
      %v295 = vld [vmem:[#allocation2] sm:$0xff]
      %v296 = vld [vmem:[#allocation2 + $0x8] sm:$0xff]
      %v297 = vld [vmem:[#allocation2 + $0x10] sm:$0xff]
      %v298 = vld [vmem:[#allocation2 + $0x18] sm:$0xff]
      %v299 = vld [vmem:[#allocation2 + $0x20] sm:$0xff]
      %v300 = vld [vmem:[#allocation2 + $0x28] sm:$0xff]
      %v301 = vld [vmem:[#allocation2 + $0x30] sm:$0xff]
      %v302 = vld [vmem:[#allocation2 + $0x38] sm:$0xff]
      %v303 = vld [vmem:[#allocation2 + $0x40] sm:$0xff]
      %v304 = vld [vmem:[#allocation2 + $0x48] sm:$0xff]
      %v305 = vld [vmem:[#allocation2 + $0x50] sm:$0xff]
      %v306 = vld [vmem:[#allocation2 + $0x58] sm:$0xff]
      %v307 = vld [vmem:[#allocation2 + $0x60] sm:$0xff]
      %v308 = vld [vmem:[#allocation2 + $0x68] sm:$0xff]
      %v309 = vld [vmem:[#allocation2 + $0x70] sm:$0xff]
      %v310 = vld [vmem:[#allocation2 + $0x78] sm:$0xff]
      %v311 = vld [vmem:[#allocation2 + $0x80] sm:$0xff]
      %v312 = vld [vmem:[#allocation2 + $0x88] sm:$0xff]
      %v313 = vld [vmem:[#allocation2 + $0x90] sm:$0xff]
      %v314 = vld [vmem:[#allocation2 + $0x98] sm:$0xff]
      %v315 = vld [vmem:[#allocation2 + $0xa0] sm:$0xff]
      %v316 = vld [vmem:[#allocation2 + $0xa8] sm:$0xff]
      %v317 = vld [vmem:[#allocation2 + $0xb0] sm:$0xff]
      %v318 = vld [vmem:[#allocation2 + $0xb8] sm:$0xff]
      %v319 = vld [vmem:[#allocation2 + $0xc0] sm:$0xff]
      %v320 = vld [vmem:[#allocation2 + $0xc8] sm:$0xff]
      %v321 = vld [vmem:[#allocation2 + $0xd0] sm:$0xff]
      %v322 = vld [vmem:[#allocation2 + $0xd8] sm:$0xff]
      %v323 = vld [vmem:[#allocation2 + $0xe0] sm:$0xff]
      %v324 = vld [vmem:[#allocation2 + $0xe8] sm:$0xff]
      %v325 = vld [vmem:[#allocation2 + $0xf0] sm:$0xff]
      %v326 = vld [vmem:[#allocation2 + $0xf8] sm:$0xff]
      %v327 = vld [vmem:[%s236] sm:$0xf]
      %v328 = vld [vmem:[%s236 + $0x4] sm:$0xf]
      %v329 = vld [vmem:[%s236 + $0x8] sm:$0xf]
      %v330 = vld [vmem:[%s236 + $0xc] sm:$0xf]
      %v331 = vld [vmem:[%s236 + $0x10] sm:$0xf]
      %v332 = vld [vmem:[%s236 + $0x14] sm:$0xf]
      %v333 = vld [vmem:[%s236 + $0x18] sm:$0xf]
      %v334 = vld [vmem:[%s236 + $0x1c] sm:$0xf]
      %v335 = vld [vmem:[%s236 + $0x20] sm:$0xf]
      %v336 = vld [vmem:[%s236 + $0x24] sm:$0xf]
      %v337 = vld [vmem:[%s236 + $0x28] sm:$0xf]
      %v338 = vld [vmem:[%s236 + $0x2c] sm:$0xf]
      %v339 = vld [vmem:[%s236 + $0x30] sm:$0xf]
      %v340 = vld [vmem:[%s236 + $0x34] sm:$0xf]
      %v341 = vld [vmem:[%s236 + $0x38] sm:$0xf]
      %v342 = vld [vmem:[%s236 + $0x3c] sm:$0xf]
      %v343 = vld [vmem:[%s236 + $0x40] sm:$0xf]
      %v344 = vld [vmem:[%s236 + $0x44] sm:$0xf]
      %v345 = vld [vmem:[%s236 + $0x48] sm:$0xf]
      %v346 = vld [vmem:[%s236 + $0x4c] sm:$0xf]
      %v347 = vld [vmem:[%s236 + $0x50] sm:$0xf]
      %v348 = vld [vmem:[%s236 + $0x54] sm:$0xf]
      %v349 = vld [vmem:[%s236 + $0x58] sm:$0xf]
      %v350 = vld [vmem:[%s236 + $0x5c] sm:$0xf]
      %v351 = vld [vmem:[%s236 + $0x60] sm:$0xf]
      %v352 = vld [vmem:[%s236 + $0x64] sm:$0xf]
      %v353 = vld [vmem:[%s236 + $0x68] sm:$0xf]
      %v354 = vld [vmem:[%s236 + $0x6c] sm:$0xf]
      %v355 = vld [vmem:[%s236 + $0x70] sm:$0xf]
      %v356 = vld [vmem:[%s236 + $0x74] sm:$0xf]
      %v357 = vld [vmem:[%s236 + $0x78] sm:$0xf]
      %v358 = vld [vmem:[%s236 + $0x7c] sm:$0xf]
      %v359 = vld [vmem:[%s245] sm:$0xf]
      %v360 = vld [vmem:[%s245 + $0x4] sm:$0xf]
      %v361 = vld [vmem:[%s245 + $0x8] sm:$0xf]
      %v362 = vld [vmem:[%s245 + $0xc] sm:$0xf]
      %v363 = vld [vmem:[%s245 + $0x10] sm:$0xf]
      %v364 = vld [vmem:[%s245 + $0x14] sm:$0xf]
      %v365 = vld [vmem:[%s245 + $0x18] sm:$0xf]
      %v366 = vld [vmem:[%s245 + $0x1c] sm:$0xf]
      %v367 = vld [vmem:[%s245 + $0x20] sm:$0xf]
      %v368 = vld [vmem:[%s245 + $0x24] sm:$0xf]
      %v369 = vld [vmem:[%s245 + $0x28] sm:$0xf]
      %v370 = vld [vmem:[%s245 + $0x2c] sm:$0xf]
      %v371 = vld [vmem:[%s245 + $0x30] sm:$0xf]
      %v372 = vld [vmem:[%s245 + $0x34] sm:$0xf]
      %v373 = vld [vmem:[%s245 + $0x38] sm:$0xf]
      %v374 = vld [vmem:[%s245 + $0x3c] sm:$0xf]
      %v407 = vunpack.c.l.b16 %v327
      %v408 = vunpack.c.l.b16 %v328
      %v409 = vunpack.c.l.b16 %v329
      %v410 = vunpack.c.l.b16 %v330
      %v411 = vunpack.c.l.b16 %v331
      %v412 = vunpack.c.l.b16 %v332
      %v413 = vunpack.c.l.b16 %v333
      %v414 = vunpack.c.l.b16 %v334
      %v415 = vunpack.c.l.b16 %v335
      %v416 = vunpack.c.l.b16 %v336
      %v417 = vunpack.c.l.b16 %v337
      %v418 = vunpack.c.l.b16 %v338
      %v419 = vunpack.c.l.b16 %v339
      %v420 = vunpack.c.l.b16 %v340
      %v421 = vunpack.c.l.b16 %v341
      %v422 = vunpack.c.l.b16 %v342
      %v423 = vunpack.c.l.b16 %v343
      %v424 = vunpack.c.l.b16 %v344
      %v425 = vunpack.c.l.b16 %v345
      %v426 = vunpack.c.l.b16 %v346
      %v427 = vunpack.c.l.b16 %v347
      %v428 = vunpack.c.l.b16 %v348
      %v429 = vunpack.c.l.b16 %v349
      %v430 = vunpack.c.l.b16 %v350
      %v431 = vunpack.c.l.b16 %v351
      %v432 = vunpack.c.l.b16 %v352
      %v433 = vunpack.c.l.b16 %v353
      %v434 = vunpack.c.l.b16 %v354
      %v435 = vunpack.c.l.b16 %v355
      %v436 = vunpack.c.l.b16 %v356
      %v437 = vunpack.c.l.b16 %v357
      %v438 = vunpack.c.l.b16 %v358
      %v439 = vpack.c.b16 %v408, %v407
      %v440 = vpack.c.b16 %v410, %v409
      %v441 = vpack.c.b16 %v412, %v411
      %v442 = vpack.c.b16 %v414, %v413
      %v443 = vpack.c.b16 %v416, %v415
      %v444 = vpack.c.b16 %v418, %v417
      %v445 = vpack.c.b16 %v420, %v419
      %v446 = vpack.c.b16 %v422, %v421
      %v447 = vpack.c.b16 %v424, %v423
      %v448 = vpack.c.b16 %v426, %v425
      %v449 = vpack.c.b16 %v428, %v427
      %v450 = vpack.c.b16 %v430, %v429
      %v451 = vpack.c.b16 %v432, %v431
      %v452 = vpack.c.b16 %v434, %v433
      %v453 = vpack.c.b16 %v436, %v435
      %v454 = vpack.c.b16 %v438, %v437
      %v487 = vunpack.c.l.b16 %v359
      %v488 = vunpack.c.l.b16 %v360
      %v489 = vunpack.c.l.b16 %v361
      %v490 = vunpack.c.l.b16 %v362
      %v491 = vunpack.c.l.b16 %v363
      %v492 = vunpack.c.l.b16 %v364
      %v493 = vunpack.c.l.b16 %v365
      %v494 = vunpack.c.l.b16 %v366
      %v495 = vunpack.c.l.b16 %v367
      %v496 = vunpack.c.l.b16 %v368
      %v497 = vunpack.c.l.b16 %v369
      %v498 = vunpack.c.l.b16 %v370
      %v499 = vunpack.c.l.b16 %v371
      %v500 = vunpack.c.l.b16 %v372
      %v501 = vunpack.c.l.b16 %v373
      %v502 = vunpack.c.l.b16 %v374
      %v503 = vpack.c.b16 %v488, %v487
      %v504 = vpack.c.b16 %v490, %v489
      %v505 = vpack.c.b16 %v492, %v491
      %v506 = vpack.c.b16 %v494, %v493
      %v507 = vpack.c.b16 %v496, %v495
      %v508 = vpack.c.b16 %v498, %v497
      %v509 = vpack.c.b16 %v500, %v499
      %v510 = vpack.c.b16 %v502, %v501
      %519 = vmatpush.bf16.msra.mxu0 %v510
      %520 = vmatpush.bf16.msra.mxu0 %v509
      %521 = vmatpush.bf16.msra.mxu0 %v508
      %522 = vmatpush.bf16.msra.mxu0 %v507
      %523 = vmatpush.bf16.msra.mxu0 %v506
      %524 = vmatpush.bf16.msra.mxu0 %v505
      %525 = vmatpush.bf16.msra.mxu0 %v504
      %526 = vmatpush.bf16.msra.mxu0 %v503
      %527 = vmatmul.bf16.gmra.mxu0 %v439
      %v528 = vpop.f32.mrf.mxu0
      %v529 = vadd.f32 0.0, %v528
      %v530 = vpop.f32.mrf.mxu0
      %v531 = vadd.f32 0.0, %v530
      %532 = vmatmul.bf16.gmra.mxu0 %v440
      %v533 = vpop.f32.mrf.mxu0
      %v534 = vadd.f32 0.0, %v533
      %v535 = vpop.f32.mrf.mxu0
      %v536 = vadd.f32 0.0, %v535
      %537 = vmatmul.bf16.gmra.mxu0 %v441
      %v538 = vpop.f32.mrf.mxu0
      %v539 = vadd.f32 0.0, %v538
      %v540 = vpop.f32.mrf.mxu0
      %v541 = vadd.f32 0.0, %v540
      %542 = vmatmul.bf16.gmra.mxu0 %v442
      %v543 = vpop.f32.mrf.mxu0
      %v544 = vadd.f32 0.0, %v543
      %v545 = vpop.f32.mrf.mxu0
      %v546 = vadd.f32 0.0, %v545
      %547 = vmatmul.bf16.gmra.mxu0 %v443
      %v548 = vpop.f32.mrf.mxu0
      %v549 = vadd.f32 0.0, %v548
      %v550 = vpop.f32.mrf.mxu0
      %v551 = vadd.f32 0.0, %v550
      %552 = vmatmul.bf16.gmra.mxu0 %v444
      %v553 = vpop.f32.mrf.mxu0
      %v554 = vadd.f32 0.0, %v553
      %v555 = vpop.f32.mrf.mxu0
      %v556 = vadd.f32 0.0, %v555
      %557 = vmatmul.bf16.gmra.mxu0 %v445
      %v558 = vpop.f32.mrf.mxu0
      %v559 = vadd.f32 0.0, %v558
      %v560 = vpop.f32.mrf.mxu0
      %v561 = vadd.f32 0.0, %v560
      %562 = vmatmul.bf16.gmra.mxu0 %v446
      %v563 = vpop.f32.mrf.mxu0
      %v564 = vadd.f32 0.0, %v563
      %v565 = vpop.f32.mrf.mxu0
      %v566 = vadd.f32 0.0, %v565
      %567 = vmatmul.bf16.gmra.mxu0 %v447
      %v568 = vpop.f32.mrf.mxu0
      %v569 = vadd.f32 0.0, %v568
      %v570 = vpop.f32.mrf.mxu0
      %v571 = vadd.f32 0.0, %v570
      %572 = vmatmul.bf16.gmra.mxu0 %v448
      %v573 = vpop.f32.mrf.mxu0
      %v574 = vadd.f32 0.0, %v573
      %v575 = vpop.f32.mrf.mxu0
      %v576 = vadd.f32 0.0, %v575
      %577 = vmatmul.bf16.gmra.mxu0 %v449
      %v578 = vpop.f32.mrf.mxu0
      %v579 = vadd.f32 0.0, %v578
      %v580 = vpop.f32.mrf.mxu0
      %v581 = vadd.f32 0.0, %v580
      %582 = vmatmul.bf16.gmra.mxu0 %v450
      %v583 = vpop.f32.mrf.mxu0
      %v584 = vadd.f32 0.0, %v583
      %v585 = vpop.f32.mrf.mxu0
      %v586 = vadd.f32 0.0, %v585
      %587 = vmatmul.bf16.gmra.mxu0 %v451
      %v588 = vpop.f32.mrf.mxu0
      %v589 = vadd.f32 0.0, %v588
      %v590 = vpop.f32.mrf.mxu0
      %v591 = vadd.f32 0.0, %v590
      %592 = vmatmul.bf16.gmra.mxu0 %v452
      %v593 = vpop.f32.mrf.mxu0
      %v594 = vadd.f32 0.0, %v593
      %v595 = vpop.f32.mrf.mxu0
      %v596 = vadd.f32 0.0, %v595
      %597 = vmatmul.bf16.gmra.mxu0 %v453
      %v598 = vpop.f32.mrf.mxu0
      %v599 = vadd.f32 0.0, %v598
      %v600 = vpop.f32.mrf.mxu0
      %v601 = vadd.f32 0.0, %v600
      %602 = vmatmul.bf16.gmra.mxu0 %v454
      %v603 = vpop.f32.mrf.mxu0
      %v604 = vadd.f32 0.0, %v603
      %v605 = vpop.f32.mrf.mxu0
      %v606 = vadd.f32 0.0, %v605
      %607 = vdwg.mxu0
      %v608 = vadd.f32 %v295, %v529
      %v609 = vadd.f32 %v296, %v531
      %v610 = vadd.f32 %v297, %v534
      %v611 = vadd.f32 %v298, %v536
      %v612 = vadd.f32 %v299, %v539
      %v613 = vadd.f32 %v300, %v541
      %v614 = vadd.f32 %v301, %v544
      %v615 = vadd.f32 %v302, %v546
      %v616 = vadd.f32 %v303, %v549
      %v617 = vadd.f32 %v304, %v551
      %v618 = vadd.f32 %v305, %v554
      %v619 = vadd.f32 %v306, %v556
      %v620 = vadd.f32 %v307, %v559
      %v621 = vadd.f32 %v308, %v561
      %v622 = vadd.f32 %v309, %v564
      %v623 = vadd.f32 %v310, %v566
      %v624 = vadd.f32 %v311, %v569
      %v625 = vadd.f32 %v312, %v571
      %v626 = vadd.f32 %v313, %v574
      %v627 = vadd.f32 %v314, %v576
      %v628 = vadd.f32 %v315, %v579
      %v629 = vadd.f32 %v316, %v581
      %v630 = vadd.f32 %v317, %v584
      %v631 = vadd.f32 %v318, %v586
      %v632 = vadd.f32 %v319, %v589
      %v633 = vadd.f32 %v320, %v591
      %v634 = vadd.f32 %v321, %v594
      %v635 = vadd.f32 %v322, %v596
      %v636 = vadd.f32 %v323, %v599
      %v637 = vadd.f32 %v324, %v601
      %v638 = vadd.f32 %v325, %v604
      %v639 = vadd.f32 %v326, %v606
      %640 = vst [vmem:[#allocation2] sm:$0xff] %v608
      %641 = vst [vmem:[#allocation2 + $0x8] sm:$0xff] %v609
      %642 = vst [vmem:[#allocation2 + $0x10] sm:$0xff] %v610
      %643 = vst [vmem:[#allocation2 + $0x18] sm:$0xff] %v611
      %644 = vst [vmem:[#allocation2 + $0x20] sm:$0xff] %v612
      %645 = vst [vmem:[#allocation2 + $0x28] sm:$0xff] %v613
      %646 = vst [vmem:[#allocation2 + $0x30] sm:$0xff] %v614
      %647 = vst [vmem:[#allocation2 + $0x38] sm:$0xff] %v615
      %648 = vst [vmem:[#allocation2 + $0x40] sm:$0xff] %v616
      %649 = vst [vmem:[#allocation2 + $0x48] sm:$0xff] %v617
      %650 = vst [vmem:[#allocation2 + $0x50] sm:$0xff] %v618
      %651 = vst [vmem:[#allocation2 + $0x58] sm:$0xff] %v619
      %652 = vst [vmem:[#allocation2 + $0x60] sm:$0xff] %v620
      %653 = vst [vmem:[#allocation2 + $0x68] sm:$0xff] %v621
      %654 = vst [vmem:[#allocation2 + $0x70] sm:$0xff] %v622
      %655 = vst [vmem:[#allocation2 + $0x78] sm:$0xff] %v623
      %656 = vst [vmem:[#allocation2 + $0x80] sm:$0xff] %v624
      %657 = vst [vmem:[#allocation2 + $0x88] sm:$0xff] %v625
      %658 = vst [vmem:[#allocation2 + $0x90] sm:$0xff] %v626
      %659 = vst [vmem:[#allocation2 + $0x98] sm:$0xff] %v627
      %660 = vst [vmem:[#allocation2 + $0xa0] sm:$0xff] %v628
      %661 = vst [vmem:[#allocation2 + $0xa8] sm:$0xff] %v629
      %662 = vst [vmem:[#allocation2 + $0xb0] sm:$0xff] %v630
      %663 = vst [vmem:[#allocation2 + $0xb8] sm:$0xff] %v631
      %664 = vst [vmem:[#allocation2 + $0xc0] sm:$0xff] %v632
      %665 = vst [vmem:[#allocation2 + $0xc8] sm:$0xff] %v633
      %666 = vst [vmem:[#allocation2 + $0xd0] sm:$0xff] %v634
      %667 = vst [vmem:[#allocation2 + $0xd8] sm:$0xff] %v635
      %668 = vst [vmem:[#allocation2 + $0xe0] sm:$0xff] %v636
      %669 = vst [vmem:[#allocation2 + $0xe8] sm:$0xff] %v637
      %670 = vst [vmem:[#allocation2 + $0xf0] sm:$0xff] %v638
      %671 = vst [vmem:[#allocation2 + $0xf8] sm:$0xff] %v639
      // Predicated region
      $region37: #{bottleneck_forward.4} parent=31 // pred_check
        %p672 = pneg %p259
      $region38: #{bottleneck_forward.4} parent=31 // pred_check_branch
        %674 = sbr.rel (%p672) target = $region40
      $region39: #{bottleneck_forward.4} parent=31 // pred_region
        %v675 = vld [vmem:[#allocation2] sm:$0xff]
        %v676 = vld [vmem:[#allocation2 + $0x8] sm:$0xff]
        %v677 = vld [vmem:[#allocation2 + $0x10] sm:$0xff]
        %v678 = vld [vmem:[#allocation2 + $0x18] sm:$0xff]
        %v679 = vld [vmem:[#allocation2 + $0x20] sm:$0xff]
        %v680 = vld [vmem:[#allocation2 + $0x28] sm:$0xff]
        %v681 = vld [vmem:[#allocation2 + $0x30] sm:$0xff]
        %v682 = vld [vmem:[#allocation2 + $0x38] sm:$0xff]
        %v683 = vld [vmem:[#allocation2 + $0x40] sm:$0xff]
        %v684 = vld [vmem:[#allocation2 + $0x48] sm:$0xff]
        %v685 = vld [vmem:[#allocation2 + $0x50] sm:$0xff]
        %v686 = vld [vmem:[#allocation2 + $0x58] sm:$0xff]
        %v687 = vld [vmem:[#allocation2 + $0x60] sm:$0xff]
        %v688 = vld [vmem:[#allocation2 + $0x68] sm:$0xff]
        %v689 = vld [vmem:[#allocation2 + $0x70] sm:$0xff]
        %v690 = vld [vmem:[#allocation2 + $0x78] sm:$0xff]
        %v691 = vld [vmem:[#allocation2 + $0x80] sm:$0xff]
        %v692 = vld [vmem:[#allocation2 + $0x88] sm:$0xff]
        %v693 = vld [vmem:[#allocation2 + $0x90] sm:$0xff]
        %v694 = vld [vmem:[#allocation2 + $0x98] sm:$0xff]
        %v695 = vld [vmem:[#allocation2 + $0xa0] sm:$0xff]
        %v696 = vld [vmem:[#allocation2 + $0xa8] sm:$0xff]
        %v697 = vld [vmem:[#allocation2 + $0xb0] sm:$0xff]
        %v698 = vld [vmem:[#allocation2 + $0xb8] sm:$0xff]
        %v699 = vld [vmem:[#allocation2 + $0xc0] sm:$0xff]
        %v700 = vld [vmem:[#allocation2 + $0xc8] sm:$0xff]
        %v701 = vld [vmem:[#allocation2 + $0xd0] sm:$0xff]
        %v702 = vld [vmem:[#allocation2 + $0xd8] sm:$0xff]
        %v703 = vld [vmem:[#allocation2 + $0xe0] sm:$0xff]
        %v704 = vld [vmem:[#allocation2 + $0xe8] sm:$0xff]
        %v705 = vld [vmem:[#allocation2 + $0xf0] sm:$0xff]
        %v706 = vld [vmem:[#allocation2 + $0xf8] sm:$0xff]
        %v707 = vld [vmem:[%s249] sm:$0x1]
        %v709 = vperm.slane %v707, 0
        %v711 = vadd.f32 %v675, %v709
        %v712 = vadd.f32 %v676, %v709
        %v713 = vadd.f32 %v677, %v709
        %v714 = vadd.f32 %v678, %v709
        %v715 = vadd.f32 %v679, %v709
        %v716 = vadd.f32 %v680, %v709
        %v717 = vadd.f32 %v681, %v709
        %v718 = vadd.f32 %v682, %v709
        %v719 = vadd.f32 %v683, %v709
        %v720 = vadd.f32 %v684, %v709
        %v721 = vadd.f32 %v685, %v709
        %v722 = vadd.f32 %v686, %v709
        %v723 = vadd.f32 %v687, %v709
        %v724 = vadd.f32 %v688, %v709
        %v725 = vadd.f32 %v689, %v709
        %v726 = vadd.f32 %v690, %v709
        %v727 = vadd.f32 %v691, %v709
        %v728 = vadd.f32 %v692, %v709
        %v729 = vadd.f32 %v693, %v709
        %v730 = vadd.f32 %v694, %v709
        %v731 = vadd.f32 %v695, %v709
        %v732 = vadd.f32 %v696, %v709
        %v733 = vadd.f32 %v697, %v709
        %v734 = vadd.f32 %v698, %v709
        %v735 = vadd.f32 %v699, %v709
        %v736 = vadd.f32 %v700, %v709
        %v737 = vadd.f32 %v701, %v709
        %v738 = vadd.f32 %v702, %v709
        %v739 = vadd.f32 %v703, %v709
        %v740 = vadd.f32 %v704, %v709
        %v741 = vadd.f32 %v705, %v709
        %v742 = vadd.f32 %v706, %v709
        %v743 = vmax.f32 %v711, 0.0
        %v744 = vmax.f32 %v712, 0.0
        %v745 = vmax.f32 %v713, 0.0
        %v746 = vmax.f32 %v714, 0.0
        %v747 = vmax.f32 %v715, 0.0
        %v748 = vmax.f32 %v716, 0.0
        %v749 = vmax.f32 %v717, 0.0
        %v750 = vmax.f32 %v718, 0.0
        %v751 = vmax.f32 %v719, 0.0
        %v752 = vmax.f32 %v720, 0.0
        %v753 = vmax.f32 %v721, 0.0
        %v754 = vmax.f32 %v722, 0.0
        %v755 = vmax.f32 %v723, 0.0
        %v756 = vmax.f32 %v724, 0.0
        %v757 = vmax.f32 %v725, 0.0
        %v758 = vmax.f32 %v726, 0.0
        %v759 = vmax.f32 %v727, 0.0
        %v760 = vmax.f32 %v728, 0.0
        %v761 = vmax.f32 %v729, 0.0
        %v762 = vmax.f32 %v730, 0.0
        %v763 = vmax.f32 %v731, 0.0
        %v764 = vmax.f32 %v732, 0.0
        %v765 = vmax.f32 %v733, 0.0
        %v766 = vmax.f32 %v734, 0.0
        %v767 = vmax.f32 %v735, 0.0
        %v768 = vmax.f32 %v736, 0.0
        %v769 = vmax.f32 %v737, 0.0
        %v770 = vmax.f32 %v738, 0.0
        %v771 = vmax.f32 %v739, 0.0
        %v772 = vmax.f32 %v740, 0.0
        %v773 = vmax.f32 %v741, 0.0
        %v774 = vmax.f32 %v742, 0.0
        %v775 = vpack.c.bf16 %v743, %v743
        %v776 = vpack.c.bf16 %v744, %v744
        %v777 = vpack.c.bf16 %v745, %v745
        %v778 = vpack.c.bf16 %v746, %v746
        %v779 = vpack.c.bf16 %v747, %v747
        %v780 = vpack.c.bf16 %v748, %v748
        %v781 = vpack.c.bf16 %v749, %v749
        %v782 = vpack.c.bf16 %v750, %v750
        %v783 = vpack.c.bf16 %v751, %v751
        %v784 = vpack.c.bf16 %v752, %v752
        %v785 = vpack.c.bf16 %v753, %v753
        %v786 = vpack.c.bf16 %v754, %v754
        %v787 = vpack.c.bf16 %v755, %v755
        %v788 = vpack.c.bf16 %v756, %v756
        %v789 = vpack.c.bf16 %v757, %v757
        %v790 = vpack.c.bf16 %v758, %v758
        %v791 = vpack.c.bf16 %v759, %v759
        %v792 = vpack.c.bf16 %v760, %v760
        %v793 = vpack.c.bf16 %v761, %v761
        %v794 = vpack.c.bf16 %v762, %v762
        %v795 = vpack.c.bf16 %v763, %v763
        %v796 = vpack.c.bf16 %v764, %v764
        %v797 = vpack.c.bf16 %v765, %v765
        %v798 = vpack.c.bf16 %v766, %v766
        %v799 = vpack.c.bf16 %v767, %v767
        %v800 = vpack.c.bf16 %v768, %v768
        %v801 = vpack.c.bf16 %v769, %v769
        %v802 = vpack.c.bf16 %v770, %v770
        %v803 = vpack.c.bf16 %v771, %v771
        %v804 = vpack.c.bf16 %v772, %v772
        %v805 = vpack.c.bf16 %v773, %v773
        %v806 = vpack.c.bf16 %v774, %v774
        %807 = vst [vmem:[%s257] sm:$0xf] %v775
        %808 = vst [vmem:[%s257 + $0x4] sm:$0xf] %v776
        %809 = vst [vmem:[%s257 + $0x8] sm:$0xf] %v777
        %810 = vst [vmem:[%s257 + $0xc] sm:$0xf] %v778
        %811 = vst [vmem:[%s257 + $0x10] sm:$0xf] %v779
        %812 = vst [vmem:[%s257 + $0x14] sm:$0xf] %v780
        %813 = vst [vmem:[%s257 + $0x18] sm:$0xf] %v781
        %814 = vst [vmem:[%s257 + $0x1c] sm:$0xf] %v782
        %815 = vst [vmem:[%s257 + $0x20] sm:$0xf] %v783
        %816 = vst [vmem:[%s257 + $0x24] sm:$0xf] %v784
        %817 = vst [vmem:[%s257 + $0x28] sm:$0xf] %v785
        %818 = vst [vmem:[%s257 + $0x2c] sm:$0xf] %v786
        %819 = vst [vmem:[%s257 + $0x30] sm:$0xf] %v787
        %820 = vst [vmem:[%s257 + $0x34] sm:$0xf] %v788
        %821 = vst [vmem:[%s257 + $0x38] sm:$0xf] %v789
        %822 = vst [vmem:[%s257 + $0x3c] sm:$0xf] %v790
        %823 = vst [vmem:[%s257 + $0x40] sm:$0xf] %v791
        %824 = vst [vmem:[%s257 + $0x44] sm:$0xf] %v792
        %825 = vst [vmem:[%s257 + $0x48] sm:$0xf] %v793
        %826 = vst [vmem:[%s257 + $0x4c] sm:$0xf] %v794
        %827 = vst [vmem:[%s257 + $0x50] sm:$0xf] %v795
        %828 = vst [vmem:[%s257 + $0x54] sm:$0xf] %v796
        %829 = vst [vmem:[%s257 + $0x58] sm:$0xf] %v797
        %830 = vst [vmem:[%s257 + $0x5c] sm:$0xf] %v798
        %831 = vst [vmem:[%s257 + $0x60] sm:$0xf] %v799
        %832 = vst [vmem:[%s257 + $0x64] sm:$0xf] %v800
        %833 = vst [vmem:[%s257 + $0x68] sm:$0xf] %v801
        %834 = vst [vmem:[%s257 + $0x6c] sm:$0xf] %v802
        %835 = vst [vmem:[%s257 + $0x70] sm:$0xf] %v803
        %836 = vst [vmem:[%s257 + $0x74] sm:$0xf] %v804
        %837 = vst [vmem:[%s257 + $0x78] sm:$0xf] %v805
        %838 = vst [vmem:[%s257 + $0x7c] sm:$0xf] %v806
      $region40: #{bottleneck_forward.4} parent=31 // pred_fallthru
        _
      %s839 = smul.u32 32, %s19
      %p840 = scmp.lt.s32.totalorder %s839, 63
      %s841 = scalar_select %p840, %s839, 63
      %p842 = scmp.lt.s32.totalorder %s20, 0
      %s843 = scalar_select %p842, %s20, 0
      %s844 = sadd.s32 %s843, %s841
      %s845 = smul.addr %s844, 4
      %s846 = scalar_lea.vmem %s3, %s845
      // Predicated region
      $region41: #{bottleneck_forward.4} parent=31 // pred_check
        %p847 = pneg %p135
      $region42: #{bottleneck_forward.4} parent=31 // pred_check_branch
        %849 = sbr.rel (%p847) target = $region44
      $region43: #{bottleneck_forward.4} parent=31 // pred_region
        %s850 = smul.u32 32, %s19
      $region44: #{bottleneck_forward.4} parent=31 // pred_fallthru
        _
    $region32: #{bottleneck_forward.4} parent=5 // pred_fallthru
      _
    %p851 = scmp.le.s32.totalorder 2, %s9
    // Predicated region
    $region45: #{bottleneck_forward.4} parent=5 // pred_check
      %p852 = pneg %p851
    $region46: #{bottleneck_forward.4} parent=5 // pred_check_branch
      %854 = sbr.rel (%p852) target = $region48
    $region47: #{bottleneck_forward.4} parent=5 // pred_region
      %s855 = ssub.s32 %s9, 2
      // Predicated region
      $region49: #{bottleneck_forward.4} parent=47 // pred_check
        %p856 = pneg %p141
      $region50: #{bottleneck_forward.4} parent=47 // pred_check_branch
        %858 = sbr.rel (%p856) target = $region52
      $region51: #{bottleneck_forward.4} parent=47 // pred_region
        %s859 = smul.u32 32, %s22
        %p860 = scmp.lt.s32.totalorder %s859, 63
        %s861 = scalar_select %p860, %s859, 63
        %p862 = scmp.lt.s32.totalorder %s23, 0
        %s863 = scalar_select %p862, %s23, 0
        %s864 = sadd.s32 %s863, %s861
        %s865 = smul.addr %s864, 4
        %s866 = scalar_lea.vmem %s3, %s865
      $region52: #{bottleneck_forward.4} parent=47 // pred_fallthru
        _
    $region48: #{bottleneck_forward.4} parent=5 // pred_fallthru
      _
  $region6: #{bottleneck_forward.4} parent=0 // loop_footer
    %s13 = sadd.s32 1, %s9
  $region7: #{bottleneck_forward.4} parent=0 // loop_footer_branch
    %8 = sbr.rel target = $region3
  $region8: #{bottleneck_forward.4} parent=0 // loop_exit
    _

// kernel: bottleneck_forward.7
$region0: #{bottleneck_forward.7}
  #allocation0 [shape = 'u32[]', space=smem, size = 0x4, offset = 0x4, fixed_abs, tag = 'smem constant byte address 0x4 - core index']
  #allocation1 [shape = 'u32[72,128]{1,0:T(1,128)}', space=vmem, size = 0x9000, scoped, tag = 'internal scratch']
  #allocation2 [shape = 'f32[256,128]{1,0:T(8,128)}', space=vmem, size = 0x20000, scoped, tag = 'scratch operand']
  %s0 = inlined_call_operand.vmem [shape: bf16[512,128], index: 0, kind: input, shape index: {}]
  %s1 = inlined_call_operand.vmem [shape: bf16[128,128], index: 1, kind: input, shape index: {}]
  %s2 = inlined_call_operand.vmem [shape: f32[1,128], index: 2, kind: input, shape index: {}]
  %s3 = inlined_call_operand.vmem [shape: bf16[512,128], index: 3, kind: input, shape index: {}]
  %s4 = inlined_call_operand.vmem [shape: bf16[512,128], index: 4, kind: output, shape index: {}]
  %s5 = sld [smem:[#allocation0]]
  $region57: #{bottleneck_forward.7} parent=0
    _
  %s7 = ssub.s32 1, %s5
  %s8 = scalar_select 0, %s7, %s5
  loop: start=0, step=1, limit=4
  $region2: #{bottleneck_forward.7} parent=0 // loop_pre_header
    _
  $region3: #{bottleneck_forward.7} parent=0 // loop_header
    %s10 = sphi 0, %s14
    %p11 = scmp.ge.s32.totalorder %s10, 4
    %s17 = sphi 0, %s36
    %s18 = sphi 0, %s32
    %s19 = sphi 0, %s28
    %s20 = sphi 0, %s17
    %s21 = sphi 0, %s18
    %s22 = sphi 0, %s19
    %s23 = sphi 0, %s20
    %s24 = sphi 0, %s21
    %s25 = sphi 0, %s22
    %s41 = sphi 0, %s43
    %s44 = sphi 0, %s41
    %s45 = sphi 0, %s44
    %s61 = sphi 0, %s45
    %s69 = sphi 0, %s71
    %s72 = sphi 0, %s69
    %s73 = sphi 0, %s72
    %s89 = sphi 0, %s73
    %s95 = sphi 0, %s97
    %s98 = sphi 0, %s95
    %s99 = sphi 0, %s98
    %s115 = sphi 0, %s99
    %s123 = sphi 0, %s125
    %s126 = sphi 0, %s123
    %s127 = sphi 0, %s126
    %s143 = sphi 0, %s127
    %s151 = sphi 0, %s153
    %s154 = sphi 0, %s151
    %s155 = sphi 0, %s154
    %s171 = sphi 0, %s155
  $region4: #{bottleneck_forward.7} parent=0 // loop_header_branch
    %13 = sbr.rel (%p11) target = $region8
  $region5: #{bottleneck_forward.7} parent=0 // loop_body
    %s15 = ssub.s32 %s10, 1
    %s16 = ssub.s32 %s10, 2
    %s26 = sadd.s32 1, %s19
    %p27 = scmp.ge.s32.totalorder %s26, 1
    %s28 = scalar_select %p27, 0, %s26
    %s29 = sadd.s32 1, %s18
    %s30 = scalar_select %p27, %s29, %s18
    %p31 = scmp.ge.s32.totalorder %s30, 1
    %s32 = scalar_select %p31, 0, %s30
    %s33 = sadd.s32 1, %s17
    %s34 = scalar_select %p31, %s33, %s17
    %p35 = scmp.ge.s32.totalorder %s34, 2
    %s36 = scalar_select %p35, 0, %s34
    %s37 = ssub.s32 %s17, %s36
    %s38 = ssub.s32 %s19, %s28
    %s39 = sor.u32 %s37, %s38
    %p40 = scmp.eq.s32.totalorder %s39, 0
    %s42 = sadd.s32 %s41, 1
    %s43 = scalar_select %p40, %s41, %s42
    %p46 = pneg %p40
    %p47 = scmp.eq.s32.totalorder %s10, 1
    %p48 = por %p46, %p47
    %p49 = scmp.ne.s32.totalorder %s41, %s44
    %p50 = scmp.eq.s32.totalorder %s10, 0
    %p51 = por %p49, %p50
    %p52 = scmp.ne.s32.totalorder %s41, %s44
    %p53 = scmp.eq.s32.totalorder %s15, 1
    %p54 = por %p52, %p53
    %p55 = scmp.ne.s32.totalorder %s44, %s45
    %p56 = scmp.eq.s32.totalorder %s15, 0
    %p57 = por %p55, %p56
    %p58 = scmp.ne.s32.totalorder %s44, %s45
    %p59 = scmp.eq.s32.totalorder %s16, 1
    %p60 = por %p58, %p59
    %p62 = scmp.ne.s32.totalorder %s45, %s61
    %p63 = scmp.eq.s32.totalorder %s16, 0
    %p64 = por %p62, %p63
    %s65 = ssub.s32 %s19, %s28
    %s66 = ssub.s32 %s18, %s32
    %s67 = sor.u32 %s65, %s66
    %p68 = scmp.eq.s32.totalorder %s67, 0
    %s70 = sadd.s32 %s69, 1
    %s71 = scalar_select %p68, %s69, %s70
    %p74 = pneg %p68
    %p75 = scmp.eq.s32.totalorder %s10, 1
    %p76 = por %p74, %p75
    %p77 = scmp.ne.s32.totalorder %s69, %s72
    %p78 = scmp.eq.s32.totalorder %s10, 0
    %p79 = por %p77, %p78
    %p80 = scmp.ne.s32.totalorder %s69, %s72
    %p81 = scmp.eq.s32.totalorder %s15, 1
    %p82 = por %p80, %p81
    %p83 = scmp.ne.s32.totalorder %s72, %s73
    %p84 = scmp.eq.s32.totalorder %s15, 0
    %p85 = por %p83, %p84
    %p86 = scmp.ne.s32.totalorder %s72, %s73
    %p87 = scmp.eq.s32.totalorder %s16, 1
    %p88 = por %p86, %p87
    %p90 = scmp.ne.s32.totalorder %s73, %s89
    %p91 = scmp.eq.s32.totalorder %s16, 0
    %p92 = por %p90, %p91
    %s93 = ssub.s32 %s18, %s32
    %p94 = scmp.eq.s32.totalorder %s93, 0
    %s96 = sadd.s32 %s95, 1
    %s97 = scalar_select %p94, %s95, %s96
    %p100 = pneg %p94
    %p101 = scmp.eq.s32.totalorder %s10, 1
    %p102 = por %p100, %p101
    %p103 = scmp.ne.s32.totalorder %s95, %s98
    %p104 = scmp.eq.s32.totalorder %s10, 0
    %p105 = por %p103, %p104
    %p106 = scmp.ne.s32.totalorder %s95, %s98
    %p107 = scmp.eq.s32.totalorder %s15, 1
    %p108 = por %p106, %p107
    %p109 = scmp.ne.s32.totalorder %s98, %s99
    %p110 = scmp.eq.s32.totalorder %s15, 0
    %p111 = por %p109, %p110
    %p112 = scmp.ne.s32.totalorder %s98, %s99
    %p113 = scmp.eq.s32.totalorder %s16, 1
    %p114 = por %p112, %p113
    %p116 = scmp.ne.s32.totalorder %s99, %s115
    %p117 = scmp.eq.s32.totalorder %s16, 0
    %p118 = por %p116, %p117
    %s119 = ssub.s32 %s17, %s36
    %s120 = ssub.s32 %s18, %s32
    %s121 = sor.u32 %s119, %s120
    %p122 = scmp.eq.s32.totalorder %s121, 0
    %s124 = sadd.s32 %s123, 1
    %s125 = scalar_select %p122, %s123, %s124
    %p128 = pneg %p122
    %p129 = scmp.eq.s32.totalorder %s10, 1
    %p130 = por %p128, %p129
    %p131 = scmp.ne.s32.totalorder %s123, %s126
    %p132 = scmp.eq.s32.totalorder %s10, 0
    %p133 = por %p131, %p132
    %p134 = scmp.ne.s32.totalorder %s123, %s126
    %p135 = scmp.eq.s32.totalorder %s15, 1
    %p136 = por %p134, %p135
    %p137 = scmp.ne.s32.totalorder %s126, %s127
    %p138 = scmp.eq.s32.totalorder %s15, 0
    %p139 = por %p137, %p138
    %p140 = scmp.ne.s32.totalorder %s126, %s127
    %p141 = scmp.eq.s32.totalorder %s16, 1
    %p142 = por %p140, %p141
    %p144 = scmp.ne.s32.totalorder %s127, %s143
    %p145 = scmp.eq.s32.totalorder %s16, 0
    %p146 = por %p144, %p145
    %s147 = ssub.s32 %s17, %s36
    %s148 = ssub.s32 %s18, %s32
    %s149 = sor.u32 %s147, %s148
    %p150 = scmp.eq.s32.totalorder %s149, 0
    %s152 = sadd.s32 %s151, 1
    %s153 = scalar_select %p150, %s151, %s152
    %p156 = pneg %p150
    %p157 = scmp.eq.s32.totalorder %s10, 1
    %p158 = por %p156, %p157
    %p159 = scmp.ne.s32.totalorder %s151, %s154
    %p160 = scmp.eq.s32.totalorder %s10, 0
    %p161 = por %p159, %p160
    %p162 = scmp.ne.s32.totalorder %s151, %s154
    %p163 = scmp.eq.s32.totalorder %s15, 1
    %p164 = por %p162, %p163
    %p165 = scmp.ne.s32.totalorder %s154, %s155
    %p166 = scmp.eq.s32.totalorder %s15, 0
    %p167 = por %p165, %p166
    %p168 = scmp.ne.s32.totalorder %s154, %s155
    %p169 = scmp.eq.s32.totalorder %s16, 1
    %p170 = por %p168, %p169
    %p172 = scmp.ne.s32.totalorder %s155, %s171
    %p173 = scmp.eq.s32.totalorder %s16, 0
    %p174 = por %p172, %p173
    %p175 = scmp.le.s32.totalorder 1, %s10
    %p176 = scmp.lt.s32.totalorder %s10, 3
    %p177 = pnand %p175, %p176
    %p178 = pneg %p177
    // Predicated region
    $region9: #{bottleneck_forward.7} parent=5 // pred_check
      _
    $region10: #{bottleneck_forward.7} parent=5 // pred_check_branch
      %180 = sbr.rel (%p177) target = $region12
    $region11: #{bottleneck_forward.7} parent=5 // pred_region
      %s181 = ssub.s32 %s10, 1
      // Predicated region
      $region13: #{bottleneck_forward.7} parent=11 // pred_check
        %p182 = pneg %p85
      $region14: #{bottleneck_forward.7} parent=11 // pred_check_branch
        %184 = sbr.rel (%p182) target = $region16
      $region15: #{bottleneck_forward.7} parent=11 // pred_region
        %s185 = smul.u32 16, %s22
        %p186 = scmp.lt.s32.totalorder %s185, 15
        %s187 = scalar_select %p186, %s185, 15
        %p188 = scmp.lt.s32.totalorder %s21, 0
        %s189 = scalar_select %p188, %s21, 0
        %s190 = sadd.s32 %s189, %s187
        %s191 = smul.addr %s190, 4
        %s192 = scalar_lea.vmem %s1, %s191
        %s193 = smul.u32 16, %s22
      $region16: #{bottleneck_forward.7} parent=11 // pred_fallthru
        _
      // Predicated region
      $region17: #{bottleneck_forward.7} parent=11 // pred_check
        %p194 = pneg %p111
      $region18: #{bottleneck_forward.7} parent=11 // pred_check_branch
        %196 = sbr.rel (%p194) target = $region20
      $region19: #{bottleneck_forward.7} parent=11 // pred_region
        %p197 = scmp.lt.s32.totalorder %s21, 0
        %s198 = scalar_select %p197, %s21, 0
        %s199 = scalar_lea.vmem %s2, %s198
      $region20: #{bottleneck_forward.7} parent=11 // pred_fallthru
        _
    $region12: #{bottleneck_forward.7} parent=5 // pred_fallthru
      _
    %p200 = scmp.lt.s32.totalorder %s10, 2
    // Predicated region
    $region21: #{bottleneck_forward.7} parent=5 // pred_check
      %p201 = pneg %p200
    $region22: #{bottleneck_forward.7} parent=5 // pred_check_branch
      %203 = sbr.rel (%p201) target = $region24
    $region23: #{bottleneck_forward.7} parent=5 // pred_region
      // Predicated region
      $region25: #{bottleneck_forward.7} parent=23 // pred_check
        %p204 = pneg %p51
      $region26: #{bottleneck_forward.7} parent=23 // pred_check_branch
        %206 = sbr.rel (%p204) target = $region28
      $region27: #{bottleneck_forward.7} parent=23 // pred_region
        %s207 = smul.u32 32, %s17
        %p208 = scmp.lt.s32.totalorder %s207, 63
        %s209 = scalar_select %p208, %s207, 63
        %p210 = scmp.lt.s32.totalorder %s19, 0
        %s211 = scalar_select %p210, %s19, 0
        %s212 = sadd.s32 %s211, %s209
        %s213 = smul.addr %s212, 4
        %s214 = scalar_lea.vmem %s0, %s213
        %s215 = smul.u32 32, %s17
      $region28: #{bottleneck_forward.7} parent=23 // pred_fallthru
        _
      // Predicated region
      $region29: #{bottleneck_forward.7} parent=23 // pred_check
        %p216 = pneg %p133
      $region30: #{bottleneck_forward.7} parent=23 // pred_check_branch
        %218 = sbr.rel (%p216) target = $region32
      $region31: #{bottleneck_forward.7} parent=23 // pred_region
        %s219 = smul.u32 32, %s17
        %p220 = scmp.lt.s32.totalorder %s219, 63
        %s221 = scalar_select %p220, %s219, 63
        %p222 = scmp.lt.s32.totalorder %s18, 0
        %s223 = scalar_select %p222, %s18, 0
        %s224 = sadd.s32 %s223, %s221
        %s225 = smul.addr %s224, 4
        %s226 = scalar_lea.vmem %s3, %s225
        %s227 = smul.u32 32, %s17
      $region32: #{bottleneck_forward.7} parent=23 // pred_fallthru
        _
    $region24: #{bottleneck_forward.7} parent=5 // pred_fallthru
      _
    %p228 = scmp.le.s32.totalorder 1, %s10
    %p229 = scmp.lt.s32.totalorder %s10, 3
    %p230 = pnand %p228, %p229
    %p231 = pneg %p230
    // Predicated region
    $region33: #{bottleneck_forward.7} parent=5 // pred_check
      _
    $region34: #{bottleneck_forward.7} parent=5 // pred_check_branch
      %233 = sbr.rel (%p230) target = $region36
    $region35: #{bottleneck_forward.7} parent=5 // pred_region
      %s234 = ssub.s32 %s10, 1
      %s235 = smul.u32 32, %s20
      %p236 = scmp.lt.s32.totalorder %s235, 63
      %s237 = scalar_select %p236, %s235, 63
      %p238 = scmp.lt.s32.totalorder %s22, 0
      %s239 = scalar_select %p238, %s22, 0
      %s240 = sadd.s32 %s239, %s237
      %s241 = smul.addr %s240, 4
      %s242 = scalar_lea.vmem %s0, %s241
      %p243 = pneg %p57
      %p244 = pneg %p54
      %s245 = smul.u32 16, %s22
      %p246 = scmp.lt.s32.totalorder %s245, 15
      %s247 = scalar_select %p246, %s245, 15
      %p248 = scmp.lt.s32.totalorder %s21, 0
      %s249 = scalar_select %p248, %s21, 0
      %s250 = sadd.s32 %s249, %s247
      %s251 = smul.addr %s250, 4
      %s252 = scalar_lea.vmem %s1, %s251
      %p253 = pneg %p85
      %p254 = pneg %p82
      %p255 = scmp.lt.s32.totalorder %s21, 0
      %s256 = scalar_select %p255, %s21, 0
      %s257 = scalar_lea.vmem %s2, %s256
      %p258 = pneg %p111
      %p259 = pneg %p108
      %s260 = smul.u32 32, %s20
      %p261 = scmp.lt.s32.totalorder %s260, 63
      %s262 = scalar_select %p261, %s260, 63
      %p263 = scmp.lt.s32.totalorder %s21, 0
      %s264 = scalar_select %p263, %s21, 0
      %s265 = sadd.s32 %s264, %s262
      %s266 = smul.addr %s265, 4
      %s267 = scalar_lea.vmem %s3, %s266
      %p268 = pneg %p139
      %p269 = pneg %p136
      %p270 = pneg %p167
      %p271 = pneg %p164
      %s272 = smul.u32 32, %s20
      %p273 = scmp.lt.s32.totalorder %s272, 63
      %s274 = scalar_select %p273, %s272, 63
      %p275 = scmp.lt.s32.totalorder %s21, 0
      %s276 = scalar_select %p275, %s21, 0
      %s277 = sadd.s32 %s276, %s274
      %s278 = smul.addr %s277, 4
      %s279 = scalar_lea.vmem %s4, %s278
      %s280 = smul.u32 32, %s20
      %p281 = scmp.lt.s32.totalorder %s280, 63
      %s282 = scalar_select %p281, %s280, 63
      %p283 = scmp.lt.s32.totalorder %s22, 0
      %s284 = scalar_select %p283, %s22, 0
      %s285 = sadd.s32 %s284, %s282
      %s286 = smul.addr %s285, 4
      %s287 = scalar_lea.vmem %s0, %s286
      %s288 = smul.u32 32, %s20
      %s289 = smul.u32 16, %s22
      %p290 = scmp.lt.s32.totalorder %s289, 15
      %s291 = scalar_select %p290, %s289, 15
      %p292 = scmp.lt.s32.totalorder %s21, 0
      %s293 = scalar_select %p292, %s21, 0
      %s294 = sadd.s32 %s293, %s291
      %s295 = smul.addr %s294, 4
      %s296 = scalar_lea.vmem %s1, %s295
      %s297 = smul.u32 16, %s22
      %p298 = scmp.lt.s32.totalorder %s21, 0
      %s299 = scalar_select %p298, %s21, 0
      %s300 = scalar_lea.vmem %s2, %s299
      %s301 = smul.u32 32, %s20
      %p302 = scmp.lt.s32.totalorder %s301, 63
      %s303 = scalar_select %p302, %s301, 63
      %p304 = scmp.lt.s32.totalorder %s21, 0
      %s305 = scalar_select %p304, %s21, 0
      %s306 = sadd.s32 %s305, %s303
      %s307 = smul.addr %s306, 4
      %s308 = scalar_lea.vmem %s3, %s307
      %s309 = smul.u32 32, %s20
      %s310 = smul.u32 32, %s20
      %p311 = scmp.lt.s32.totalorder %s310, 63
      %s312 = scalar_select %p311, %s310, 63
      %p313 = scmp.lt.s32.totalorder %s21, 0
      %s314 = scalar_select %p313, %s21, 0
      %s315 = sadd.s32 %s314, %s312
      %s316 = smul.addr %s315, 4
      %s317 = scalar_lea.vmem %s4, %s316
      %s318 = smul.u32 32, %s20
      %p319 = scmp.eq.s32.totalorder %s22, 0
      // Predicated region
      $region37: #{bottleneck_forward.7} parent=35 // pred_check
        %p320 = pneg %p319
      $region38: #{bottleneck_forward.7} parent=35 // pred_check_branch
        %322 = sbr.rel (%p320) target = $region40
      $region39: #{bottleneck_forward.7} parent=35 // pred_region
        %323 = vst [vmem:[#allocation2] sm:$0xff] 0.0
        %324 = vst [vmem:[#allocation2 + $0x8] sm:$0xff] 0.0
        %325 = vst [vmem:[#allocation2 + $0x10] sm:$0xff] 0.0
        %326 = vst [vmem:[#allocation2 + $0x18] sm:$0xff] 0.0
        %327 = vst [vmem:[#allocation2 + $0x20] sm:$0xff] 0.0
        %328 = vst [vmem:[#allocation2 + $0x28] sm:$0xff] 0.0
        %329 = vst [vmem:[#allocation2 + $0x30] sm:$0xff] 0.0
        %330 = vst [vmem:[#allocation2 + $0x38] sm:$0xff] 0.0
        %331 = vst [vmem:[#allocation2 + $0x40] sm:$0xff] 0.0
        %332 = vst [vmem:[#allocation2 + $0x48] sm:$0xff] 0.0
        %333 = vst [vmem:[#allocation2 + $0x50] sm:$0xff] 0.0
        %334 = vst [vmem:[#allocation2 + $0x58] sm:$0xff] 0.0
        %335 = vst [vmem:[#allocation2 + $0x60] sm:$0xff] 0.0
        %336 = vst [vmem:[#allocation2 + $0x68] sm:$0xff] 0.0
        %337 = vst [vmem:[#allocation2 + $0x70] sm:$0xff] 0.0
        %338 = vst [vmem:[#allocation2 + $0x78] sm:$0xff] 0.0
        %339 = vst [vmem:[#allocation2 + $0x80] sm:$0xff] 0.0
        %340 = vst [vmem:[#allocation2 + $0x88] sm:$0xff] 0.0
        %341 = vst [vmem:[#allocation2 + $0x90] sm:$0xff] 0.0
        %342 = vst [vmem:[#allocation2 + $0x98] sm:$0xff] 0.0
        %343 = vst [vmem:[#allocation2 + $0xa0] sm:$0xff] 0.0
        %344 = vst [vmem:[#allocation2 + $0xa8] sm:$0xff] 0.0
        %345 = vst [vmem:[#allocation2 + $0xb0] sm:$0xff] 0.0
        %346 = vst [vmem:[#allocation2 + $0xb8] sm:$0xff] 0.0
        %347 = vst [vmem:[#allocation2 + $0xc0] sm:$0xff] 0.0
        %348 = vst [vmem:[#allocation2 + $0xc8] sm:$0xff] 0.0
        %349 = vst [vmem:[#allocation2 + $0xd0] sm:$0xff] 0.0
        %350 = vst [vmem:[#allocation2 + $0xd8] sm:$0xff] 0.0
        %351 = vst [vmem:[#allocation2 + $0xe0] sm:$0xff] 0.0
        %352 = vst [vmem:[#allocation2 + $0xe8] sm:$0xff] 0.0
        %353 = vst [vmem:[#allocation2 + $0xf0] sm:$0xff] 0.0
        %354 = vst [vmem:[#allocation2 + $0xf8] sm:$0xff] 0.0
      $region40: #{bottleneck_forward.7} parent=35 // pred_fallthru
        _
      %v355 = vld [vmem:[#allocation2] sm:$0xff]
      %v356 = vld [vmem:[#allocation2 + $0x8] sm:$0xff]
      %v357 = vld [vmem:[#allocation2 + $0x10] sm:$0xff]
      %v358 = vld [vmem:[#allocation2 + $0x18] sm:$0xff]
      %v359 = vld [vmem:[#allocation2 + $0x20] sm:$0xff]
      %v360 = vld [vmem:[#allocation2 + $0x28] sm:$0xff]
      %v361 = vld [vmem:[#allocation2 + $0x30] sm:$0xff]
      %v362 = vld [vmem:[#allocation2 + $0x38] sm:$0xff]
      %v363 = vld [vmem:[#allocation2 + $0x40] sm:$0xff]
      %v364 = vld [vmem:[#allocation2 + $0x48] sm:$0xff]
      %v365 = vld [vmem:[#allocation2 + $0x50] sm:$0xff]
      %v366 = vld [vmem:[#allocation2 + $0x58] sm:$0xff]
      %v367 = vld [vmem:[#allocation2 + $0x60] sm:$0xff]
      %v368 = vld [vmem:[#allocation2 + $0x68] sm:$0xff]
      %v369 = vld [vmem:[#allocation2 + $0x70] sm:$0xff]
      %v370 = vld [vmem:[#allocation2 + $0x78] sm:$0xff]
      %v371 = vld [vmem:[#allocation2 + $0x80] sm:$0xff]
      %v372 = vld [vmem:[#allocation2 + $0x88] sm:$0xff]
      %v373 = vld [vmem:[#allocation2 + $0x90] sm:$0xff]
      %v374 = vld [vmem:[#allocation2 + $0x98] sm:$0xff]
      %v375 = vld [vmem:[#allocation2 + $0xa0] sm:$0xff]
      %v376 = vld [vmem:[#allocation2 + $0xa8] sm:$0xff]
      %v377 = vld [vmem:[#allocation2 + $0xb0] sm:$0xff]
      %v378 = vld [vmem:[#allocation2 + $0xb8] sm:$0xff]
      %v379 = vld [vmem:[#allocation2 + $0xc0] sm:$0xff]
      %v380 = vld [vmem:[#allocation2 + $0xc8] sm:$0xff]
      %v381 = vld [vmem:[#allocation2 + $0xd0] sm:$0xff]
      %v382 = vld [vmem:[#allocation2 + $0xd8] sm:$0xff]
      %v383 = vld [vmem:[#allocation2 + $0xe0] sm:$0xff]
      %v384 = vld [vmem:[#allocation2 + $0xe8] sm:$0xff]
      %v385 = vld [vmem:[#allocation2 + $0xf0] sm:$0xff]
      %v386 = vld [vmem:[#allocation2 + $0xf8] sm:$0xff]
      %v387 = vld [vmem:[%s287] sm:$0xf]
      %v388 = vld [vmem:[%s287 + $0x4] sm:$0xf]
      %v389 = vld [vmem:[%s287 + $0x8] sm:$0xf]
      %v390 = vld [vmem:[%s287 + $0xc] sm:$0xf]
      %v391 = vld [vmem:[%s287 + $0x10] sm:$0xf]
      %v392 = vld [vmem:[%s287 + $0x14] sm:$0xf]
      %v393 = vld [vmem:[%s287 + $0x18] sm:$0xf]
      %v394 = vld [vmem:[%s287 + $0x1c] sm:$0xf]
      %v395 = vld [vmem:[%s287 + $0x20] sm:$0xf]
      %v396 = vld [vmem:[%s287 + $0x24] sm:$0xf]
      %v397 = vld [vmem:[%s287 + $0x28] sm:$0xf]
      %v398 = vld [vmem:[%s287 + $0x2c] sm:$0xf]
      %v399 = vld [vmem:[%s287 + $0x30] sm:$0xf]
      %v400 = vld [vmem:[%s287 + $0x34] sm:$0xf]
      %v401 = vld [vmem:[%s287 + $0x38] sm:$0xf]
      %v402 = vld [vmem:[%s287 + $0x3c] sm:$0xf]
      %v403 = vld [vmem:[%s287 + $0x40] sm:$0xf]
      %v404 = vld [vmem:[%s287 + $0x44] sm:$0xf]
      %v405 = vld [vmem:[%s287 + $0x48] sm:$0xf]
      %v406 = vld [vmem:[%s287 + $0x4c] sm:$0xf]
      %v407 = vld [vmem:[%s287 + $0x50] sm:$0xf]
      %v408 = vld [vmem:[%s287 + $0x54] sm:$0xf]
      %v409 = vld [vmem:[%s287 + $0x58] sm:$0xf]
      %v410 = vld [vmem:[%s287 + $0x5c] sm:$0xf]
      %v411 = vld [vmem:[%s287 + $0x60] sm:$0xf]
      %v412 = vld [vmem:[%s287 + $0x64] sm:$0xf]
      %v413 = vld [vmem:[%s287 + $0x68] sm:$0xf]
      %v414 = vld [vmem:[%s287 + $0x6c] sm:$0xf]
      %v415 = vld [vmem:[%s287 + $0x70] sm:$0xf]
      %v416 = vld [vmem:[%s287 + $0x74] sm:$0xf]
      %v417 = vld [vmem:[%s287 + $0x78] sm:$0xf]
      %v418 = vld [vmem:[%s287 + $0x7c] sm:$0xf]
      %v419 = vld [vmem:[%s296] sm:$0xf]
      %v420 = vld [vmem:[%s296 + $0x4] sm:$0xf]
      %v421 = vld [vmem:[%s296 + $0x8] sm:$0xf]
      %v422 = vld [vmem:[%s296 + $0xc] sm:$0xf]
      %v423 = vld [vmem:[%s296 + $0x10] sm:$0xf]
      %v424 = vld [vmem:[%s296 + $0x14] sm:$0xf]
      %v425 = vld [vmem:[%s296 + $0x18] sm:$0xf]
      %v426 = vld [vmem:[%s296 + $0x1c] sm:$0xf]
      %v427 = vld [vmem:[%s296 + $0x20] sm:$0xf]
      %v428 = vld [vmem:[%s296 + $0x24] sm:$0xf]
      %v429 = vld [vmem:[%s296 + $0x28] sm:$0xf]
      %v430 = vld [vmem:[%s296 + $0x2c] sm:$0xf]
      %v431 = vld [vmem:[%s296 + $0x30] sm:$0xf]
      %v432 = vld [vmem:[%s296 + $0x34] sm:$0xf]
      %v433 = vld [vmem:[%s296 + $0x38] sm:$0xf]
      %v434 = vld [vmem:[%s296 + $0x3c] sm:$0xf]
      %v467 = vunpack.c.l.b16 %v387
      %v468 = vunpack.c.l.b16 %v388
      %v469 = vunpack.c.l.b16 %v389
      %v470 = vunpack.c.l.b16 %v390
      %v471 = vunpack.c.l.b16 %v391
      %v472 = vunpack.c.l.b16 %v392
      %v473 = vunpack.c.l.b16 %v393
      %v474 = vunpack.c.l.b16 %v394
      %v475 = vunpack.c.l.b16 %v395
      %v476 = vunpack.c.l.b16 %v396
      %v477 = vunpack.c.l.b16 %v397
      %v478 = vunpack.c.l.b16 %v398
      %v479 = vunpack.c.l.b16 %v399
      %v480 = vunpack.c.l.b16 %v400
      %v481 = vunpack.c.l.b16 %v401
      %v482 = vunpack.c.l.b16 %v402
      %v483 = vunpack.c.l.b16 %v403
      %v484 = vunpack.c.l.b16 %v404
      %v485 = vunpack.c.l.b16 %v405
      %v486 = vunpack.c.l.b16 %v406
      %v487 = vunpack.c.l.b16 %v407
      %v488 = vunpack.c.l.b16 %v408
      %v489 = vunpack.c.l.b16 %v409
      %v490 = vunpack.c.l.b16 %v410
      %v491 = vunpack.c.l.b16 %v411
      %v492 = vunpack.c.l.b16 %v412
      %v493 = vunpack.c.l.b16 %v413
      %v494 = vunpack.c.l.b16 %v414
      %v495 = vunpack.c.l.b16 %v415
      %v496 = vunpack.c.l.b16 %v416
      %v497 = vunpack.c.l.b16 %v417
      %v498 = vunpack.c.l.b16 %v418
      %v499 = vpack.c.b16 %v468, %v467
      %v500 = vpack.c.b16 %v470, %v469
      %v501 = vpack.c.b16 %v472, %v471
      %v502 = vpack.c.b16 %v474, %v473
      %v503 = vpack.c.b16 %v476, %v475
      %v504 = vpack.c.b16 %v478, %v477
      %v505 = vpack.c.b16 %v480, %v479
      %v506 = vpack.c.b16 %v482, %v481
      %v507 = vpack.c.b16 %v484, %v483
      %v508 = vpack.c.b16 %v486, %v485
      %v509 = vpack.c.b16 %v488, %v487
      %v510 = vpack.c.b16 %v490, %v489
      %v511 = vpack.c.b16 %v492, %v491
      %v512 = vpack.c.b16 %v494, %v493
      %v513 = vpack.c.b16 %v496, %v495
      %v514 = vpack.c.b16 %v498, %v497
      %v547 = vunpack.c.l.b16 %v419
      %v548 = vunpack.c.l.b16 %v420
      %v549 = vunpack.c.l.b16 %v421
      %v550 = vunpack.c.l.b16 %v422
      %v551 = vunpack.c.l.b16 %v423
      %v552 = vunpack.c.l.b16 %v424
      %v553 = vunpack.c.l.b16 %v425
      %v554 = vunpack.c.l.b16 %v426
      %v555 = vunpack.c.l.b16 %v427
      %v556 = vunpack.c.l.b16 %v428
      %v557 = vunpack.c.l.b16 %v429
      %v558 = vunpack.c.l.b16 %v430
      %v559 = vunpack.c.l.b16 %v431
      %v560 = vunpack.c.l.b16 %v432
      %v561 = vunpack.c.l.b16 %v433
      %v562 = vunpack.c.l.b16 %v434
      %v563 = vpack.c.b16 %v548, %v547
      %v564 = vpack.c.b16 %v550, %v549
      %v565 = vpack.c.b16 %v552, %v551
      %v566 = vpack.c.b16 %v554, %v553
      %v567 = vpack.c.b16 %v556, %v555
      %v568 = vpack.c.b16 %v558, %v557
      %v569 = vpack.c.b16 %v560, %v559
      %v570 = vpack.c.b16 %v562, %v561
      %579 = vmatpush.bf16.msra.mxu0 %v570
      %580 = vmatpush.bf16.msra.mxu0 %v569
      %581 = vmatpush.bf16.msra.mxu0 %v568
      %582 = vmatpush.bf16.msra.mxu0 %v567
      %583 = vmatpush.bf16.msra.mxu0 %v566
      %584 = vmatpush.bf16.msra.mxu0 %v565
      %585 = vmatpush.bf16.msra.mxu0 %v564
      %586 = vmatpush.bf16.msra.mxu0 %v563
      %587 = vmatmul.bf16.gmra.mxu0 %v499
      %v588 = vpop.f32.mrf.mxu0
      %v589 = vadd.f32 0.0, %v588
      %v590 = vpop.f32.mrf.mxu0
      %v591 = vadd.f32 0.0, %v590
      %592 = vmatmul.bf16.gmra.mxu0 %v500
      %v593 = vpop.f32.mrf.mxu0
      %v594 = vadd.f32 0.0, %v593
      %v595 = vpop.f32.mrf.mxu0
      %v596 = vadd.f32 0.0, %v595
      %597 = vmatmul.bf16.gmra.mxu0 %v501
      %v598 = vpop.f32.mrf.mxu0
      %v599 = vadd.f32 0.0, %v598
      %v600 = vpop.f32.mrf.mxu0
      %v601 = vadd.f32 0.0, %v600
      %602 = vmatmul.bf16.gmra.mxu0 %v502
      %v603 = vpop.f32.mrf.mxu0
      %v604 = vadd.f32 0.0, %v603
      %v605 = vpop.f32.mrf.mxu0
      %v606 = vadd.f32 0.0, %v605
      %607 = vmatmul.bf16.gmra.mxu0 %v503
      %v608 = vpop.f32.mrf.mxu0
      %v609 = vadd.f32 0.0, %v608
      %v610 = vpop.f32.mrf.mxu0
      %v611 = vadd.f32 0.0, %v610
      %612 = vmatmul.bf16.gmra.mxu0 %v504
      %v613 = vpop.f32.mrf.mxu0
      %v614 = vadd.f32 0.0, %v613
      %v615 = vpop.f32.mrf.mxu0
      %v616 = vadd.f32 0.0, %v615
      %617 = vmatmul.bf16.gmra.mxu0 %v505
      %v618 = vpop.f32.mrf.mxu0
      %v619 = vadd.f32 0.0, %v618
      %v620 = vpop.f32.mrf.mxu0
      %v621 = vadd.f32 0.0, %v620
      %622 = vmatmul.bf16.gmra.mxu0 %v506
      %v623 = vpop.f32.mrf.mxu0
      %v624 = vadd.f32 0.0, %v623
      %v625 = vpop.f32.mrf.mxu0
      %v626 = vadd.f32 0.0, %v625
      %627 = vmatmul.bf16.gmra.mxu0 %v507
      %v628 = vpop.f32.mrf.mxu0
      %v629 = vadd.f32 0.0, %v628
      %v630 = vpop.f32.mrf.mxu0
      %v631 = vadd.f32 0.0, %v630
      %632 = vmatmul.bf16.gmra.mxu0 %v508
      %v633 = vpop.f32.mrf.mxu0
      %v634 = vadd.f32 0.0, %v633
      %v635 = vpop.f32.mrf.mxu0
      %v636 = vadd.f32 0.0, %v635
      %637 = vmatmul.bf16.gmra.mxu0 %v509
      %v638 = vpop.f32.mrf.mxu0
      %v639 = vadd.f32 0.0, %v638
      %v640 = vpop.f32.mrf.mxu0
      %v641 = vadd.f32 0.0, %v640
      %642 = vmatmul.bf16.gmra.mxu0 %v510
      %v643 = vpop.f32.mrf.mxu0
      %v644 = vadd.f32 0.0, %v643
      %v645 = vpop.f32.mrf.mxu0
      %v646 = vadd.f32 0.0, %v645
      %647 = vmatmul.bf16.gmra.mxu0 %v511
      %v648 = vpop.f32.mrf.mxu0
      %v649 = vadd.f32 0.0, %v648
      %v650 = vpop.f32.mrf.mxu0
      %v651 = vadd.f32 0.0, %v650
      %652 = vmatmul.bf16.gmra.mxu0 %v512
      %v653 = vpop.f32.mrf.mxu0
      %v654 = vadd.f32 0.0, %v653
      %v655 = vpop.f32.mrf.mxu0
      %v656 = vadd.f32 0.0, %v655
      %657 = vmatmul.bf16.gmra.mxu0 %v513
      %v658 = vpop.f32.mrf.mxu0
      %v659 = vadd.f32 0.0, %v658
      %v660 = vpop.f32.mrf.mxu0
      %v661 = vadd.f32 0.0, %v660
      %662 = vmatmul.bf16.gmra.mxu0 %v514
      %v663 = vpop.f32.mrf.mxu0
      %v664 = vadd.f32 0.0, %v663
      %v665 = vpop.f32.mrf.mxu0
      %v666 = vadd.f32 0.0, %v665
      %667 = vdwg.mxu0
      %v668 = vadd.f32 %v355, %v589
      %v669 = vadd.f32 %v356, %v591
      %v670 = vadd.f32 %v357, %v594
      %v671 = vadd.f32 %v358, %v596
      %v672 = vadd.f32 %v359, %v599
      %v673 = vadd.f32 %v360, %v601
      %v674 = vadd.f32 %v361, %v604
      %v675 = vadd.f32 %v362, %v606
      %v676 = vadd.f32 %v363, %v609
      %v677 = vadd.f32 %v364, %v611
      %v678 = vadd.f32 %v365, %v614
      %v679 = vadd.f32 %v366, %v616
      %v680 = vadd.f32 %v367, %v619
      %v681 = vadd.f32 %v368, %v621
      %v682 = vadd.f32 %v369, %v624
      %v683 = vadd.f32 %v370, %v626
      %v684 = vadd.f32 %v371, %v629
      %v685 = vadd.f32 %v372, %v631
      %v686 = vadd.f32 %v373, %v634
      %v687 = vadd.f32 %v374, %v636
      %v688 = vadd.f32 %v375, %v639
      %v689 = vadd.f32 %v376, %v641
      %v690 = vadd.f32 %v377, %v644
      %v691 = vadd.f32 %v378, %v646
      %v692 = vadd.f32 %v379, %v649
      %v693 = vadd.f32 %v380, %v651
      %v694 = vadd.f32 %v381, %v654
      %v695 = vadd.f32 %v382, %v656
      %v696 = vadd.f32 %v383, %v659
      %v697 = vadd.f32 %v384, %v661
      %v698 = vadd.f32 %v385, %v664
      %v699 = vadd.f32 %v386, %v666
      %700 = vst [vmem:[#allocation2] sm:$0xff] %v668
      %701 = vst [vmem:[#allocation2 + $0x8] sm:$0xff] %v669
      %702 = vst [vmem:[#allocation2 + $0x10] sm:$0xff] %v670
      %703 = vst [vmem:[#allocation2 + $0x18] sm:$0xff] %v671
      %704 = vst [vmem:[#allocation2 + $0x20] sm:$0xff] %v672
      %705 = vst [vmem:[#allocation2 + $0x28] sm:$0xff] %v673
      %706 = vst [vmem:[#allocation2 + $0x30] sm:$0xff] %v674
      %707 = vst [vmem:[#allocation2 + $0x38] sm:$0xff] %v675
      %708 = vst [vmem:[#allocation2 + $0x40] sm:$0xff] %v676
      %709 = vst [vmem:[#allocation2 + $0x48] sm:$0xff] %v677
      %710 = vst [vmem:[#allocation2 + $0x50] sm:$0xff] %v678
      %711 = vst [vmem:[#allocation2 + $0x58] sm:$0xff] %v679
      %712 = vst [vmem:[#allocation2 + $0x60] sm:$0xff] %v680
      %713 = vst [vmem:[#allocation2 + $0x68] sm:$0xff] %v681
      %714 = vst [vmem:[#allocation2 + $0x70] sm:$0xff] %v682
      %715 = vst [vmem:[#allocation2 + $0x78] sm:$0xff] %v683
      %716 = vst [vmem:[#allocation2 + $0x80] sm:$0xff] %v684
      %717 = vst [vmem:[#allocation2 + $0x88] sm:$0xff] %v685
      %718 = vst [vmem:[#allocation2 + $0x90] sm:$0xff] %v686
      %719 = vst [vmem:[#allocation2 + $0x98] sm:$0xff] %v687
      %720 = vst [vmem:[#allocation2 + $0xa0] sm:$0xff] %v688
      %721 = vst [vmem:[#allocation2 + $0xa8] sm:$0xff] %v689
      %722 = vst [vmem:[#allocation2 + $0xb0] sm:$0xff] %v690
      %723 = vst [vmem:[#allocation2 + $0xb8] sm:$0xff] %v691
      %724 = vst [vmem:[#allocation2 + $0xc0] sm:$0xff] %v692
      %725 = vst [vmem:[#allocation2 + $0xc8] sm:$0xff] %v693
      %726 = vst [vmem:[#allocation2 + $0xd0] sm:$0xff] %v694
      %727 = vst [vmem:[#allocation2 + $0xd8] sm:$0xff] %v695
      %728 = vst [vmem:[#allocation2 + $0xe0] sm:$0xff] %v696
      %729 = vst [vmem:[#allocation2 + $0xe8] sm:$0xff] %v697
      %730 = vst [vmem:[#allocation2 + $0xf0] sm:$0xff] %v698
      %731 = vst [vmem:[#allocation2 + $0xf8] sm:$0xff] %v699
      // Predicated region
      $region41: #{bottleneck_forward.7} parent=35 // pred_check
        %p732 = pneg %p319
      $region42: #{bottleneck_forward.7} parent=35 // pred_check_branch
        %734 = sbr.rel (%p732) target = $region44
      $region43: #{bottleneck_forward.7} parent=35 // pred_region
        %v735 = vld [vmem:[#allocation2] sm:$0xff]
        %v736 = vld [vmem:[#allocation2 + $0x8] sm:$0xff]
        %v737 = vld [vmem:[#allocation2 + $0x10] sm:$0xff]
        %v738 = vld [vmem:[#allocation2 + $0x18] sm:$0xff]
        %v739 = vld [vmem:[#allocation2 + $0x20] sm:$0xff]
        %v740 = vld [vmem:[#allocation2 + $0x28] sm:$0xff]
        %v741 = vld [vmem:[#allocation2 + $0x30] sm:$0xff]
        %v742 = vld [vmem:[#allocation2 + $0x38] sm:$0xff]
        %v743 = vld [vmem:[#allocation2 + $0x40] sm:$0xff]
        %v744 = vld [vmem:[#allocation2 + $0x48] sm:$0xff]
        %v745 = vld [vmem:[#allocation2 + $0x50] sm:$0xff]
        %v746 = vld [vmem:[#allocation2 + $0x58] sm:$0xff]
        %v747 = vld [vmem:[#allocation2 + $0x60] sm:$0xff]
        %v748 = vld [vmem:[#allocation2 + $0x68] sm:$0xff]
        %v749 = vld [vmem:[#allocation2 + $0x70] sm:$0xff]
        %v750 = vld [vmem:[#allocation2 + $0x78] sm:$0xff]
        %v751 = vld [vmem:[#allocation2 + $0x80] sm:$0xff]
        %v752 = vld [vmem:[#allocation2 + $0x88] sm:$0xff]
        %v753 = vld [vmem:[#allocation2 + $0x90] sm:$0xff]
        %v754 = vld [vmem:[#allocation2 + $0x98] sm:$0xff]
        %v755 = vld [vmem:[#allocation2 + $0xa0] sm:$0xff]
        %v756 = vld [vmem:[#allocation2 + $0xa8] sm:$0xff]
        %v757 = vld [vmem:[#allocation2 + $0xb0] sm:$0xff]
        %v758 = vld [vmem:[#allocation2 + $0xb8] sm:$0xff]
        %v759 = vld [vmem:[#allocation2 + $0xc0] sm:$0xff]
        %v760 = vld [vmem:[#allocation2 + $0xc8] sm:$0xff]
        %v761 = vld [vmem:[#allocation2 + $0xd0] sm:$0xff]
        %v762 = vld [vmem:[#allocation2 + $0xd8] sm:$0xff]
        %v763 = vld [vmem:[#allocation2 + $0xe0] sm:$0xff]
        %v764 = vld [vmem:[#allocation2 + $0xe8] sm:$0xff]
        %v765 = vld [vmem:[#allocation2 + $0xf0] sm:$0xff]
        %v766 = vld [vmem:[#allocation2 + $0xf8] sm:$0xff]
        %v767 = vld [vmem:[%s300] sm:$0x1]
        %v769 = vperm.slane %v767, 0
        %v771 = vadd.f32 %v735, %v769
        %v772 = vadd.f32 %v736, %v769
        %v773 = vadd.f32 %v737, %v769
        %v774 = vadd.f32 %v738, %v769
        %v775 = vadd.f32 %v739, %v769
        %v776 = vadd.f32 %v740, %v769
        %v777 = vadd.f32 %v741, %v769
        %v778 = vadd.f32 %v742, %v769
        %v779 = vadd.f32 %v743, %v769
        %v780 = vadd.f32 %v744, %v769
        %v781 = vadd.f32 %v745, %v769
        %v782 = vadd.f32 %v746, %v769
        %v783 = vadd.f32 %v747, %v769
        %v784 = vadd.f32 %v748, %v769
        %v785 = vadd.f32 %v749, %v769
        %v786 = vadd.f32 %v750, %v769
        %v787 = vadd.f32 %v751, %v769
        %v788 = vadd.f32 %v752, %v769
        %v789 = vadd.f32 %v753, %v769
        %v790 = vadd.f32 %v754, %v769
        %v791 = vadd.f32 %v755, %v769
        %v792 = vadd.f32 %v756, %v769
        %v793 = vadd.f32 %v757, %v769
        %v794 = vadd.f32 %v758, %v769
        %v795 = vadd.f32 %v759, %v769
        %v796 = vadd.f32 %v760, %v769
        %v797 = vadd.f32 %v761, %v769
        %v798 = vadd.f32 %v762, %v769
        %v799 = vadd.f32 %v763, %v769
        %v800 = vadd.f32 %v764, %v769
        %v801 = vadd.f32 %v765, %v769
        %v802 = vadd.f32 %v766, %v769
        %v803 = vld [vmem:[%s308] sm:$0xf]
        %v804 = vld [vmem:[%s308 + $0x4] sm:$0xf]
        %v805 = vld [vmem:[%s308 + $0x8] sm:$0xf]
        %v806 = vld [vmem:[%s308 + $0xc] sm:$0xf]
        %v807 = vld [vmem:[%s308 + $0x10] sm:$0xf]
        %v808 = vld [vmem:[%s308 + $0x14] sm:$0xf]
        %v809 = vld [vmem:[%s308 + $0x18] sm:$0xf]
        %v810 = vld [vmem:[%s308 + $0x1c] sm:$0xf]
        %v811 = vld [vmem:[%s308 + $0x20] sm:$0xf]
        %v812 = vld [vmem:[%s308 + $0x24] sm:$0xf]
        %v813 = vld [vmem:[%s308 + $0x28] sm:$0xf]
        %v814 = vld [vmem:[%s308 + $0x2c] sm:$0xf]
        %v815 = vld [vmem:[%s308 + $0x30] sm:$0xf]
        %v816 = vld [vmem:[%s308 + $0x34] sm:$0xf]
        %v817 = vld [vmem:[%s308 + $0x38] sm:$0xf]
        %v818 = vld [vmem:[%s308 + $0x3c] sm:$0xf]
        %v819 = vld [vmem:[%s308 + $0x40] sm:$0xf]
        %v820 = vld [vmem:[%s308 + $0x44] sm:$0xf]
        %v821 = vld [vmem:[%s308 + $0x48] sm:$0xf]
        %v822 = vld [vmem:[%s308 + $0x4c] sm:$0xf]
        %v823 = vld [vmem:[%s308 + $0x50] sm:$0xf]
        %v824 = vld [vmem:[%s308 + $0x54] sm:$0xf]
        %v825 = vld [vmem:[%s308 + $0x58] sm:$0xf]
        %v826 = vld [vmem:[%s308 + $0x5c] sm:$0xf]
        %v827 = vld [vmem:[%s308 + $0x60] sm:$0xf]
        %v828 = vld [vmem:[%s308 + $0x64] sm:$0xf]
        %v829 = vld [vmem:[%s308 + $0x68] sm:$0xf]
        %v830 = vld [vmem:[%s308 + $0x6c] sm:$0xf]
        %v831 = vld [vmem:[%s308 + $0x70] sm:$0xf]
        %v832 = vld [vmem:[%s308 + $0x74] sm:$0xf]
        %v833 = vld [vmem:[%s308 + $0x78] sm:$0xf]
        %v834 = vld [vmem:[%s308 + $0x7c] sm:$0xf]
        %v835 = vunpack.c.l.bf16 %v803
        %v836 = vunpack.c.l.bf16 %v804
        %v837 = vunpack.c.l.bf16 %v805
        %v838 = vunpack.c.l.bf16 %v806
        %v839 = vunpack.c.l.bf16 %v807
        %v840 = vunpack.c.l.bf16 %v808
        %v841 = vunpack.c.l.bf16 %v809
        %v842 = vunpack.c.l.bf16 %v810
        %v843 = vunpack.c.l.bf16 %v811
        %v844 = vunpack.c.l.bf16 %v812
        %v845 = vunpack.c.l.bf16 %v813
        %v846 = vunpack.c.l.bf16 %v814
        %v847 = vunpack.c.l.bf16 %v815
        %v848 = vunpack.c.l.bf16 %v816
        %v849 = vunpack.c.l.bf16 %v817
        %v850 = vunpack.c.l.bf16 %v818
        %v851 = vunpack.c.l.bf16 %v819
        %v852 = vunpack.c.l.bf16 %v820
        %v853 = vunpack.c.l.bf16 %v821
        %v854 = vunpack.c.l.bf16 %v822
        %v855 = vunpack.c.l.bf16 %v823
        %v856 = vunpack.c.l.bf16 %v824
        %v857 = vunpack.c.l.bf16 %v825
        %v858 = vunpack.c.l.bf16 %v826
        %v859 = vunpack.c.l.bf16 %v827
        %v860 = vunpack.c.l.bf16 %v828
        %v861 = vunpack.c.l.bf16 %v829
        %v862 = vunpack.c.l.bf16 %v830
        %v863 = vunpack.c.l.bf16 %v831
        %v864 = vunpack.c.l.bf16 %v832
        %v865 = vunpack.c.l.bf16 %v833
        %v866 = vunpack.c.l.bf16 %v834
        %v867 = vadd.f32 %v771, %v835
        %v868 = vadd.f32 %v772, %v836
        %v869 = vadd.f32 %v773, %v837
        %v870 = vadd.f32 %v774, %v838
        %v871 = vadd.f32 %v775, %v839
        %v872 = vadd.f32 %v776, %v840
        %v873 = vadd.f32 %v777, %v841
        %v874 = vadd.f32 %v778, %v842
        %v875 = vadd.f32 %v779, %v843
        %v876 = vadd.f32 %v780, %v844
        %v877 = vadd.f32 %v781, %v845
        %v878 = vadd.f32 %v782, %v846
        %v879 = vadd.f32 %v783, %v847
        %v880 = vadd.f32 %v784, %v848
        %v881 = vadd.f32 %v785, %v849
        %v882 = vadd.f32 %v786, %v850
        %v883 = vadd.f32 %v787, %v851
        %v884 = vadd.f32 %v788, %v852
        %v885 = vadd.f32 %v789, %v853
        %v886 = vadd.f32 %v790, %v854
        %v887 = vadd.f32 %v791, %v855
        %v888 = vadd.f32 %v792, %v856
        %v889 = vadd.f32 %v793, %v857
        %v890 = vadd.f32 %v794, %v858
        %v891 = vadd.f32 %v795, %v859
        %v892 = vadd.f32 %v796, %v860
        %v893 = vadd.f32 %v797, %v861
        %v894 = vadd.f32 %v798, %v862
        %v895 = vadd.f32 %v799, %v863
        %v896 = vadd.f32 %v800, %v864
        %v897 = vadd.f32 %v801, %v865
        %v898 = vadd.f32 %v802, %v866
        %v899 = vmax.f32 %v867, 0.0
        %v900 = vmax.f32 %v868, 0.0
        %v901 = vmax.f32 %v869, 0.0
        %v902 = vmax.f32 %v870, 0.0
        %v903 = vmax.f32 %v871, 0.0
        %v904 = vmax.f32 %v872, 0.0
        %v905 = vmax.f32 %v873, 0.0
        %v906 = vmax.f32 %v874, 0.0
        %v907 = vmax.f32 %v875, 0.0
        %v908 = vmax.f32 %v876, 0.0
        %v909 = vmax.f32 %v877, 0.0
        %v910 = vmax.f32 %v878, 0.0
        %v911 = vmax.f32 %v879, 0.0
        %v912 = vmax.f32 %v880, 0.0
        %v913 = vmax.f32 %v881, 0.0
        %v914 = vmax.f32 %v882, 0.0
        %v915 = vmax.f32 %v883, 0.0
        %v916 = vmax.f32 %v884, 0.0
        %v917 = vmax.f32 %v885, 0.0
        %v918 = vmax.f32 %v886, 0.0
        %v919 = vmax.f32 %v887, 0.0
        %v920 = vmax.f32 %v888, 0.0
        %v921 = vmax.f32 %v889, 0.0
        %v922 = vmax.f32 %v890, 0.0
        %v923 = vmax.f32 %v891, 0.0
        %v924 = vmax.f32 %v892, 0.0
        %v925 = vmax.f32 %v893, 0.0
        %v926 = vmax.f32 %v894, 0.0
        %v927 = vmax.f32 %v895, 0.0
        %v928 = vmax.f32 %v896, 0.0
        %v929 = vmax.f32 %v897, 0.0
        %v930 = vmax.f32 %v898, 0.0
        %v931 = vpack.c.bf16 %v899, %v899
        %v932 = vpack.c.bf16 %v900, %v900
        %v933 = vpack.c.bf16 %v901, %v901
        %v934 = vpack.c.bf16 %v902, %v902
        %v935 = vpack.c.bf16 %v903, %v903
        %v936 = vpack.c.bf16 %v904, %v904
        %v937 = vpack.c.bf16 %v905, %v905
        %v938 = vpack.c.bf16 %v906, %v906
        %v939 = vpack.c.bf16 %v907, %v907
        %v940 = vpack.c.bf16 %v908, %v908
        %v941 = vpack.c.bf16 %v909, %v909
        %v942 = vpack.c.bf16 %v910, %v910
        %v943 = vpack.c.bf16 %v911, %v911
        %v944 = vpack.c.bf16 %v912, %v912
        %v945 = vpack.c.bf16 %v913, %v913
        %v946 = vpack.c.bf16 %v914, %v914
        %v947 = vpack.c.bf16 %v915, %v915
        %v948 = vpack.c.bf16 %v916, %v916
        %v949 = vpack.c.bf16 %v917, %v917
        %v950 = vpack.c.bf16 %v918, %v918
        %v951 = vpack.c.bf16 %v919, %v919
        %v952 = vpack.c.bf16 %v920, %v920
        %v953 = vpack.c.bf16 %v921, %v921
        %v954 = vpack.c.bf16 %v922, %v922
        %v955 = vpack.c.bf16 %v923, %v923
        %v956 = vpack.c.bf16 %v924, %v924
        %v957 = vpack.c.bf16 %v925, %v925
        %v958 = vpack.c.bf16 %v926, %v926
        %v959 = vpack.c.bf16 %v927, %v927
        %v960 = vpack.c.bf16 %v928, %v928
        %v961 = vpack.c.bf16 %v929, %v929
        %v962 = vpack.c.bf16 %v930, %v930
        %963 = vst [vmem:[%s317] sm:$0xf] %v931
        %964 = vst [vmem:[%s317 + $0x4] sm:$0xf] %v932
        %965 = vst [vmem:[%s317 + $0x8] sm:$0xf] %v933
        %966 = vst [vmem:[%s317 + $0xc] sm:$0xf] %v934
        %967 = vst [vmem:[%s317 + $0x10] sm:$0xf] %v935
        %968 = vst [vmem:[%s317 + $0x14] sm:$0xf] %v936
        %969 = vst [vmem:[%s317 + $0x18] sm:$0xf] %v937
        %970 = vst [vmem:[%s317 + $0x1c] sm:$0xf] %v938
        %971 = vst [vmem:[%s317 + $0x20] sm:$0xf] %v939
        %972 = vst [vmem:[%s317 + $0x24] sm:$0xf] %v940
        %973 = vst [vmem:[%s317 + $0x28] sm:$0xf] %v941
        %974 = vst [vmem:[%s317 + $0x2c] sm:$0xf] %v942
        %975 = vst [vmem:[%s317 + $0x30] sm:$0xf] %v943
        %976 = vst [vmem:[%s317 + $0x34] sm:$0xf] %v944
        %977 = vst [vmem:[%s317 + $0x38] sm:$0xf] %v945
        %978 = vst [vmem:[%s317 + $0x3c] sm:$0xf] %v946
        %979 = vst [vmem:[%s317 + $0x40] sm:$0xf] %v947
        %980 = vst [vmem:[%s317 + $0x44] sm:$0xf] %v948
        %981 = vst [vmem:[%s317 + $0x48] sm:$0xf] %v949
        %982 = vst [vmem:[%s317 + $0x4c] sm:$0xf] %v950
        %983 = vst [vmem:[%s317 + $0x50] sm:$0xf] %v951
        %984 = vst [vmem:[%s317 + $0x54] sm:$0xf] %v952
        %985 = vst [vmem:[%s317 + $0x58] sm:$0xf] %v953
        %986 = vst [vmem:[%s317 + $0x5c] sm:$0xf] %v954
        %987 = vst [vmem:[%s317 + $0x60] sm:$0xf] %v955
        %988 = vst [vmem:[%s317 + $0x64] sm:$0xf] %v956
        %989 = vst [vmem:[%s317 + $0x68] sm:$0xf] %v957
        %990 = vst [vmem:[%s317 + $0x6c] sm:$0xf] %v958
        %991 = vst [vmem:[%s317 + $0x70] sm:$0xf] %v959
        %992 = vst [vmem:[%s317 + $0x74] sm:$0xf] %v960
        %993 = vst [vmem:[%s317 + $0x78] sm:$0xf] %v961
        %994 = vst [vmem:[%s317 + $0x7c] sm:$0xf] %v962
      $region44: #{bottleneck_forward.7} parent=35 // pred_fallthru
        _
      %s995 = smul.u32 32, %s20
      %p996 = scmp.lt.s32.totalorder %s995, 63
      %s997 = scalar_select %p996, %s995, 63
      %p998 = scmp.lt.s32.totalorder %s21, 0
      %s999 = scalar_select %p998, %s21, 0
      %s1000 = sadd.s32 %s999, %s997
      %s1001 = smul.addr %s1000, 4
      %s1002 = scalar_lea.vmem %s4, %s1001
      // Predicated region
      $region45: #{bottleneck_forward.7} parent=35 // pred_check
        %p1003 = pneg %p164
      $region46: #{bottleneck_forward.7} parent=35 // pred_check_branch
        %1005 = sbr.rel (%p1003) target = $region48
      $region47: #{bottleneck_forward.7} parent=35 // pred_region
        %s1006 = smul.u32 32, %s20
      $region48: #{bottleneck_forward.7} parent=35 // pred_fallthru
        _
    $region36: #{bottleneck_forward.7} parent=5 // pred_fallthru
      _
    %p1007 = scmp.le.s32.totalorder 2, %s10
    // Predicated region
    $region49: #{bottleneck_forward.7} parent=5 // pred_check
      %p1008 = pneg %p1007
    $region50: #{bottleneck_forward.7} parent=5 // pred_check_branch
      %1010 = sbr.rel (%p1008) target = $region52
    $region51: #{bottleneck_forward.7} parent=5 // pred_region
      %s1011 = ssub.s32 %s10, 2
      // Predicated region
      $region53: #{bottleneck_forward.7} parent=51 // pred_check
        %p1012 = pneg %p170
      $region54: #{bottleneck_forward.7} parent=51 // pred_check_branch
        %1014 = sbr.rel (%p1012) target = $region56
      $region55: #{bottleneck_forward.7} parent=51 // pred_region
        %s1015 = smul.u32 32, %s23
        %p1016 = scmp.lt.s32.totalorder %s1015, 63
        %s1017 = scalar_select %p1016, %s1015, 63
        %p1018 = scmp.lt.s32.totalorder %s24, 0
        %s1019 = scalar_select %p1018, %s24, 0
        %s1020 = sadd.s32 %s1019, %s1017
        %s1021 = smul.addr %s1020, 4
        %s1022 = scalar_lea.vmem %s4, %s1021
      $region56: #{bottleneck_forward.7} parent=51 // pred_fallthru
        _
    $region52: #{bottleneck_forward.7} parent=5 // pred_fallthru
      _
  $region6: #{bottleneck_forward.7} parent=0 // loop_footer
    %s14 = sadd.s32 1, %s10
  $region7: #{bottleneck_forward.7} parent=0 // loop_footer_branch
    %9 = sbr.rel target = $region3
  $region8: #{bottleneck_forward.7} parent=0 // loop_exit
    _

// kernel: bottleneck_forward.5
$region0: #{bottleneck_forward.5}
  #allocation0 [shape = 'u32[]', space=smem, size = 0x4, offset = 0x4, fixed_abs, tag = 'smem constant byte address 0x4 - core index']
  #allocation1 [shape = 'u32[72,128]{1,0:T(1,128)}', space=vmem, size = 0x9000, scoped, tag = 'internal scratch']
  #allocation2 [shape = 'f32[288,128]{1,0:T(8,128)}', space=vmem, size = 0x24000, scoped, tag = 'scratch operand']
  %s0 = inlined_call_operand.vmem [shape: bf16[2,1,378,128], index: 0, kind: input, shape index: {}]
  %s1 = inlined_call_operand.vmem [shape: bf16[9,128,128], index: 1, kind: input, shape index: {}]
  %s2 = inlined_call_operand.vmem [shape: f32[1,128], index: 2, kind: input, shape index: {}]
  %s3 = inlined_call_operand.vmem [shape: bf16[2,16,16,128], index: 3, kind: output, shape index: {}]
  %s4 = sld [smem:[#allocation0]]
  $region45: #{bottleneck_forward.5} parent=0
    _
  %s6 = ssub.s32 1, %s4
  %s7 = scalar_select 0, %s6, %s4
  loop: start=0, step=1, limit=4
  $region2: #{bottleneck_forward.5} parent=0 // loop_pre_header
    _
  $region3: #{bottleneck_forward.5} parent=0 // loop_header
    %s9 = sphi 0, %s13
    %p10 = scmp.ge.s32.totalorder %s9, 4
    %s16 = sphi 0, %s28
    %s17 = sphi 0, %s24
    %s18 = sphi 0, %s16
    %s19 = sphi 0, %s17
    %s20 = sphi 0, %s18
    %s21 = sphi 0, %s19
    %s31 = sphi 0, %s33
    %s34 = sphi 0, %s31
    %s35 = sphi 0, %s34
    %s51 = sphi 0, %s35
    %s57 = sphi 0, %s59
    %s60 = sphi 0, %s57
    %s61 = sphi 0, %s60
    %s77 = sphi 0, %s61
    %s83 = sphi 0, %s85
    %s86 = sphi 0, %s83
    %s87 = sphi 0, %s86
    %s103 = sphi 0, %s87
    %s111 = sphi 0, %s113
    %s114 = sphi 0, %s111
    %s115 = sphi 0, %s114
    %s131 = sphi 0, %s115
  $region4: #{bottleneck_forward.5} parent=0 // loop_header_branch
    %12 = sbr.rel (%p10) target = $region8
  $region5: #{bottleneck_forward.5} parent=0 // loop_body
    %s14 = ssub.s32 %s9, 1
    %s15 = ssub.s32 %s9, 2
    %s22 = sadd.s32 1, %s17
    %p23 = scmp.ge.s32.totalorder %s22, 1
    %s24 = scalar_select %p23, 0, %s22
    %s25 = sadd.s32 1, %s16
    %s26 = scalar_select %p23, %s25, %s16
    %p27 = scmp.ge.s32.totalorder %s26, 2
    %s28 = scalar_select %p27, 0, %s26
    %s29 = ssub.s32 %s16, %s28
    %p30 = scmp.eq.s32.totalorder %s29, 0
    %s32 = sadd.s32 %s31, 1
    %s33 = scalar_select %p30, %s31, %s32
    %p36 = pneg %p30
    %p37 = scmp.eq.s32.totalorder %s9, 1
    %p38 = por %p36, %p37
    %p39 = scmp.ne.s32.totalorder %s31, %s34
    %p40 = scmp.eq.s32.totalorder %s9, 0
    %p41 = por %p39, %p40
    %p42 = scmp.ne.s32.totalorder %s31, %s34
    %p43 = scmp.eq.s32.totalorder %s14, 1
    %p44 = por %p42, %p43
    %p45 = scmp.ne.s32.totalorder %s34, %s35
    %p46 = scmp.eq.s32.totalorder %s14, 0
    %p47 = por %p45, %p46
    %p48 = scmp.ne.s32.totalorder %s34, %s35
    %p49 = scmp.eq.s32.totalorder %s15, 1
    %p50 = por %p48, %p49
    %p52 = scmp.ne.s32.totalorder %s35, %s51
    %p53 = scmp.eq.s32.totalorder %s15, 0
    %p54 = por %p52, %p53
    %s55 = ssub.s32 %s17, %s24
    %p56 = scmp.eq.s32.totalorder %s55, 0
    %s58 = sadd.s32 %s57, 1
    %s59 = scalar_select %p56, %s57, %s58
    %p62 = pneg %p56
    %p63 = scmp.eq.s32.totalorder %s9, 1
    %p64 = por %p62, %p63
    %p65 = scmp.ne.s32.totalorder %s57, %s60
    %p66 = scmp.eq.s32.totalorder %s9, 0
    %p67 = por %p65, %p66
    %p68 = scmp.ne.s32.totalorder %s57, %s60
    %p69 = scmp.eq.s32.totalorder %s14, 1
    %p70 = por %p68, %p69
    %p71 = scmp.ne.s32.totalorder %s60, %s61
    %p72 = scmp.eq.s32.totalorder %s14, 0
    %p73 = por %p71, %p72
    %p74 = scmp.ne.s32.totalorder %s60, %s61
    %p75 = scmp.eq.s32.totalorder %s15, 1
    %p76 = por %p74, %p75
    %p78 = scmp.ne.s32.totalorder %s61, %s77
    %p79 = scmp.eq.s32.totalorder %s15, 0
    %p80 = por %p78, %p79
    %s81 = ssub.s32 %s17, %s24
    %p82 = scmp.eq.s32.totalorder %s81, 0
    %s84 = sadd.s32 %s83, 1
    %s85 = scalar_select %p82, %s83, %s84
    %p88 = pneg %p82
    %p89 = scmp.eq.s32.totalorder %s9, 1
    %p90 = por %p88, %p89
    %p91 = scmp.ne.s32.totalorder %s83, %s86
    %p92 = scmp.eq.s32.totalorder %s9, 0
    %p93 = por %p91, %p92
    %p94 = scmp.ne.s32.totalorder %s83, %s86
    %p95 = scmp.eq.s32.totalorder %s14, 1
    %p96 = por %p94, %p95
    %p97 = scmp.ne.s32.totalorder %s86, %s87
    %p98 = scmp.eq.s32.totalorder %s14, 0
    %p99 = por %p97, %p98
    %p100 = scmp.ne.s32.totalorder %s86, %s87
    %p101 = scmp.eq.s32.totalorder %s15, 1
    %p102 = por %p100, %p101
    %p104 = scmp.ne.s32.totalorder %s87, %s103
    %p105 = scmp.eq.s32.totalorder %s15, 0
    %p106 = por %p104, %p105
    %s107 = ssub.s32 %s16, %s28
    %s108 = ssub.s32 %s17, %s24
    %s109 = sor.u32 %s107, %s108
    %p110 = scmp.eq.s32.totalorder %s109, 0
    %s112 = sadd.s32 %s111, 1
    %s113 = scalar_select %p110, %s111, %s112
    %p116 = pneg %p110
    %p117 = scmp.eq.s32.totalorder %s9, 1
    %p118 = por %p116, %p117
    %p119 = scmp.ne.s32.totalorder %s111, %s114
    %p120 = scmp.eq.s32.totalorder %s9, 0
    %p121 = por %p119, %p120
    %p122 = scmp.ne.s32.totalorder %s111, %s114
    %p123 = scmp.eq.s32.totalorder %s14, 1
    %p124 = por %p122, %p123
    %p125 = scmp.ne.s32.totalorder %s114, %s115
    %p126 = scmp.eq.s32.totalorder %s14, 0
    %p127 = por %p125, %p126
    %p128 = scmp.ne.s32.totalorder %s114, %s115
    %p129 = scmp.eq.s32.totalorder %s15, 1
    %p130 = por %p128, %p129
    %p132 = scmp.ne.s32.totalorder %s115, %s131
    %p133 = scmp.eq.s32.totalorder %s15, 0
    %p134 = por %p132, %p133
    %p135 = scmp.le.s32.totalorder 1, %s9
    %p136 = scmp.lt.s32.totalorder %s9, 3
    %p137 = pnand %p135, %p136
    %p138 = pneg %p137
    // Predicated region
    $region9: #{bottleneck_forward.5} parent=5 // pred_check
      _
    $region10: #{bottleneck_forward.5} parent=5 // pred_check_branch
      %140 = sbr.rel (%p137) target = $region12
    $region11: #{bottleneck_forward.5} parent=5 // pred_region
      %s141 = ssub.s32 %s9, 1
      // Predicated region
      $region13: #{bottleneck_forward.5} parent=11 // pred_check
        %p142 = pneg %p73
      $region14: #{bottleneck_forward.5} parent=11 // pred_check_branch
        %144 = sbr.rel (%p142) target = $region16
      $region15: #{bottleneck_forward.5} parent=11 // pred_region
        %p145 = scmp.lt.s32.totalorder %s19, 0
        %s146 = scalar_select %p145, %s19, 0
        %s147 = smul.addr %s146, 4
        %s148 = scalar_lea.vmem %s1, %s147
      $region16: #{bottleneck_forward.5} parent=11 // pred_fallthru
        _
      // Predicated region
      $region17: #{bottleneck_forward.5} parent=11 // pred_check
        %p149 = pneg %p99
      $region18: #{bottleneck_forward.5} parent=11 // pred_check_branch
        %151 = sbr.rel (%p149) target = $region20
      $region19: #{bottleneck_forward.5} parent=11 // pred_region
        %p152 = scmp.lt.s32.totalorder %s19, 0
        %s153 = scalar_select %p152, %s19, 0
        %s154 = scalar_lea.vmem %s2, %s153
      $region20: #{bottleneck_forward.5} parent=11 // pred_fallthru
        _
    $region12: #{bottleneck_forward.5} parent=5 // pred_fallthru
      _
    %p155 = scmp.lt.s32.totalorder %s9, 2
    // Predicated region
    $region21: #{bottleneck_forward.5} parent=5 // pred_check
      %p156 = pneg %p155
    $region22: #{bottleneck_forward.5} parent=5 // pred_check_branch
      %158 = sbr.rel (%p156) target = $region24
    $region23: #{bottleneck_forward.5} parent=5 // pred_region
      // Predicated region
      $region25: #{bottleneck_forward.5} parent=23 // pred_check
        %p159 = pneg %p41
      $region26: #{bottleneck_forward.5} parent=23 // pred_check_branch
        %161 = sbr.rel (%p159) target = $region28
      $region27: #{bottleneck_forward.5} parent=23 // pred_region
        %p162 = scmp.lt.s32.totalorder %s16, 1
        %s163 = scalar_select %p162, %s16, 1
        %s164 = smul.addr %s163, 48
        %s165 = smul.addr %s164, 4
        %s166 = scalar_lea.vmem %s0, %s165
      $region28: #{bottleneck_forward.5} parent=23 // pred_fallthru
        _
    $region24: #{bottleneck_forward.5} parent=5 // pred_fallthru
      _
    %p167 = scmp.le.s32.totalorder 1, %s9
    %p168 = scmp.lt.s32.totalorder %s9, 3
    %p169 = pnand %p167, %p168
    %p170 = pneg %p169
    // Predicated region
    $region29: #{bottleneck_forward.5} parent=5 // pred_check
      _
    $region30: #{bottleneck_forward.5} parent=5 // pred_check_branch
      %172 = sbr.rel (%p169) target = $region32
    $region31: #{bottleneck_forward.5} parent=5 // pred_region
      %s173 = ssub.s32 %s9, 1
      %p174 = scmp.lt.s32.totalorder %s18, 1
      %s175 = scalar_select %p174, %s18, 1
      %s176 = smul.addr %s175, 48
      %s177 = smul.addr %s176, 4
      %s178 = scalar_lea.vmem %s0, %s177
      %p179 = pneg %p47
      %p180 = pneg %p44
      %p181 = scmp.lt.s32.totalorder %s19, 0
      %s182 = scalar_select %p181, %s19, 0
      %s183 = smul.addr %s182, 4
      %s184 = scalar_lea.vmem %s1, %s183
      %p185 = pneg %p73
      %p186 = pneg %p70
      %p187 = scmp.lt.s32.totalorder %s19, 0
      %s188 = scalar_select %p187, %s19, 0
      %s189 = scalar_lea.vmem %s2, %s188
      %p190 = pneg %p99
      %p191 = pneg %p96
      %p192 = pneg %p127
      %p193 = pneg %p124
      %p194 = scmp.lt.s32.totalorder %s18, 1
      %s195 = scalar_select %p194, %s18, 1
      %p196 = scmp.lt.s32.totalorder %s19, 0
      %s197 = scalar_select %p196, %s19, 0
      %s198 = smul.addr %s195, 32
      %s199 = sadd.s32 %s197, %s198
      %s200 = smul.addr %s199, 4
      %s201 = scalar_lea.vmem %s3, %s200
      %p202 = scmp.lt.s32.totalorder %s18, 1
      %s203 = scalar_select %p202, %s18, 1
      %s204 = smul.addr %s203, 48
      %s205 = smul.addr %s204, 4
      %s206 = scalar_lea.vmem %s0, %s205
      %p207 = scmp.lt.s32.totalorder %s19, 0
      %s208 = scalar_select %p207, %s19, 0
      %s209 = smul.addr %s208, 4
      %s210 = scalar_lea.vmem %s1, %s209
      %p211 = scmp.lt.s32.totalorder %s19, 0
      %s212 = scalar_select %p211, %s19, 0
      %s213 = scalar_lea.vmem %s2, %s212
      %p214 = scmp.lt.s32.totalorder %s18, 1
      %s215 = scalar_select %p214, %s18, 1
      %p216 = scmp.lt.s32.totalorder %s19, 0
      %s217 = scalar_select %p216, %s19, 0
      %s218 = smul.addr %s215, 32
      %s219 = sadd.s32 %s217, %s218
      %s220 = smul.addr %s219, 4
      %s221 = scalar_lea.vmem %s3, %s220
      %v222 = vld [vmem:[%s206] sm:$0xf]
      %v223 = vld [vmem:[%s206 + $0x4] sm:$0xf]
      %v224 = vld [vmem:[%s206 + $0x8] sm:$0xf]
      %v225 = vld [vmem:[%s206 + $0xc] sm:$0xf]
      %v226 = vld [vmem:[%s206 + $0x10] sm:$0xf]
      %v227 = vld [vmem:[%s206 + $0x14] sm:$0xf]
      %v228 = vld [vmem:[%s206 + $0x18] sm:$0xf]
      %v229 = vld [vmem:[%s206 + $0x1c] sm:$0xf]
      %v230 = vld [vmem:[%s206 + $0x20] sm:$0xf]
      %v231 = vld [vmem:[%s206 + $0x24] sm:$0xf]
      %v232 = vld [vmem:[%s206 + $0x28] sm:$0xf]
      %v233 = vld [vmem:[%s206 + $0x2c] sm:$0xf]
      %v234 = vld [vmem:[%s206 + $0x30] sm:$0xf]
      %v235 = vld [vmem:[%s206 + $0x34] sm:$0xf]
      %v236 = vld [vmem:[%s206 + $0x38] sm:$0xf]
      %v237 = vld [vmem:[%s206 + $0x3c] sm:$0xf]
      %v238 = vld [vmem:[%s206 + $0x40] sm:$0xf]
      %v239 = vld [vmem:[%s206 + $0x44] sm:$0xf]
      %v240 = vld [vmem:[%s206 + $0x48] sm:$0xf]
      %v241 = vld [vmem:[%s206 + $0x4c] sm:$0xf]
      %v242 = vld [vmem:[%s206 + $0x50] sm:$0xf]
      %v243 = vld [vmem:[%s206 + $0x54] sm:$0xf]
      %v244 = vld [vmem:[%s206 + $0x58] sm:$0xf]
      %v245 = vld [vmem:[%s206 + $0x5c] sm:$0xf]
      %v246 = vld [vmem:[%s206 + $0x60] sm:$0xf]
      %v247 = vld [vmem:[%s206 + $0x64] sm:$0xf]
      %v248 = vld [vmem:[%s206 + $0x68] sm:$0xf]
      %v249 = vld [vmem:[%s206 + $0x6c] sm:$0xf]
      %v250 = vld [vmem:[%s206 + $0x70] sm:$0xf]
      %v251 = vld [vmem:[%s206 + $0x74] sm:$0xf]
      %v252 = vld [vmem:[%s206 + $0x78] sm:$0xf]
      %v253 = vld [vmem:[%s206 + $0x7c] sm:$0xf]
      %v254 = vld [vmem:[%s206 + $0x80] sm:$0xf]
      %v255 = vld [vmem:[%s206 + $0x84] sm:$0xf]
      %v256 = vld [vmem:[%s206 + $0x88] sm:$0xf]
      %v257 = vld [vmem:[%s206 + $0x8c] sm:$0xf]
      %v258 = vld [vmem:[%s210] sm:$0xf]
      %v259 = vld [vmem:[%s210 + $0x4] sm:$0xf]
      %v260 = vld [vmem:[%s210 + $0x8] sm:$0xf]
      %v261 = vld [vmem:[%s210 + $0xc] sm:$0xf]
      %v262 = vld [vmem:[%s210 + $0x10] sm:$0xf]
      %v263 = vld [vmem:[%s210 + $0x14] sm:$0xf]
      %v264 = vld [vmem:[%s210 + $0x18] sm:$0xf]
      %v265 = vld [vmem:[%s210 + $0x1c] sm:$0xf]
      %v266 = vld [vmem:[%s210 + $0x20] sm:$0xf]
      %v267 = vld [vmem:[%s210 + $0x24] sm:$0xf]
      %v268 = vld [vmem:[%s210 + $0x28] sm:$0xf]
      %v269 = vld [vmem:[%s210 + $0x2c] sm:$0xf]
      %v270 = vld [vmem:[%s210 + $0x30] sm:$0xf]
      %v271 = vld [vmem:[%s210 + $0x34] sm:$0xf]
      %v272 = vld [vmem:[%s210 + $0x38] sm:$0xf]
      %v273 = vld [vmem:[%s210 + $0x3c] sm:$0xf]
      %v310 = vunpack.c.l.b16 %v222
      %v311 = vunpack.c.l.b16 %v223
      %v312 = vunpack.c.l.b16 %v224
      %v313 = vunpack.c.l.b16 %v225
      %v314 = vunpack.c.l.b16 %v226
      %v315 = vunpack.c.l.b16 %v227
      %v316 = vunpack.c.l.b16 %v228
      %v317 = vunpack.c.l.b16 %v229
      %v318 = vunpack.c.l.b16 %v230
      %v319 = vunpack.c.l.b16 %v231
      %v320 = vunpack.c.l.b16 %v232
      %v321 = vunpack.c.l.b16 %v233
      %v322 = vunpack.c.l.b16 %v234
      %v323 = vunpack.c.l.b16 %v235
      %v324 = vunpack.c.l.b16 %v236
      %v325 = vunpack.c.l.b16 %v237
      %v326 = vunpack.c.l.b16 %v238
      %v327 = vunpack.c.l.b16 %v239
      %v328 = vunpack.c.l.b16 %v240
      %v329 = vunpack.c.l.b16 %v241
      %v330 = vunpack.c.l.b16 %v242
      %v331 = vunpack.c.l.b16 %v243
      %v332 = vunpack.c.l.b16 %v244
      %v333 = vunpack.c.l.b16 %v245
      %v334 = vunpack.c.l.b16 %v246
      %v335 = vunpack.c.l.b16 %v247
      %v336 = vunpack.c.l.b16 %v248
      %v337 = vunpack.c.l.b16 %v249
      %v338 = vunpack.c.l.b16 %v250
      %v339 = vunpack.c.l.b16 %v251
      %v340 = vunpack.c.l.b16 %v252
      %v341 = vunpack.c.l.b16 %v253
      %v342 = vunpack.c.l.b16 %v254
      %v343 = vunpack.c.l.b16 %v255
      %v344 = vunpack.c.l.b16 %v256
      %v345 = vunpack.c.l.b16 %v257
      %v346 = vpack.c.b16 %v311, %v310
      %v347 = vpack.c.b16 %v313, %v312
      %v348 = vpack.c.b16 %v315, %v314
      %v349 = vpack.c.b16 %v317, %v316
      %v350 = vpack.c.b16 %v319, %v318
      %v351 = vpack.c.b16 %v321, %v320
      %v352 = vpack.c.b16 %v323, %v322
      %v353 = vpack.c.b16 %v325, %v324
      %v354 = vpack.c.b16 %v327, %v326
      %v355 = vpack.c.b16 %v329, %v328
      %v356 = vpack.c.b16 %v331, %v330
      %v357 = vpack.c.b16 %v333, %v332
      %v358 = vpack.c.b16 %v335, %v334
      %v359 = vpack.c.b16 %v337, %v336
      %v360 = vpack.c.b16 %v339, %v338
      %v361 = vpack.c.b16 %v341, %v340
      %v362 = vpack.c.b16 %v343, %v342
      %v363 = vpack.c.b16 %v345, %v344
      %v398 = vunpack.c.l.b16 %v258
      %v399 = vunpack.c.l.b16 %v259
      %v400 = vunpack.c.l.b16 %v260
      %v401 = vunpack.c.l.b16 %v261
      %v402 = vunpack.c.l.b16 %v262
      %v403 = vunpack.c.l.b16 %v263
      %v404 = vunpack.c.l.b16 %v264
      %v405 = vunpack.c.l.b16 %v265
      %v406 = vunpack.c.l.b16 %v266
      %v407 = vunpack.c.l.b16 %v267
      %v408 = vunpack.c.l.b16 %v268
      %v409 = vunpack.c.l.b16 %v269
      %v410 = vunpack.c.l.b16 %v270
      %v411 = vunpack.c.l.b16 %v271
      %v412 = vunpack.c.l.b16 %v272
      %v413 = vunpack.c.l.b16 %v273
      %v414 = vpack.c.b16 %v399, %v398
      %v415 = vpack.c.b16 %v401, %v400
      %v416 = vpack.c.b16 %v403, %v402
      %v417 = vpack.c.b16 %v405, %v404
      %v418 = vpack.c.b16 %v407, %v406
      %v419 = vpack.c.b16 %v409, %v408
      %v420 = vpack.c.b16 %v411, %v410
      %v421 = vpack.c.b16 %v413, %v412
      %430 = vmatpush.bf16.msra.mxu0 %v421
      %431 = vmatpush.bf16.msra.mxu0 %v420
      %432 = vmatpush.bf16.msra.mxu0 %v419
      %433 = vmatpush.bf16.msra.mxu0 %v418
      %434 = vmatpush.bf16.msra.mxu0 %v417
      %435 = vmatpush.bf16.msra.mxu0 %v416
      %436 = vmatpush.bf16.msra.mxu0 %v415
      %437 = vmatpush.bf16.msra.mxu0 %v414
      %438 = vmatmul.bf16.gmra.mxu0 %v346
      %v439 = vpop.f32.mrf.mxu0
      %v440 = vadd.f32 0.0, %v439
      %v441 = vpop.f32.mrf.mxu0
      %v442 = vadd.f32 0.0, %v441
      %443 = vmatmul.bf16.gmra.mxu0 %v347
      %v444 = vpop.f32.mrf.mxu0
      %v445 = vadd.f32 0.0, %v444
      %v446 = vpop.f32.mrf.mxu0
      %v447 = vadd.f32 0.0, %v446
      %448 = vmatmul.bf16.gmra.mxu0 %v348
      %v449 = vpop.f32.mrf.mxu0
      %v450 = vadd.f32 0.0, %v449
      %v451 = vpop.f32.mrf.mxu0
      %v452 = vadd.f32 0.0, %v451
      %453 = vmatmul.bf16.gmra.mxu0 %v349
      %v454 = vpop.f32.mrf.mxu0
      %v455 = vadd.f32 0.0, %v454
      %v456 = vpop.f32.mrf.mxu0
      %v457 = vadd.f32 0.0, %v456
      %458 = vmatmul.bf16.gmra.mxu0 %v350
      %v459 = vpop.f32.mrf.mxu0
      %v460 = vadd.f32 0.0, %v459
      %v461 = vpop.f32.mrf.mxu0
      %v462 = vadd.f32 0.0, %v461
      %463 = vmatmul.bf16.gmra.mxu0 %v351
      %v464 = vpop.f32.mrf.mxu0
      %v465 = vadd.f32 0.0, %v464
      %v466 = vpop.f32.mrf.mxu0
      %v467 = vadd.f32 0.0, %v466
      %468 = vmatmul.bf16.gmra.mxu0 %v352
      %v469 = vpop.f32.mrf.mxu0
      %v470 = vadd.f32 0.0, %v469
      %v471 = vpop.f32.mrf.mxu0
      %v472 = vadd.f32 0.0, %v471
      %473 = vmatmul.bf16.gmra.mxu0 %v353
      %v474 = vpop.f32.mrf.mxu0
      %v475 = vadd.f32 0.0, %v474
      %v476 = vpop.f32.mrf.mxu0
      %v477 = vadd.f32 0.0, %v476
      %478 = vmatmul.bf16.gmra.mxu0 %v354
      %v479 = vpop.f32.mrf.mxu0
      %v480 = vadd.f32 0.0, %v479
      %v481 = vpop.f32.mrf.mxu0
      %v482 = vadd.f32 0.0, %v481
      %483 = vmatmul.bf16.gmra.mxu0 %v355
      %v484 = vpop.f32.mrf.mxu0
      %v485 = vadd.f32 0.0, %v484
      %v486 = vpop.f32.mrf.mxu0
      %v487 = vadd.f32 0.0, %v486
      %488 = vmatmul.bf16.gmra.mxu0 %v356
      %v489 = vpop.f32.mrf.mxu0
      %v490 = vadd.f32 0.0, %v489
      %v491 = vpop.f32.mrf.mxu0
      %v492 = vadd.f32 0.0, %v491
      %493 = vmatmul.bf16.gmra.mxu0 %v357
      %v494 = vpop.f32.mrf.mxu0
      %v495 = vadd.f32 0.0, %v494
      %v496 = vpop.f32.mrf.mxu0
      %v497 = vadd.f32 0.0, %v496
      %498 = vmatmul.bf16.gmra.mxu0 %v358
      %v499 = vpop.f32.mrf.mxu0
      %v500 = vadd.f32 0.0, %v499
      %v501 = vpop.f32.mrf.mxu0
      %v502 = vadd.f32 0.0, %v501
      %503 = vmatmul.bf16.gmra.mxu0 %v359
      %v504 = vpop.f32.mrf.mxu0
      %v505 = vadd.f32 0.0, %v504
      %v506 = vpop.f32.mrf.mxu0
      %v507 = vadd.f32 0.0, %v506
      %508 = vmatmul.bf16.gmra.mxu0 %v360
      %v509 = vpop.f32.mrf.mxu0
      %v510 = vadd.f32 0.0, %v509
      %v511 = vpop.f32.mrf.mxu0
      %v512 = vadd.f32 0.0, %v511
      %513 = vmatmul.bf16.gmra.mxu0 %v361
      %v514 = vpop.f32.mrf.mxu0
      %v515 = vadd.f32 0.0, %v514
      %v516 = vpop.f32.mrf.mxu0
      %v517 = vadd.f32 0.0, %v516
      %518 = vmatmul.bf16.gmra.mxu0 %v362
      %v519 = vpop.f32.mrf.mxu0
      %v520 = vadd.f32 0.0, %v519
      %v521 = vpop.f32.mrf.mxu0
      %v522 = vadd.f32 0.0, %v521
      %523 = vmatmul.bf16.gmra.mxu0 %v363
      %v524 = vpop.f32.mrf.mxu0
      %v525 = vadd.f32 0.0, %v524
      %v526 = vpop.f32.mrf.mxu0
      %v527 = vadd.f32 0.0, %v526
      %528 = vdwg.mxu0
      %529 = vst [vmem:[#allocation2] sm:$0xff] %v440
      %530 = vst [vmem:[#allocation2 + $0x8] sm:$0xff] %v442
      %531 = vst [vmem:[#allocation2 + $0x10] sm:$0xff] %v445
      %532 = vst [vmem:[#allocation2 + $0x18] sm:$0xff] %v447
      %533 = vst [vmem:[#allocation2 + $0x20] sm:$0xff] %v450
      %534 = vst [vmem:[#allocation2 + $0x28] sm:$0xff] %v452
      %535 = vst [vmem:[#allocation2 + $0x30] sm:$0xff] %v455
      %536 = vst [vmem:[#allocation2 + $0x38] sm:$0xff] %v457
      %537 = vst [vmem:[#allocation2 + $0x40] sm:$0xff] %v460
      %538 = vst [vmem:[#allocation2 + $0x48] sm:$0xff] %v462
      %539 = vst [vmem:[#allocation2 + $0x50] sm:$0xff] %v465
      %540 = vst [vmem:[#allocation2 + $0x58] sm:$0xff] %v467
      %541 = vst [vmem:[#allocation2 + $0x60] sm:$0xff] %v470
      %542 = vst [vmem:[#allocation2 + $0x68] sm:$0xff] %v472
      %543 = vst [vmem:[#allocation2 + $0x70] sm:$0xff] %v475
      %544 = vst [vmem:[#allocation2 + $0x78] sm:$0xff] %v477
      %545 = vst [vmem:[#allocation2 + $0x80] sm:$0xff] %v480
      %546 = vst [vmem:[#allocation2 + $0x88] sm:$0xff] %v482
      %547 = vst [vmem:[#allocation2 + $0x90] sm:$0xff] %v485
      %548 = vst [vmem:[#allocation2 + $0x98] sm:$0xff] %v487
      %549 = vst [vmem:[#allocation2 + $0xa0] sm:$0xff] %v490
      %550 = vst [vmem:[#allocation2 + $0xa8] sm:$0xff] %v492
      %551 = vst [vmem:[#allocation2 + $0xb0] sm:$0xff] %v495
      %552 = vst [vmem:[#allocation2 + $0xb8] sm:$0xff] %v497
      %553 = vst [vmem:[#allocation2 + $0xc0] sm:$0xff] %v500
      %554 = vst [vmem:[#allocation2 + $0xc8] sm:$0xff] %v502
      %555 = vst [vmem:[#allocation2 + $0xd0] sm:$0xff] %v505
      %556 = vst [vmem:[#allocation2 + $0xd8] sm:$0xff] %v507
      %557 = vst [vmem:[#allocation2 + $0xe0] sm:$0xff] %v510
      %558 = vst [vmem:[#allocation2 + $0xe8] sm:$0xff] %v512
      %559 = vst [vmem:[#allocation2 + $0xf0] sm:$0xff] %v515
      %560 = vst [vmem:[#allocation2 + $0xf8] sm:$0xff] %v517
      %561 = vst [vmem:[#allocation2 + $0x100] sm:$0xff] %v520
      %562 = vst [vmem:[#allocation2 + $0x108] sm:$0xff] %v522
      %563 = vst [vmem:[#allocation2 + $0x110] sm:$0xff] %v525
      %564 = vst [vmem:[#allocation2 + $0x118] sm:$0xff] %v527
      %v565 = vld [vmem:[%s206] sm:$0xf]
      %v566 = vld [vmem:[%s206 + $0x4] sm:$0xf]
      %v567 = vld [vmem:[%s206 + $0x8] sm:$0xf]
      %v568 = vld [vmem:[%s206 + $0xc] sm:$0xf]
      %v569 = vld [vmem:[%s206 + $0x10] sm:$0xf]
      %v570 = vld [vmem:[%s206 + $0x14] sm:$0xf]
      %v571 = vld [vmem:[%s206 + $0x18] sm:$0xf]
      %v572 = vld [vmem:[%s206 + $0x1c] sm:$0xf]
      %v573 = vld [vmem:[%s206 + $0x20] sm:$0xf]
      %v574 = vld [vmem:[%s206 + $0x24] sm:$0xf]
      %v575 = vld [vmem:[%s206 + $0x28] sm:$0xf]
      %v576 = vld [vmem:[%s206 + $0x2c] sm:$0xf]
      %v577 = vld [vmem:[%s206 + $0x30] sm:$0xf]
      %v578 = vld [vmem:[%s206 + $0x34] sm:$0xf]
      %v579 = vld [vmem:[%s206 + $0x38] sm:$0xf]
      %v580 = vld [vmem:[%s206 + $0x3c] sm:$0xf]
      %v581 = vld [vmem:[%s206 + $0x40] sm:$0xf]
      %v582 = vld [vmem:[%s206 + $0x44] sm:$0xf]
      %v583 = vld [vmem:[%s206 + $0x48] sm:$0xf]
      %v584 = vld [vmem:[%s206 + $0x4c] sm:$0xf]
      %v585 = vld [vmem:[%s206 + $0x50] sm:$0xf]
      %v586 = vld [vmem:[%s206 + $0x54] sm:$0xf]
      %v587 = vld [vmem:[%s206 + $0x58] sm:$0xf]
      %v588 = vld [vmem:[%s206 + $0x5c] sm:$0xf]
      %v589 = vld [vmem:[%s206 + $0x60] sm:$0xf]
      %v590 = vld [vmem:[%s206 + $0x64] sm:$0xf]
      %v591 = vld [vmem:[%s206 + $0x68] sm:$0xf]
      %v592 = vld [vmem:[%s206 + $0x6c] sm:$0xf]
      %v593 = vld [vmem:[%s206 + $0x70] sm:$0xf]
      %v594 = vld [vmem:[%s206 + $0x74] sm:$0xf]
      %v595 = vld [vmem:[%s206 + $0x78] sm:$0xf]
      %v596 = vld [vmem:[%s206 + $0x7c] sm:$0xf]
      %v597 = vld [vmem:[%s206 + $0x80] sm:$0xf]
      %v598 = vld [vmem:[%s206 + $0x84] sm:$0xf]
      %v599 = vld [vmem:[%s206 + $0x88] sm:$0xf]
      %v600 = vld [vmem:[%s206 + $0x8c] sm:$0xf]
      %v601 = vld [vmem:[%s206 + $0x90] sm:$0x1]
      %s602 = scalar_lea.vmem %s210, 64
      %v603 = vld [vmem:[%s602] sm:$0xf]
      %v604 = vld [vmem:[%s602 + $0x4] sm:$0xf]
      %v605 = vld [vmem:[%s602 + $0x8] sm:$0xf]
      %v606 = vld [vmem:[%s602 + $0xc] sm:$0xf]
      %v607 = vld [vmem:[%s602 + $0x10] sm:$0xf]
      %v608 = vld [vmem:[%s602 + $0x14] sm:$0xf]
      %v609 = vld [vmem:[%s602 + $0x18] sm:$0xf]
      %v610 = vld [vmem:[%s602 + $0x1c] sm:$0xf]
      %v611 = vld [vmem:[%s602 + $0x20] sm:$0xf]
      %v612 = vld [vmem:[%s602 + $0x24] sm:$0xf]
      %v613 = vld [vmem:[%s602 + $0x28] sm:$0xf]
      %v614 = vld [vmem:[%s602 + $0x2c] sm:$0xf]
      %v615 = vld [vmem:[%s602 + $0x30] sm:$0xf]
      %v616 = vld [vmem:[%s602 + $0x34] sm:$0xf]
      %v617 = vld [vmem:[%s602 + $0x38] sm:$0xf]
      %v618 = vld [vmem:[%s602 + $0x3c] sm:$0xf]
      %v656 = vunpack.c.l.b16 %v565
      %v657 = vunpack.c.l.b16 %v566
      %v658 = vunpack.c.l.b16 %v567
      %v659 = vunpack.c.l.b16 %v568
      %v660 = vunpack.c.l.b16 %v569
      %v661 = vunpack.c.l.b16 %v570
      %v662 = vunpack.c.l.b16 %v571
      %v663 = vunpack.c.l.b16 %v572
      %v664 = vunpack.c.l.b16 %v573
      %v665 = vunpack.c.l.b16 %v574
      %v666 = vunpack.c.l.b16 %v575
      %v667 = vunpack.c.l.b16 %v576
      %v668 = vunpack.c.l.b16 %v577
      %v669 = vunpack.c.l.b16 %v578
      %v670 = vunpack.c.l.b16 %v579
      %v671 = vunpack.c.l.b16 %v580
      %v672 = vunpack.c.l.b16 %v581
      %v673 = vunpack.c.l.b16 %v582
      %v674 = vunpack.c.l.b16 %v583
      %v675 = vunpack.c.l.b16 %v584
      %v676 = vunpack.c.l.b16 %v585
      %v677 = vunpack.c.l.b16 %v586
      %v678 = vunpack.c.l.b16 %v587
      %v679 = vunpack.c.l.b16 %v588
      %v680 = vunpack.c.l.b16 %v589
      %v681 = vunpack.c.l.b16 %v590
      %v682 = vunpack.c.l.b16 %v591
      %v683 = vunpack.c.l.b16 %v592
      %v684 = vunpack.c.l.b16 %v593
      %v685 = vunpack.c.l.b16 %v594
      %v686 = vunpack.c.l.b16 %v595
      %v687 = vunpack.c.l.b16 %v596
      %v688 = vunpack.c.l.b16 %v597
      %v689 = vunpack.c.l.b16 %v598
      %v690 = vunpack.c.l.b16 %v599
      %v691 = vunpack.c.l.b16 %v600
      %v692 = vunpack.c.l.b16 %v601
      %v693 = vpack.c.b16 %v657, %v656
      %v694 = vpack.c.b16 %v659, %v658
      %v695 = vpack.c.b16 %v661, %v660
      %v696 = vpack.c.b16 %v663, %v662
      %v697 = vpack.c.b16 %v665, %v664
      %v698 = vpack.c.b16 %v667, %v666
      %v699 = vpack.c.b16 %v669, %v668
      %v700 = vpack.c.b16 %v671, %v670
      %v701 = vpack.c.b16 %v673, %v672
      %v702 = vpack.c.b16 %v675, %v674
      %v703 = vpack.c.b16 %v677, %v676
      %v704 = vpack.c.b16 %v679, %v678
      %v705 = vpack.c.b16 %v681, %v680
      %v706 = vpack.c.b16 %v683, %v682
      %v707 = vpack.c.b16 %v685, %v684
      %v708 = vpack.c.b16 %v687, %v686
      %v709 = vpack.c.b16 %v689, %v688
      %v710 = vpack.c.b16 %v691, %v690
      %v711 = vpack.c.b16 %v692, %v692
      %vm712 = vsmask.f32 7424
      %v714 = vshrl.u32 %v693, 16
      %v716 = vshll.u32 %v693, 16
      %v718 = vrot.slane %v716, 1
      %v719 = vor.u32 %v714, %v718
      %v721 = vshll.u32 %v694, 16
      %v723 = vrot.slane %v721, 1
      %v724 = vsel %vm712, %v719, %v723
      %v725 = vshrl.u32 %v694, 16
      %v727 = vor.u32 %v725, %v723
      %v729 = vshll.u32 %v695, 16
      %v731 = vrot.slane %v729, 1
      %v732 = vsel %vm712, %v727, %v731
      %v733 = vshrl.u32 %v695, 16
      %v735 = vor.u32 %v733, %v731
      %v737 = vshll.u32 %v696, 16
      %v739 = vrot.slane %v737, 1
      %v740 = vsel %vm712, %v735, %v739
      %v741 = vshrl.u32 %v696, 16
      %v743 = vor.u32 %v741, %v739
      %v745 = vshll.u32 %v697, 16
      %v747 = vrot.slane %v745, 1
      %v748 = vsel %vm712, %v743, %v747
      %v749 = vshrl.u32 %v697, 16
      %v751 = vor.u32 %v749, %v747
      %v753 = vshll.u32 %v698, 16
      %v755 = vrot.slane %v753, 1
      %v756 = vsel %vm712, %v751, %v755
      %v757 = vshrl.u32 %v698, 16
      %v759 = vor.u32 %v757, %v755
      %v761 = vshll.u32 %v699, 16
      %v763 = vrot.slane %v761, 1
      %v764 = vsel %vm712, %v759, %v763
      %v765 = vshrl.u32 %v699, 16
      %v767 = vor.u32 %v765, %v763
      %v769 = vshll.u32 %v700, 16
      %v771 = vrot.slane %v769, 1
      %v772 = vsel %vm712, %v767, %v771
      %v773 = vshrl.u32 %v700, 16
      %v775 = vor.u32 %v773, %v771
      %v777 = vshll.u32 %v701, 16
      %v779 = vrot.slane %v777, 1
      %v780 = vsel %vm712, %v775, %v779
      %v781 = vshrl.u32 %v701, 16
      %v783 = vor.u32 %v781, %v779
      %v785 = vshll.u32 %v702, 16
      %v787 = vrot.slane %v785, 1
      %v788 = vsel %vm712, %v783, %v787
      %v789 = vshrl.u32 %v702, 16
      %v791 = vor.u32 %v789, %v787
      %v793 = vshll.u32 %v703, 16
      %v795 = vrot.slane %v793, 1
      %v796 = vsel %vm712, %v791, %v795
      %v797 = vshrl.u32 %v703, 16
      %v799 = vor.u32 %v797, %v795
      %v801 = vshll.u32 %v704, 16
      %v803 = vrot.slane %v801, 1
      %v804 = vsel %vm712, %v799, %v803
      %v805 = vshrl.u32 %v704, 16
      %v807 = vor.u32 %v805, %v803
      %v809 = vshll.u32 %v705, 16
      %v811 = vrot.slane %v809, 1
      %v812 = vsel %vm712, %v807, %v811
      %v813 = vshrl.u32 %v705, 16
      %v815 = vor.u32 %v813, %v811
      %v817 = vshll.u32 %v706, 16
      %v819 = vrot.slane %v817, 1
      %v820 = vsel %vm712, %v815, %v819
      %v821 = vshrl.u32 %v706, 16
      %v823 = vor.u32 %v821, %v819
      %v825 = vshll.u32 %v707, 16
      %v827 = vrot.slane %v825, 1
      %v828 = vsel %vm712, %v823, %v827
      %v829 = vshrl.u32 %v707, 16
      %v831 = vor.u32 %v829, %v827
      %v833 = vshll.u32 %v708, 16
      %v835 = vrot.slane %v833, 1
      %v836 = vsel %vm712, %v831, %v835
      %v837 = vshrl.u32 %v708, 16
      %v839 = vor.u32 %v837, %v835
      %v841 = vshll.u32 %v709, 16
      %v843 = vrot.slane %v841, 1
      %v844 = vsel %vm712, %v839, %v843
      %v845 = vshrl.u32 %v709, 16
      %v847 = vor.u32 %v845, %v843
      %v849 = vshll.u32 %v710, 16
      %v851 = vrot.slane %v849, 1
      %v852 = vsel %vm712, %v847, %v851
      %v853 = vshrl.u32 %v710, 16
      %v855 = vor.u32 %v853, %v851
      %v857 = vshll.u32 %v711, 16
      %v859 = vrot.slane %v857, 1
      %v860 = vsel %vm712, %v855, %v859
      %v895 = vunpack.c.l.b16 %v603
      %v896 = vunpack.c.l.b16 %v604
      %v897 = vunpack.c.l.b16 %v605
      %v898 = vunpack.c.l.b16 %v606
      %v899 = vunpack.c.l.b16 %v607
      %v900 = vunpack.c.l.b16 %v608
      %v901 = vunpack.c.l.b16 %v609
      %v902 = vunpack.c.l.b16 %v610
      %v903 = vunpack.c.l.b16 %v611
      %v904 = vunpack.c.l.b16 %v612
      %v905 = vunpack.c.l.b16 %v613
      %v906 = vunpack.c.l.b16 %v614
      %v907 = vunpack.c.l.b16 %v615
      %v908 = vunpack.c.l.b16 %v616
      %v909 = vunpack.c.l.b16 %v617
      %v910 = vunpack.c.l.b16 %v618
      %v911 = vpack.c.b16 %v896, %v895
      %v912 = vpack.c.b16 %v898, %v897
      %v913 = vpack.c.b16 %v900, %v899
      %v914 = vpack.c.b16 %v902, %v901
      %v915 = vpack.c.b16 %v904, %v903
      %v916 = vpack.c.b16 %v906, %v905
      %v917 = vpack.c.b16 %v908, %v907
      %v918 = vpack.c.b16 %v910, %v909
      %927 = vmatpush.bf16.msra.mxu0 %v918
      %928 = vmatpush.bf16.msra.mxu0 %v917
      %929 = vmatpush.bf16.msra.mxu0 %v916
      %930 = vmatpush.bf16.msra.mxu0 %v915
      %931 = vmatpush.bf16.msra.mxu0 %v914
      %932 = vmatpush.bf16.msra.mxu0 %v913
      %933 = vmatpush.bf16.msra.mxu0 %v912
      %934 = vmatpush.bf16.msra.mxu0 %v911
      %935 = vmatmul.bf16.gmra.mxu0 %v724
      %v936 = vpop.f32.mrf.mxu0
      %v937 = vadd.f32 0.0, %v936
      %v938 = vpop.f32.mrf.mxu0
      %v939 = vadd.f32 0.0, %v938
      %940 = vmatmul.bf16.gmra.mxu0 %v732
      %v941 = vpop.f32.mrf.mxu0
      %v942 = vadd.f32 0.0, %v941
      %v943 = vpop.f32.mrf.mxu0
      %v944 = vadd.f32 0.0, %v943
      %945 = vmatmul.bf16.gmra.mxu0 %v740
      %v946 = vpop.f32.mrf.mxu0
      %v947 = vadd.f32 0.0, %v946
      %v948 = vpop.f32.mrf.mxu0
      %v949 = vadd.f32 0.0, %v948
      %950 = vmatmul.bf16.gmra.mxu0 %v748
      %v951 = vpop.f32.mrf.mxu0
      %v952 = vadd.f32 0.0, %v951
      %v953 = vpop.f32.mrf.mxu0
      %v954 = vadd.f32 0.0, %v953
      %955 = vmatmul.bf16.gmra.mxu0 %v756
      %v956 = vpop.f32.mrf.mxu0
      %v957 = vadd.f32 0.0, %v956
      %v958 = vpop.f32.mrf.mxu0
      %v959 = vadd.f32 0.0, %v958
      %960 = vmatmul.bf16.gmra.mxu0 %v764
      %v961 = vpop.f32.mrf.mxu0
      %v962 = vadd.f32 0.0, %v961
      %v963 = vpop.f32.mrf.mxu0
      %v964 = vadd.f32 0.0, %v963
      %965 = vmatmul.bf16.gmra.mxu0 %v772
      %v966 = vpop.f32.mrf.mxu0
      %v967 = vadd.f32 0.0, %v966
      %v968 = vpop.f32.mrf.mxu0
      %v969 = vadd.f32 0.0, %v968
      %970 = vmatmul.bf16.gmra.mxu0 %v780
      %v971 = vpop.f32.mrf.mxu0
      %v972 = vadd.f32 0.0, %v971
      %v973 = vpop.f32.mrf.mxu0
      %v974 = vadd.f32 0.0, %v973
      %975 = vmatmul.bf16.gmra.mxu0 %v788
      %v976 = vpop.f32.mrf.mxu0
      %v977 = vadd.f32 0.0, %v976
      %v978 = vpop.f32.mrf.mxu0
      %v979 = vadd.f32 0.0, %v978
      %980 = vmatmul.bf16.gmra.mxu0 %v796
      %v981 = vpop.f32.mrf.mxu0
      %v982 = vadd.f32 0.0, %v981
      %v983 = vpop.f32.mrf.mxu0
      %v984 = vadd.f32 0.0, %v983
      %985 = vmatmul.bf16.gmra.mxu0 %v804
      %v986 = vpop.f32.mrf.mxu0
      %v987 = vadd.f32 0.0, %v986
      %v988 = vpop.f32.mrf.mxu0
      %v989 = vadd.f32 0.0, %v988
      %990 = vmatmul.bf16.gmra.mxu0 %v812
      %v991 = vpop.f32.mrf.mxu0
      %v992 = vadd.f32 0.0, %v991
      %v993 = vpop.f32.mrf.mxu0
      %v994 = vadd.f32 0.0, %v993
      %995 = vmatmul.bf16.gmra.mxu0 %v820
      %v996 = vpop.f32.mrf.mxu0
      %v997 = vadd.f32 0.0, %v996
      %v998 = vpop.f32.mrf.mxu0
      %v999 = vadd.f32 0.0, %v998
      %1000 = vmatmul.bf16.gmra.mxu0 %v828
      %v1001 = vpop.f32.mrf.mxu0
      %v1002 = vadd.f32 0.0, %v1001
      %v1003 = vpop.f32.mrf.mxu0
      %v1004 = vadd.f32 0.0, %v1003
      %1005 = vmatmul.bf16.gmra.mxu0 %v836
      %v1006 = vpop.f32.mrf.mxu0
      %v1007 = vadd.f32 0.0, %v1006
      %v1008 = vpop.f32.mrf.mxu0
      %v1009 = vadd.f32 0.0, %v1008
      %1010 = vmatmul.bf16.gmra.mxu0 %v844
      %v1011 = vpop.f32.mrf.mxu0
      %v1012 = vadd.f32 0.0, %v1011
      %v1013 = vpop.f32.mrf.mxu0
      %v1014 = vadd.f32 0.0, %v1013
      %1015 = vmatmul.bf16.gmra.mxu0 %v852
      %v1016 = vpop.f32.mrf.mxu0
      %v1017 = vadd.f32 0.0, %v1016
      %v1018 = vpop.f32.mrf.mxu0
      %v1019 = vadd.f32 0.0, %v1018
      %1020 = vmatmul.bf16.gmra.mxu0 %v860
      %v1021 = vpop.f32.mrf.mxu0
      %v1022 = vadd.f32 0.0, %v1021
      %v1023 = vpop.f32.mrf.mxu0
      %v1024 = vadd.f32 0.0, %v1023
      %1025 = vdwg.mxu0
      %v1026 = vld [vmem:[#allocation2] sm:$0xff]
      %v1027 = vld [vmem:[#allocation2 + $0x8] sm:$0xff]
      %v1028 = vld [vmem:[#allocation2 + $0x10] sm:$0xff]
      %v1029 = vld [vmem:[#allocation2 + $0x18] sm:$0xff]
      %v1030 = vld [vmem:[#allocation2 + $0x20] sm:$0xff]
      %v1031 = vld [vmem:[#allocation2 + $0x28] sm:$0xff]
      %v1032 = vld [vmem:[#allocation2 + $0x30] sm:$0xff]
      %v1033 = vld [vmem:[#allocation2 + $0x38] sm:$0xff]
      %v1034 = vld [vmem:[#allocation2 + $0x40] sm:$0xff]
      %v1035 = vld [vmem:[#allocation2 + $0x48] sm:$0xff]
      %v1036 = vld [vmem:[#allocation2 + $0x50] sm:$0xff]
      %v1037 = vld [vmem:[#allocation2 + $0x58] sm:$0xff]
      %v1038 = vld [vmem:[#allocation2 + $0x60] sm:$0xff]
      %v1039 = vld [vmem:[#allocation2 + $0x68] sm:$0xff]
      %v1040 = vld [vmem:[#allocation2 + $0x70] sm:$0xff]
      %v1041 = vld [vmem:[#allocation2 + $0x78] sm:$0xff]
      %v1042 = vld [vmem:[#allocation2 + $0x80] sm:$0xff]
      %v1043 = vld [vmem:[#allocation2 + $0x88] sm:$0xff]
      %v1044 = vld [vmem:[#allocation2 + $0x90] sm:$0xff]
      %v1045 = vld [vmem:[#allocation2 + $0x98] sm:$0xff]
      %v1046 = vld [vmem:[#allocation2 + $0xa0] sm:$0xff]
      %v1047 = vld [vmem:[#allocation2 + $0xa8] sm:$0xff]
      %v1048 = vld [vmem:[#allocation2 + $0xb0] sm:$0xff]
      %v1049 = vld [vmem:[#allocation2 + $0xb8] sm:$0xff]
      %v1050 = vld [vmem:[#allocation2 + $0xc0] sm:$0xff]
      %v1051 = vld [vmem:[#allocation2 + $0xc8] sm:$0xff]
      %v1052 = vld [vmem:[#allocation2 + $0xd0] sm:$0xff]
      %v1053 = vld [vmem:[#allocation2 + $0xd8] sm:$0xff]
      %v1054 = vld [vmem:[#allocation2 + $0xe0] sm:$0xff]
      %v1055 = vld [vmem:[#allocation2 + $0xe8] sm:$0xff]
      %v1056 = vld [vmem:[#allocation2 + $0xf0] sm:$0xff]
      %v1057 = vld [vmem:[#allocation2 + $0xf8] sm:$0xff]
      %v1058 = vld [vmem:[#allocation2 + $0x100] sm:$0xff]
      %v1059 = vld [vmem:[#allocation2 + $0x108] sm:$0xff]
      %v1060 = vld [vmem:[#allocation2 + $0x110] sm:$0xff]
      %v1061 = vld [vmem:[#allocation2 + $0x118] sm:$0xff]
      %v1062 = vadd.f32 %v1026, %v937
      %v1063 = vadd.f32 %v1027, %v939
      %v1064 = vadd.f32 %v1028, %v942
      %v1065 = vadd.f32 %v1029, %v944
      %v1066 = vadd.f32 %v1030, %v947
      %v1067 = vadd.f32 %v1031, %v949
      %v1068 = vadd.f32 %v1032, %v952
      %v1069 = vadd.f32 %v1033, %v954
      %v1070 = vadd.f32 %v1034, %v957
      %v1071 = vadd.f32 %v1035, %v959
      %v1072 = vadd.f32 %v1036, %v962
      %v1073 = vadd.f32 %v1037, %v964
      %v1074 = vadd.f32 %v1038, %v967
      %v1075 = vadd.f32 %v1039, %v969
      %v1076 = vadd.f32 %v1040, %v972
      %v1077 = vadd.f32 %v1041, %v974
      %v1078 = vadd.f32 %v1042, %v977
      %v1079 = vadd.f32 %v1043, %v979
      %v1080 = vadd.f32 %v1044, %v982
      %v1081 = vadd.f32 %v1045, %v984
      %v1082 = vadd.f32 %v1046, %v987
      %v1083 = vadd.f32 %v1047, %v989
      %v1084 = vadd.f32 %v1048, %v992
      %v1085 = vadd.f32 %v1049, %v994
      %v1086 = vadd.f32 %v1050, %v997
      %v1087 = vadd.f32 %v1051, %v999
      %v1088 = vadd.f32 %v1052, %v1002
      %v1089 = vadd.f32 %v1053, %v1004
      %v1090 = vadd.f32 %v1054, %v1007
      %v1091 = vadd.f32 %v1055, %v1009
      %v1092 = vadd.f32 %v1056, %v1012
      %v1093 = vadd.f32 %v1057, %v1014
      %v1094 = vadd.f32 %v1058, %v1017
      %v1095 = vadd.f32 %v1059, %v1019
      %v1096 = vadd.f32 %v1060, %v1022
      %v1097 = vadd.f32 %v1061, %v1024
      %1098 = vst [vmem:[#allocation2] sm:$0xff] %v1062
      %1099 = vst [vmem:[#allocation2 + $0x8] sm:$0xff] %v1063
      %1100 = vst [vmem:[#allocation2 + $0x10] sm:$0xff] %v1064
      %1101 = vst [vmem:[#allocation2 + $0x18] sm:$0xff] %v1065
      %1102 = vst [vmem:[#allocation2 + $0x20] sm:$0xff] %v1066
      %1103 = vst [vmem:[#allocation2 + $0x28] sm:$0xff] %v1067
      %1104 = vst [vmem:[#allocation2 + $0x30] sm:$0xff] %v1068
      %1105 = vst [vmem:[#allocation2 + $0x38] sm:$0xff] %v1069
      %1106 = vst [vmem:[#allocation2 + $0x40] sm:$0xff] %v1070
      %1107 = vst [vmem:[#allocation2 + $0x48] sm:$0xff] %v1071
      %1108 = vst [vmem:[#allocation2 + $0x50] sm:$0xff] %v1072
      %1109 = vst [vmem:[#allocation2 + $0x58] sm:$0xff] %v1073
      %1110 = vst [vmem:[#allocation2 + $0x60] sm:$0xff] %v1074
      %1111 = vst [vmem:[#allocation2 + $0x68] sm:$0xff] %v1075
      %1112 = vst [vmem:[#allocation2 + $0x70] sm:$0xff] %v1076
      %1113 = vst [vmem:[#allocation2 + $0x78] sm:$0xff] %v1077
      %1114 = vst [vmem:[#allocation2 + $0x80] sm:$0xff] %v1078
      %1115 = vst [vmem:[#allocation2 + $0x88] sm:$0xff] %v1079
      %1116 = vst [vmem:[#allocation2 + $0x90] sm:$0xff] %v1080
      %1117 = vst [vmem:[#allocation2 + $0x98] sm:$0xff] %v1081
      %1118 = vst [vmem:[#allocation2 + $0xa0] sm:$0xff] %v1082
      %1119 = vst [vmem:[#allocation2 + $0xa8] sm:$0xff] %v1083
      %1120 = vst [vmem:[#allocation2 + $0xb0] sm:$0xff] %v1084
      %1121 = vst [vmem:[#allocation2 + $0xb8] sm:$0xff] %v1085
      %1122 = vst [vmem:[#allocation2 + $0xc0] sm:$0xff] %v1086
      %1123 = vst [vmem:[#allocation2 + $0xc8] sm:$0xff] %v1087
      %1124 = vst [vmem:[#allocation2 + $0xd0] sm:$0xff] %v1088
      %1125 = vst [vmem:[#allocation2 + $0xd8] sm:$0xff] %v1089
      %1126 = vst [vmem:[#allocation2 + $0xe0] sm:$0xff] %v1090
      %1127 = vst [vmem:[#allocation2 + $0xe8] sm:$0xff] %v1091
      %1128 = vst [vmem:[#allocation2 + $0xf0] sm:$0xff] %v1092
      %1129 = vst [vmem:[#allocation2 + $0xf8] sm:$0xff] %v1093
      %1130 = vst [vmem:[#allocation2 + $0x100] sm:$0xff] %v1094
      %1131 = vst [vmem:[#allocation2 + $0x108] sm:$0xff] %v1095
      %1132 = vst [vmem:[#allocation2 + $0x110] sm:$0xff] %v1096
      %1133 = vst [vmem:[#allocation2 + $0x118] sm:$0xff] %v1097
      %v1134 = vld [vmem:[%s206] sm:$0xe]
      %v1135 = vld [vmem:[%s206 + $0x4] sm:$0xf]
      %v1136 = vld [vmem:[%s206 + $0x8] sm:$0xf]
      %v1137 = vld [vmem:[%s206 + $0xc] sm:$0xf]
      %v1138 = vld [vmem:[%s206 + $0x10] sm:$0xf]
      %v1139 = vld [vmem:[%s206 + $0x14] sm:$0xf]
      %v1140 = vld [vmem:[%s206 + $0x18] sm:$0xf]
      %v1141 = vld [vmem:[%s206 + $0x1c] sm:$0xf]
      %v1142 = vld [vmem:[%s206 + $0x20] sm:$0xf]
      %v1143 = vld [vmem:[%s206 + $0x24] sm:$0xf]
      %v1144 = vld [vmem:[%s206 + $0x28] sm:$0xf]
      %v1145 = vld [vmem:[%s206 + $0x2c] sm:$0xf]
      %v1146 = vld [vmem:[%s206 + $0x30] sm:$0xf]
      %v1147 = vld [vmem:[%s206 + $0x34] sm:$0xf]
      %v1148 = vld [vmem:[%s206 + $0x38] sm:$0xf]
      %v1149 = vld [vmem:[%s206 + $0x3c] sm:$0xf]
      %v1150 = vld [vmem:[%s206 + $0x40] sm:$0xf]
      %v1151 = vld [vmem:[%s206 + $0x44] sm:$0xf]
      %v1152 = vld [vmem:[%s206 + $0x48] sm:$0xf]
      %v1153 = vld [vmem:[%s206 + $0x4c] sm:$0xf]
      %v1154 = vld [vmem:[%s206 + $0x50] sm:$0xf]
      %v1155 = vld [vmem:[%s206 + $0x54] sm:$0xf]
      %v1156 = vld [vmem:[%s206 + $0x58] sm:$0xf]
      %v1157 = vld [vmem:[%s206 + $0x5c] sm:$0xf]
      %v1158 = vld [vmem:[%s206 + $0x60] sm:$0xf]
      %v1159 = vld [vmem:[%s206 + $0x64] sm:$0xf]
      %v1160 = vld [vmem:[%s206 + $0x68] sm:$0xf]
      %v1161 = vld [vmem:[%s206 + $0x6c] sm:$0xf]
      %v1162 = vld [vmem:[%s206 + $0x70] sm:$0xf]
      %v1163 = vld [vmem:[%s206 + $0x74] sm:$0xf]
      %v1164 = vld [vmem:[%s206 + $0x78] sm:$0xf]
      %v1165 = vld [vmem:[%s206 + $0x7c] sm:$0xf]
      %v1166 = vld [vmem:[%s206 + $0x80] sm:$0xf]
      %v1167 = vld [vmem:[%s206 + $0x84] sm:$0xf]
      %v1168 = vld [vmem:[%s206 + $0x88] sm:$0xf]
      %v1169 = vld [vmem:[%s206 + $0x8c] sm:$0xf]
      %v1170 = vld [vmem:[%s206 + $0x90] sm:$0x1]
      %s1171 = scalar_lea.vmem %s210, 128
      %v1172 = vld [vmem:[%s1171] sm:$0xf]
      %v1173 = vld [vmem:[%s1171 + $0x4] sm:$0xf]
      %v1174 = vld [vmem:[%s1171 + $0x8] sm:$0xf]
      %v1175 = vld [vmem:[%s1171 + $0xc] sm:$0xf]
      %v1176 = vld [vmem:[%s1171 + $0x10] sm:$0xf]
      %v1177 = vld [vmem:[%s1171 + $0x14] sm:$0xf]
      %v1178 = vld [vmem:[%s1171 + $0x18] sm:$0xf]
      %v1179 = vld [vmem:[%s1171 + $0x1c] sm:$0xf]
      %v1180 = vld [vmem:[%s1171 + $0x20] sm:$0xf]
      %v1181 = vld [vmem:[%s1171 + $0x24] sm:$0xf]
      %v1182 = vld [vmem:[%s1171 + $0x28] sm:$0xf]
      %v1183 = vld [vmem:[%s1171 + $0x2c] sm:$0xf]
      %v1184 = vld [vmem:[%s1171 + $0x30] sm:$0xf]
      %v1185 = vld [vmem:[%s1171 + $0x34] sm:$0xf]
      %v1186 = vld [vmem:[%s1171 + $0x38] sm:$0xf]
      %v1187 = vld [vmem:[%s1171 + $0x3c] sm:$0xf]
      %v1225 = vunpack.c.l.b16 %v1134
      %v1226 = vunpack.c.l.b16 %v1135
      %v1227 = vunpack.c.l.b16 %v1136
      %v1228 = vunpack.c.l.b16 %v1137
      %v1229 = vunpack.c.l.b16 %v1138
      %v1230 = vunpack.c.l.b16 %v1139
      %v1231 = vunpack.c.l.b16 %v1140
      %v1232 = vunpack.c.l.b16 %v1141
      %v1233 = vunpack.c.l.b16 %v1142
      %v1234 = vunpack.c.l.b16 %v1143
      %v1235 = vunpack.c.l.b16 %v1144
      %v1236 = vunpack.c.l.b16 %v1145
      %v1237 = vunpack.c.l.b16 %v1146
      %v1238 = vunpack.c.l.b16 %v1147
      %v1239 = vunpack.c.l.b16 %v1148
      %v1240 = vunpack.c.l.b16 %v1149
      %v1241 = vunpack.c.l.b16 %v1150
      %v1242 = vunpack.c.l.b16 %v1151
      %v1243 = vunpack.c.l.b16 %v1152
      %v1244 = vunpack.c.l.b16 %v1153
      %v1245 = vunpack.c.l.b16 %v1154
      %v1246 = vunpack.c.l.b16 %v1155
      %v1247 = vunpack.c.l.b16 %v1156
      %v1248 = vunpack.c.l.b16 %v1157
      %v1249 = vunpack.c.l.b16 %v1158
      %v1250 = vunpack.c.l.b16 %v1159
      %v1251 = vunpack.c.l.b16 %v1160
      %v1252 = vunpack.c.l.b16 %v1161
      %v1253 = vunpack.c.l.b16 %v1162
      %v1254 = vunpack.c.l.b16 %v1163
      %v1255 = vunpack.c.l.b16 %v1164
      %v1256 = vunpack.c.l.b16 %v1165
      %v1257 = vunpack.c.l.b16 %v1166
      %v1258 = vunpack.c.l.b16 %v1167
      %v1259 = vunpack.c.l.b16 %v1168
      %v1260 = vunpack.c.l.b16 %v1169
      %v1261 = vunpack.c.l.b16 %v1170
      %v1262 = vpack.c.b16 %v1226, %v1225
      %v1263 = vpack.c.b16 %v1228, %v1227
      %v1264 = vpack.c.b16 %v1230, %v1229
      %v1265 = vpack.c.b16 %v1232, %v1231
      %v1266 = vpack.c.b16 %v1234, %v1233
      %v1267 = vpack.c.b16 %v1236, %v1235
      %v1268 = vpack.c.b16 %v1238, %v1237
      %v1269 = vpack.c.b16 %v1240, %v1239
      %v1270 = vpack.c.b16 %v1242, %v1241
      %v1271 = vpack.c.b16 %v1244, %v1243
      %v1272 = vpack.c.b16 %v1246, %v1245
      %v1273 = vpack.c.b16 %v1248, %v1247
      %v1274 = vpack.c.b16 %v1250, %v1249
      %v1275 = vpack.c.b16 %v1252, %v1251
      %v1276 = vpack.c.b16 %v1254, %v1253
      %v1277 = vpack.c.b16 %v1256, %v1255
      %v1278 = vpack.c.b16 %v1258, %v1257
      %v1279 = vpack.c.b16 %v1260, %v1259
      %v1280 = vpack.c.b16 %v1261, %v1261
      %vm1281 = vcmask 1046528
      %v1282 = vrot.slane %v1262, 1
      %v1283 = vrot.slane %v1263, 1
      %v1284 = vsel %vm1281, %v1282, %v1283
      %v1285 = vrot.slane %v1264, 1
      %v1286 = vsel %vm1281, %v1283, %v1285
      %v1287 = vrot.slane %v1265, 1
      %v1288 = vsel %vm1281, %v1285, %v1287
      %v1289 = vrot.slane %v1266, 1
      %v1290 = vsel %vm1281, %v1287, %v1289
      %v1291 = vrot.slane %v1267, 1
      %v1292 = vsel %vm1281, %v1289, %v1291
      %v1293 = vrot.slane %v1268, 1
      %v1294 = vsel %vm1281, %v1291, %v1293
      %v1295 = vrot.slane %v1269, 1
      %v1296 = vsel %vm1281, %v1293, %v1295
      %v1297 = vrot.slane %v1270, 1
      %v1298 = vsel %vm1281, %v1295, %v1297
      %v1299 = vrot.slane %v1271, 1
      %v1300 = vsel %vm1281, %v1297, %v1299
      %v1301 = vrot.slane %v1272, 1
      %v1302 = vsel %vm1281, %v1299, %v1301
      %v1303 = vrot.slane %v1273, 1
      %v1304 = vsel %vm1281, %v1301, %v1303
      %v1305 = vrot.slane %v1274, 1
      %v1306 = vsel %vm1281, %v1303, %v1305
      %v1307 = vrot.slane %v1275, 1
      %v1308 = vsel %vm1281, %v1305, %v1307
      %v1309 = vrot.slane %v1276, 1
      %v1310 = vsel %vm1281, %v1307, %v1309
      %v1311 = vrot.slane %v1277, 1
      %v1312 = vsel %vm1281, %v1309, %v1311
      %v1313 = vrot.slane %v1278, 1
      %v1314 = vsel %vm1281, %v1311, %v1313
      %v1315 = vrot.slane %v1279, 1
      %v1316 = vsel %vm1281, %v1313, %v1315
      %v1317 = vrot.slane %v1280, 1
      %v1318 = vsel %vm1281, %v1315, %v1317
      %v1353 = vunpack.c.l.b16 %v1172
      %v1354 = vunpack.c.l.b16 %v1173
      %v1355 = vunpack.c.l.b16 %v1174
      %v1356 = vunpack.c.l.b16 %v1175
      %v1357 = vunpack.c.l.b16 %v1176
      %v1358 = vunpack.c.l.b16 %v1177
      %v1359 = vunpack.c.l.b16 %v1178
      %v1360 = vunpack.c.l.b16 %v1179
      %v1361 = vunpack.c.l.b16 %v1180
      %v1362 = vunpack.c.l.b16 %v1181
      %v1363 = vunpack.c.l.b16 %v1182
      %v1364 = vunpack.c.l.b16 %v1183
      %v1365 = vunpack.c.l.b16 %v1184
      %v1366 = vunpack.c.l.b16 %v1185
      %v1367 = vunpack.c.l.b16 %v1186
      %v1368 = vunpack.c.l.b16 %v1187
      %v1369 = vpack.c.b16 %v1354, %v1353
      %v1370 = vpack.c.b16 %v1356, %v1355
      %v1371 = vpack.c.b16 %v1358, %v1357
      %v1372 = vpack.c.b16 %v1360, %v1359
      %v1373 = vpack.c.b16 %v1362, %v1361
      %v1374 = vpack.c.b16 %v1364, %v1363
      %v1375 = vpack.c.b16 %v1366, %v1365
      %v1376 = vpack.c.b16 %v1368, %v1367
      %1385 = vmatpush.bf16.msra.mxu0 %v1376
      %1386 = vmatpush.bf16.msra.mxu0 %v1375
      %1387 = vmatpush.bf16.msra.mxu0 %v1374
      %1388 = vmatpush.bf16.msra.mxu0 %v1373
      %1389 = vmatpush.bf16.msra.mxu0 %v1372
      %1390 = vmatpush.bf16.msra.mxu0 %v1371
      %1391 = vmatpush.bf16.msra.mxu0 %v1370
      %1392 = vmatpush.bf16.msra.mxu0 %v1369
      %1393 = vmatmul.bf16.gmra.mxu0 %v1284
      %v1394 = vpop.f32.mrf.mxu0
      %v1395 = vadd.f32 0.0, %v1394
      %v1396 = vpop.f32.mrf.mxu0
      %v1397 = vadd.f32 0.0, %v1396
      %1398 = vmatmul.bf16.gmra.mxu0 %v1286
      %v1399 = vpop.f32.mrf.mxu0
      %v1400 = vadd.f32 0.0, %v1399
      %v1401 = vpop.f32.mrf.mxu0
      %v1402 = vadd.f32 0.0, %v1401
      %1403 = vmatmul.bf16.gmra.mxu0 %v1288
      %v1404 = vpop.f32.mrf.mxu0
      %v1405 = vadd.f32 0.0, %v1404
      %v1406 = vpop.f32.mrf.mxu0
      %v1407 = vadd.f32 0.0, %v1406
      %1408 = vmatmul.bf16.gmra.mxu0 %v1290
      %v1409 = vpop.f32.mrf.mxu0
      %v1410 = vadd.f32 0.0, %v1409
      %v1411 = vpop.f32.mrf.mxu0
      %v1412 = vadd.f32 0.0, %v1411
      %1413 = vmatmul.bf16.gmra.mxu0 %v1292
      %v1414 = vpop.f32.mrf.mxu0
      %v1415 = vadd.f32 0.0, %v1414
      %v1416 = vpop.f32.mrf.mxu0
      %v1417 = vadd.f32 0.0, %v1416
      %1418 = vmatmul.bf16.gmra.mxu0 %v1294
      %v1419 = vpop.f32.mrf.mxu0
      %v1420 = vadd.f32 0.0, %v1419
      %v1421 = vpop.f32.mrf.mxu0
      %v1422 = vadd.f32 0.0, %v1421
      %1423 = vmatmul.bf16.gmra.mxu0 %v1296
      %v1424 = vpop.f32.mrf.mxu0
      %v1425 = vadd.f32 0.0, %v1424
      %v1426 = vpop.f32.mrf.mxu0
      %v1427 = vadd.f32 0.0, %v1426
      %1428 = vmatmul.bf16.gmra.mxu0 %v1298
      %v1429 = vpop.f32.mrf.mxu0
      %v1430 = vadd.f32 0.0, %v1429
      %v1431 = vpop.f32.mrf.mxu0
      %v1432 = vadd.f32 0.0, %v1431
      %1433 = vmatmul.bf16.gmra.mxu0 %v1300
      %v1434 = vpop.f32.mrf.mxu0
      %v1435 = vadd.f32 0.0, %v1434
      %v1436 = vpop.f32.mrf.mxu0
      %v1437 = vadd.f32 0.0, %v1436
      %1438 = vmatmul.bf16.gmra.mxu0 %v1302
      %v1439 = vpop.f32.mrf.mxu0
      %v1440 = vadd.f32 0.0, %v1439
      %v1441 = vpop.f32.mrf.mxu0
      %v1442 = vadd.f32 0.0, %v1441
      %1443 = vmatmul.bf16.gmra.mxu0 %v1304
      %v1444 = vpop.f32.mrf.mxu0
      %v1445 = vadd.f32 0.0, %v1444
      %v1446 = vpop.f32.mrf.mxu0
      %v1447 = vadd.f32 0.0, %v1446
      %1448 = vmatmul.bf16.gmra.mxu0 %v1306
      %v1449 = vpop.f32.mrf.mxu0
      %v1450 = vadd.f32 0.0, %v1449
      %v1451 = vpop.f32.mrf.mxu0
      %v1452 = vadd.f32 0.0, %v1451
      %1453 = vmatmul.bf16.gmra.mxu0 %v1308
      %v1454 = vpop.f32.mrf.mxu0
      %v1455 = vadd.f32 0.0, %v1454
      %v1456 = vpop.f32.mrf.mxu0
      %v1457 = vadd.f32 0.0, %v1456
      %1458 = vmatmul.bf16.gmra.mxu0 %v1310
      %v1459 = vpop.f32.mrf.mxu0
      %v1460 = vadd.f32 0.0, %v1459
      %v1461 = vpop.f32.mrf.mxu0
      %v1462 = vadd.f32 0.0, %v1461
      %1463 = vmatmul.bf16.gmra.mxu0 %v1312
      %v1464 = vpop.f32.mrf.mxu0
      %v1465 = vadd.f32 0.0, %v1464
      %v1466 = vpop.f32.mrf.mxu0
      %v1467 = vadd.f32 0.0, %v1466
      %1468 = vmatmul.bf16.gmra.mxu0 %v1314
      %v1469 = vpop.f32.mrf.mxu0
      %v1470 = vadd.f32 0.0, %v1469
      %v1471 = vpop.f32.mrf.mxu0
      %v1472 = vadd.f32 0.0, %v1471
      %1473 = vmatmul.bf16.gmra.mxu0 %v1316
      %v1474 = vpop.f32.mrf.mxu0
      %v1475 = vadd.f32 0.0, %v1474
      %v1476 = vpop.f32.mrf.mxu0
      %v1477 = vadd.f32 0.0, %v1476
      %1478 = vmatmul.bf16.gmra.mxu0 %v1318
      %v1479 = vpop.f32.mrf.mxu0
      %v1480 = vadd.f32 0.0, %v1479
      %v1481 = vpop.f32.mrf.mxu0
      %v1482 = vadd.f32 0.0, %v1481
      %1483 = vdwg.mxu0
      %v1484 = vld [vmem:[#allocation2] sm:$0xff]
      %v1485 = vld [vmem:[#allocation2 + $0x8] sm:$0xff]
      %v1486 = vld [vmem:[#allocation2 + $0x10] sm:$0xff]
      %v1487 = vld [vmem:[#allocation2 + $0x18] sm:$0xff]
      %v1488 = vld [vmem:[#allocation2 + $0x20] sm:$0xff]
      %v1489 = vld [vmem:[#allocation2 + $0x28] sm:$0xff]
      %v1490 = vld [vmem:[#allocation2 + $0x30] sm:$0xff]
      %v1491 = vld [vmem:[#allocation2 + $0x38] sm:$0xff]
      %v1492 = vld [vmem:[#allocation2 + $0x40] sm:$0xff]
      %v1493 = vld [vmem:[#allocation2 + $0x48] sm:$0xff]
      %v1494 = vld [vmem:[#allocation2 + $0x50] sm:$0xff]
      %v1495 = vld [vmem:[#allocation2 + $0x58] sm:$0xff]
      %v1496 = vld [vmem:[#allocation2 + $0x60] sm:$0xff]
      %v1497 = vld [vmem:[#allocation2 + $0x68] sm:$0xff]
      %v1498 = vld [vmem:[#allocation2 + $0x70] sm:$0xff]
      %v1499 = vld [vmem:[#allocation2 + $0x78] sm:$0xff]
      %v1500 = vld [vmem:[#allocation2 + $0x80] sm:$0xff]
      %v1501 = vld [vmem:[#allocation2 + $0x88] sm:$0xff]
      %v1502 = vld [vmem:[#allocation2 + $0x90] sm:$0xff]
      %v1503 = vld [vmem:[#allocation2 + $0x98] sm:$0xff]
      %v1504 = vld [vmem:[#allocation2 + $0xa0] sm:$0xff]
      %v1505 = vld [vmem:[#allocation2 + $0xa8] sm:$0xff]
      %v1506 = vld [vmem:[#allocation2 + $0xb0] sm:$0xff]
      %v1507 = vld [vmem:[#allocation2 + $0xb8] sm:$0xff]
      %v1508 = vld [vmem:[#allocation2 + $0xc0] sm:$0xff]
      %v1509 = vld [vmem:[#allocation2 + $0xc8] sm:$0xff]
      %v1510 = vld [vmem:[#allocation2 + $0xd0] sm:$0xff]
      %v1511 = vld [vmem:[#allocation2 + $0xd8] sm:$0xff]
      %v1512 = vld [vmem:[#allocation2 + $0xe0] sm:$0xff]
      %v1513 = vld [vmem:[#allocation2 + $0xe8] sm:$0xff]
      %v1514 = vld [vmem:[#allocation2 + $0xf0] sm:$0xff]
      %v1515 = vld [vmem:[#allocation2 + $0xf8] sm:$0xff]
      %v1516 = vld [vmem:[#allocation2 + $0x100] sm:$0xff]
      %v1517 = vld [vmem:[#allocation2 + $0x108] sm:$0xff]
      %v1518 = vld [vmem:[#allocation2 + $0x110] sm:$0xff]
      %v1519 = vld [vmem:[#allocation2 + $0x118] sm:$0xff]
      %v1520 = vadd.f32 %v1484, %v1395
      %v1521 = vadd.f32 %v1485, %v1397
      %v1522 = vadd.f32 %v1486, %v1400
      %v1523 = vadd.f32 %v1487, %v1402
      %v1524 = vadd.f32 %v1488, %v1405
      %v1525 = vadd.f32 %v1489, %v1407
      %v1526 = vadd.f32 %v1490, %v1410
      %v1527 = vadd.f32 %v1491, %v1412
      %v1528 = vadd.f32 %v1492, %v1415
      %v1529 = vadd.f32 %v1493, %v1417
      %v1530 = vadd.f32 %v1494, %v1420
      %v1531 = vadd.f32 %v1495, %v1422
      %v1532 = vadd.f32 %v1496, %v1425
      %v1533 = vadd.f32 %v1497, %v1427
      %v1534 = vadd.f32 %v1498, %v1430
      %v1535 = vadd.f32 %v1499, %v1432
      %v1536 = vadd.f32 %v1500, %v1435
      %v1537 = vadd.f32 %v1501, %v1437
      %v1538 = vadd.f32 %v1502, %v1440
      %v1539 = vadd.f32 %v1503, %v1442
      %v1540 = vadd.f32 %v1504, %v1445
      %v1541 = vadd.f32 %v1505, %v1447
      %v1542 = vadd.f32 %v1506, %v1450
      %v1543 = vadd.f32 %v1507, %v1452
      %v1544 = vadd.f32 %v1508, %v1455
      %v1545 = vadd.f32 %v1509, %v1457
      %v1546 = vadd.f32 %v1510, %v1460
      %v1547 = vadd.f32 %v1511, %v1462
      %v1548 = vadd.f32 %v1512, %v1465
      %v1549 = vadd.f32 %v1513, %v1467
      %v1550 = vadd.f32 %v1514, %v1470
      %v1551 = vadd.f32 %v1515, %v1472
      %v1552 = vadd.f32 %v1516, %v1475
      %v1553 = vadd.f32 %v1517, %v1477
      %v1554 = vadd.f32 %v1518, %v1480
      %v1555 = vadd.f32 %v1519, %v1482
      %1556 = vst [vmem:[#allocation2] sm:$0xff] %v1520
      %1557 = vst [vmem:[#allocation2 + $0x8] sm:$0xff] %v1521
      %1558 = vst [vmem:[#allocation2 + $0x10] sm:$0xff] %v1522
      %1559 = vst [vmem:[#allocation2 + $0x18] sm:$0xff] %v1523
      %1560 = vst [vmem:[#allocation2 + $0x20] sm:$0xff] %v1524
      %1561 = vst [vmem:[#allocation2 + $0x28] sm:$0xff] %v1525
      %1562 = vst [vmem:[#allocation2 + $0x30] sm:$0xff] %v1526
      %1563 = vst [vmem:[#allocation2 + $0x38] sm:$0xff] %v1527
      %1564 = vst [vmem:[#allocation2 + $0x40] sm:$0xff] %v1528
      %1565 = vst [vmem:[#allocation2 + $0x48] sm:$0xff] %v1529
      %1566 = vst [vmem:[#allocation2 + $0x50] sm:$0xff] %v1530
      %1567 = vst [vmem:[#allocation2 + $0x58] sm:$0xff] %v1531
      %1568 = vst [vmem:[#allocation2 + $0x60] sm:$0xff] %v1532
      %1569 = vst [vmem:[#allocation2 + $0x68] sm:$0xff] %v1533
      %1570 = vst [vmem:[#allocation2 + $0x70] sm:$0xff] %v1534
      %1571 = vst [vmem:[#allocation2 + $0x78] sm:$0xff] %v1535
      %1572 = vst [vmem:[#allocation2 + $0x80] sm:$0xff] %v1536
      %1573 = vst [vmem:[#allocation2 + $0x88] sm:$0xff] %v1537
      %1574 = vst [vmem:[#allocation2 + $0x90] sm:$0xff] %v1538
      %1575 = vst [vmem:[#allocation2 + $0x98] sm:$0xff] %v1539
      %1576 = vst [vmem:[#allocation2 + $0xa0] sm:$0xff] %v1540
      %1577 = vst [vmem:[#allocation2 + $0xa8] sm:$0xff] %v1541
      %1578 = vst [vmem:[#allocation2 + $0xb0] sm:$0xff] %v1542
      %1579 = vst [vmem:[#allocation2 + $0xb8] sm:$0xff] %v1543
      %1580 = vst [vmem:[#allocation2 + $0xc0] sm:$0xff] %v1544
      %1581 = vst [vmem:[#allocation2 + $0xc8] sm:$0xff] %v1545
      %1582 = vst [vmem:[#allocation2 + $0xd0] sm:$0xff] %v1546
      %1583 = vst [vmem:[#allocation2 + $0xd8] sm:$0xff] %v1547
      %1584 = vst [vmem:[#allocation2 + $0xe0] sm:$0xff] %v1548
      %1585 = vst [vmem:[#allocation2 + $0xe8] sm:$0xff] %v1549
      %1586 = vst [vmem:[#allocation2 + $0xf0] sm:$0xff] %v1550
      %1587 = vst [vmem:[#allocation2 + $0xf8] sm:$0xff] %v1551
      %1588 = vst [vmem:[#allocation2 + $0x100] sm:$0xff] %v1552
      %1589 = vst [vmem:[#allocation2 + $0x108] sm:$0xff] %v1553
      %1590 = vst [vmem:[#allocation2 + $0x110] sm:$0xff] %v1554
      %1591 = vst [vmem:[#allocation2 + $0x118] sm:$0xff] %v1555
      %v1592 = vld [vmem:[%s206 + $0x8] sm:$0xe]
      %v1593 = vld [vmem:[%s206 + $0xc] sm:$0xf]
      %v1594 = vld [vmem:[%s206 + $0x10] sm:$0xf]
      %v1595 = vld [vmem:[%s206 + $0x14] sm:$0xf]
      %v1596 = vld [vmem:[%s206 + $0x18] sm:$0xf]
      %v1597 = vld [vmem:[%s206 + $0x1c] sm:$0xf]
      %v1598 = vld [vmem:[%s206 + $0x20] sm:$0xf]
      %v1599 = vld [vmem:[%s206 + $0x24] sm:$0xf]
      %v1600 = vld [vmem:[%s206 + $0x28] sm:$0xf]
      %v1601 = vld [vmem:[%s206 + $0x2c] sm:$0xf]
      %v1602 = vld [vmem:[%s206 + $0x30] sm:$0xf]
      %v1603 = vld [vmem:[%s206 + $0x34] sm:$0xf]
      %v1604 = vld [vmem:[%s206 + $0x38] sm:$0xf]
      %v1605 = vld [vmem:[%s206 + $0x3c] sm:$0xf]
      %v1606 = vld [vmem:[%s206 + $0x40] sm:$0xf]
      %v1607 = vld [vmem:[%s206 + $0x44] sm:$0xf]
      %v1608 = vld [vmem:[%s206 + $0x48] sm:$0xf]
      %v1609 = vld [vmem:[%s206 + $0x4c] sm:$0xf]
      %v1610 = vld [vmem:[%s206 + $0x50] sm:$0xf]
      %v1611 = vld [vmem:[%s206 + $0x54] sm:$0xf]
      %v1612 = vld [vmem:[%s206 + $0x58] sm:$0xf]
      %v1613 = vld [vmem:[%s206 + $0x5c] sm:$0xf]
      %v1614 = vld [vmem:[%s206 + $0x60] sm:$0xf]
      %v1615 = vld [vmem:[%s206 + $0x64] sm:$0xf]
      %v1616 = vld [vmem:[%s206 + $0x68] sm:$0xf]
      %v1617 = vld [vmem:[%s206 + $0x6c] sm:$0xf]
      %v1618 = vld [vmem:[%s206 + $0x70] sm:$0xf]
      %v1619 = vld [vmem:[%s206 + $0x74] sm:$0xf]
      %v1620 = vld [vmem:[%s206 + $0x78] sm:$0xf]
      %v1621 = vld [vmem:[%s206 + $0x7c] sm:$0xf]
      %v1622 = vld [vmem:[%s206 + $0x80] sm:$0xf]
      %v1623 = vld [vmem:[%s206 + $0x84] sm:$0xf]
      %v1624 = vld [vmem:[%s206 + $0x88] sm:$0xf]
      %v1625 = vld [vmem:[%s206 + $0x8c] sm:$0xf]
      %v1626 = vld [vmem:[%s206 + $0x90] sm:$0xf]
      %v1627 = vld [vmem:[%s206 + $0x94] sm:$0xf]
      %v1628 = vld [vmem:[%s206 + $0x98] sm:$0x1]
      %s1629 = scalar_lea.vmem %s210, 192
      %v1630 = vld [vmem:[%s1629] sm:$0xf]
      %v1631 = vld [vmem:[%s1629 + $0x4] sm:$0xf]
      %v1632 = vld [vmem:[%s1629 + $0x8] sm:$0xf]
      %v1633 = vld [vmem:[%s1629 + $0xc] sm:$0xf]
      %v1634 = vld [vmem:[%s1629 + $0x10] sm:$0xf]
      %v1635 = vld [vmem:[%s1629 + $0x14] sm:$0xf]
      %v1636 = vld [vmem:[%s1629 + $0x18] sm:$0xf]
      %v1637 = vld [vmem:[%s1629 + $0x1c] sm:$0xf]
      %v1638 = vld [vmem:[%s1629 + $0x20] sm:$0xf]
      %v1639 = vld [vmem:[%s1629 + $0x24] sm:$0xf]
      %v1640 = vld [vmem:[%s1629 + $0x28] sm:$0xf]
      %v1641 = vld [vmem:[%s1629 + $0x2c] sm:$0xf]
      %v1642 = vld [vmem:[%s1629 + $0x30] sm:$0xf]
      %v1643 = vld [vmem:[%s1629 + $0x34] sm:$0xf]
      %v1644 = vld [vmem:[%s1629 + $0x38] sm:$0xf]
      %v1645 = vld [vmem:[%s1629 + $0x3c] sm:$0xf]
      %v1683 = vunpack.c.l.b16 %v1592
      %v1684 = vunpack.c.l.b16 %v1593
      %v1685 = vunpack.c.l.b16 %v1594
      %v1686 = vunpack.c.l.b16 %v1595
      %v1687 = vunpack.c.l.b16 %v1596
      %v1688 = vunpack.c.l.b16 %v1597
      %v1689 = vunpack.c.l.b16 %v1598
      %v1690 = vunpack.c.l.b16 %v1599
      %v1691 = vunpack.c.l.b16 %v1600
      %v1692 = vunpack.c.l.b16 %v1601
      %v1693 = vunpack.c.l.b16 %v1602
      %v1694 = vunpack.c.l.b16 %v1603
      %v1695 = vunpack.c.l.b16 %v1604
      %v1696 = vunpack.c.l.b16 %v1605
      %v1697 = vunpack.c.l.b16 %v1606
      %v1698 = vunpack.c.l.b16 %v1607
      %v1699 = vunpack.c.l.b16 %v1608
      %v1700 = vunpack.c.l.b16 %v1609
      %v1701 = vunpack.c.l.b16 %v1610
      %v1702 = vunpack.c.l.b16 %v1611
      %v1703 = vunpack.c.l.b16 %v1612
      %v1704 = vunpack.c.l.b16 %v1613
      %v1705 = vunpack.c.l.b16 %v1614
      %v1706 = vunpack.c.l.b16 %v1615
      %v1707 = vunpack.c.l.b16 %v1616
      %v1708 = vunpack.c.l.b16 %v1617
      %v1709 = vunpack.c.l.b16 %v1618
      %v1710 = vunpack.c.l.b16 %v1619
      %v1711 = vunpack.c.l.b16 %v1620
      %v1712 = vunpack.c.l.b16 %v1621
      %v1713 = vunpack.c.l.b16 %v1622
      %v1714 = vunpack.c.l.b16 %v1623
      %v1715 = vunpack.c.l.b16 %v1624
      %v1716 = vunpack.c.l.b16 %v1625
      %v1717 = vunpack.c.l.b16 %v1626
      %v1718 = vunpack.c.l.b16 %v1627
      %v1719 = vunpack.c.l.b16 %v1628
      %v1720 = vpack.c.b16 %v1684, %v1683
      %v1721 = vpack.c.b16 %v1686, %v1685
      %v1722 = vpack.c.b16 %v1688, %v1687
      %v1723 = vpack.c.b16 %v1690, %v1689
      %v1724 = vpack.c.b16 %v1692, %v1691
      %v1725 = vpack.c.b16 %v1694, %v1693
      %v1726 = vpack.c.b16 %v1696, %v1695
      %v1727 = vpack.c.b16 %v1698, %v1697
      %v1728 = vpack.c.b16 %v1700, %v1699
      %v1729 = vpack.c.b16 %v1702, %v1701
      %v1730 = vpack.c.b16 %v1704, %v1703
      %v1731 = vpack.c.b16 %v1706, %v1705
      %v1732 = vpack.c.b16 %v1708, %v1707
      %v1733 = vpack.c.b16 %v1710, %v1709
      %v1734 = vpack.c.b16 %v1712, %v1711
      %v1735 = vpack.c.b16 %v1714, %v1713
      %v1736 = vpack.c.b16 %v1716, %v1715
      %v1737 = vpack.c.b16 %v1718, %v1717
      %v1738 = vpack.c.b16 %v1719, %v1719
      %v1739 = vrot.slane %v1720, 1
      %v1740 = vrot.slane %v1721, 1
      %v1741 = vsel %vm1281, %v1739, %v1740
      %v1742 = vrot.slane %v1722, 1
      %v1743 = vsel %vm1281, %v1740, %v1742
      %v1744 = vrot.slane %v1723, 1
      %v1745 = vsel %vm1281, %v1742, %v1744
      %v1746 = vrot.slane %v1724, 1
      %v1747 = vsel %vm1281, %v1744, %v1746
      %v1748 = vrot.slane %v1725, 1
      %v1749 = vsel %vm1281, %v1746, %v1748
      %v1750 = vrot.slane %v1726, 1
      %v1751 = vsel %vm1281, %v1748, %v1750
      %v1752 = vrot.slane %v1727, 1
      %v1753 = vsel %vm1281, %v1750, %v1752
      %v1754 = vrot.slane %v1728, 1
      %v1755 = vsel %vm1281, %v1752, %v1754
      %v1756 = vrot.slane %v1729, 1
      %v1757 = vsel %vm1281, %v1754, %v1756
      %v1758 = vrot.slane %v1730, 1
      %v1759 = vsel %vm1281, %v1756, %v1758
      %v1760 = vrot.slane %v1731, 1
      %v1761 = vsel %vm1281, %v1758, %v1760
      %v1762 = vrot.slane %v1732, 1
      %v1763 = vsel %vm1281, %v1760, %v1762
      %v1764 = vrot.slane %v1733, 1
      %v1765 = vsel %vm1281, %v1762, %v1764
      %v1766 = vrot.slane %v1734, 1
      %v1767 = vsel %vm1281, %v1764, %v1766
      %v1768 = vrot.slane %v1735, 1
      %v1769 = vsel %vm1281, %v1766, %v1768
      %v1770 = vrot.slane %v1736, 1
      %v1771 = vsel %vm1281, %v1768, %v1770
      %v1772 = vrot.slane %v1737, 1
      %v1773 = vsel %vm1281, %v1770, %v1772
      %v1774 = vrot.slane %v1738, 1
      %v1775 = vsel %vm1281, %v1772, %v1774
      %v1810 = vunpack.c.l.b16 %v1630
      %v1811 = vunpack.c.l.b16 %v1631
      %v1812 = vunpack.c.l.b16 %v1632
      %v1813 = vunpack.c.l.b16 %v1633
      %v1814 = vunpack.c.l.b16 %v1634
      %v1815 = vunpack.c.l.b16 %v1635
      %v1816 = vunpack.c.l.b16 %v1636
      %v1817 = vunpack.c.l.b16 %v1637
      %v1818 = vunpack.c.l.b16 %v1638
      %v1819 = vunpack.c.l.b16 %v1639
      %v1820 = vunpack.c.l.b16 %v1640
      %v1821 = vunpack.c.l.b16 %v1641
      %v1822 = vunpack.c.l.b16 %v1642
      %v1823 = vunpack.c.l.b16 %v1643
      %v1824 = vunpack.c.l.b16 %v1644
      %v1825 = vunpack.c.l.b16 %v1645
      %v1826 = vpack.c.b16 %v1811, %v1810
      %v1827 = vpack.c.b16 %v1813, %v1812
      %v1828 = vpack.c.b16 %v1815, %v1814
      %v1829 = vpack.c.b16 %v1817, %v1816
      %v1830 = vpack.c.b16 %v1819, %v1818
      %v1831 = vpack.c.b16 %v1821, %v1820
      %v1832 = vpack.c.b16 %v1823, %v1822
      %v1833 = vpack.c.b16 %v1825, %v1824
      %1842 = vmatpush.bf16.msra.mxu0 %v1833
      %1843 = vmatpush.bf16.msra.mxu0 %v1832
      %1844 = vmatpush.bf16.msra.mxu0 %v1831
      %1845 = vmatpush.bf16.msra.mxu0 %v1830
      %1846 = vmatpush.bf16.msra.mxu0 %v1829
      %1847 = vmatpush.bf16.msra.mxu0 %v1828
      %1848 = vmatpush.bf16.msra.mxu0 %v1827
      %1849 = vmatpush.bf16.msra.mxu0 %v1826
      %1850 = vmatmul.bf16.gmra.mxu0 %v1741
      %v1851 = vpop.f32.mrf.mxu0
      %v1852 = vadd.f32 0.0, %v1851
      %v1853 = vpop.f32.mrf.mxu0
      %v1854 = vadd.f32 0.0, %v1853
      %1855 = vmatmul.bf16.gmra.mxu0 %v1743
      %v1856 = vpop.f32.mrf.mxu0
      %v1857 = vadd.f32 0.0, %v1856
      %v1858 = vpop.f32.mrf.mxu0
      %v1859 = vadd.f32 0.0, %v1858
      %1860 = vmatmul.bf16.gmra.mxu0 %v1745
      %v1861 = vpop.f32.mrf.mxu0
      %v1862 = vadd.f32 0.0, %v1861
      %v1863 = vpop.f32.mrf.mxu0
      %v1864 = vadd.f32 0.0, %v1863
      %1865 = vmatmul.bf16.gmra.mxu0 %v1747
      %v1866 = vpop.f32.mrf.mxu0
      %v1867 = vadd.f32 0.0, %v1866
      %v1868 = vpop.f32.mrf.mxu0
      %v1869 = vadd.f32 0.0, %v1868
      %1870 = vmatmul.bf16.gmra.mxu0 %v1749
      %v1871 = vpop.f32.mrf.mxu0
      %v1872 = vadd.f32 0.0, %v1871
      %v1873 = vpop.f32.mrf.mxu0
      %v1874 = vadd.f32 0.0, %v1873
      %1875 = vmatmul.bf16.gmra.mxu0 %v1751
      %v1876 = vpop.f32.mrf.mxu0
      %v1877 = vadd.f32 0.0, %v1876
      %v1878 = vpop.f32.mrf.mxu0
      %v1879 = vadd.f32 0.0, %v1878
      %1880 = vmatmul.bf16.gmra.mxu0 %v1753
      %v1881 = vpop.f32.mrf.mxu0
      %v1882 = vadd.f32 0.0, %v1881
      %v1883 = vpop.f32.mrf.mxu0
      %v1884 = vadd.f32 0.0, %v1883
      %1885 = vmatmul.bf16.gmra.mxu0 %v1755
      %v1886 = vpop.f32.mrf.mxu0
      %v1887 = vadd.f32 0.0, %v1886
      %v1888 = vpop.f32.mrf.mxu0
      %v1889 = vadd.f32 0.0, %v1888
      %1890 = vmatmul.bf16.gmra.mxu0 %v1757
      %v1891 = vpop.f32.mrf.mxu0
      %v1892 = vadd.f32 0.0, %v1891
      %v1893 = vpop.f32.mrf.mxu0
      %v1894 = vadd.f32 0.0, %v1893
      %1895 = vmatmul.bf16.gmra.mxu0 %v1759
      %v1896 = vpop.f32.mrf.mxu0
      %v1897 = vadd.f32 0.0, %v1896
      %v1898 = vpop.f32.mrf.mxu0
      %v1899 = vadd.f32 0.0, %v1898
      %1900 = vmatmul.bf16.gmra.mxu0 %v1761
      %v1901 = vpop.f32.mrf.mxu0
      %v1902 = vadd.f32 0.0, %v1901
      %v1903 = vpop.f32.mrf.mxu0
      %v1904 = vadd.f32 0.0, %v1903
      %1905 = vmatmul.bf16.gmra.mxu0 %v1763
      %v1906 = vpop.f32.mrf.mxu0
      %v1907 = vadd.f32 0.0, %v1906
      %v1908 = vpop.f32.mrf.mxu0
      %v1909 = vadd.f32 0.0, %v1908
      %1910 = vmatmul.bf16.gmra.mxu0 %v1765
      %v1911 = vpop.f32.mrf.mxu0
      %v1912 = vadd.f32 0.0, %v1911
      %v1913 = vpop.f32.mrf.mxu0
      %v1914 = vadd.f32 0.0, %v1913
      %1915 = vmatmul.bf16.gmra.mxu0 %v1767
      %v1916 = vpop.f32.mrf.mxu0
      %v1917 = vadd.f32 0.0, %v1916
      %v1918 = vpop.f32.mrf.mxu0
      %v1919 = vadd.f32 0.0, %v1918
      %1920 = vmatmul.bf16.gmra.mxu0 %v1769
      %v1921 = vpop.f32.mrf.mxu0
      %v1922 = vadd.f32 0.0, %v1921
      %v1923 = vpop.f32.mrf.mxu0
      %v1924 = vadd.f32 0.0, %v1923
      %1925 = vmatmul.bf16.gmra.mxu0 %v1771
      %v1926 = vpop.f32.mrf.mxu0
      %v1927 = vadd.f32 0.0, %v1926
      %v1928 = vpop.f32.mrf.mxu0
      %v1929 = vadd.f32 0.0, %v1928
      %1930 = vmatmul.bf16.gmra.mxu0 %v1773
      %v1931 = vpop.f32.mrf.mxu0
      %v1932 = vadd.f32 0.0, %v1931
      %v1933 = vpop.f32.mrf.mxu0
      %v1934 = vadd.f32 0.0, %v1933
      %1935 = vmatmul.bf16.gmra.mxu0 %v1775
      %v1936 = vpop.f32.mrf.mxu0
      %v1937 = vadd.f32 0.0, %v1936
      %v1938 = vpop.f32.mrf.mxu0
      %v1939 = vadd.f32 0.0, %v1938
      %1940 = vdwg.mxu0
      %v1941 = vld [vmem:[#allocation2] sm:$0xff]
      %v1942 = vld [vmem:[#allocation2 + $0x8] sm:$0xff]
      %v1943 = vld [vmem:[#allocation2 + $0x10] sm:$0xff]
      %v1944 = vld [vmem:[#allocation2 + $0x18] sm:$0xff]
      %v1945 = vld [vmem:[#allocation2 + $0x20] sm:$0xff]
      %v1946 = vld [vmem:[#allocation2 + $0x28] sm:$0xff]
      %v1947 = vld [vmem:[#allocation2 + $0x30] sm:$0xff]
      %v1948 = vld [vmem:[#allocation2 + $0x38] sm:$0xff]
      %v1949 = vld [vmem:[#allocation2 + $0x40] sm:$0xff]
      %v1950 = vld [vmem:[#allocation2 + $0x48] sm:$0xff]
      %v1951 = vld [vmem:[#allocation2 + $0x50] sm:$0xff]
      %v1952 = vld [vmem:[#allocation2 + $0x58] sm:$0xff]
      %v1953 = vld [vmem:[#allocation2 + $0x60] sm:$0xff]
      %v1954 = vld [vmem:[#allocation2 + $0x68] sm:$0xff]
      %v1955 = vld [vmem:[#allocation2 + $0x70] sm:$0xff]
      %v1956 = vld [vmem:[#allocation2 + $0x78] sm:$0xff]
      %v1957 = vld [vmem:[#allocation2 + $0x80] sm:$0xff]
      %v1958 = vld [vmem:[#allocation2 + $0x88] sm:$0xff]
      %v1959 = vld [vmem:[#allocation2 + $0x90] sm:$0xff]
      %v1960 = vld [vmem:[#allocation2 + $0x98] sm:$0xff]
      %v1961 = vld [vmem:[#allocation2 + $0xa0] sm:$0xff]
      %v1962 = vld [vmem:[#allocation2 + $0xa8] sm:$0xff]
      %v1963 = vld [vmem:[#allocation2 + $0xb0] sm:$0xff]
      %v1964 = vld [vmem:[#allocation2 + $0xb8] sm:$0xff]
      %v1965 = vld [vmem:[#allocation2 + $0xc0] sm:$0xff]
      %v1966 = vld [vmem:[#allocation2 + $0xc8] sm:$0xff]
      %v1967 = vld [vmem:[#allocation2 + $0xd0] sm:$0xff]
      %v1968 = vld [vmem:[#allocation2 + $0xd8] sm:$0xff]
      %v1969 = vld [vmem:[#allocation2 + $0xe0] sm:$0xff]
      %v1970 = vld [vmem:[#allocation2 + $0xe8] sm:$0xff]
      %v1971 = vld [vmem:[#allocation2 + $0xf0] sm:$0xff]
      %v1972 = vld [vmem:[#allocation2 + $0xf8] sm:$0xff]
      %v1973 = vld [vmem:[#allocation2 + $0x100] sm:$0xff]
      %v1974 = vld [vmem:[#allocation2 + $0x108] sm:$0xff]
      %v1975 = vld [vmem:[#allocation2 + $0x110] sm:$0xff]
      %v1976 = vld [vmem:[#allocation2 + $0x118] sm:$0xff]
      %v1977 = vadd.f32 %v1941, %v1852
      %v1978 = vadd.f32 %v1942, %v1854
      %v1979 = vadd.f32 %v1943, %v1857
      %v1980 = vadd.f32 %v1944, %v1859
      %v1981 = vadd.f32 %v1945, %v1862
      %v1982 = vadd.f32 %v1946, %v1864
      %v1983 = vadd.f32 %v1947, %v1867
      %v1984 = vadd.f32 %v1948, %v1869
      %v1985 = vadd.f32 %v1949, %v1872
      %v1986 = vadd.f32 %v1950, %v1874
      %v1987 = vadd.f32 %v1951, %v1877
      %v1988 = vadd.f32 %v1952, %v1879
      %v1989 = vadd.f32 %v1953, %v1882
      %v1990 = vadd.f32 %v1954, %v1884
      %v1991 = vadd.f32 %v1955, %v1887
      %v1992 = vadd.f32 %v1956, %v1889
      %v1993 = vadd.f32 %v1957, %v1892
      %v1994 = vadd.f32 %v1958, %v1894
      %v1995 = vadd.f32 %v1959, %v1897
      %v1996 = vadd.f32 %v1960, %v1899
      %v1997 = vadd.f32 %v1961, %v1902
      %v1998 = vadd.f32 %v1962, %v1904
      %v1999 = vadd.f32 %v1963, %v1907
      %v2000 = vadd.f32 %v1964, %v1909
      %v2001 = vadd.f32 %v1965, %v1912
      %v2002 = vadd.f32 %v1966, %v1914
      %v2003 = vadd.f32 %v1967, %v1917
      %v2004 = vadd.f32 %v1968, %v1919
      %v2005 = vadd.f32 %v1969, %v1922
      %v2006 = vadd.f32 %v1970, %v1924
      %v2007 = vadd.f32 %v1971, %v1927
      %v2008 = vadd.f32 %v1972, %v1929
      %v2009 = vadd.f32 %v1973, %v1932
      %v2010 = vadd.f32 %v1974, %v1934
      %v2011 = vadd.f32 %v1975, %v1937
      %v2012 = vadd.f32 %v1976, %v1939
      %2013 = vst [vmem:[#allocation2] sm:$0xff] %v1977
      %2014 = vst [vmem:[#allocation2 + $0x8] sm:$0xff] %v1978
      %2015 = vst [vmem:[#allocation2 + $0x10] sm:$0xff] %v1979
      %2016 = vst [vmem:[#allocation2 + $0x18] sm:$0xff] %v1980
      %2017 = vst [vmem:[#allocation2 + $0x20] sm:$0xff] %v1981
      %2018 = vst [vmem:[#allocation2 + $0x28] sm:$0xff] %v1982
      %2019 = vst [vmem:[#allocation2 + $0x30] sm:$0xff] %v1983
      %2020 = vst [vmem:[#allocation2 + $0x38] sm:$0xff] %v1984
      %2021 = vst [vmem:[#allocation2 + $0x40] sm:$0xff] %v1985
      %2022 = vst [vmem:[#allocation2 + $0x48] sm:$0xff] %v1986
      %2023 = vst [vmem:[#allocation2 + $0x50] sm:$0xff] %v1987
      %2024 = vst [vmem:[#allocation2 + $0x58] sm:$0xff] %v1988
      %2025 = vst [vmem:[#allocation2 + $0x60] sm:$0xff] %v1989
      %2026 = vst [vmem:[#allocation2 + $0x68] sm:$0xff] %v1990
      %2027 = vst [vmem:[#allocation2 + $0x70] sm:$0xff] %v1991
      %2028 = vst [vmem:[#allocation2 + $0x78] sm:$0xff] %v1992
      %2029 = vst [vmem:[#allocation2 + $0x80] sm:$0xff] %v1993
      %2030 = vst [vmem:[#allocation2 + $0x88] sm:$0xff] %v1994
      %2031 = vst [vmem:[#allocation2 + $0x90] sm:$0xff] %v1995
      %2032 = vst [vmem:[#allocation2 + $0x98] sm:$0xff] %v1996
      %2033 = vst [vmem:[#allocation2 + $0xa0] sm:$0xff] %v1997
      %2034 = vst [vmem:[#allocation2 + $0xa8] sm:$0xff] %v1998
      %2035 = vst [vmem:[#allocation2 + $0xb0] sm:$0xff] %v1999
      %2036 = vst [vmem:[#allocation2 + $0xb8] sm:$0xff] %v2000
      %2037 = vst [vmem:[#allocation2 + $0xc0] sm:$0xff] %v2001
      %2038 = vst [vmem:[#allocation2 + $0xc8] sm:$0xff] %v2002
      %2039 = vst [vmem:[#allocation2 + $0xd0] sm:$0xff] %v2003
      %2040 = vst [vmem:[#allocation2 + $0xd8] sm:$0xff] %v2004
      %2041 = vst [vmem:[#allocation2 + $0xe0] sm:$0xff] %v2005
      %2042 = vst [vmem:[#allocation2 + $0xe8] sm:$0xff] %v2006
      %2043 = vst [vmem:[#allocation2 + $0xf0] sm:$0xff] %v2007
      %2044 = vst [vmem:[#allocation2 + $0xf8] sm:$0xff] %v2008
      %2045 = vst [vmem:[#allocation2 + $0x100] sm:$0xff] %v2009
      %2046 = vst [vmem:[#allocation2 + $0x108] sm:$0xff] %v2010
      %2047 = vst [vmem:[#allocation2 + $0x110] sm:$0xff] %v2011
      %2048 = vst [vmem:[#allocation2 + $0x118] sm:$0xff] %v2012
      %v2049 = vld [vmem:[%s206 + $0x8] sm:$0xe]
      %v2050 = vld [vmem:[%s206 + $0xc] sm:$0xf]
      %v2051 = vld [vmem:[%s206 + $0x10] sm:$0xf]
      %v2052 = vld [vmem:[%s206 + $0x14] sm:$0xf]
      %v2053 = vld [vmem:[%s206 + $0x18] sm:$0xf]
      %v2054 = vld [vmem:[%s206 + $0x1c] sm:$0xf]
      %v2055 = vld [vmem:[%s206 + $0x20] sm:$0xf]
      %v2056 = vld [vmem:[%s206 + $0x24] sm:$0xf]
      %v2057 = vld [vmem:[%s206 + $0x28] sm:$0xf]
      %v2058 = vld [vmem:[%s206 + $0x2c] sm:$0xf]
      %v2059 = vld [vmem:[%s206 + $0x30] sm:$0xf]
      %v2060 = vld [vmem:[%s206 + $0x34] sm:$0xf]
      %v2061 = vld [vmem:[%s206 + $0x38] sm:$0xf]
      %v2062 = vld [vmem:[%s206 + $0x3c] sm:$0xf]
      %v2063 = vld [vmem:[%s206 + $0x40] sm:$0xf]
      %v2064 = vld [vmem:[%s206 + $0x44] sm:$0xf]
      %v2065 = vld [vmem:[%s206 + $0x48] sm:$0xf]
      %v2066 = vld [vmem:[%s206 + $0x4c] sm:$0xf]
      %v2067 = vld [vmem:[%s206 + $0x50] sm:$0xf]
      %v2068 = vld [vmem:[%s206 + $0x54] sm:$0xf]
      %v2069 = vld [vmem:[%s206 + $0x58] sm:$0xf]
      %v2070 = vld [vmem:[%s206 + $0x5c] sm:$0xf]
      %v2071 = vld [vmem:[%s206 + $0x60] sm:$0xf]
      %v2072 = vld [vmem:[%s206 + $0x64] sm:$0xf]
      %v2073 = vld [vmem:[%s206 + $0x68] sm:$0xf]
      %v2074 = vld [vmem:[%s206 + $0x6c] sm:$0xf]
      %v2075 = vld [vmem:[%s206 + $0x70] sm:$0xf]
      %v2076 = vld [vmem:[%s206 + $0x74] sm:$0xf]
      %v2077 = vld [vmem:[%s206 + $0x78] sm:$0xf]
      %v2078 = vld [vmem:[%s206 + $0x7c] sm:$0xf]
      %v2079 = vld [vmem:[%s206 + $0x80] sm:$0xf]
      %v2080 = vld [vmem:[%s206 + $0x84] sm:$0xf]
      %v2081 = vld [vmem:[%s206 + $0x88] sm:$0xf]
      %v2082 = vld [vmem:[%s206 + $0x8c] sm:$0xf]
      %v2083 = vld [vmem:[%s206 + $0x90] sm:$0xf]
      %v2084 = vld [vmem:[%s206 + $0x94] sm:$0xf]
      %v2085 = vld [vmem:[%s206 + $0x98] sm:$0x3]
      %s2086 = scalar_lea.vmem %s210, 256
      %v2087 = vld [vmem:[%s2086] sm:$0xf]
      %v2088 = vld [vmem:[%s2086 + $0x4] sm:$0xf]
      %v2089 = vld [vmem:[%s2086 + $0x8] sm:$0xf]
      %v2090 = vld [vmem:[%s2086 + $0xc] sm:$0xf]
      %v2091 = vld [vmem:[%s2086 + $0x10] sm:$0xf]
      %v2092 = vld [vmem:[%s2086 + $0x14] sm:$0xf]
      %v2093 = vld [vmem:[%s2086 + $0x18] sm:$0xf]
      %v2094 = vld [vmem:[%s2086 + $0x1c] sm:$0xf]
      %v2095 = vld [vmem:[%s2086 + $0x20] sm:$0xf]
      %v2096 = vld [vmem:[%s2086 + $0x24] sm:$0xf]
      %v2097 = vld [vmem:[%s2086 + $0x28] sm:$0xf]
      %v2098 = vld [vmem:[%s2086 + $0x2c] sm:$0xf]
      %v2099 = vld [vmem:[%s2086 + $0x30] sm:$0xf]
      %v2100 = vld [vmem:[%s2086 + $0x34] sm:$0xf]
      %v2101 = vld [vmem:[%s2086 + $0x38] sm:$0xf]
      %v2102 = vld [vmem:[%s2086 + $0x3c] sm:$0xf]
      %v2140 = vunpack.c.l.b16 %v2049
      %v2141 = vunpack.c.l.b16 %v2050
      %v2142 = vunpack.c.l.b16 %v2051
      %v2143 = vunpack.c.l.b16 %v2052
      %v2144 = vunpack.c.l.b16 %v2053
      %v2145 = vunpack.c.l.b16 %v2054
      %v2146 = vunpack.c.l.b16 %v2055
      %v2147 = vunpack.c.l.b16 %v2056
      %v2148 = vunpack.c.l.b16 %v2057
      %v2149 = vunpack.c.l.b16 %v2058
      %v2150 = vunpack.c.l.b16 %v2059
      %v2151 = vunpack.c.l.b16 %v2060
      %v2152 = vunpack.c.l.b16 %v2061
      %v2153 = vunpack.c.l.b16 %v2062
      %v2154 = vunpack.c.l.b16 %v2063
      %v2155 = vunpack.c.l.b16 %v2064
      %v2156 = vunpack.c.l.b16 %v2065
      %v2157 = vunpack.c.l.b16 %v2066
      %v2158 = vunpack.c.l.b16 %v2067
      %v2159 = vunpack.c.l.b16 %v2068
      %v2160 = vunpack.c.l.b16 %v2069
      %v2161 = vunpack.c.l.b16 %v2070
      %v2162 = vunpack.c.l.b16 %v2071
      %v2163 = vunpack.c.l.b16 %v2072
      %v2164 = vunpack.c.l.b16 %v2073
      %v2165 = vunpack.c.l.b16 %v2074
      %v2166 = vunpack.c.l.b16 %v2075
      %v2167 = vunpack.c.l.b16 %v2076
      %v2168 = vunpack.c.l.b16 %v2077
      %v2169 = vunpack.c.l.b16 %v2078
      %v2170 = vunpack.c.l.b16 %v2079
      %v2171 = vunpack.c.l.b16 %v2080
      %v2172 = vunpack.c.l.b16 %v2081
      %v2173 = vunpack.c.l.b16 %v2082
      %v2174 = vunpack.c.l.b16 %v2083
      %v2175 = vunpack.c.l.b16 %v2084
      %v2176 = vunpack.c.l.b16 %v2085
      %v2177 = vpack.c.b16 %v2141, %v2140
      %v2178 = vpack.c.b16 %v2143, %v2142
      %v2179 = vpack.c.b16 %v2145, %v2144
      %v2180 = vpack.c.b16 %v2147, %v2146
      %v2181 = vpack.c.b16 %v2149, %v2148
      %v2182 = vpack.c.b16 %v2151, %v2150
      %v2183 = vpack.c.b16 %v2153, %v2152
      %v2184 = vpack.c.b16 %v2155, %v2154
      %v2185 = vpack.c.b16 %v2157, %v2156
      %v2186 = vpack.c.b16 %v2159, %v2158
      %v2187 = vpack.c.b16 %v2161, %v2160
      %v2188 = vpack.c.b16 %v2163, %v2162
      %v2189 = vpack.c.b16 %v2165, %v2164
      %v2190 = vpack.c.b16 %v2167, %v2166
      %v2191 = vpack.c.b16 %v2169, %v2168
      %v2192 = vpack.c.b16 %v2171, %v2170
      %v2193 = vpack.c.b16 %v2173, %v2172
      %v2194 = vpack.c.b16 %v2175, %v2174
      %v2195 = vpack.c.b16 %v2176, %v2176
      %vm2196 = vsmask.f32 6400
      %v2198 = vshrl.u32 %v2177, 16
      %v2200 = vrot.slane %v2198, 1
      %v2201 = vshll.u32 %v2177, 16
      %v2203 = vrot.slane %v2201, 2
      %v2204 = vor.u32 %v2200, %v2203
      %v2206 = vshrl.u32 %v2178, 16
      %v2208 = vrot.slane %v2206, 1
      %v2209 = vshll.u32 %v2178, 16
      %v2211 = vrot.slane %v2209, 2
      %v2212 = vor.u32 %v2208, %v2211
      %v2213 = vsel %vm2196, %v2204, %v2212
      %v2215 = vshrl.u32 %v2179, 16
      %v2217 = vrot.slane %v2215, 1
      %v2218 = vshll.u32 %v2179, 16
      %v2220 = vrot.slane %v2218, 2
      %v2221 = vor.u32 %v2217, %v2220
      %v2222 = vsel %vm2196, %v2212, %v2221
      %v2224 = vshrl.u32 %v2180, 16
      %v2226 = vrot.slane %v2224, 1
      %v2227 = vshll.u32 %v2180, 16
      %v2229 = vrot.slane %v2227, 2
      %v2230 = vor.u32 %v2226, %v2229
      %v2231 = vsel %vm2196, %v2221, %v2230
      %v2233 = vshrl.u32 %v2181, 16
      %v2235 = vrot.slane %v2233, 1
      %v2236 = vshll.u32 %v2181, 16
      %v2238 = vrot.slane %v2236, 2
      %v2239 = vor.u32 %v2235, %v2238
      %v2240 = vsel %vm2196, %v2230, %v2239
      %v2242 = vshrl.u32 %v2182, 16
      %v2244 = vrot.slane %v2242, 1
      %v2245 = vshll.u32 %v2182, 16
      %v2247 = vrot.slane %v2245, 2
      %v2248 = vor.u32 %v2244, %v2247
      %v2249 = vsel %vm2196, %v2239, %v2248
      %v2251 = vshrl.u32 %v2183, 16
      %v2253 = vrot.slane %v2251, 1
      %v2254 = vshll.u32 %v2183, 16
      %v2256 = vrot.slane %v2254, 2
      %v2257 = vor.u32 %v2253, %v2256
      %v2258 = vsel %vm2196, %v2248, %v2257
      %v2260 = vshrl.u32 %v2184, 16
      %v2262 = vrot.slane %v2260, 1
      %v2263 = vshll.u32 %v2184, 16
      %v2265 = vrot.slane %v2263, 2
      %v2266 = vor.u32 %v2262, %v2265
      %v2267 = vsel %vm2196, %v2257, %v2266
      %v2269 = vshrl.u32 %v2185, 16
      %v2271 = vrot.slane %v2269, 1
      %v2272 = vshll.u32 %v2185, 16
      %v2274 = vrot.slane %v2272, 2
      %v2275 = vor.u32 %v2271, %v2274
      %v2276 = vsel %vm2196, %v2266, %v2275
      %v2278 = vshrl.u32 %v2186, 16
      %v2280 = vrot.slane %v2278, 1
      %v2281 = vshll.u32 %v2186, 16
      %v2283 = vrot.slane %v2281, 2
      %v2284 = vor.u32 %v2280, %v2283
      %v2285 = vsel %vm2196, %v2275, %v2284
      %v2287 = vshrl.u32 %v2187, 16
      %v2289 = vrot.slane %v2287, 1
      %v2290 = vshll.u32 %v2187, 16
      %v2292 = vrot.slane %v2290, 2
      %v2293 = vor.u32 %v2289, %v2292
      %v2294 = vsel %vm2196, %v2284, %v2293
      %v2296 = vshrl.u32 %v2188, 16
      %v2298 = vrot.slane %v2296, 1
      %v2299 = vshll.u32 %v2188, 16
      %v2301 = vrot.slane %v2299, 2
      %v2302 = vor.u32 %v2298, %v2301
      %v2303 = vsel %vm2196, %v2293, %v2302
      %v2305 = vshrl.u32 %v2189, 16
      %v2307 = vrot.slane %v2305, 1
      %v2308 = vshll.u32 %v2189, 16
      %v2310 = vrot.slane %v2308, 2
      %v2311 = vor.u32 %v2307, %v2310
      %v2312 = vsel %vm2196, %v2302, %v2311
      %v2314 = vshrl.u32 %v2190, 16
      %v2316 = vrot.slane %v2314, 1
      %v2317 = vshll.u32 %v2190, 16
      %v2319 = vrot.slane %v2317, 2
      %v2320 = vor.u32 %v2316, %v2319
      %v2321 = vsel %vm2196, %v2311, %v2320
      %v2323 = vshrl.u32 %v2191, 16
      %v2325 = vrot.slane %v2323, 1
      %v2326 = vshll.u32 %v2191, 16
      %v2328 = vrot.slane %v2326, 2
      %v2329 = vor.u32 %v2325, %v2328
      %v2330 = vsel %vm2196, %v2320, %v2329
      %v2332 = vshrl.u32 %v2192, 16
      %v2334 = vrot.slane %v2332, 1
      %v2335 = vshll.u32 %v2192, 16
      %v2337 = vrot.slane %v2335, 2
      %v2338 = vor.u32 %v2334, %v2337
      %v2339 = vsel %vm2196, %v2329, %v2338
      %v2341 = vshrl.u32 %v2193, 16
      %v2343 = vrot.slane %v2341, 1
      %v2344 = vshll.u32 %v2193, 16
      %v2346 = vrot.slane %v2344, 2
      %v2347 = vor.u32 %v2343, %v2346
      %v2348 = vsel %vm2196, %v2338, %v2347
      %v2350 = vshrl.u32 %v2194, 16
      %v2352 = vrot.slane %v2350, 1
      %v2353 = vshll.u32 %v2194, 16
      %v2355 = vrot.slane %v2353, 2
      %v2356 = vor.u32 %v2352, %v2355
      %v2357 = vsel %vm2196, %v2347, %v2356
      %v2359 = vshrl.u32 %v2195, 16
      %v2361 = vrot.slane %v2359, 1
      %v2362 = vshll.u32 %v2195, 16
      %v2364 = vrot.slane %v2362, 2
      %v2365 = vor.u32 %v2361, %v2364
      %v2366 = vsel %vm2196, %v2356, %v2365
      %v2401 = vunpack.c.l.b16 %v2087
      %v2402 = vunpack.c.l.b16 %v2088
      %v2403 = vunpack.c.l.b16 %v2089
      %v2404 = vunpack.c.l.b16 %v2090
      %v2405 = vunpack.c.l.b16 %v2091
      %v2406 = vunpack.c.l.b16 %v2092
      %v2407 = vunpack.c.l.b16 %v2093
      %v2408 = vunpack.c.l.b16 %v2094
      %v2409 = vunpack.c.l.b16 %v2095
      %v2410 = vunpack.c.l.b16 %v2096
      %v2411 = vunpack.c.l.b16 %v2097
      %v2412 = vunpack.c.l.b16 %v2098
      %v2413 = vunpack.c.l.b16 %v2099
      %v2414 = vunpack.c.l.b16 %v2100
      %v2415 = vunpack.c.l.b16 %v2101
      %v2416 = vunpack.c.l.b16 %v2102
      %v2417 = vpack.c.b16 %v2402, %v2401
      %v2418 = vpack.c.b16 %v2404, %v2403
      %v2419 = vpack.c.b16 %v2406, %v2405
      %v2420 = vpack.c.b16 %v2408, %v2407
      %v2421 = vpack.c.b16 %v2410, %v2409
      %v2422 = vpack.c.b16 %v2412, %v2411
      %v2423 = vpack.c.b16 %v2414, %v2413
      %v2424 = vpack.c.b16 %v2416, %v2415
      %2433 = vmatpush.bf16.msra.mxu0 %v2424
      %2434 = vmatpush.bf16.msra.mxu0 %v2423
      %2435 = vmatpush.bf16.msra.mxu0 %v2422
      %2436 = vmatpush.bf16.msra.mxu0 %v2421
      %2437 = vmatpush.bf16.msra.mxu0 %v2420
      %2438 = vmatpush.bf16.msra.mxu0 %v2419
      %2439 = vmatpush.bf16.msra.mxu0 %v2418
      %2440 = vmatpush.bf16.msra.mxu0 %v2417
      %2441 = vmatmul.bf16.gmra.mxu0 %v2213
      %v2442 = vpop.f32.mrf.mxu0
      %v2443 = vadd.f32 0.0, %v2442
      %v2444 = vpop.f32.mrf.mxu0
      %v2445 = vadd.f32 0.0, %v2444
      %2446 = vmatmul.bf16.gmra.mxu0 %v2222
      %v2447 = vpop.f32.mrf.mxu0
      %v2448 = vadd.f32 0.0, %v2447
      %v2449 = vpop.f32.mrf.mxu0
      %v2450 = vadd.f32 0.0, %v2449
      %2451 = vmatmul.bf16.gmra.mxu0 %v2231
      %v2452 = vpop.f32.mrf.mxu0
      %v2453 = vadd.f32 0.0, %v2452
      %v2454 = vpop.f32.mrf.mxu0
      %v2455 = vadd.f32 0.0, %v2454
      %2456 = vmatmul.bf16.gmra.mxu0 %v2240
      %v2457 = vpop.f32.mrf.mxu0
      %v2458 = vadd.f32 0.0, %v2457
      %v2459 = vpop.f32.mrf.mxu0
      %v2460 = vadd.f32 0.0, %v2459
      %2461 = vmatmul.bf16.gmra.mxu0 %v2249
      %v2462 = vpop.f32.mrf.mxu0
      %v2463 = vadd.f32 0.0, %v2462
      %v2464 = vpop.f32.mrf.mxu0
      %v2465 = vadd.f32 0.0, %v2464
      %2466 = vmatmul.bf16.gmra.mxu0 %v2258
      %v2467 = vpop.f32.mrf.mxu0
      %v2468 = vadd.f32 0.0, %v2467
      %v2469 = vpop.f32.mrf.mxu0
      %v2470 = vadd.f32 0.0, %v2469
      %2471 = vmatmul.bf16.gmra.mxu0 %v2267
      %v2472 = vpop.f32.mrf.mxu0
      %v2473 = vadd.f32 0.0, %v2472
      %v2474 = vpop.f32.mrf.mxu0
      %v2475 = vadd.f32 0.0, %v2474
      %2476 = vmatmul.bf16.gmra.mxu0 %v2276
      %v2477 = vpop.f32.mrf.mxu0
      %v2478 = vadd.f32 0.0, %v2477
      %v2479 = vpop.f32.mrf.mxu0
      %v2480 = vadd.f32 0.0, %v2479
      %2481 = vmatmul.bf16.gmra.mxu0 %v2285
      %v2482 = vpop.f32.mrf.mxu0
      %v2483 = vadd.f32 0.0, %v2482
      %v2484 = vpop.f32.mrf.mxu0
      %v2485 = vadd.f32 0.0, %v2484
      %2486 = vmatmul.bf16.gmra.mxu0 %v2294
      %v2487 = vpop.f32.mrf.mxu0
      %v2488 = vadd.f32 0.0, %v2487
      %v2489 = vpop.f32.mrf.mxu0
      %v2490 = vadd.f32 0.0, %v2489
      %2491 = vmatmul.bf16.gmra.mxu0 %v2303
      %v2492 = vpop.f32.mrf.mxu0
      %v2493 = vadd.f32 0.0, %v2492
      %v2494 = vpop.f32.mrf.mxu0
      %v2495 = vadd.f32 0.0, %v2494
      %2496 = vmatmul.bf16.gmra.mxu0 %v2312
      %v2497 = vpop.f32.mrf.mxu0
      %v2498 = vadd.f32 0.0, %v2497
      %v2499 = vpop.f32.mrf.mxu0
      %v2500 = vadd.f32 0.0, %v2499
      %2501 = vmatmul.bf16.gmra.mxu0 %v2321
      %v2502 = vpop.f32.mrf.mxu0
      %v2503 = vadd.f32 0.0, %v2502
      %v2504 = vpop.f32.mrf.mxu0
      %v2505 = vadd.f32 0.0, %v2504
      %2506 = vmatmul.bf16.gmra.mxu0 %v2330
      %v2507 = vpop.f32.mrf.mxu0
      %v2508 = vadd.f32 0.0, %v2507
      %v2509 = vpop.f32.mrf.mxu0
      %v2510 = vadd.f32 0.0, %v2509
      %2511 = vmatmul.bf16.gmra.mxu0 %v2339
      %v2512 = vpop.f32.mrf.mxu0
      %v2513 = vadd.f32 0.0, %v2512
      %v2514 = vpop.f32.mrf.mxu0
      %v2515 = vadd.f32 0.0, %v2514
      %2516 = vmatmul.bf16.gmra.mxu0 %v2348
      %v2517 = vpop.f32.mrf.mxu0
      %v2518 = vadd.f32 0.0, %v2517
      %v2519 = vpop.f32.mrf.mxu0
      %v2520 = vadd.f32 0.0, %v2519
      %2521 = vmatmul.bf16.gmra.mxu0 %v2357
      %v2522 = vpop.f32.mrf.mxu0
      %v2523 = vadd.f32 0.0, %v2522
      %v2524 = vpop.f32.mrf.mxu0
      %v2525 = vadd.f32 0.0, %v2524
      %2526 = vmatmul.bf16.gmra.mxu0 %v2366
      %v2527 = vpop.f32.mrf.mxu0
      %v2528 = vadd.f32 0.0, %v2527
      %v2529 = vpop.f32.mrf.mxu0
      %v2530 = vadd.f32 0.0, %v2529
      %2531 = vdwg.mxu0
      %v2532 = vld [vmem:[#allocation2] sm:$0xff]
      %v2533 = vld [vmem:[#allocation2 + $0x8] sm:$0xff]
      %v2534 = vld [vmem:[#allocation2 + $0x10] sm:$0xff]
      %v2535 = vld [vmem:[#allocation2 + $0x18] sm:$0xff]
      %v2536 = vld [vmem:[#allocation2 + $0x20] sm:$0xff]
      %v2537 = vld [vmem:[#allocation2 + $0x28] sm:$0xff]
      %v2538 = vld [vmem:[#allocation2 + $0x30] sm:$0xff]
      %v2539 = vld [vmem:[#allocation2 + $0x38] sm:$0xff]
      %v2540 = vld [vmem:[#allocation2 + $0x40] sm:$0xff]
      %v2541 = vld [vmem:[#allocation2 + $0x48] sm:$0xff]
      %v2542 = vld [vmem:[#allocation2 + $0x50] sm:$0xff]
      %v2543 = vld [vmem:[#allocation2 + $0x58] sm:$0xff]
      %v2544 = vld [vmem:[#allocation2 + $0x60] sm:$0xff]
      %v2545 = vld [vmem:[#allocation2 + $0x68] sm:$0xff]
      %v2546 = vld [vmem:[#allocation2 + $0x70] sm:$0xff]
      %v2547 = vld [vmem:[#allocation2 + $0x78] sm:$0xff]
      %v2548 = vld [vmem:[#allocation2 + $0x80] sm:$0xff]
      %v2549 = vld [vmem:[#allocation2 + $0x88] sm:$0xff]
      %v2550 = vld [vmem:[#allocation2 + $0x90] sm:$0xff]
      %v2551 = vld [vmem:[#allocation2 + $0x98] sm:$0xff]
      %v2552 = vld [vmem:[#allocation2 + $0xa0] sm:$0xff]
      %v2553 = vld [vmem:[#allocation2 + $0xa8] sm:$0xff]
      %v2554 = vld [vmem:[#allocation2 + $0xb0] sm:$0xff]
      %v2555 = vld [vmem:[#allocation2 + $0xb8] sm:$0xff]
      %v2556 = vld [vmem:[#allocation2 + $0xc0] sm:$0xff]
      %v2557 = vld [vmem:[#allocation2 + $0xc8] sm:$0xff]
      %v2558 = vld [vmem:[#allocation2 + $0xd0] sm:$0xff]
      %v2559 = vld [vmem:[#allocation2 + $0xd8] sm:$0xff]
      %v2560 = vld [vmem:[#allocation2 + $0xe0] sm:$0xff]
      %v2561 = vld [vmem:[#allocation2 + $0xe8] sm:$0xff]
      %v2562 = vld [vmem:[#allocation2 + $0xf0] sm:$0xff]
      %v2563 = vld [vmem:[#allocation2 + $0xf8] sm:$0xff]
      %v2564 = vld [vmem:[#allocation2 + $0x100] sm:$0xff]
      %v2565 = vld [vmem:[#allocation2 + $0x108] sm:$0xff]
      %v2566 = vld [vmem:[#allocation2 + $0x110] sm:$0xff]
      %v2567 = vld [vmem:[#allocation2 + $0x118] sm:$0xff]
      %v2568 = vadd.f32 %v2532, %v2443
      %v2569 = vadd.f32 %v2533, %v2445
      %v2570 = vadd.f32 %v2534, %v2448
      %v2571 = vadd.f32 %v2535, %v2450
      %v2572 = vadd.f32 %v2536, %v2453
      %v2573 = vadd.f32 %v2537, %v2455
      %v2574 = vadd.f32 %v2538, %v2458
      %v2575 = vadd.f32 %v2539, %v2460
      %v2576 = vadd.f32 %v2540, %v2463
      %v2577 = vadd.f32 %v2541, %v2465
      %v2578 = vadd.f32 %v2542, %v2468
      %v2579 = vadd.f32 %v2543, %v2470
      %v2580 = vadd.f32 %v2544, %v2473
      %v2581 = vadd.f32 %v2545, %v2475
      %v2582 = vadd.f32 %v2546, %v2478
      %v2583 = vadd.f32 %v2547, %v2480
      %v2584 = vadd.f32 %v2548, %v2483
      %v2585 = vadd.f32 %v2549, %v2485
      %v2586 = vadd.f32 %v2550, %v2488
      %v2587 = vadd.f32 %v2551, %v2490
      %v2588 = vadd.f32 %v2552, %v2493
      %v2589 = vadd.f32 %v2553, %v2495
      %v2590 = vadd.f32 %v2554, %v2498
      %v2591 = vadd.f32 %v2555, %v2500
      %v2592 = vadd.f32 %v2556, %v2503
      %v2593 = vadd.f32 %v2557, %v2505
      %v2594 = vadd.f32 %v2558, %v2508
      %v2595 = vadd.f32 %v2559, %v2510
      %v2596 = vadd.f32 %v2560, %v2513
      %v2597 = vadd.f32 %v2561, %v2515
      %v2598 = vadd.f32 %v2562, %v2518
      %v2599 = vadd.f32 %v2563, %v2520
      %v2600 = vadd.f32 %v2564, %v2523
      %v2601 = vadd.f32 %v2565, %v2525
      %v2602 = vadd.f32 %v2566, %v2528
      %v2603 = vadd.f32 %v2567, %v2530
      %2604 = vst [vmem:[#allocation2] sm:$0xff] %v2568
      %2605 = vst [vmem:[#allocation2 + $0x8] sm:$0xff] %v2569
      %2606 = vst [vmem:[#allocation2 + $0x10] sm:$0xff] %v2570
      %2607 = vst [vmem:[#allocation2 + $0x18] sm:$0xff] %v2571
      %2608 = vst [vmem:[#allocation2 + $0x20] sm:$0xff] %v2572
      %2609 = vst [vmem:[#allocation2 + $0x28] sm:$0xff] %v2573
      %2610 = vst [vmem:[#allocation2 + $0x30] sm:$0xff] %v2574
      %2611 = vst [vmem:[#allocation2 + $0x38] sm:$0xff] %v2575
      %2612 = vst [vmem:[#allocation2 + $0x40] sm:$0xff] %v2576
      %2613 = vst [vmem:[#allocation2 + $0x48] sm:$0xff] %v2577
      %2614 = vst [vmem:[#allocation2 + $0x50] sm:$0xff] %v2578
      %2615 = vst [vmem:[#allocation2 + $0x58] sm:$0xff] %v2579
      %2616 = vst [vmem:[#allocation2 + $0x60] sm:$0xff] %v2580
      %2617 = vst [vmem:[#allocation2 + $0x68] sm:$0xff] %v2581
      %2618 = vst [vmem:[#allocation2 + $0x70] sm:$0xff] %v2582
      %2619 = vst [vmem:[#allocation2 + $0x78] sm:$0xff] %v2583
      %2620 = vst [vmem:[#allocation2 + $0x80] sm:$0xff] %v2584
      %2621 = vst [vmem:[#allocation2 + $0x88] sm:$0xff] %v2585
      %2622 = vst [vmem:[#allocation2 + $0x90] sm:$0xff] %v2586
      %2623 = vst [vmem:[#allocation2 + $0x98] sm:$0xff] %v2587
      %2624 = vst [vmem:[#allocation2 + $0xa0] sm:$0xff] %v2588
      %2625 = vst [vmem:[#allocation2 + $0xa8] sm:$0xff] %v2589
      %2626 = vst [vmem:[#allocation2 + $0xb0] sm:$0xff] %v2590
      %2627 = vst [vmem:[#allocation2 + $0xb8] sm:$0xff] %v2591
      %2628 = vst [vmem:[#allocation2 + $0xc0] sm:$0xff] %v2592
      %2629 = vst [vmem:[#allocation2 + $0xc8] sm:$0xff] %v2593
      %2630 = vst [vmem:[#allocation2 + $0xd0] sm:$0xff] %v2594
      %2631 = vst [vmem:[#allocation2 + $0xd8] sm:$0xff] %v2595
      %2632 = vst [vmem:[#allocation2 + $0xe0] sm:$0xff] %v2596
      %2633 = vst [vmem:[#allocation2 + $0xe8] sm:$0xff] %v2597
      %2634 = vst [vmem:[#allocation2 + $0xf0] sm:$0xff] %v2598
      %2635 = vst [vmem:[#allocation2 + $0xf8] sm:$0xff] %v2599
      %2636 = vst [vmem:[#allocation2 + $0x100] sm:$0xff] %v2600
      %2637 = vst [vmem:[#allocation2 + $0x108] sm:$0xff] %v2601
      %2638 = vst [vmem:[#allocation2 + $0x110] sm:$0xff] %v2602
      %2639 = vst [vmem:[#allocation2 + $0x118] sm:$0xff] %v2603
      %v2640 = vld [vmem:[%s206 + $0x8] sm:$0xc]
      %v2641 = vld [vmem:[%s206 + $0xc] sm:$0xf]
      %v2642 = vld [vmem:[%s206 + $0x10] sm:$0xf]
      %v2643 = vld [vmem:[%s206 + $0x14] sm:$0xf]
      %v2644 = vld [vmem:[%s206 + $0x18] sm:$0xf]
      %v2645 = vld [vmem:[%s206 + $0x1c] sm:$0xf]
      %v2646 = vld [vmem:[%s206 + $0x20] sm:$0xf]
      %v2647 = vld [vmem:[%s206 + $0x24] sm:$0xf]
      %v2648 = vld [vmem:[%s206 + $0x28] sm:$0xf]
      %v2649 = vld [vmem:[%s206 + $0x2c] sm:$0xf]
      %v2650 = vld [vmem:[%s206 + $0x30] sm:$0xf]
      %v2651 = vld [vmem:[%s206 + $0x34] sm:$0xf]
      %v2652 = vld [vmem:[%s206 + $0x38] sm:$0xf]
      %v2653 = vld [vmem:[%s206 + $0x3c] sm:$0xf]
      %v2654 = vld [vmem:[%s206 + $0x40] sm:$0xf]
      %v2655 = vld [vmem:[%s206 + $0x44] sm:$0xf]
      %v2656 = vld [vmem:[%s206 + $0x48] sm:$0xf]
      %v2657 = vld [vmem:[%s206 + $0x4c] sm:$0xf]
      %v2658 = vld [vmem:[%s206 + $0x50] sm:$0xf]
      %v2659 = vld [vmem:[%s206 + $0x54] sm:$0xf]
      %v2660 = vld [vmem:[%s206 + $0x58] sm:$0xf]
      %v2661 = vld [vmem:[%s206 + $0x5c] sm:$0xf]
      %v2662 = vld [vmem:[%s206 + $0x60] sm:$0xf]
      %v2663 = vld [vmem:[%s206 + $0x64] sm:$0xf]
      %v2664 = vld [vmem:[%s206 + $0x68] sm:$0xf]
      %v2665 = vld [vmem:[%s206 + $0x6c] sm:$0xf]
      %v2666 = vld [vmem:[%s206 + $0x70] sm:$0xf]
      %v2667 = vld [vmem:[%s206 + $0x74] sm:$0xf]
      %v2668 = vld [vmem:[%s206 + $0x78] sm:$0xf]
      %v2669 = vld [vmem:[%s206 + $0x7c] sm:$0xf]
      %v2670 = vld [vmem:[%s206 + $0x80] sm:$0xf]
      %v2671 = vld [vmem:[%s206 + $0x84] sm:$0xf]
      %v2672 = vld [vmem:[%s206 + $0x88] sm:$0xf]
      %v2673 = vld [vmem:[%s206 + $0x8c] sm:$0xf]
      %v2674 = vld [vmem:[%s206 + $0x90] sm:$0xf]
      %v2675 = vld [vmem:[%s206 + $0x94] sm:$0xf]
      %v2676 = vld [vmem:[%s206 + $0x98] sm:$0x3]
      %s2677 = scalar_lea.vmem %s210, 320
      %v2678 = vld [vmem:[%s2677] sm:$0xf]
      %v2679 = vld [vmem:[%s2677 + $0x4] sm:$0xf]
      %v2680 = vld [vmem:[%s2677 + $0x8] sm:$0xf]
      %v2681 = vld [vmem:[%s2677 + $0xc] sm:$0xf]
      %v2682 = vld [vmem:[%s2677 + $0x10] sm:$0xf]
      %v2683 = vld [vmem:[%s2677 + $0x14] sm:$0xf]
      %v2684 = vld [vmem:[%s2677 + $0x18] sm:$0xf]
      %v2685 = vld [vmem:[%s2677 + $0x1c] sm:$0xf]
      %v2686 = vld [vmem:[%s2677 + $0x20] sm:$0xf]
      %v2687 = vld [vmem:[%s2677 + $0x24] sm:$0xf]
      %v2688 = vld [vmem:[%s2677 + $0x28] sm:$0xf]
      %v2689 = vld [vmem:[%s2677 + $0x2c] sm:$0xf]
      %v2690 = vld [vmem:[%s2677 + $0x30] sm:$0xf]
      %v2691 = vld [vmem:[%s2677 + $0x34] sm:$0xf]
      %v2692 = vld [vmem:[%s2677 + $0x38] sm:$0xf]
      %v2693 = vld [vmem:[%s2677 + $0x3c] sm:$0xf]
      %v2731 = vunpack.c.l.b16 %v2640
      %v2732 = vunpack.c.l.b16 %v2641
      %v2733 = vunpack.c.l.b16 %v2642
      %v2734 = vunpack.c.l.b16 %v2643
      %v2735 = vunpack.c.l.b16 %v2644
      %v2736 = vunpack.c.l.b16 %v2645
      %v2737 = vunpack.c.l.b16 %v2646
      %v2738 = vunpack.c.l.b16 %v2647
      %v2739 = vunpack.c.l.b16 %v2648
      %v2740 = vunpack.c.l.b16 %v2649
      %v2741 = vunpack.c.l.b16 %v2650
      %v2742 = vunpack.c.l.b16 %v2651
      %v2743 = vunpack.c.l.b16 %v2652
      %v2744 = vunpack.c.l.b16 %v2653
      %v2745 = vunpack.c.l.b16 %v2654
      %v2746 = vunpack.c.l.b16 %v2655
      %v2747 = vunpack.c.l.b16 %v2656
      %v2748 = vunpack.c.l.b16 %v2657
      %v2749 = vunpack.c.l.b16 %v2658
      %v2750 = vunpack.c.l.b16 %v2659
      %v2751 = vunpack.c.l.b16 %v2660
      %v2752 = vunpack.c.l.b16 %v2661
      %v2753 = vunpack.c.l.b16 %v2662
      %v2754 = vunpack.c.l.b16 %v2663
      %v2755 = vunpack.c.l.b16 %v2664
      %v2756 = vunpack.c.l.b16 %v2665
      %v2757 = vunpack.c.l.b16 %v2666
      %v2758 = vunpack.c.l.b16 %v2667
      %v2759 = vunpack.c.l.b16 %v2668
      %v2760 = vunpack.c.l.b16 %v2669
      %v2761 = vunpack.c.l.b16 %v2670
      %v2762 = vunpack.c.l.b16 %v2671
      %v2763 = vunpack.c.l.b16 %v2672
      %v2764 = vunpack.c.l.b16 %v2673
      %v2765 = vunpack.c.l.b16 %v2674
      %v2766 = vunpack.c.l.b16 %v2675
      %v2767 = vunpack.c.l.b16 %v2676
      %v2768 = vpack.c.b16 %v2732, %v2731
      %v2769 = vpack.c.b16 %v2734, %v2733
      %v2770 = vpack.c.b16 %v2736, %v2735
      %v2771 = vpack.c.b16 %v2738, %v2737
      %v2772 = vpack.c.b16 %v2740, %v2739
      %v2773 = vpack.c.b16 %v2742, %v2741
      %v2774 = vpack.c.b16 %v2744, %v2743
      %v2775 = vpack.c.b16 %v2746, %v2745
      %v2776 = vpack.c.b16 %v2748, %v2747
      %v2777 = vpack.c.b16 %v2750, %v2749
      %v2778 = vpack.c.b16 %v2752, %v2751
      %v2779 = vpack.c.b16 %v2754, %v2753
      %v2780 = vpack.c.b16 %v2756, %v2755
      %v2781 = vpack.c.b16 %v2758, %v2757
      %v2782 = vpack.c.b16 %v2760, %v2759
      %v2783 = vpack.c.b16 %v2762, %v2761
      %v2784 = vpack.c.b16 %v2764, %v2763
      %v2785 = vpack.c.b16 %v2766, %v2765
      %v2786 = vpack.c.b16 %v2767, %v2767
      %vm2787 = vcmask 1045504
      %v2788 = vrot.slane %v2768, 2
      %v2789 = vrot.slane %v2769, 2
      %v2790 = vsel %vm2787, %v2788, %v2789
      %v2791 = vrot.slane %v2770, 2
      %v2792 = vsel %vm2787, %v2789, %v2791
      %v2793 = vrot.slane %v2771, 2
      %v2794 = vsel %vm2787, %v2791, %v2793
      %v2795 = vrot.slane %v2772, 2
      %v2796 = vsel %vm2787, %v2793, %v2795
      %v2797 = vrot.slane %v2773, 2
      %v2798 = vsel %vm2787, %v2795, %v2797
      %v2799 = vrot.slane %v2774, 2
      %v2800 = vsel %vm2787, %v2797, %v2799
      %v2801 = vrot.slane %v2775, 2
      %v2802 = vsel %vm2787, %v2799, %v2801
      %v2803 = vrot.slane %v2776, 2
      %v2804 = vsel %vm2787, %v2801, %v2803
      %v2805 = vrot.slane %v2777, 2
      %v2806 = vsel %vm2787, %v2803, %v2805
      %v2807 = vrot.slane %v2778, 2
      %v2808 = vsel %vm2787, %v2805, %v2807
      %v2809 = vrot.slane %v2779, 2
      %v2810 = vsel %vm2787, %v2807, %v2809
      %v2811 = vrot.slane %v2780, 2
      %v2812 = vsel %vm2787, %v2809, %v2811
      %v2813 = vrot.slane %v2781, 2
      %v2814 = vsel %vm2787, %v2811, %v2813
      %v2815 = vrot.slane %v2782, 2
      %v2816 = vsel %vm2787, %v2813, %v2815
      %v2817 = vrot.slane %v2783, 2
      %v2818 = vsel %vm2787, %v2815, %v2817
      %v2819 = vrot.slane %v2784, 2
      %v2820 = vsel %vm2787, %v2817, %v2819
      %v2821 = vrot.slane %v2785, 2
      %v2822 = vsel %vm2787, %v2819, %v2821
      %v2823 = vrot.slane %v2786, 2
      %v2824 = vsel %vm2787, %v2821, %v2823
      %v2859 = vunpack.c.l.b16 %v2678
      %v2860 = vunpack.c.l.b16 %v2679
      %v2861 = vunpack.c.l.b16 %v2680
      %v2862 = vunpack.c.l.b16 %v2681
      %v2863 = vunpack.c.l.b16 %v2682
      %v2864 = vunpack.c.l.b16 %v2683
      %v2865 = vunpack.c.l.b16 %v2684
      %v2866 = vunpack.c.l.b16 %v2685
      %v2867 = vunpack.c.l.b16 %v2686
      %v2868 = vunpack.c.l.b16 %v2687
      %v2869 = vunpack.c.l.b16 %v2688
      %v2870 = vunpack.c.l.b16 %v2689
      %v2871 = vunpack.c.l.b16 %v2690
      %v2872 = vunpack.c.l.b16 %v2691
      %v2873 = vunpack.c.l.b16 %v2692
      %v2874 = vunpack.c.l.b16 %v2693
      %v2875 = vpack.c.b16 %v2860, %v2859
      %v2876 = vpack.c.b16 %v2862, %v2861
      %v2877 = vpack.c.b16 %v2864, %v2863
      %v2878 = vpack.c.b16 %v2866, %v2865
      %v2879 = vpack.c.b16 %v2868, %v2867
      %v2880 = vpack.c.b16 %v2870, %v2869
      %v2881 = vpack.c.b16 %v2872, %v2871
      %v2882 = vpack.c.b16 %v2874, %v2873
      %2891 = vmatpush.bf16.msra.mxu0 %v2882
      %2892 = vmatpush.bf16.msra.mxu0 %v2881
      %2893 = vmatpush.bf16.msra.mxu0 %v2880
      %2894 = vmatpush.bf16.msra.mxu0 %v2879
      %2895 = vmatpush.bf16.msra.mxu0 %v2878
      %2896 = vmatpush.bf16.msra.mxu0 %v2877
      %2897 = vmatpush.bf16.msra.mxu0 %v2876
      %2898 = vmatpush.bf16.msra.mxu0 %v2875
      %2899 = vmatmul.bf16.gmra.mxu0 %v2790
      %v2900 = vpop.f32.mrf.mxu0
      %v2901 = vadd.f32 0.0, %v2900
      %v2902 = vpop.f32.mrf.mxu0
      %v2903 = vadd.f32 0.0, %v2902
      %2904 = vmatmul.bf16.gmra.mxu0 %v2792
      %v2905 = vpop.f32.mrf.mxu0
      %v2906 = vadd.f32 0.0, %v2905
      %v2907 = vpop.f32.mrf.mxu0
      %v2908 = vadd.f32 0.0, %v2907
      %2909 = vmatmul.bf16.gmra.mxu0 %v2794
      %v2910 = vpop.f32.mrf.mxu0
      %v2911 = vadd.f32 0.0, %v2910
      %v2912 = vpop.f32.mrf.mxu0
      %v2913 = vadd.f32 0.0, %v2912
      %2914 = vmatmul.bf16.gmra.mxu0 %v2796
      %v2915 = vpop.f32.mrf.mxu0
      %v2916 = vadd.f32 0.0, %v2915
      %v2917 = vpop.f32.mrf.mxu0
      %v2918 = vadd.f32 0.0, %v2917
      %2919 = vmatmul.bf16.gmra.mxu0 %v2798
      %v2920 = vpop.f32.mrf.mxu0
      %v2921 = vadd.f32 0.0, %v2920
      %v2922 = vpop.f32.mrf.mxu0
      %v2923 = vadd.f32 0.0, %v2922
      %2924 = vmatmul.bf16.gmra.mxu0 %v2800
      %v2925 = vpop.f32.mrf.mxu0
      %v2926 = vadd.f32 0.0, %v2925
      %v2927 = vpop.f32.mrf.mxu0
      %v2928 = vadd.f32 0.0, %v2927
      %2929 = vmatmul.bf16.gmra.mxu0 %v2802
      %v2930 = vpop.f32.mrf.mxu0
      %v2931 = vadd.f32 0.0, %v2930
      %v2932 = vpop.f32.mrf.mxu0
      %v2933 = vadd.f32 0.0, %v2932
      %2934 = vmatmul.bf16.gmra.mxu0 %v2804
      %v2935 = vpop.f32.mrf.mxu0
      %v2936 = vadd.f32 0.0, %v2935
      %v2937 = vpop.f32.mrf.mxu0
      %v2938 = vadd.f32 0.0, %v2937
      %2939 = vmatmul.bf16.gmra.mxu0 %v2806
      %v2940 = vpop.f32.mrf.mxu0
      %v2941 = vadd.f32 0.0, %v2940
      %v2942 = vpop.f32.mrf.mxu0
      %v2943 = vadd.f32 0.0, %v2942
      %2944 = vmatmul.bf16.gmra.mxu0 %v2808
      %v2945 = vpop.f32.mrf.mxu0
      %v2946 = vadd.f32 0.0, %v2945
      %v2947 = vpop.f32.mrf.mxu0
      %v2948 = vadd.f32 0.0, %v2947
      %2949 = vmatmul.bf16.gmra.mxu0 %v2810
      %v2950 = vpop.f32.mrf.mxu0
      %v2951 = vadd.f32 0.0, %v2950
      %v2952 = vpop.f32.mrf.mxu0
      %v2953 = vadd.f32 0.0, %v2952
      %2954 = vmatmul.bf16.gmra.mxu0 %v2812
      %v2955 = vpop.f32.mrf.mxu0
      %v2956 = vadd.f32 0.0, %v2955
      %v2957 = vpop.f32.mrf.mxu0
      %v2958 = vadd.f32 0.0, %v2957
      %2959 = vmatmul.bf16.gmra.mxu0 %v2814
      %v2960 = vpop.f32.mrf.mxu0
      %v2961 = vadd.f32 0.0, %v2960
      %v2962 = vpop.f32.mrf.mxu0
      %v2963 = vadd.f32 0.0, %v2962
      %2964 = vmatmul.bf16.gmra.mxu0 %v2816
      %v2965 = vpop.f32.mrf.mxu0
      %v2966 = vadd.f32 0.0, %v2965
      %v2967 = vpop.f32.mrf.mxu0
      %v2968 = vadd.f32 0.0, %v2967
      %2969 = vmatmul.bf16.gmra.mxu0 %v2818
      %v2970 = vpop.f32.mrf.mxu0
      %v2971 = vadd.f32 0.0, %v2970
      %v2972 = vpop.f32.mrf.mxu0
      %v2973 = vadd.f32 0.0, %v2972
      %2974 = vmatmul.bf16.gmra.mxu0 %v2820
      %v2975 = vpop.f32.mrf.mxu0
      %v2976 = vadd.f32 0.0, %v2975
      %v2977 = vpop.f32.mrf.mxu0
      %v2978 = vadd.f32 0.0, %v2977
      %2979 = vmatmul.bf16.gmra.mxu0 %v2822
      %v2980 = vpop.f32.mrf.mxu0
      %v2981 = vadd.f32 0.0, %v2980
      %v2982 = vpop.f32.mrf.mxu0
      %v2983 = vadd.f32 0.0, %v2982
      %2984 = vmatmul.bf16.gmra.mxu0 %v2824
      %v2985 = vpop.f32.mrf.mxu0
      %v2986 = vadd.f32 0.0, %v2985
      %v2987 = vpop.f32.mrf.mxu0
      %v2988 = vadd.f32 0.0, %v2987
      %2989 = vdwg.mxu0
      %v2990 = vld [vmem:[#allocation2] sm:$0xff]
      %v2991 = vld [vmem:[#allocation2 + $0x8] sm:$0xff]
      %v2992 = vld [vmem:[#allocation2 + $0x10] sm:$0xff]
      %v2993 = vld [vmem:[#allocation2 + $0x18] sm:$0xff]
      %v2994 = vld [vmem:[#allocation2 + $0x20] sm:$0xff]
      %v2995 = vld [vmem:[#allocation2 + $0x28] sm:$0xff]
      %v2996 = vld [vmem:[#allocation2 + $0x30] sm:$0xff]
      %v2997 = vld [vmem:[#allocation2 + $0x38] sm:$0xff]
      %v2998 = vld [vmem:[#allocation2 + $0x40] sm:$0xff]
      %v2999 = vld [vmem:[#allocation2 + $0x48] sm:$0xff]
      %v3000 = vld [vmem:[#allocation2 + $0x50] sm:$0xff]
      %v3001 = vld [vmem:[#allocation2 + $0x58] sm:$0xff]
      %v3002 = vld [vmem:[#allocation2 + $0x60] sm:$0xff]
      %v3003 = vld [vmem:[#allocation2 + $0x68] sm:$0xff]
      %v3004 = vld [vmem:[#allocation2 + $0x70] sm:$0xff]
      %v3005 = vld [vmem:[#allocation2 + $0x78] sm:$0xff]
      %v3006 = vld [vmem:[#allocation2 + $0x80] sm:$0xff]
      %v3007 = vld [vmem:[#allocation2 + $0x88] sm:$0xff]
      %v3008 = vld [vmem:[#allocation2 + $0x90] sm:$0xff]
      %v3009 = vld [vmem:[#allocation2 + $0x98] sm:$0xff]
      %v3010 = vld [vmem:[#allocation2 + $0xa0] sm:$0xff]
      %v3011 = vld [vmem:[#allocation2 + $0xa8] sm:$0xff]
      %v3012 = vld [vmem:[#allocation2 + $0xb0] sm:$0xff]
      %v3013 = vld [vmem:[#allocation2 + $0xb8] sm:$0xff]
      %v3014 = vld [vmem:[#allocation2 + $0xc0] sm:$0xff]
      %v3015 = vld [vmem:[#allocation2 + $0xc8] sm:$0xff]
      %v3016 = vld [vmem:[#allocation2 + $0xd0] sm:$0xff]
      %v3017 = vld [vmem:[#allocation2 + $0xd8] sm:$0xff]
      %v3018 = vld [vmem:[#allocation2 + $0xe0] sm:$0xff]
      %v3019 = vld [vmem:[#allocation2 + $0xe8] sm:$0xff]
      %v3020 = vld [vmem:[#allocation2 + $0xf0] sm:$0xff]
      %v3021 = vld [vmem:[#allocation2 + $0xf8] sm:$0xff]
      %v3022 = vld [vmem:[#allocation2 + $0x100] sm:$0xff]
      %v3023 = vld [vmem:[#allocation2 + $0x108] sm:$0xff]
      %v3024 = vld [vmem:[#allocation2 + $0x110] sm:$0xff]
      %v3025 = vld [vmem:[#allocation2 + $0x118] sm:$0xff]
      %v3026 = vadd.f32 %v2990, %v2901
      %v3027 = vadd.f32 %v2991, %v2903
      %v3028 = vadd.f32 %v2992, %v2906
      %v3029 = vadd.f32 %v2993, %v2908
      %v3030 = vadd.f32 %v2994, %v2911
      %v3031 = vadd.f32 %v2995, %v2913
      %v3032 = vadd.f32 %v2996, %v2916
      %v3033 = vadd.f32 %v2997, %v2918
      %v3034 = vadd.f32 %v2998, %v2921
      %v3035 = vadd.f32 %v2999, %v2923
      %v3036 = vadd.f32 %v3000, %v2926
      %v3037 = vadd.f32 %v3001, %v2928
      %v3038 = vadd.f32 %v3002, %v2931
      %v3039 = vadd.f32 %v3003, %v2933
      %v3040 = vadd.f32 %v3004, %v2936
      %v3041 = vadd.f32 %v3005, %v2938
      %v3042 = vadd.f32 %v3006, %v2941
      %v3043 = vadd.f32 %v3007, %v2943
      %v3044 = vadd.f32 %v3008, %v2946
      %v3045 = vadd.f32 %v3009, %v2948
      %v3046 = vadd.f32 %v3010, %v2951
      %v3047 = vadd.f32 %v3011, %v2953
      %v3048 = vadd.f32 %v3012, %v2956
      %v3049 = vadd.f32 %v3013, %v2958
      %v3050 = vadd.f32 %v3014, %v2961
      %v3051 = vadd.f32 %v3015, %v2963
      %v3052 = vadd.f32 %v3016, %v2966
      %v3053 = vadd.f32 %v3017, %v2968
      %v3054 = vadd.f32 %v3018, %v2971
      %v3055 = vadd.f32 %v3019, %v2973
      %v3056 = vadd.f32 %v3020, %v2976
      %v3057 = vadd.f32 %v3021, %v2978
      %v3058 = vadd.f32 %v3022, %v2981
      %v3059 = vadd.f32 %v3023, %v2983
      %v3060 = vadd.f32 %v3024, %v2986
      %v3061 = vadd.f32 %v3025, %v2988
      %3062 = vst [vmem:[#allocation2] sm:$0xff] %v3026
      %3063 = vst [vmem:[#allocation2 + $0x8] sm:$0xff] %v3027
      %3064 = vst [vmem:[#allocation2 + $0x10] sm:$0xff] %v3028
      %3065 = vst [vmem:[#allocation2 + $0x18] sm:$0xff] %v3029
      %3066 = vst [vmem:[#allocation2 + $0x20] sm:$0xff] %v3030
      %3067 = vst [vmem:[#allocation2 + $0x28] sm:$0xff] %v3031
      %3068 = vst [vmem:[#allocation2 + $0x30] sm:$0xff] %v3032
      %3069 = vst [vmem:[#allocation2 + $0x38] sm:$0xff] %v3033
      %3070 = vst [vmem:[#allocation2 + $0x40] sm:$0xff] %v3034
      %3071 = vst [vmem:[#allocation2 + $0x48] sm:$0xff] %v3035
      %3072 = vst [vmem:[#allocation2 + $0x50] sm:$0xff] %v3036
      %3073 = vst [vmem:[#allocation2 + $0x58] sm:$0xff] %v3037
      %3074 = vst [vmem:[#allocation2 + $0x60] sm:$0xff] %v3038
      %3075 = vst [vmem:[#allocation2 + $0x68] sm:$0xff] %v3039
      %3076 = vst [vmem:[#allocation2 + $0x70] sm:$0xff] %v3040
      %3077 = vst [vmem:[#allocation2 + $0x78] sm:$0xff] %v3041
      %3078 = vst [vmem:[#allocation2 + $0x80] sm:$0xff] %v3042
      %3079 = vst [vmem:[#allocation2 + $0x88] sm:$0xff] %v3043
      %3080 = vst [vmem:[#allocation2 + $0x90] sm:$0xff] %v3044
      %3081 = vst [vmem:[#allocation2 + $0x98] sm:$0xff] %v3045
      %3082 = vst [vmem:[#allocation2 + $0xa0] sm:$0xff] %v3046
      %3083 = vst [vmem:[#allocation2 + $0xa8] sm:$0xff] %v3047
      %3084 = vst [vmem:[#allocation2 + $0xb0] sm:$0xff] %v3048
      %3085 = vst [vmem:[#allocation2 + $0xb8] sm:$0xff] %v3049
      %3086 = vst [vmem:[#allocation2 + $0xc0] sm:$0xff] %v3050
      %3087 = vst [vmem:[#allocation2 + $0xc8] sm:$0xff] %v3051
      %3088 = vst [vmem:[#allocation2 + $0xd0] sm:$0xff] %v3052
      %3089 = vst [vmem:[#allocation2 + $0xd8] sm:$0xff] %v3053
      %3090 = vst [vmem:[#allocation2 + $0xe0] sm:$0xff] %v3054
      %3091 = vst [vmem:[#allocation2 + $0xe8] sm:$0xff] %v3055
      %3092 = vst [vmem:[#allocation2 + $0xf0] sm:$0xff] %v3056
      %3093 = vst [vmem:[#allocation2 + $0xf8] sm:$0xff] %v3057
      %3094 = vst [vmem:[#allocation2 + $0x100] sm:$0xff] %v3058
      %3095 = vst [vmem:[#allocation2 + $0x108] sm:$0xff] %v3059
      %3096 = vst [vmem:[#allocation2 + $0x110] sm:$0xff] %v3060
      %3097 = vst [vmem:[#allocation2 + $0x118] sm:$0xff] %v3061
      %v3098 = vld [vmem:[%s206 + $0x10] sm:$0xc]
      %v3099 = vld [vmem:[%s206 + $0x14] sm:$0xf]
      %v3100 = vld [vmem:[%s206 + $0x18] sm:$0xf]
      %v3101 = vld [vmem:[%s206 + $0x1c] sm:$0xf]
      %v3102 = vld [vmem:[%s206 + $0x20] sm:$0xf]
      %v3103 = vld [vmem:[%s206 + $0x24] sm:$0xf]
      %v3104 = vld [vmem:[%s206 + $0x28] sm:$0xf]
      %v3105 = vld [vmem:[%s206 + $0x2c] sm:$0xf]
      %v3106 = vld [vmem:[%s206 + $0x30] sm:$0xf]
      %v3107 = vld [vmem:[%s206 + $0x34] sm:$0xf]
      %v3108 = vld [vmem:[%s206 + $0x38] sm:$0xf]
      %v3109 = vld [vmem:[%s206 + $0x3c] sm:$0xf]
      %v3110 = vld [vmem:[%s206 + $0x40] sm:$0xf]
      %v3111 = vld [vmem:[%s206 + $0x44] sm:$0xf]
      %v3112 = vld [vmem:[%s206 + $0x48] sm:$0xf]
      %v3113 = vld [vmem:[%s206 + $0x4c] sm:$0xf]
      %v3114 = vld [vmem:[%s206 + $0x50] sm:$0xf]
      %v3115 = vld [vmem:[%s206 + $0x54] sm:$0xf]
      %v3116 = vld [vmem:[%s206 + $0x58] sm:$0xf]
      %v3117 = vld [vmem:[%s206 + $0x5c] sm:$0xf]
      %v3118 = vld [vmem:[%s206 + $0x60] sm:$0xf]
      %v3119 = vld [vmem:[%s206 + $0x64] sm:$0xf]
      %v3120 = vld [vmem:[%s206 + $0x68] sm:$0xf]
      %v3121 = vld [vmem:[%s206 + $0x6c] sm:$0xf]
      %v3122 = vld [vmem:[%s206 + $0x70] sm:$0xf]
      %v3123 = vld [vmem:[%s206 + $0x74] sm:$0xf]
      %v3124 = vld [vmem:[%s206 + $0x78] sm:$0xf]
      %v3125 = vld [vmem:[%s206 + $0x7c] sm:$0xf]
      %v3126 = vld [vmem:[%s206 + $0x80] sm:$0xf]
      %v3127 = vld [vmem:[%s206 + $0x84] sm:$0xf]
      %v3128 = vld [vmem:[%s206 + $0x88] sm:$0xf]
      %v3129 = vld [vmem:[%s206 + $0x8c] sm:$0xf]
      %v3130 = vld [vmem:[%s206 + $0x90] sm:$0xf]
      %v3131 = vld [vmem:[%s206 + $0x94] sm:$0xf]
      %v3132 = vld [vmem:[%s206 + $0x98] sm:$0xf]
      %v3133 = vld [vmem:[%s206 + $0x9c] sm:$0xf]
      %v3134 = vld [vmem:[%s206 + $0xa0] sm:$0x3]
      %s3135 = scalar_lea.vmem %s210, 384
      %v3136 = vld [vmem:[%s3135] sm:$0xf]
      %v3137 = vld [vmem:[%s3135 + $0x4] sm:$0xf]
      %v3138 = vld [vmem:[%s3135 + $0x8] sm:$0xf]
      %v3139 = vld [vmem:[%s3135 + $0xc] sm:$0xf]
      %v3140 = vld [vmem:[%s3135 + $0x10] sm:$0xf]
      %v3141 = vld [vmem:[%s3135 + $0x14] sm:$0xf]
      %v3142 = vld [vmem:[%s3135 + $0x18] sm:$0xf]
      %v3143 = vld [vmem:[%s3135 + $0x1c] sm:$0xf]
      %v3144 = vld [vmem:[%s3135 + $0x20] sm:$0xf]
      %v3145 = vld [vmem:[%s3135 + $0x24] sm:$0xf]
      %v3146 = vld [vmem:[%s3135 + $0x28] sm:$0xf]
      %v3147 = vld [vmem:[%s3135 + $0x2c] sm:$0xf]
      %v3148 = vld [vmem:[%s3135 + $0x30] sm:$0xf]
      %v3149 = vld [vmem:[%s3135 + $0x34] sm:$0xf]
      %v3150 = vld [vmem:[%s3135 + $0x38] sm:$0xf]
      %v3151 = vld [vmem:[%s3135 + $0x3c] sm:$0xf]
      %v3189 = vunpack.c.l.b16 %v3098
      %v3190 = vunpack.c.l.b16 %v3099
      %v3191 = vunpack.c.l.b16 %v3100
      %v3192 = vunpack.c.l.b16 %v3101
      %v3193 = vunpack.c.l.b16 %v3102
      %v3194 = vunpack.c.l.b16 %v3103
      %v3195 = vunpack.c.l.b16 %v3104
      %v3196 = vunpack.c.l.b16 %v3105
      %v3197 = vunpack.c.l.b16 %v3106
      %v3198 = vunpack.c.l.b16 %v3107
      %v3199 = vunpack.c.l.b16 %v3108
      %v3200 = vunpack.c.l.b16 %v3109
      %v3201 = vunpack.c.l.b16 %v3110
      %v3202 = vunpack.c.l.b16 %v3111
      %v3203 = vunpack.c.l.b16 %v3112
      %v3204 = vunpack.c.l.b16 %v3113
      %v3205 = vunpack.c.l.b16 %v3114
      %v3206 = vunpack.c.l.b16 %v3115
      %v3207 = vunpack.c.l.b16 %v3116
      %v3208 = vunpack.c.l.b16 %v3117
      %v3209 = vunpack.c.l.b16 %v3118
      %v3210 = vunpack.c.l.b16 %v3119
      %v3211 = vunpack.c.l.b16 %v3120
      %v3212 = vunpack.c.l.b16 %v3121
      %v3213 = vunpack.c.l.b16 %v3122
      %v3214 = vunpack.c.l.b16 %v3123
      %v3215 = vunpack.c.l.b16 %v3124
      %v3216 = vunpack.c.l.b16 %v3125
      %v3217 = vunpack.c.l.b16 %v3126
      %v3218 = vunpack.c.l.b16 %v3127
      %v3219 = vunpack.c.l.b16 %v3128
      %v3220 = vunpack.c.l.b16 %v3129
      %v3221 = vunpack.c.l.b16 %v3130
      %v3222 = vunpack.c.l.b16 %v3131
      %v3223 = vunpack.c.l.b16 %v3132
      %v3224 = vunpack.c.l.b16 %v3133
      %v3225 = vunpack.c.l.b16 %v3134
      %v3226 = vpack.c.b16 %v3190, %v3189
      %v3227 = vpack.c.b16 %v3192, %v3191
      %v3228 = vpack.c.b16 %v3194, %v3193
      %v3229 = vpack.c.b16 %v3196, %v3195
      %v3230 = vpack.c.b16 %v3198, %v3197
      %v3231 = vpack.c.b16 %v3200, %v3199
      %v3232 = vpack.c.b16 %v3202, %v3201
      %v3233 = vpack.c.b16 %v3204, %v3203
      %v3234 = vpack.c.b16 %v3206, %v3205
      %v3235 = vpack.c.b16 %v3208, %v3207
      %v3236 = vpack.c.b16 %v3210, %v3209
      %v3237 = vpack.c.b16 %v3212, %v3211
      %v3238 = vpack.c.b16 %v3214, %v3213
      %v3239 = vpack.c.b16 %v3216, %v3215
      %v3240 = vpack.c.b16 %v3218, %v3217
      %v3241 = vpack.c.b16 %v3220, %v3219
      %v3242 = vpack.c.b16 %v3222, %v3221
      %v3243 = vpack.c.b16 %v3224, %v3223
      %v3244 = vpack.c.b16 %v3225, %v3225
      %v3245 = vrot.slane %v3226, 2
      %v3246 = vrot.slane %v3227, 2
      %v3247 = vsel %vm2787, %v3245, %v3246
      %v3248 = vrot.slane %v3228, 2
      %v3249 = vsel %vm2787, %v3246, %v3248
      %v3250 = vrot.slane %v3229, 2
      %v3251 = vsel %vm2787, %v3248, %v3250
      %v3252 = vrot.slane %v3230, 2
      %v3253 = vsel %vm2787, %v3250, %v3252
      %v3254 = vrot.slane %v3231, 2
      %v3255 = vsel %vm2787, %v3252, %v3254
      %v3256 = vrot.slane %v3232, 2
      %v3257 = vsel %vm2787, %v3254, %v3256
      %v3258 = vrot.slane %v3233, 2
      %v3259 = vsel %vm2787, %v3256, %v3258
      %v3260 = vrot.slane %v3234, 2
      %v3261 = vsel %vm2787, %v3258, %v3260
      %v3262 = vrot.slane %v3235, 2
      %v3263 = vsel %vm2787, %v3260, %v3262
      %v3264 = vrot.slane %v3236, 2
      %v3265 = vsel %vm2787, %v3262, %v3264
      %v3266 = vrot.slane %v3237, 2
      %v3267 = vsel %vm2787, %v3264, %v3266
      %v3268 = vrot.slane %v3238, 2
      %v3269 = vsel %vm2787, %v3266, %v3268
      %v3270 = vrot.slane %v3239, 2
      %v3271 = vsel %vm2787, %v3268, %v3270
      %v3272 = vrot.slane %v3240, 2
      %v3273 = vsel %vm2787, %v3270, %v3272
      %v3274 = vrot.slane %v3241, 2
      %v3275 = vsel %vm2787, %v3272, %v3274
      %v3276 = vrot.slane %v3242, 2
      %v3277 = vsel %vm2787, %v3274, %v3276
      %v3278 = vrot.slane %v3243, 2
      %v3279 = vsel %vm2787, %v3276, %v3278
      %v3280 = vrot.slane %v3244, 2
      %v3281 = vsel %vm2787, %v3278, %v3280
      %v3316 = vunpack.c.l.b16 %v3136
      %v3317 = vunpack.c.l.b16 %v3137
      %v3318 = vunpack.c.l.b16 %v3138
      %v3319 = vunpack.c.l.b16 %v3139
      %v3320 = vunpack.c.l.b16 %v3140
      %v3321 = vunpack.c.l.b16 %v3141
      %v3322 = vunpack.c.l.b16 %v3142
      %v3323 = vunpack.c.l.b16 %v3143
      %v3324 = vunpack.c.l.b16 %v3144
      %v3325 = vunpack.c.l.b16 %v3145
      %v3326 = vunpack.c.l.b16 %v3146
      %v3327 = vunpack.c.l.b16 %v3147
      %v3328 = vunpack.c.l.b16 %v3148
      %v3329 = vunpack.c.l.b16 %v3149
      %v3330 = vunpack.c.l.b16 %v3150
      %v3331 = vunpack.c.l.b16 %v3151
      %v3332 = vpack.c.b16 %v3317, %v3316
      %v3333 = vpack.c.b16 %v3319, %v3318
      %v3334 = vpack.c.b16 %v3321, %v3320
      %v3335 = vpack.c.b16 %v3323, %v3322
      %v3336 = vpack.c.b16 %v3325, %v3324
      %v3337 = vpack.c.b16 %v3327, %v3326
      %v3338 = vpack.c.b16 %v3329, %v3328
      %v3339 = vpack.c.b16 %v3331, %v3330
      %3348 = vmatpush.bf16.msra.mxu0 %v3339
      %3349 = vmatpush.bf16.msra.mxu0 %v3338
      %3350 = vmatpush.bf16.msra.mxu0 %v3337
      %3351 = vmatpush.bf16.msra.mxu0 %v3336
      %3352 = vmatpush.bf16.msra.mxu0 %v3335
      %3353 = vmatpush.bf16.msra.mxu0 %v3334
      %3354 = vmatpush.bf16.msra.mxu0 %v3333
      %3355 = vmatpush.bf16.msra.mxu0 %v3332
      %3356 = vmatmul.bf16.gmra.mxu0 %v3247
      %v3357 = vpop.f32.mrf.mxu0
      %v3358 = vadd.f32 0.0, %v3357
      %v3359 = vpop.f32.mrf.mxu0
      %v3360 = vadd.f32 0.0, %v3359
      %3361 = vmatmul.bf16.gmra.mxu0 %v3249
      %v3362 = vpop.f32.mrf.mxu0
      %v3363 = vadd.f32 0.0, %v3362
      %v3364 = vpop.f32.mrf.mxu0
      %v3365 = vadd.f32 0.0, %v3364
      %3366 = vmatmul.bf16.gmra.mxu0 %v3251
      %v3367 = vpop.f32.mrf.mxu0
      %v3368 = vadd.f32 0.0, %v3367
      %v3369 = vpop.f32.mrf.mxu0
      %v3370 = vadd.f32 0.0, %v3369
      %3371 = vmatmul.bf16.gmra.mxu0 %v3253
      %v3372 = vpop.f32.mrf.mxu0
      %v3373 = vadd.f32 0.0, %v3372
      %v3374 = vpop.f32.mrf.mxu0
      %v3375 = vadd.f32 0.0, %v3374
      %3376 = vmatmul.bf16.gmra.mxu0 %v3255
      %v3377 = vpop.f32.mrf.mxu0
      %v3378 = vadd.f32 0.0, %v3377
      %v3379 = vpop.f32.mrf.mxu0
      %v3380 = vadd.f32 0.0, %v3379
      %3381 = vmatmul.bf16.gmra.mxu0 %v3257
      %v3382 = vpop.f32.mrf.mxu0
      %v3383 = vadd.f32 0.0, %v3382
      %v3384 = vpop.f32.mrf.mxu0
      %v3385 = vadd.f32 0.0, %v3384
      %3386 = vmatmul.bf16.gmra.mxu0 %v3259
      %v3387 = vpop.f32.mrf.mxu0
      %v3388 = vadd.f32 0.0, %v3387
      %v3389 = vpop.f32.mrf.mxu0
      %v3390 = vadd.f32 0.0, %v3389
      %3391 = vmatmul.bf16.gmra.mxu0 %v3261
      %v3392 = vpop.f32.mrf.mxu0
      %v3393 = vadd.f32 0.0, %v3392
      %v3394 = vpop.f32.mrf.mxu0
      %v3395 = vadd.f32 0.0, %v3394
      %3396 = vmatmul.bf16.gmra.mxu0 %v3263
      %v3397 = vpop.f32.mrf.mxu0
      %v3398 = vadd.f32 0.0, %v3397
      %v3399 = vpop.f32.mrf.mxu0
      %v3400 = vadd.f32 0.0, %v3399
      %3401 = vmatmul.bf16.gmra.mxu0 %v3265
      %v3402 = vpop.f32.mrf.mxu0
      %v3403 = vadd.f32 0.0, %v3402
      %v3404 = vpop.f32.mrf.mxu0
      %v3405 = vadd.f32 0.0, %v3404
      %3406 = vmatmul.bf16.gmra.mxu0 %v3267
      %v3407 = vpop.f32.mrf.mxu0
      %v3408 = vadd.f32 0.0, %v3407
      %v3409 = vpop.f32.mrf.mxu0
      %v3410 = vadd.f32 0.0, %v3409
      %3411 = vmatmul.bf16.gmra.mxu0 %v3269
      %v3412 = vpop.f32.mrf.mxu0
      %v3413 = vadd.f32 0.0, %v3412
      %v3414 = vpop.f32.mrf.mxu0
      %v3415 = vadd.f32 0.0, %v3414
      %3416 = vmatmul.bf16.gmra.mxu0 %v3271
      %v3417 = vpop.f32.mrf.mxu0
      %v3418 = vadd.f32 0.0, %v3417
      %v3419 = vpop.f32.mrf.mxu0
      %v3420 = vadd.f32 0.0, %v3419
      %3421 = vmatmul.bf16.gmra.mxu0 %v3273
      %v3422 = vpop.f32.mrf.mxu0
      %v3423 = vadd.f32 0.0, %v3422
      %v3424 = vpop.f32.mrf.mxu0
      %v3425 = vadd.f32 0.0, %v3424
      %3426 = vmatmul.bf16.gmra.mxu0 %v3275
      %v3427 = vpop.f32.mrf.mxu0
      %v3428 = vadd.f32 0.0, %v3427
      %v3429 = vpop.f32.mrf.mxu0
      %v3430 = vadd.f32 0.0, %v3429
      %3431 = vmatmul.bf16.gmra.mxu0 %v3277
      %v3432 = vpop.f32.mrf.mxu0
      %v3433 = vadd.f32 0.0, %v3432
      %v3434 = vpop.f32.mrf.mxu0
      %v3435 = vadd.f32 0.0, %v3434
      %3436 = vmatmul.bf16.gmra.mxu0 %v3279
      %v3437 = vpop.f32.mrf.mxu0
      %v3438 = vadd.f32 0.0, %v3437
      %v3439 = vpop.f32.mrf.mxu0
      %v3440 = vadd.f32 0.0, %v3439
      %3441 = vmatmul.bf16.gmra.mxu0 %v3281
      %v3442 = vpop.f32.mrf.mxu0
      %v3443 = vadd.f32 0.0, %v3442
      %v3444 = vpop.f32.mrf.mxu0
      %v3445 = vadd.f32 0.0, %v3444
      %3446 = vdwg.mxu0
      %v3447 = vld [vmem:[#allocation2] sm:$0xff]
      %v3448 = vld [vmem:[#allocation2 + $0x8] sm:$0xff]
      %v3449 = vld [vmem:[#allocation2 + $0x10] sm:$0xff]
      %v3450 = vld [vmem:[#allocation2 + $0x18] sm:$0xff]
      %v3451 = vld [vmem:[#allocation2 + $0x20] sm:$0xff]
      %v3452 = vld [vmem:[#allocation2 + $0x28] sm:$0xff]
      %v3453 = vld [vmem:[#allocation2 + $0x30] sm:$0xff]
      %v3454 = vld [vmem:[#allocation2 + $0x38] sm:$0xff]
      %v3455 = vld [vmem:[#allocation2 + $0x40] sm:$0xff]
      %v3456 = vld [vmem:[#allocation2 + $0x48] sm:$0xff]
      %v3457 = vld [vmem:[#allocation2 + $0x50] sm:$0xff]
      %v3458 = vld [vmem:[#allocation2 + $0x58] sm:$0xff]
      %v3459 = vld [vmem:[#allocation2 + $0x60] sm:$0xff]
      %v3460 = vld [vmem:[#allocation2 + $0x68] sm:$0xff]
      %v3461 = vld [vmem:[#allocation2 + $0x70] sm:$0xff]
      %v3462 = vld [vmem:[#allocation2 + $0x78] sm:$0xff]
      %v3463 = vld [vmem:[#allocation2 + $0x80] sm:$0xff]
      %v3464 = vld [vmem:[#allocation2 + $0x88] sm:$0xff]
      %v3465 = vld [vmem:[#allocation2 + $0x90] sm:$0xff]
      %v3466 = vld [vmem:[#allocation2 + $0x98] sm:$0xff]
      %v3467 = vld [vmem:[#allocation2 + $0xa0] sm:$0xff]
      %v3468 = vld [vmem:[#allocation2 + $0xa8] sm:$0xff]
      %v3469 = vld [vmem:[#allocation2 + $0xb0] sm:$0xff]
      %v3470 = vld [vmem:[#allocation2 + $0xb8] sm:$0xff]
      %v3471 = vld [vmem:[#allocation2 + $0xc0] sm:$0xff]
      %v3472 = vld [vmem:[#allocation2 + $0xc8] sm:$0xff]
      %v3473 = vld [vmem:[#allocation2 + $0xd0] sm:$0xff]
      %v3474 = vld [vmem:[#allocation2 + $0xd8] sm:$0xff]
      %v3475 = vld [vmem:[#allocation2 + $0xe0] sm:$0xff]
      %v3476 = vld [vmem:[#allocation2 + $0xe8] sm:$0xff]
      %v3477 = vld [vmem:[#allocation2 + $0xf0] sm:$0xff]
      %v3478 = vld [vmem:[#allocation2 + $0xf8] sm:$0xff]
      %v3479 = vld [vmem:[#allocation2 + $0x100] sm:$0xff]
      %v3480 = vld [vmem:[#allocation2 + $0x108] sm:$0xff]
      %v3481 = vld [vmem:[#allocation2 + $0x110] sm:$0xff]
      %v3482 = vld [vmem:[#allocation2 + $0x118] sm:$0xff]
      %v3483 = vadd.f32 %v3447, %v3358
      %v3484 = vadd.f32 %v3448, %v3360
      %v3485 = vadd.f32 %v3449, %v3363
      %v3486 = vadd.f32 %v3450, %v3365
      %v3487 = vadd.f32 %v3451, %v3368
      %v3488 = vadd.f32 %v3452, %v3370
      %v3489 = vadd.f32 %v3453, %v3373
      %v3490 = vadd.f32 %v3454, %v3375
      %v3491 = vadd.f32 %v3455, %v3378
      %v3492 = vadd.f32 %v3456, %v3380
      %v3493 = vadd.f32 %v3457, %v3383
      %v3494 = vadd.f32 %v3458, %v3385
      %v3495 = vadd.f32 %v3459, %v3388
      %v3496 = vadd.f32 %v3460, %v3390
      %v3497 = vadd.f32 %v3461, %v3393
      %v3498 = vadd.f32 %v3462, %v3395
      %v3499 = vadd.f32 %v3463, %v3398
      %v3500 = vadd.f32 %v3464, %v3400
      %v3501 = vadd.f32 %v3465, %v3403
      %v3502 = vadd.f32 %v3466, %v3405
      %v3503 = vadd.f32 %v3467, %v3408
      %v3504 = vadd.f32 %v3468, %v3410
      %v3505 = vadd.f32 %v3469, %v3413
      %v3506 = vadd.f32 %v3470, %v3415
      %v3507 = vadd.f32 %v3471, %v3418
      %v3508 = vadd.f32 %v3472, %v3420
      %v3509 = vadd.f32 %v3473, %v3423
      %v3510 = vadd.f32 %v3474, %v3425
      %v3511 = vadd.f32 %v3475, %v3428
      %v3512 = vadd.f32 %v3476, %v3430
      %v3513 = vadd.f32 %v3477, %v3433
      %v3514 = vadd.f32 %v3478, %v3435
      %v3515 = vadd.f32 %v3479, %v3438
      %v3516 = vadd.f32 %v3480, %v3440
      %v3517 = vadd.f32 %v3481, %v3443
      %v3518 = vadd.f32 %v3482, %v3445
      %3519 = vst [vmem:[#allocation2] sm:$0xff] %v3483
      %3520 = vst [vmem:[#allocation2 + $0x8] sm:$0xff] %v3484
      %3521 = vst [vmem:[#allocation2 + $0x10] sm:$0xff] %v3485
      %3522 = vst [vmem:[#allocation2 + $0x18] sm:$0xff] %v3486
      %3523 = vst [vmem:[#allocation2 + $0x20] sm:$0xff] %v3487
      %3524 = vst [vmem:[#allocation2 + $0x28] sm:$0xff] %v3488
      %3525 = vst [vmem:[#allocation2 + $0x30] sm:$0xff] %v3489
      %3526 = vst [vmem:[#allocation2 + $0x38] sm:$0xff] %v3490
      %3527 = vst [vmem:[#allocation2 + $0x40] sm:$0xff] %v3491
      %3528 = vst [vmem:[#allocation2 + $0x48] sm:$0xff] %v3492
      %3529 = vst [vmem:[#allocation2 + $0x50] sm:$0xff] %v3493
      %3530 = vst [vmem:[#allocation2 + $0x58] sm:$0xff] %v3494
      %3531 = vst [vmem:[#allocation2 + $0x60] sm:$0xff] %v3495
      %3532 = vst [vmem:[#allocation2 + $0x68] sm:$0xff] %v3496
      %3533 = vst [vmem:[#allocation2 + $0x70] sm:$0xff] %v3497
      %3534 = vst [vmem:[#allocation2 + $0x78] sm:$0xff] %v3498
      %3535 = vst [vmem:[#allocation2 + $0x80] sm:$0xff] %v3499
      %3536 = vst [vmem:[#allocation2 + $0x88] sm:$0xff] %v3500
      %3537 = vst [vmem:[#allocation2 + $0x90] sm:$0xff] %v3501
      %3538 = vst [vmem:[#allocation2 + $0x98] sm:$0xff] %v3502
      %3539 = vst [vmem:[#allocation2 + $0xa0] sm:$0xff] %v3503
      %3540 = vst [vmem:[#allocation2 + $0xa8] sm:$0xff] %v3504
      %3541 = vst [vmem:[#allocation2 + $0xb0] sm:$0xff] %v3505
      %3542 = vst [vmem:[#allocation2 + $0xb8] sm:$0xff] %v3506
      %3543 = vst [vmem:[#allocation2 + $0xc0] sm:$0xff] %v3507
      %3544 = vst [vmem:[#allocation2 + $0xc8] sm:$0xff] %v3508
      %3545 = vst [vmem:[#allocation2 + $0xd0] sm:$0xff] %v3509
      %3546 = vst [vmem:[#allocation2 + $0xd8] sm:$0xff] %v3510
      %3547 = vst [vmem:[#allocation2 + $0xe0] sm:$0xff] %v3511
      %3548 = vst [vmem:[#allocation2 + $0xe8] sm:$0xff] %v3512
      %3549 = vst [vmem:[#allocation2 + $0xf0] sm:$0xff] %v3513
      %3550 = vst [vmem:[#allocation2 + $0xf8] sm:$0xff] %v3514
      %3551 = vst [vmem:[#allocation2 + $0x100] sm:$0xff] %v3515
      %3552 = vst [vmem:[#allocation2 + $0x108] sm:$0xff] %v3516
      %3553 = vst [vmem:[#allocation2 + $0x110] sm:$0xff] %v3517
      %3554 = vst [vmem:[#allocation2 + $0x118] sm:$0xff] %v3518
      %v3555 = vld [vmem:[%s206 + $0x10] sm:$0xc]
      %v3556 = vld [vmem:[%s206 + $0x14] sm:$0xf]
      %v3557 = vld [vmem:[%s206 + $0x18] sm:$0xf]
      %v3558 = vld [vmem:[%s206 + $0x1c] sm:$0xf]
      %v3559 = vld [vmem:[%s206 + $0x20] sm:$0xf]
      %v3560 = vld [vmem:[%s206 + $0x24] sm:$0xf]
      %v3561 = vld [vmem:[%s206 + $0x28] sm:$0xf]
      %v3562 = vld [vmem:[%s206 + $0x2c] sm:$0xf]
      %v3563 = vld [vmem:[%s206 + $0x30] sm:$0xf]
      %v3564 = vld [vmem:[%s206 + $0x34] sm:$0xf]
      %v3565 = vld [vmem:[%s206 + $0x38] sm:$0xf]
      %v3566 = vld [vmem:[%s206 + $0x3c] sm:$0xf]
      %v3567 = vld [vmem:[%s206 + $0x40] sm:$0xf]
      %v3568 = vld [vmem:[%s206 + $0x44] sm:$0xf]
      %v3569 = vld [vmem:[%s206 + $0x48] sm:$0xf]
      %v3570 = vld [vmem:[%s206 + $0x4c] sm:$0xf]
      %v3571 = vld [vmem:[%s206 + $0x50] sm:$0xf]
      %v3572 = vld [vmem:[%s206 + $0x54] sm:$0xf]
      %v3573 = vld [vmem:[%s206 + $0x58] sm:$0xf]
      %v3574 = vld [vmem:[%s206 + $0x5c] sm:$0xf]
      %v3575 = vld [vmem:[%s206 + $0x60] sm:$0xf]
      %v3576 = vld [vmem:[%s206 + $0x64] sm:$0xf]
      %v3577 = vld [vmem:[%s206 + $0x68] sm:$0xf]
      %v3578 = vld [vmem:[%s206 + $0x6c] sm:$0xf]
      %v3579 = vld [vmem:[%s206 + $0x70] sm:$0xf]
      %v3580 = vld [vmem:[%s206 + $0x74] sm:$0xf]
      %v3581 = vld [vmem:[%s206 + $0x78] sm:$0xf]
      %v3582 = vld [vmem:[%s206 + $0x7c] sm:$0xf]
      %v3583 = vld [vmem:[%s206 + $0x80] sm:$0xf]
      %v3584 = vld [vmem:[%s206 + $0x84] sm:$0xf]
      %v3585 = vld [vmem:[%s206 + $0x88] sm:$0xf]
      %v3586 = vld [vmem:[%s206 + $0x8c] sm:$0xf]
      %v3587 = vld [vmem:[%s206 + $0x90] sm:$0xf]
      %v3588 = vld [vmem:[%s206 + $0x94] sm:$0xf]
      %v3589 = vld [vmem:[%s206 + $0x98] sm:$0xf]
      %v3590 = vld [vmem:[%s206 + $0x9c] sm:$0xf]
      %v3591 = vld [vmem:[%s206 + $0xa0] sm:$0x7]
      %s3592 = scalar_lea.vmem %s210, 448
      %v3593 = vld [vmem:[%s3592] sm:$0xf]
      %v3594 = vld [vmem:[%s3592 + $0x4] sm:$0xf]
      %v3595 = vld [vmem:[%s3592 + $0x8] sm:$0xf]
      %v3596 = vld [vmem:[%s3592 + $0xc] sm:$0xf]
      %v3597 = vld [vmem:[%s3592 + $0x10] sm:$0xf]
      %v3598 = vld [vmem:[%s3592 + $0x14] sm:$0xf]
      %v3599 = vld [vmem:[%s3592 + $0x18] sm:$0xf]
      %v3600 = vld [vmem:[%s3592 + $0x1c] sm:$0xf]
      %v3601 = vld [vmem:[%s3592 + $0x20] sm:$0xf]
      %v3602 = vld [vmem:[%s3592 + $0x24] sm:$0xf]
      %v3603 = vld [vmem:[%s3592 + $0x28] sm:$0xf]
      %v3604 = vld [vmem:[%s3592 + $0x2c] sm:$0xf]
      %v3605 = vld [vmem:[%s3592 + $0x30] sm:$0xf]
      %v3606 = vld [vmem:[%s3592 + $0x34] sm:$0xf]
      %v3607 = vld [vmem:[%s3592 + $0x38] sm:$0xf]
      %v3608 = vld [vmem:[%s3592 + $0x3c] sm:$0xf]
      %v3646 = vunpack.c.l.b16 %v3555
      %v3647 = vunpack.c.l.b16 %v3556
      %v3648 = vunpack.c.l.b16 %v3557
      %v3649 = vunpack.c.l.b16 %v3558
      %v3650 = vunpack.c.l.b16 %v3559
      %v3651 = vunpack.c.l.b16 %v3560
      %v3652 = vunpack.c.l.b16 %v3561
      %v3653 = vunpack.c.l.b16 %v3562
      %v3654 = vunpack.c.l.b16 %v3563
      %v3655 = vunpack.c.l.b16 %v3564
      %v3656 = vunpack.c.l.b16 %v3565
      %v3657 = vunpack.c.l.b16 %v3566
      %v3658 = vunpack.c.l.b16 %v3567
      %v3659 = vunpack.c.l.b16 %v3568
      %v3660 = vunpack.c.l.b16 %v3569
      %v3661 = vunpack.c.l.b16 %v3570
      %v3662 = vunpack.c.l.b16 %v3571
      %v3663 = vunpack.c.l.b16 %v3572
      %v3664 = vunpack.c.l.b16 %v3573
      %v3665 = vunpack.c.l.b16 %v3574
      %v3666 = vunpack.c.l.b16 %v3575
      %v3667 = vunpack.c.l.b16 %v3576
      %v3668 = vunpack.c.l.b16 %v3577
      %v3669 = vunpack.c.l.b16 %v3578
      %v3670 = vunpack.c.l.b16 %v3579
      %v3671 = vunpack.c.l.b16 %v3580
      %v3672 = vunpack.c.l.b16 %v3581
      %v3673 = vunpack.c.l.b16 %v3582
      %v3674 = vunpack.c.l.b16 %v3583
      %v3675 = vunpack.c.l.b16 %v3584
      %v3676 = vunpack.c.l.b16 %v3585
      %v3677 = vunpack.c.l.b16 %v3586
      %v3678 = vunpack.c.l.b16 %v3587
      %v3679 = vunpack.c.l.b16 %v3588
      %v3680 = vunpack.c.l.b16 %v3589
      %v3681 = vunpack.c.l.b16 %v3590
      %v3682 = vunpack.c.l.b16 %v3591
      %v3683 = vpack.c.b16 %v3647, %v3646
      %v3684 = vpack.c.b16 %v3649, %v3648
      %v3685 = vpack.c.b16 %v3651, %v3650
      %v3686 = vpack.c.b16 %v3653, %v3652
      %v3687 = vpack.c.b16 %v3655, %v3654
      %v3688 = vpack.c.b16 %v3657, %v3656
      %v3689 = vpack.c.b16 %v3659, %v3658
      %v3690 = vpack.c.b16 %v3661, %v3660
      %v3691 = vpack.c.b16 %v3663, %v3662
      %v3692 = vpack.c.b16 %v3665, %v3664
      %v3693 = vpack.c.b16 %v3667, %v3666
      %v3694 = vpack.c.b16 %v3669, %v3668
      %v3695 = vpack.c.b16 %v3671, %v3670
      %v3696 = vpack.c.b16 %v3673, %v3672
      %v3697 = vpack.c.b16 %v3675, %v3674
      %v3698 = vpack.c.b16 %v3677, %v3676
      %v3699 = vpack.c.b16 %v3679, %v3678
      %v3700 = vpack.c.b16 %v3681, %v3680
      %v3701 = vpack.c.b16 %v3682, %v3682
      %vm3702 = vsmask.f32 5376
      %v3704 = vshrl.u32 %v3683, 16
      %v3706 = vrot.slane %v3704, 2
      %v3707 = vshll.u32 %v3683, 16
      %v3709 = vrot.slane %v3707, 3
      %v3710 = vor.u32 %v3706, %v3709
      %v3712 = vshrl.u32 %v3684, 16
      %v3714 = vrot.slane %v3712, 2
      %v3715 = vshll.u32 %v3684, 16
      %v3717 = vrot.slane %v3715, 3
      %v3718 = vor.u32 %v3714, %v3717
      %v3719 = vsel %vm3702, %v3710, %v3718
      %v3721 = vshrl.u32 %v3685, 16
      %v3723 = vrot.slane %v3721, 2
      %v3724 = vshll.u32 %v3685, 16
      %v3726 = vrot.slane %v3724, 3
      %v3727 = vor.u32 %v3723, %v3726
      %v3728 = vsel %vm3702, %v3718, %v3727
      %v3730 = vshrl.u32 %v3686, 16
      %v3732 = vrot.slane %v3730, 2
      %v3733 = vshll.u32 %v3686, 16
      %v3735 = vrot.slane %v3733, 3
      %v3736 = vor.u32 %v3732, %v3735
      %v3737 = vsel %vm3702, %v3727, %v3736
      %v3739 = vshrl.u32 %v3687, 16
      %v3741 = vrot.slane %v3739, 2
      %v3742 = vshll.u32 %v3687, 16
      %v3744 = vrot.slane %v3742, 3
      %v3745 = vor.u32 %v3741, %v3744
      %v3746 = vsel %vm3702, %v3736, %v3745
      %v3748 = vshrl.u32 %v3688, 16
      %v3750 = vrot.slane %v3748, 2
      %v3751 = vshll.u32 %v3688, 16
      %v3753 = vrot.slane %v3751, 3
      %v3754 = vor.u32 %v3750, %v3753
      %v3755 = vsel %vm3702, %v3745, %v3754
      %v3757 = vshrl.u32 %v3689, 16
      %v3759 = vrot.slane %v3757, 2
      %v3760 = vshll.u32 %v3689, 16
      %v3762 = vrot.slane %v3760, 3
      %v3763 = vor.u32 %v3759, %v3762
      %v3764 = vsel %vm3702, %v3754, %v3763
      %v3766 = vshrl.u32 %v3690, 16
      %v3768 = vrot.slane %v3766, 2
      %v3769 = vshll.u32 %v3690, 16
      %v3771 = vrot.slane %v3769, 3
      %v3772 = vor.u32 %v3768, %v3771
      %v3773 = vsel %vm3702, %v3763, %v3772
      %v3775 = vshrl.u32 %v3691, 16
      %v3777 = vrot.slane %v3775, 2
      %v3778 = vshll.u32 %v3691, 16
      %v3780 = vrot.slane %v3778, 3
      %v3781 = vor.u32 %v3777, %v3780
      %v3782 = vsel %vm3702, %v3772, %v3781
      %v3784 = vshrl.u32 %v3692, 16
      %v3786 = vrot.slane %v3784, 2
      %v3787 = vshll.u32 %v3692, 16
      %v3789 = vrot.slane %v3787, 3
      %v3790 = vor.u32 %v3786, %v3789
      %v3791 = vsel %vm3702, %v3781, %v3790
      %v3793 = vshrl.u32 %v3693, 16
      %v3795 = vrot.slane %v3793, 2
      %v3796 = vshll.u32 %v3693, 16
      %v3798 = vrot.slane %v3796, 3
      %v3799 = vor.u32 %v3795, %v3798
      %v3800 = vsel %vm3702, %v3790, %v3799
      %v3802 = vshrl.u32 %v3694, 16
      %v3804 = vrot.slane %v3802, 2
      %v3805 = vshll.u32 %v3694, 16
      %v3807 = vrot.slane %v3805, 3
      %v3808 = vor.u32 %v3804, %v3807
      %v3809 = vsel %vm3702, %v3799, %v3808
      %v3811 = vshrl.u32 %v3695, 16
      %v3813 = vrot.slane %v3811, 2
      %v3814 = vshll.u32 %v3695, 16
      %v3816 = vrot.slane %v3814, 3
      %v3817 = vor.u32 %v3813, %v3816
      %v3818 = vsel %vm3702, %v3808, %v3817
      %v3820 = vshrl.u32 %v3696, 16
      %v3822 = vrot.slane %v3820, 2
      %v3823 = vshll.u32 %v3696, 16
      %v3825 = vrot.slane %v3823, 3
      %v3826 = vor.u32 %v3822, %v3825
      %v3827 = vsel %vm3702, %v3817, %v3826
      %v3829 = vshrl.u32 %v3697, 16
      %v3831 = vrot.slane %v3829, 2
      %v3832 = vshll.u32 %v3697, 16
      %v3834 = vrot.slane %v3832, 3
      %v3835 = vor.u32 %v3831, %v3834
      %v3836 = vsel %vm3702, %v3826, %v3835
      %v3838 = vshrl.u32 %v3698, 16
      %v3840 = vrot.slane %v3838, 2
      %v3841 = vshll.u32 %v3698, 16
      %v3843 = vrot.slane %v3841, 3
      %v3844 = vor.u32 %v3840, %v3843
      %v3845 = vsel %vm3702, %v3835, %v3844
      %v3847 = vshrl.u32 %v3699, 16
      %v3849 = vrot.slane %v3847, 2
      %v3850 = vshll.u32 %v3699, 16
      %v3852 = vrot.slane %v3850, 3
      %v3853 = vor.u32 %v3849, %v3852
      %v3854 = vsel %vm3702, %v3844, %v3853
      %v3856 = vshrl.u32 %v3700, 16
      %v3858 = vrot.slane %v3856, 2
      %v3859 = vshll.u32 %v3700, 16
      %v3861 = vrot.slane %v3859, 3
      %v3862 = vor.u32 %v3858, %v3861
      %v3863 = vsel %vm3702, %v3853, %v3862
      %v3865 = vshrl.u32 %v3701, 16
      %v3867 = vrot.slane %v3865, 2
      %v3868 = vshll.u32 %v3701, 16
      %v3870 = vrot.slane %v3868, 3
      %v3871 = vor.u32 %v3867, %v3870
      %v3872 = vsel %vm3702, %v3862, %v3871
      %v3907 = vunpack.c.l.b16 %v3593
      %v3908 = vunpack.c.l.b16 %v3594
      %v3909 = vunpack.c.l.b16 %v3595
      %v3910 = vunpack.c.l.b16 %v3596
      %v3911 = vunpack.c.l.b16 %v3597
      %v3912 = vunpack.c.l.b16 %v3598
      %v3913 = vunpack.c.l.b16 %v3599
      %v3914 = vunpack.c.l.b16 %v3600
      %v3915 = vunpack.c.l.b16 %v3601
      %v3916 = vunpack.c.l.b16 %v3602
      %v3917 = vunpack.c.l.b16 %v3603
      %v3918 = vunpack.c.l.b16 %v3604
      %v3919 = vunpack.c.l.b16 %v3605
      %v3920 = vunpack.c.l.b16 %v3606
      %v3921 = vunpack.c.l.b16 %v3607
      %v3922 = vunpack.c.l.b16 %v3608
      %v3923 = vpack.c.b16 %v3908, %v3907
      %v3924 = vpack.c.b16 %v3910, %v3909
      %v3925 = vpack.c.b16 %v3912, %v3911
      %v3926 = vpack.c.b16 %v3914, %v3913
      %v3927 = vpack.c.b16 %v3916, %v3915
      %v3928 = vpack.c.b16 %v3918, %v3917
      %v3929 = vpack.c.b16 %v3920, %v3919
      %v3930 = vpack.c.b16 %v3922, %v3921
      %3939 = vmatpush.bf16.msra.mxu0 %v3930
      %3940 = vmatpush.bf16.msra.mxu0 %v3929
      %3941 = vmatpush.bf16.msra.mxu0 %v3928
      %3942 = vmatpush.bf16.msra.mxu0 %v3927
      %3943 = vmatpush.bf16.msra.mxu0 %v3926
      %3944 = vmatpush.bf16.msra.mxu0 %v3925
      %3945 = vmatpush.bf16.msra.mxu0 %v3924
      %3946 = vmatpush.bf16.msra.mxu0 %v3923
      %3947 = vmatmul.bf16.gmra.mxu0 %v3719
      %v3948 = vpop.f32.mrf.mxu0
      %v3949 = vadd.f32 0.0, %v3948
      %v3950 = vpop.f32.mrf.mxu0
      %v3951 = vadd.f32 0.0, %v3950
      %3952 = vmatmul.bf16.gmra.mxu0 %v3728
      %v3953 = vpop.f32.mrf.mxu0
      %v3954 = vadd.f32 0.0, %v3953
      %v3955 = vpop.f32.mrf.mxu0
      %v3956 = vadd.f32 0.0, %v3955
      %3957 = vmatmul.bf16.gmra.mxu0 %v3737
      %v3958 = vpop.f32.mrf.mxu0
      %v3959 = vadd.f32 0.0, %v3958
      %v3960 = vpop.f32.mrf.mxu0
      %v3961 = vadd.f32 0.0, %v3960
      %3962 = vmatmul.bf16.gmra.mxu0 %v3746
      %v3963 = vpop.f32.mrf.mxu0
      %v3964 = vadd.f32 0.0, %v3963
      %v3965 = vpop.f32.mrf.mxu0
      %v3966 = vadd.f32 0.0, %v3965
      %3967 = vmatmul.bf16.gmra.mxu0 %v3755
      %v3968 = vpop.f32.mrf.mxu0
      %v3969 = vadd.f32 0.0, %v3968
      %v3970 = vpop.f32.mrf.mxu0
      %v3971 = vadd.f32 0.0, %v3970
      %3972 = vmatmul.bf16.gmra.mxu0 %v3764
      %v3973 = vpop.f32.mrf.mxu0
      %v3974 = vadd.f32 0.0, %v3973
      %v3975 = vpop.f32.mrf.mxu0
      %v3976 = vadd.f32 0.0, %v3975
      %3977 = vmatmul.bf16.gmra.mxu0 %v3773
      %v3978 = vpop.f32.mrf.mxu0
      %v3979 = vadd.f32 0.0, %v3978
      %v3980 = vpop.f32.mrf.mxu0
      %v3981 = vadd.f32 0.0, %v3980
      %3982 = vmatmul.bf16.gmra.mxu0 %v3782
      %v3983 = vpop.f32.mrf.mxu0
      %v3984 = vadd.f32 0.0, %v3983
      %v3985 = vpop.f32.mrf.mxu0
      %v3986 = vadd.f32 0.0, %v3985
      %3987 = vmatmul.bf16.gmra.mxu0 %v3791
      %v3988 = vpop.f32.mrf.mxu0
      %v3989 = vadd.f32 0.0, %v3988
      %v3990 = vpop.f32.mrf.mxu0
      %v3991 = vadd.f32 0.0, %v3990
      %3992 = vmatmul.bf16.gmra.mxu0 %v3800
      %v3993 = vpop.f32.mrf.mxu0
      %v3994 = vadd.f32 0.0, %v3993
      %v3995 = vpop.f32.mrf.mxu0
      %v3996 = vadd.f32 0.0, %v3995
      %3997 = vmatmul.bf16.gmra.mxu0 %v3809
      %v3998 = vpop.f32.mrf.mxu0
      %v3999 = vadd.f32 0.0, %v3998
      %v4000 = vpop.f32.mrf.mxu0
      %v4001 = vadd.f32 0.0, %v4000
      %4002 = vmatmul.bf16.gmra.mxu0 %v3818
      %v4003 = vpop.f32.mrf.mxu0
      %v4004 = vadd.f32 0.0, %v4003
      %v4005 = vpop.f32.mrf.mxu0
      %v4006 = vadd.f32 0.0, %v4005
      %4007 = vmatmul.bf16.gmra.mxu0 %v3827
      %v4008 = vpop.f32.mrf.mxu0
      %v4009 = vadd.f32 0.0, %v4008
      %v4010 = vpop.f32.mrf.mxu0
      %v4011 = vadd.f32 0.0, %v4010
      %4012 = vmatmul.bf16.gmra.mxu0 %v3836
      %v4013 = vpop.f32.mrf.mxu0
      %v4014 = vadd.f32 0.0, %v4013
      %v4015 = vpop.f32.mrf.mxu0
      %v4016 = vadd.f32 0.0, %v4015
      %4017 = vmatmul.bf16.gmra.mxu0 %v3845
      %v4018 = vpop.f32.mrf.mxu0
      %v4019 = vadd.f32 0.0, %v4018
      %v4020 = vpop.f32.mrf.mxu0
      %v4021 = vadd.f32 0.0, %v4020
      %4022 = vmatmul.bf16.gmra.mxu0 %v3854
      %v4023 = vpop.f32.mrf.mxu0
      %v4024 = vadd.f32 0.0, %v4023
      %v4025 = vpop.f32.mrf.mxu0
      %v4026 = vadd.f32 0.0, %v4025
      %4027 = vmatmul.bf16.gmra.mxu0 %v3863
      %v4028 = vpop.f32.mrf.mxu0
      %v4029 = vadd.f32 0.0, %v4028
      %v4030 = vpop.f32.mrf.mxu0
      %v4031 = vadd.f32 0.0, %v4030
      %4032 = vmatmul.bf16.gmra.mxu0 %v3872
      %v4033 = vpop.f32.mrf.mxu0
      %v4034 = vadd.f32 0.0, %v4033
      %v4035 = vpop.f32.mrf.mxu0
      %v4036 = vadd.f32 0.0, %v4035
      %4037 = vdwg.mxu0
      %v4038 = vld [vmem:[#allocation2] sm:$0xff]
      %v4039 = vld [vmem:[#allocation2 + $0x8] sm:$0xff]
      %v4040 = vld [vmem:[#allocation2 + $0x10] sm:$0xff]
      %v4041 = vld [vmem:[#allocation2 + $0x18] sm:$0xff]
      %v4042 = vld [vmem:[#allocation2 + $0x20] sm:$0xff]
      %v4043 = vld [vmem:[#allocation2 + $0x28] sm:$0xff]
      %v4044 = vld [vmem:[#allocation2 + $0x30] sm:$0xff]
      %v4045 = vld [vmem:[#allocation2 + $0x38] sm:$0xff]
      %v4046 = vld [vmem:[#allocation2 + $0x40] sm:$0xff]
      %v4047 = vld [vmem:[#allocation2 + $0x48] sm:$0xff]
      %v4048 = vld [vmem:[#allocation2 + $0x50] sm:$0xff]
      %v4049 = vld [vmem:[#allocation2 + $0x58] sm:$0xff]
      %v4050 = vld [vmem:[#allocation2 + $0x60] sm:$0xff]
      %v4051 = vld [vmem:[#allocation2 + $0x68] sm:$0xff]
      %v4052 = vld [vmem:[#allocation2 + $0x70] sm:$0xff]
      %v4053 = vld [vmem:[#allocation2 + $0x78] sm:$0xff]
      %v4054 = vld [vmem:[#allocation2 + $0x80] sm:$0xff]
      %v4055 = vld [vmem:[#allocation2 + $0x88] sm:$0xff]
      %v4056 = vld [vmem:[#allocation2 + $0x90] sm:$0xff]
      %v4057 = vld [vmem:[#allocation2 + $0x98] sm:$0xff]
      %v4058 = vld [vmem:[#allocation2 + $0xa0] sm:$0xff]
      %v4059 = vld [vmem:[#allocation2 + $0xa8] sm:$0xff]
      %v4060 = vld [vmem:[#allocation2 + $0xb0] sm:$0xff]
      %v4061 = vld [vmem:[#allocation2 + $0xb8] sm:$0xff]
      %v4062 = vld [vmem:[#allocation2 + $0xc0] sm:$0xff]
      %v4063 = vld [vmem:[#allocation2 + $0xc8] sm:$0xff]
      %v4064 = vld [vmem:[#allocation2 + $0xd0] sm:$0xff]
      %v4065 = vld [vmem:[#allocation2 + $0xd8] sm:$0xff]
      %v4066 = vld [vmem:[#allocation2 + $0xe0] sm:$0xff]
      %v4067 = vld [vmem:[#allocation2 + $0xe8] sm:$0xff]
      %v4068 = vld [vmem:[#allocation2 + $0xf0] sm:$0xff]
      %v4069 = vld [vmem:[#allocation2 + $0xf8] sm:$0xff]
      %v4070 = vld [vmem:[#allocation2 + $0x100] sm:$0xff]
      %v4071 = vld [vmem:[#allocation2 + $0x108] sm:$0xff]
      %v4072 = vld [vmem:[#allocation2 + $0x110] sm:$0xff]
      %v4073 = vld [vmem:[#allocation2 + $0x118] sm:$0xff]
      %v4074 = vadd.f32 %v4038, %v3949
      %v4075 = vadd.f32 %v4039, %v3951
      %v4076 = vadd.f32 %v4040, %v3954
      %v4077 = vadd.f32 %v4041, %v3956
      %v4078 = vadd.f32 %v4042, %v3959
      %v4079 = vadd.f32 %v4043, %v3961
      %v4080 = vadd.f32 %v4044, %v3964
      %v4081 = vadd.f32 %v4045, %v3966
      %v4082 = vadd.f32 %v4046, %v3969
      %v4083 = vadd.f32 %v4047, %v3971
      %v4084 = vadd.f32 %v4048, %v3974
      %v4085 = vadd.f32 %v4049, %v3976
      %v4086 = vadd.f32 %v4050, %v3979
      %v4087 = vadd.f32 %v4051, %v3981
      %v4088 = vadd.f32 %v4052, %v3984
      %v4089 = vadd.f32 %v4053, %v3986
      %v4090 = vadd.f32 %v4054, %v3989
      %v4091 = vadd.f32 %v4055, %v3991
      %v4092 = vadd.f32 %v4056, %v3994
      %v4093 = vadd.f32 %v4057, %v3996
      %v4094 = vadd.f32 %v4058, %v3999
      %v4095 = vadd.f32 %v4059, %v4001
      %v4096 = vadd.f32 %v4060, %v4004
      %v4097 = vadd.f32 %v4061, %v4006
      %v4098 = vadd.f32 %v4062, %v4009
      %v4099 = vadd.f32 %v4063, %v4011
      %v4100 = vadd.f32 %v4064, %v4014
      %v4101 = vadd.f32 %v4065, %v4016
      %v4102 = vadd.f32 %v4066, %v4019
      %v4103 = vadd.f32 %v4067, %v4021
      %v4104 = vadd.f32 %v4068, %v4024
      %v4105 = vadd.f32 %v4069, %v4026
      %v4106 = vadd.f32 %v4070, %v4029
      %v4107 = vadd.f32 %v4071, %v4031
      %v4108 = vadd.f32 %v4072, %v4034
      %v4109 = vadd.f32 %v4073, %v4036
      %4110 = vst [vmem:[#allocation2] sm:$0xff] %v4074
      %4111 = vst [vmem:[#allocation2 + $0x8] sm:$0xff] %v4075
      %4112 = vst [vmem:[#allocation2 + $0x10] sm:$0xff] %v4076
      %4113 = vst [vmem:[#allocation2 + $0x18] sm:$0xff] %v4077
      %4114 = vst [vmem:[#allocation2 + $0x20] sm:$0xff] %v4078
      %4115 = vst [vmem:[#allocation2 + $0x28] sm:$0xff] %v4079
      %4116 = vst [vmem:[#allocation2 + $0x30] sm:$0xff] %v4080
      %4117 = vst [vmem:[#allocation2 + $0x38] sm:$0xff] %v4081
      %4118 = vst [vmem:[#allocation2 + $0x40] sm:$0xff] %v4082
      %4119 = vst [vmem:[#allocation2 + $0x48] sm:$0xff] %v4083
      %4120 = vst [vmem:[#allocation2 + $0x50] sm:$0xff] %v4084
      %4121 = vst [vmem:[#allocation2 + $0x58] sm:$0xff] %v4085
      %4122 = vst [vmem:[#allocation2 + $0x60] sm:$0xff] %v4086
      %4123 = vst [vmem:[#allocation2 + $0x68] sm:$0xff] %v4087
      %4124 = vst [vmem:[#allocation2 + $0x70] sm:$0xff] %v4088
      %4125 = vst [vmem:[#allocation2 + $0x78] sm:$0xff] %v4089
      %4126 = vst [vmem:[#allocation2 + $0x80] sm:$0xff] %v4090
      %4127 = vst [vmem:[#allocation2 + $0x88] sm:$0xff] %v4091
      %4128 = vst [vmem:[#allocation2 + $0x90] sm:$0xff] %v4092
      %4129 = vst [vmem:[#allocation2 + $0x98] sm:$0xff] %v4093
      %4130 = vst [vmem:[#allocation2 + $0xa0] sm:$0xff] %v4094
      %4131 = vst [vmem:[#allocation2 + $0xa8] sm:$0xff] %v4095
      %4132 = vst [vmem:[#allocation2 + $0xb0] sm:$0xff] %v4096
      %4133 = vst [vmem:[#allocation2 + $0xb8] sm:$0xff] %v4097
      %4134 = vst [vmem:[#allocation2 + $0xc0] sm:$0xff] %v4098
      %4135 = vst [vmem:[#allocation2 + $0xc8] sm:$0xff] %v4099
      %4136 = vst [vmem:[#allocation2 + $0xd0] sm:$0xff] %v4100
      %4137 = vst [vmem:[#allocation2 + $0xd8] sm:$0xff] %v4101
      %4138 = vst [vmem:[#allocation2 + $0xe0] sm:$0xff] %v4102
      %4139 = vst [vmem:[#allocation2 + $0xe8] sm:$0xff] %v4103
      %4140 = vst [vmem:[#allocation2 + $0xf0] sm:$0xff] %v4104
      %4141 = vst [vmem:[#allocation2 + $0xf8] sm:$0xff] %v4105
      %4142 = vst [vmem:[#allocation2 + $0x100] sm:$0xff] %v4106
      %4143 = vst [vmem:[#allocation2 + $0x108] sm:$0xff] %v4107
      %4144 = vst [vmem:[#allocation2 + $0x110] sm:$0xff] %v4108
      %4145 = vst [vmem:[#allocation2 + $0x118] sm:$0xff] %v4109
      %v4146 = vld [vmem:[%s206 + $0x10] sm:$0x8]
      %v4147 = vld [vmem:[%s206 + $0x14] sm:$0xf]
      %v4148 = vld [vmem:[%s206 + $0x18] sm:$0xf]
      %v4149 = vld [vmem:[%s206 + $0x1c] sm:$0xf]
      %v4150 = vld [vmem:[%s206 + $0x20] sm:$0xf]
      %v4151 = vld [vmem:[%s206 + $0x24] sm:$0xf]
      %v4152 = vld [vmem:[%s206 + $0x28] sm:$0xf]
      %v4153 = vld [vmem:[%s206 + $0x2c] sm:$0xf]
      %v4154 = vld [vmem:[%s206 + $0x30] sm:$0xf]
      %v4155 = vld [vmem:[%s206 + $0x34] sm:$0xf]
      %v4156 = vld [vmem:[%s206 + $0x38] sm:$0xf]
      %v4157 = vld [vmem:[%s206 + $0x3c] sm:$0xf]
      %v4158 = vld [vmem:[%s206 + $0x40] sm:$0xf]
      %v4159 = vld [vmem:[%s206 + $0x44] sm:$0xf]
      %v4160 = vld [vmem:[%s206 + $0x48] sm:$0xf]
      %v4161 = vld [vmem:[%s206 + $0x4c] sm:$0xf]
      %v4162 = vld [vmem:[%s206 + $0x50] sm:$0xf]
      %v4163 = vld [vmem:[%s206 + $0x54] sm:$0xf]
      %v4164 = vld [vmem:[%s206 + $0x58] sm:$0xf]
      %v4165 = vld [vmem:[%s206 + $0x5c] sm:$0xf]
      %v4166 = vld [vmem:[%s206 + $0x60] sm:$0xf]
      %v4167 = vld [vmem:[%s206 + $0x64] sm:$0xf]
      %v4168 = vld [vmem:[%s206 + $0x68] sm:$0xf]
      %v4169 = vld [vmem:[%s206 + $0x6c] sm:$0xf]
      %v4170 = vld [vmem:[%s206 + $0x70] sm:$0xf]
      %v4171 = vld [vmem:[%s206 + $0x74] sm:$0xf]
      %v4172 = vld [vmem:[%s206 + $0x78] sm:$0xf]
      %v4173 = vld [vmem:[%s206 + $0x7c] sm:$0xf]
      %v4174 = vld [vmem:[%s206 + $0x80] sm:$0xf]
      %v4175 = vld [vmem:[%s206 + $0x84] sm:$0xf]
      %v4176 = vld [vmem:[%s206 + $0x88] sm:$0xf]
      %v4177 = vld [vmem:[%s206 + $0x8c] sm:$0xf]
      %v4178 = vld [vmem:[%s206 + $0x90] sm:$0xf]
      %v4179 = vld [vmem:[%s206 + $0x94] sm:$0xf]
      %v4180 = vld [vmem:[%s206 + $0x98] sm:$0xf]
      %v4181 = vld [vmem:[%s206 + $0x9c] sm:$0xf]
      %v4182 = vld [vmem:[%s206 + $0xa0] sm:$0x7]
      %s4183 = scalar_lea.vmem %s210, 512
      %v4184 = vld [vmem:[%s4183] sm:$0xf]
      %v4185 = vld [vmem:[%s4183 + $0x4] sm:$0xf]
      %v4186 = vld [vmem:[%s4183 + $0x8] sm:$0xf]
      %v4187 = vld [vmem:[%s4183 + $0xc] sm:$0xf]
      %v4188 = vld [vmem:[%s4183 + $0x10] sm:$0xf]
      %v4189 = vld [vmem:[%s4183 + $0x14] sm:$0xf]
      %v4190 = vld [vmem:[%s4183 + $0x18] sm:$0xf]
      %v4191 = vld [vmem:[%s4183 + $0x1c] sm:$0xf]
      %v4192 = vld [vmem:[%s4183 + $0x20] sm:$0xf]
      %v4193 = vld [vmem:[%s4183 + $0x24] sm:$0xf]
      %v4194 = vld [vmem:[%s4183 + $0x28] sm:$0xf]
      %v4195 = vld [vmem:[%s4183 + $0x2c] sm:$0xf]
      %v4196 = vld [vmem:[%s4183 + $0x30] sm:$0xf]
      %v4197 = vld [vmem:[%s4183 + $0x34] sm:$0xf]
      %v4198 = vld [vmem:[%s4183 + $0x38] sm:$0xf]
      %v4199 = vld [vmem:[%s4183 + $0x3c] sm:$0xf]
      %v4237 = vunpack.c.l.b16 %v4146
      %v4238 = vunpack.c.l.b16 %v4147
      %v4239 = vunpack.c.l.b16 %v4148
      %v4240 = vunpack.c.l.b16 %v4149
      %v4241 = vunpack.c.l.b16 %v4150
      %v4242 = vunpack.c.l.b16 %v4151
      %v4243 = vunpack.c.l.b16 %v4152
      %v4244 = vunpack.c.l.b16 %v4153
      %v4245 = vunpack.c.l.b16 %v4154
      %v4246 = vunpack.c.l.b16 %v4155
      %v4247 = vunpack.c.l.b16 %v4156
      %v4248 = vunpack.c.l.b16 %v4157
      %v4249 = vunpack.c.l.b16 %v4158
      %v4250 = vunpack.c.l.b16 %v4159
      %v4251 = vunpack.c.l.b16 %v4160
      %v4252 = vunpack.c.l.b16 %v4161
      %v4253 = vunpack.c.l.b16 %v4162
      %v4254 = vunpack.c.l.b16 %v4163
      %v4255 = vunpack.c.l.b16 %v4164
      %v4256 = vunpack.c.l.b16 %v4165
      %v4257 = vunpack.c.l.b16 %v4166
      %v4258 = vunpack.c.l.b16 %v4167
      %v4259 = vunpack.c.l.b16 %v4168
      %v4260 = vunpack.c.l.b16 %v4169
      %v4261 = vunpack.c.l.b16 %v4170
      %v4262 = vunpack.c.l.b16 %v4171
      %v4263 = vunpack.c.l.b16 %v4172
      %v4264 = vunpack.c.l.b16 %v4173
      %v4265 = vunpack.c.l.b16 %v4174
      %v4266 = vunpack.c.l.b16 %v4175
      %v4267 = vunpack.c.l.b16 %v4176
      %v4268 = vunpack.c.l.b16 %v4177
      %v4269 = vunpack.c.l.b16 %v4178
      %v4270 = vunpack.c.l.b16 %v4179
      %v4271 = vunpack.c.l.b16 %v4180
      %v4272 = vunpack.c.l.b16 %v4181
      %v4273 = vunpack.c.l.b16 %v4182
      %v4274 = vpack.c.b16 %v4238, %v4237
      %v4275 = vpack.c.b16 %v4240, %v4239
      %v4276 = vpack.c.b16 %v4242, %v4241
      %v4277 = vpack.c.b16 %v4244, %v4243
      %v4278 = vpack.c.b16 %v4246, %v4245
      %v4279 = vpack.c.b16 %v4248, %v4247
      %v4280 = vpack.c.b16 %v4250, %v4249
      %v4281 = vpack.c.b16 %v4252, %v4251
      %v4282 = vpack.c.b16 %v4254, %v4253
      %v4283 = vpack.c.b16 %v4256, %v4255
      %v4284 = vpack.c.b16 %v4258, %v4257
      %v4285 = vpack.c.b16 %v4260, %v4259
      %v4286 = vpack.c.b16 %v4262, %v4261
      %v4287 = vpack.c.b16 %v4264, %v4263
      %v4288 = vpack.c.b16 %v4266, %v4265
      %v4289 = vpack.c.b16 %v4268, %v4267
      %v4290 = vpack.c.b16 %v4270, %v4269
      %v4291 = vpack.c.b16 %v4272, %v4271
      %v4292 = vpack.c.b16 %v4273, %v4273
      %vm4293 = vcmask 1044480
      %v4294 = vrot.slane %v4274, 3
      %v4295 = vrot.slane %v4275, 3
      %v4296 = vsel %vm4293, %v4294, %v4295
      %v4297 = vrot.slane %v4276, 3
      %v4298 = vsel %vm4293, %v4295, %v4297
      %v4299 = vrot.slane %v4277, 3
      %v4300 = vsel %vm4293, %v4297, %v4299
      %v4301 = vrot.slane %v4278, 3
      %v4302 = vsel %vm4293, %v4299, %v4301
      %v4303 = vrot.slane %v4279, 3
      %v4304 = vsel %vm4293, %v4301, %v4303
      %v4305 = vrot.slane %v4280, 3
      %v4306 = vsel %vm4293, %v4303, %v4305
      %v4307 = vrot.slane %v4281, 3
      %v4308 = vsel %vm4293, %v4305, %v4307
      %v4309 = vrot.slane %v4282, 3
      %v4310 = vsel %vm4293, %v4307, %v4309
      %v4311 = vrot.slane %v4283, 3
      %v4312 = vsel %vm4293, %v4309, %v4311
      %v4313 = vrot.slane %v4284, 3
      %v4314 = vsel %vm4293, %v4311, %v4313
      %v4315 = vrot.slane %v4285, 3
      %v4316 = vsel %vm4293, %v4313, %v4315
      %v4317 = vrot.slane %v4286, 3
      %v4318 = vsel %vm4293, %v4315, %v4317
      %v4319 = vrot.slane %v4287, 3
      %v4320 = vsel %vm4293, %v4317, %v4319
      %v4321 = vrot.slane %v4288, 3
      %v4322 = vsel %vm4293, %v4319, %v4321
      %v4323 = vrot.slane %v4289, 3
      %v4324 = vsel %vm4293, %v4321, %v4323
      %v4325 = vrot.slane %v4290, 3
      %v4326 = vsel %vm4293, %v4323, %v4325
      %v4327 = vrot.slane %v4291, 3
      %v4328 = vsel %vm4293, %v4325, %v4327
      %v4329 = vrot.slane %v4292, 3
      %v4330 = vsel %vm4293, %v4327, %v4329
      %v4365 = vunpack.c.l.b16 %v4184
      %v4366 = vunpack.c.l.b16 %v4185
      %v4367 = vunpack.c.l.b16 %v4186
      %v4368 = vunpack.c.l.b16 %v4187
      %v4369 = vunpack.c.l.b16 %v4188
      %v4370 = vunpack.c.l.b16 %v4189
      %v4371 = vunpack.c.l.b16 %v4190
      %v4372 = vunpack.c.l.b16 %v4191
      %v4373 = vunpack.c.l.b16 %v4192
      %v4374 = vunpack.c.l.b16 %v4193
      %v4375 = vunpack.c.l.b16 %v4194
      %v4376 = vunpack.c.l.b16 %v4195
      %v4377 = vunpack.c.l.b16 %v4196
      %v4378 = vunpack.c.l.b16 %v4197
      %v4379 = vunpack.c.l.b16 %v4198
      %v4380 = vunpack.c.l.b16 %v4199
      %v4381 = vpack.c.b16 %v4366, %v4365
      %v4382 = vpack.c.b16 %v4368, %v4367
      %v4383 = vpack.c.b16 %v4370, %v4369
      %v4384 = vpack.c.b16 %v4372, %v4371
      %v4385 = vpack.c.b16 %v4374, %v4373
      %v4386 = vpack.c.b16 %v4376, %v4375
      %v4387 = vpack.c.b16 %v4378, %v4377
      %v4388 = vpack.c.b16 %v4380, %v4379
      %4397 = vmatpush.bf16.msra.mxu0 %v4388
      %4398 = vmatpush.bf16.msra.mxu0 %v4387
      %4399 = vmatpush.bf16.msra.mxu0 %v4386
      %4400 = vmatpush.bf16.msra.mxu0 %v4385
      %4401 = vmatpush.bf16.msra.mxu0 %v4384
      %4402 = vmatpush.bf16.msra.mxu0 %v4383
      %4403 = vmatpush.bf16.msra.mxu0 %v4382
      %4404 = vmatpush.bf16.msra.mxu0 %v4381
      %4405 = vmatmul.bf16.gmra.mxu0 %v4296
      %v4406 = vpop.f32.mrf.mxu0
      %v4407 = vadd.f32 0.0, %v4406
      %v4408 = vpop.f32.mrf.mxu0
      %v4409 = vadd.f32 0.0, %v4408
      %4410 = vmatmul.bf16.gmra.mxu0 %v4298
      %v4411 = vpop.f32.mrf.mxu0
      %v4412 = vadd.f32 0.0, %v4411
      %v4413 = vpop.f32.mrf.mxu0
      %v4414 = vadd.f32 0.0, %v4413
      %4415 = vmatmul.bf16.gmra.mxu0 %v4300
      %v4416 = vpop.f32.mrf.mxu0
      %v4417 = vadd.f32 0.0, %v4416
      %v4418 = vpop.f32.mrf.mxu0
      %v4419 = vadd.f32 0.0, %v4418
      %4420 = vmatmul.bf16.gmra.mxu0 %v4302
      %v4421 = vpop.f32.mrf.mxu0
      %v4422 = vadd.f32 0.0, %v4421
      %v4423 = vpop.f32.mrf.mxu0
      %v4424 = vadd.f32 0.0, %v4423
      %4425 = vmatmul.bf16.gmra.mxu0 %v4304
      %v4426 = vpop.f32.mrf.mxu0
      %v4427 = vadd.f32 0.0, %v4426
      %v4428 = vpop.f32.mrf.mxu0
      %v4429 = vadd.f32 0.0, %v4428
      %4430 = vmatmul.bf16.gmra.mxu0 %v4306
      %v4431 = vpop.f32.mrf.mxu0
      %v4432 = vadd.f32 0.0, %v4431
      %v4433 = vpop.f32.mrf.mxu0
      %v4434 = vadd.f32 0.0, %v4433
      %4435 = vmatmul.bf16.gmra.mxu0 %v4308
      %v4436 = vpop.f32.mrf.mxu0
      %v4437 = vadd.f32 0.0, %v4436
      %v4438 = vpop.f32.mrf.mxu0
      %v4439 = vadd.f32 0.0, %v4438
      %4440 = vmatmul.bf16.gmra.mxu0 %v4310
      %v4441 = vpop.f32.mrf.mxu0
      %v4442 = vadd.f32 0.0, %v4441
      %v4443 = vpop.f32.mrf.mxu0
      %v4444 = vadd.f32 0.0, %v4443
      %4445 = vmatmul.bf16.gmra.mxu0 %v4312
      %v4446 = vpop.f32.mrf.mxu0
      %v4447 = vadd.f32 0.0, %v4446
      %v4448 = vpop.f32.mrf.mxu0
      %v4449 = vadd.f32 0.0, %v4448
      %4450 = vmatmul.bf16.gmra.mxu0 %v4314
      %v4451 = vpop.f32.mrf.mxu0
      %v4452 = vadd.f32 0.0, %v4451
      %v4453 = vpop.f32.mrf.mxu0
      %v4454 = vadd.f32 0.0, %v4453
      %4455 = vmatmul.bf16.gmra.mxu0 %v4316
      %v4456 = vpop.f32.mrf.mxu0
      %v4457 = vadd.f32 0.0, %v4456
      %v4458 = vpop.f32.mrf.mxu0
      %v4459 = vadd.f32 0.0, %v4458
      %4460 = vmatmul.bf16.gmra.mxu0 %v4318
      %v4461 = vpop.f32.mrf.mxu0
      %v4462 = vadd.f32 0.0, %v4461
      %v4463 = vpop.f32.mrf.mxu0
      %v4464 = vadd.f32 0.0, %v4463
      %4465 = vmatmul.bf16.gmra.mxu0 %v4320
      %v4466 = vpop.f32.mrf.mxu0
      %v4467 = vadd.f32 0.0, %v4466
      %v4468 = vpop.f32.mrf.mxu0
      %v4469 = vadd.f32 0.0, %v4468
      %4470 = vmatmul.bf16.gmra.mxu0 %v4322
      %v4471 = vpop.f32.mrf.mxu0
      %v4472 = vadd.f32 0.0, %v4471
      %v4473 = vpop.f32.mrf.mxu0
      %v4474 = vadd.f32 0.0, %v4473
      %4475 = vmatmul.bf16.gmra.mxu0 %v4324
      %v4476 = vpop.f32.mrf.mxu0
      %v4477 = vadd.f32 0.0, %v4476
      %v4478 = vpop.f32.mrf.mxu0
      %v4479 = vadd.f32 0.0, %v4478
      %4480 = vmatmul.bf16.gmra.mxu0 %v4326
      %v4481 = vpop.f32.mrf.mxu0
      %v4482 = vadd.f32 0.0, %v4481
      %v4483 = vpop.f32.mrf.mxu0
      %v4484 = vadd.f32 0.0, %v4483
      %4485 = vmatmul.bf16.gmra.mxu0 %v4328
      %v4486 = vpop.f32.mrf.mxu0
      %v4487 = vadd.f32 0.0, %v4486
      %v4488 = vpop.f32.mrf.mxu0
      %v4489 = vadd.f32 0.0, %v4488
      %4490 = vmatmul.bf16.gmra.mxu0 %v4330
      %v4491 = vpop.f32.mrf.mxu0
      %v4492 = vadd.f32 0.0, %v4491
      %v4493 = vpop.f32.mrf.mxu0
      %v4494 = vadd.f32 0.0, %v4493
      %4495 = vdwg.mxu0
      %v4496 = vld [vmem:[#allocation2] sm:$0xff]
      %v4497 = vld [vmem:[#allocation2 + $0x8] sm:$0xff]
      %v4498 = vld [vmem:[#allocation2 + $0x10] sm:$0xff]
      %v4499 = vld [vmem:[#allocation2 + $0x18] sm:$0xff]
      %v4500 = vld [vmem:[#allocation2 + $0x20] sm:$0xff]
      %v4501 = vld [vmem:[#allocation2 + $0x28] sm:$0xff]
      %v4502 = vld [vmem:[#allocation2 + $0x30] sm:$0xff]
      %v4503 = vld [vmem:[#allocation2 + $0x38] sm:$0xff]
      %v4504 = vld [vmem:[#allocation2 + $0x40] sm:$0xff]
      %v4505 = vld [vmem:[#allocation2 + $0x48] sm:$0xff]
      %v4506 = vld [vmem:[#allocation2 + $0x50] sm:$0xff]
      %v4507 = vld [vmem:[#allocation2 + $0x58] sm:$0xff]
      %v4508 = vld [vmem:[#allocation2 + $0x60] sm:$0xff]
      %v4509 = vld [vmem:[#allocation2 + $0x68] sm:$0xff]
      %v4510 = vld [vmem:[#allocation2 + $0x70] sm:$0xff]
      %v4511 = vld [vmem:[#allocation2 + $0x78] sm:$0xff]
      %v4512 = vld [vmem:[#allocation2 + $0x80] sm:$0xff]
      %v4513 = vld [vmem:[#allocation2 + $0x88] sm:$0xff]
      %v4514 = vld [vmem:[#allocation2 + $0x90] sm:$0xff]
      %v4515 = vld [vmem:[#allocation2 + $0x98] sm:$0xff]
      %v4516 = vld [vmem:[#allocation2 + $0xa0] sm:$0xff]
      %v4517 = vld [vmem:[#allocation2 + $0xa8] sm:$0xff]
      %v4518 = vld [vmem:[#allocation2 + $0xb0] sm:$0xff]
      %v4519 = vld [vmem:[#allocation2 + $0xb8] sm:$0xff]
      %v4520 = vld [vmem:[#allocation2 + $0xc0] sm:$0xff]
      %v4521 = vld [vmem:[#allocation2 + $0xc8] sm:$0xff]
      %v4522 = vld [vmem:[#allocation2 + $0xd0] sm:$0xff]
      %v4523 = vld [vmem:[#allocation2 + $0xd8] sm:$0xff]
      %v4524 = vld [vmem:[#allocation2 + $0xe0] sm:$0xff]
      %v4525 = vld [vmem:[#allocation2 + $0xe8] sm:$0xff]
      %v4526 = vld [vmem:[#allocation2 + $0xf0] sm:$0xff]
      %v4527 = vld [vmem:[#allocation2 + $0xf8] sm:$0xff]
      %v4528 = vld [vmem:[#allocation2 + $0x100] sm:$0xff]
      %v4529 = vld [vmem:[#allocation2 + $0x108] sm:$0xff]
      %v4530 = vld [vmem:[#allocation2 + $0x110] sm:$0xff]
      %v4531 = vld [vmem:[#allocation2 + $0x118] sm:$0xff]
      %v4532 = vadd.f32 %v4496, %v4407
      %v4533 = vadd.f32 %v4497, %v4409
      %v4534 = vadd.f32 %v4498, %v4412
      %v4535 = vadd.f32 %v4499, %v4414
      %v4536 = vadd.f32 %v4500, %v4417
      %v4537 = vadd.f32 %v4501, %v4419
      %v4538 = vadd.f32 %v4502, %v4422
      %v4539 = vadd.f32 %v4503, %v4424
      %v4540 = vadd.f32 %v4504, %v4427
      %v4541 = vadd.f32 %v4505, %v4429
      %v4542 = vadd.f32 %v4506, %v4432
      %v4543 = vadd.f32 %v4507, %v4434
      %v4544 = vadd.f32 %v4508, %v4437
      %v4545 = vadd.f32 %v4509, %v4439
      %v4546 = vadd.f32 %v4510, %v4442
      %v4547 = vadd.f32 %v4511, %v4444
      %v4548 = vadd.f32 %v4512, %v4447
      %v4549 = vadd.f32 %v4513, %v4449
      %v4550 = vadd.f32 %v4514, %v4452
      %v4551 = vadd.f32 %v4515, %v4454
      %v4552 = vadd.f32 %v4516, %v4457
      %v4553 = vadd.f32 %v4517, %v4459
      %v4554 = vadd.f32 %v4518, %v4462
      %v4555 = vadd.f32 %v4519, %v4464
      %v4556 = vadd.f32 %v4520, %v4467
      %v4557 = vadd.f32 %v4521, %v4469
      %v4558 = vadd.f32 %v4522, %v4472
      %v4559 = vadd.f32 %v4523, %v4474
      %v4560 = vadd.f32 %v4524, %v4477
      %v4561 = vadd.f32 %v4525, %v4479
      %v4562 = vadd.f32 %v4526, %v4482
      %v4563 = vadd.f32 %v4527, %v4484
      %v4564 = vadd.f32 %v4528, %v4487
      %v4565 = vadd.f32 %v4529, %v4489
      %v4566 = vadd.f32 %v4530, %v4492
      %v4567 = vadd.f32 %v4531, %v4494
      %4568 = vst [vmem:[#allocation2] sm:$0xff] %v4532
      %4569 = vst [vmem:[#allocation2 + $0x8] sm:$0xff] %v4533
      %4570 = vst [vmem:[#allocation2 + $0x10] sm:$0xff] %v4534
      %4571 = vst [vmem:[#allocation2 + $0x18] sm:$0xff] %v4535
      %4572 = vst [vmem:[#allocation2 + $0x20] sm:$0xff] %v4536
      %4573 = vst [vmem:[#allocation2 + $0x28] sm:$0xff] %v4537
      %4574 = vst [vmem:[#allocation2 + $0x30] sm:$0xff] %v4538
      %4575 = vst [vmem:[#allocation2 + $0x38] sm:$0xff] %v4539
      %4576 = vst [vmem:[#allocation2 + $0x40] sm:$0xff] %v4540
      %4577 = vst [vmem:[#allocation2 + $0x48] sm:$0xff] %v4541
      %4578 = vst [vmem:[#allocation2 + $0x50] sm:$0xff] %v4542
      %4579 = vst [vmem:[#allocation2 + $0x58] sm:$0xff] %v4543
      %4580 = vst [vmem:[#allocation2 + $0x60] sm:$0xff] %v4544
      %4581 = vst [vmem:[#allocation2 + $0x68] sm:$0xff] %v4545
      %4582 = vst [vmem:[#allocation2 + $0x70] sm:$0xff] %v4546
      %4583 = vst [vmem:[#allocation2 + $0x78] sm:$0xff] %v4547
      %4584 = vst [vmem:[#allocation2 + $0x80] sm:$0xff] %v4548
      %4585 = vst [vmem:[#allocation2 + $0x88] sm:$0xff] %v4549
      %4586 = vst [vmem:[#allocation2 + $0x90] sm:$0xff] %v4550
      %4587 = vst [vmem:[#allocation2 + $0x98] sm:$0xff] %v4551
      %4588 = vst [vmem:[#allocation2 + $0xa0] sm:$0xff] %v4552
      %4589 = vst [vmem:[#allocation2 + $0xa8] sm:$0xff] %v4553
      %4590 = vst [vmem:[#allocation2 + $0xb0] sm:$0xff] %v4554
      %4591 = vst [vmem:[#allocation2 + $0xb8] sm:$0xff] %v4555
      %4592 = vst [vmem:[#allocation2 + $0xc0] sm:$0xff] %v4556
      %4593 = vst [vmem:[#allocation2 + $0xc8] sm:$0xff] %v4557
      %4594 = vst [vmem:[#allocation2 + $0xd0] sm:$0xff] %v4558
      %4595 = vst [vmem:[#allocation2 + $0xd8] sm:$0xff] %v4559
      %4596 = vst [vmem:[#allocation2 + $0xe0] sm:$0xff] %v4560
      %4597 = vst [vmem:[#allocation2 + $0xe8] sm:$0xff] %v4561
      %4598 = vst [vmem:[#allocation2 + $0xf0] sm:$0xff] %v4562
      %4599 = vst [vmem:[#allocation2 + $0xf8] sm:$0xff] %v4563
      %4600 = vst [vmem:[#allocation2 + $0x100] sm:$0xff] %v4564
      %4601 = vst [vmem:[#allocation2 + $0x108] sm:$0xff] %v4565
      %4602 = vst [vmem:[#allocation2 + $0x110] sm:$0xff] %v4566
      %4603 = vst [vmem:[#allocation2 + $0x118] sm:$0xff] %v4567
      %v4604 = vld [vmem:[%s213] sm:$0x1]
      %v4605 = vld [vmem:[#allocation2] sm:$0xff]
      %v4606 = vld [vmem:[#allocation2 + $0x8] sm:$0xff]
      %v4608 = vperm.slane %v4604, 0
      %v4610 = vadd.f32 %v4605, %v4608
      %v4611 = vadd.f32 %v4606, %v4608
      %v4612 = vmax.f32 %v4610, 0.0
      %v4613 = vmax.f32 %v4611, 0.0
      %v4614 = vpack.c.bf16 %v4612, %v4612
      %v4615 = vpack.c.bf16 %v4613, %v4613
      %4616 = vst [vmem:[%s221] sm:$0xf] %v4614
      %4617 = vst [vmem:[%s221 + $0x4] sm:$0xf] %v4615
      %v4618 = vld [vmem:[#allocation2 + $0x12] sm:$0xff]
      %v4619 = vld [vmem:[#allocation2 + $0x1a] sm:$0xff]
      %v4620 = vadd.f32 %v4618, %v4608
      %v4621 = vadd.f32 %v4619, %v4608
      %v4622 = vmax.f32 %v4620, 0.0
      %v4623 = vmax.f32 %v4621, 0.0
      %v4624 = vpack.c.bf16 %v4622, %v4622
      %v4625 = vpack.c.bf16 %v4623, %v4623
      %s4626 = scalar_lea.vmem %s221, 8
      %4627 = vst [vmem:[%s4626] sm:$0xf] %v4624
      %4628 = vst [vmem:[%s4626 + $0x4] sm:$0xf] %v4625
      %v4629 = vld [vmem:[#allocation2 + $0x24] sm:$0xff]
      %v4630 = vld [vmem:[#allocation2 + $0x2c] sm:$0xff]
      %v4631 = vadd.f32 %v4629, %v4608
      %v4632 = vadd.f32 %v4630, %v4608
      %v4633 = vmax.f32 %v4631, 0.0
      %v4634 = vmax.f32 %v4632, 0.0
      %v4635 = vpack.c.bf16 %v4633, %v4633
      %v4636 = vpack.c.bf16 %v4634, %v4634
      %s4637 = scalar_lea.vmem %s221, 16
      %4638 = vst [vmem:[%s4637] sm:$0xf] %v4635
      %4639 = vst [vmem:[%s4637 + $0x4] sm:$0xf] %v4636
      %v4640 = vld [vmem:[#allocation2 + $0x36] sm:$0xff]
      %v4641 = vld [vmem:[#allocation2 + $0x3e] sm:$0xff]
      %v4642 = vadd.f32 %v4640, %v4608
      %v4643 = vadd.f32 %v4641, %v4608
      %v4644 = vmax.f32 %v4642, 0.0
      %v4645 = vmax.f32 %v4643, 0.0
      %v4646 = vpack.c.bf16 %v4644, %v4644
      %v4647 = vpack.c.bf16 %v4645, %v4645
      %s4648 = scalar_lea.vmem %s221, 24
      %4649 = vst [vmem:[%s4648] sm:$0xf] %v4646
      %4650 = vst [vmem:[%s4648 + $0x4] sm:$0xf] %v4647
      %v4651 = vld [vmem:[#allocation2 + $0x48] sm:$0xff]
      %v4652 = vld [vmem:[#allocation2 + $0x50] sm:$0xff]
      %v4653 = vadd.f32 %v4651, %v4608
      %v4654 = vadd.f32 %v4652, %v4608
      %v4655 = vmax.f32 %v4653, 0.0
      %v4656 = vmax.f32 %v4654, 0.0
      %v4657 = vpack.c.bf16 %v4655, %v4655
      %v4658 = vpack.c.bf16 %v4656, %v4656
      %s4659 = scalar_lea.vmem %s221, 32
      %4660 = vst [vmem:[%s4659] sm:$0xf] %v4657
      %4661 = vst [vmem:[%s4659 + $0x4] sm:$0xf] %v4658
      %v4662 = vld [vmem:[#allocation2 + $0x5a] sm:$0xff]
      %v4663 = vld [vmem:[#allocation2 + $0x62] sm:$0xff]
      %v4664 = vadd.f32 %v4662, %v4608
      %v4665 = vadd.f32 %v4663, %v4608
      %v4666 = vmax.f32 %v4664, 0.0
      %v4667 = vmax.f32 %v4665, 0.0
      %v4668 = vpack.c.bf16 %v4666, %v4666
      %v4669 = vpack.c.bf16 %v4667, %v4667
      %s4670 = scalar_lea.vmem %s221, 40
      %4671 = vst [vmem:[%s4670] sm:$0xf] %v4668
      %4672 = vst [vmem:[%s4670 + $0x4] sm:$0xf] %v4669
      %v4673 = vld [vmem:[#allocation2 + $0x6c] sm:$0xff]
      %v4674 = vld [vmem:[#allocation2 + $0x74] sm:$0xff]
      %v4675 = vadd.f32 %v4673, %v4608
      %v4676 = vadd.f32 %v4674, %v4608
      %v4677 = vmax.f32 %v4675, 0.0
      %v4678 = vmax.f32 %v4676, 0.0
      %v4679 = vpack.c.bf16 %v4677, %v4677
      %v4680 = vpack.c.bf16 %v4678, %v4678
      %s4681 = scalar_lea.vmem %s221, 48
      %4682 = vst [vmem:[%s4681] sm:$0xf] %v4679
      %4683 = vst [vmem:[%s4681 + $0x4] sm:$0xf] %v4680
      %v4684 = vld [vmem:[#allocation2 + $0x7e] sm:$0xff]
      %v4685 = vld [vmem:[#allocation2 + $0x86] sm:$0xff]
      %v4686 = vadd.f32 %v4684, %v4608
      %v4687 = vadd.f32 %v4685, %v4608
      %v4688 = vmax.f32 %v4686, 0.0
      %v4689 = vmax.f32 %v4687, 0.0
      %v4690 = vpack.c.bf16 %v4688, %v4688
      %v4691 = vpack.c.bf16 %v4689, %v4689
      %s4692 = scalar_lea.vmem %s221, 56
      %4693 = vst [vmem:[%s4692] sm:$0xf] %v4690
      %4694 = vst [vmem:[%s4692 + $0x4] sm:$0xf] %v4691
      %v4695 = vld [vmem:[#allocation2 + $0x90] sm:$0xff]
      %v4696 = vld [vmem:[#allocation2 + $0x98] sm:$0xff]
      %v4697 = vadd.f32 %v4695, %v4608
      %v4698 = vadd.f32 %v4696, %v4608
      %v4699 = vmax.f32 %v4697, 0.0
      %v4700 = vmax.f32 %v4698, 0.0
      %v4701 = vpack.c.bf16 %v4699, %v4699
      %v4702 = vpack.c.bf16 %v4700, %v4700
      %s4703 = scalar_lea.vmem %s221, 64
      %4704 = vst [vmem:[%s4703] sm:$0xf] %v4701
      %4705 = vst [vmem:[%s4703 + $0x4] sm:$0xf] %v4702
      %v4706 = vld [vmem:[#allocation2 + $0xa2] sm:$0xff]
      %v4707 = vld [vmem:[#allocation2 + $0xaa] sm:$0xff]
      %v4708 = vadd.f32 %v4706, %v4608
      %v4709 = vadd.f32 %v4707, %v4608
      %v4710 = vmax.f32 %v4708, 0.0
      %v4711 = vmax.f32 %v4709, 0.0
      %v4712 = vpack.c.bf16 %v4710, %v4710
      %v4713 = vpack.c.bf16 %v4711, %v4711
      %s4714 = scalar_lea.vmem %s221, 72
      %4715 = vst [vmem:[%s4714] sm:$0xf] %v4712
      %4716 = vst [vmem:[%s4714 + $0x4] sm:$0xf] %v4713
      %v4717 = vld [vmem:[#allocation2 + $0xb4] sm:$0xff]
      %v4718 = vld [vmem:[#allocation2 + $0xbc] sm:$0xff]
      %v4719 = vadd.f32 %v4717, %v4608
      %v4720 = vadd.f32 %v4718, %v4608
      %v4721 = vmax.f32 %v4719, 0.0
      %v4722 = vmax.f32 %v4720, 0.0
      %v4723 = vpack.c.bf16 %v4721, %v4721
      %v4724 = vpack.c.bf16 %v4722, %v4722
      %s4725 = scalar_lea.vmem %s221, 80
      %4726 = vst [vmem:[%s4725] sm:$0xf] %v4723
      %4727 = vst [vmem:[%s4725 + $0x4] sm:$0xf] %v4724
      %v4728 = vld [vmem:[#allocation2 + $0xc6] sm:$0xff]
      %v4729 = vld [vmem:[#allocation2 + $0xce] sm:$0xff]
      %v4730 = vadd.f32 %v4728, %v4608
      %v4731 = vadd.f32 %v4729, %v4608
      %v4732 = vmax.f32 %v4730, 0.0
      %v4733 = vmax.f32 %v4731, 0.0
      %v4734 = vpack.c.bf16 %v4732, %v4732
      %v4735 = vpack.c.bf16 %v4733, %v4733
      %s4736 = scalar_lea.vmem %s221, 88
      %4737 = vst [vmem:[%s4736] sm:$0xf] %v4734
      %4738 = vst [vmem:[%s4736 + $0x4] sm:$0xf] %v4735
      %v4739 = vld [vmem:[#allocation2 + $0xd8] sm:$0xff]
      %v4740 = vld [vmem:[#allocation2 + $0xe0] sm:$0xff]
      %v4741 = vadd.f32 %v4739, %v4608
      %v4742 = vadd.f32 %v4740, %v4608
      %v4743 = vmax.f32 %v4741, 0.0
      %v4744 = vmax.f32 %v4742, 0.0
      %v4745 = vpack.c.bf16 %v4743, %v4743
      %v4746 = vpack.c.bf16 %v4744, %v4744
      %s4747 = scalar_lea.vmem %s221, 96
      %4748 = vst [vmem:[%s4747] sm:$0xf] %v4745
      %4749 = vst [vmem:[%s4747 + $0x4] sm:$0xf] %v4746
      %v4750 = vld [vmem:[#allocation2 + $0xea] sm:$0xff]
      %v4751 = vld [vmem:[#allocation2 + $0xf2] sm:$0xff]
      %v4752 = vadd.f32 %v4750, %v4608
      %v4753 = vadd.f32 %v4751, %v4608
      %v4754 = vmax.f32 %v4752, 0.0
      %v4755 = vmax.f32 %v4753, 0.0
      %v4756 = vpack.c.bf16 %v4754, %v4754
      %v4757 = vpack.c.bf16 %v4755, %v4755
      %s4758 = scalar_lea.vmem %s221, 104
      %4759 = vst [vmem:[%s4758] sm:$0xf] %v4756
      %4760 = vst [vmem:[%s4758 + $0x4] sm:$0xf] %v4757
      %v4761 = vld [vmem:[#allocation2 + $0xfc] sm:$0xff]
      %v4762 = vld [vmem:[#allocation2 + $0x104] sm:$0xff]
      %v4763 = vadd.f32 %v4761, %v4608
      %v4764 = vadd.f32 %v4762, %v4608
      %v4765 = vmax.f32 %v4763, 0.0
      %v4766 = vmax.f32 %v4764, 0.0
      %v4767 = vpack.c.bf16 %v4765, %v4765
      %v4768 = vpack.c.bf16 %v4766, %v4766
      %s4769 = scalar_lea.vmem %s221, 112
      %4770 = vst [vmem:[%s4769] sm:$0xf] %v4767
      %4771 = vst [vmem:[%s4769 + $0x4] sm:$0xf] %v4768
      %v4772 = vld [vmem:[#allocation2 + $0x10e] sm:$0xff]
      %v4773 = vld [vmem:[#allocation2 + $0x116] sm:$0xff]
      %v4774 = vadd.f32 %v4772, %v4608
      %v4775 = vadd.f32 %v4773, %v4608
      %v4776 = vmax.f32 %v4774, 0.0
      %v4777 = vmax.f32 %v4775, 0.0
      %v4778 = vpack.c.bf16 %v4776, %v4776
      %v4779 = vpack.c.bf16 %v4777, %v4777
      %s4780 = scalar_lea.vmem %s221, 120
      %4781 = vst [vmem:[%s4780] sm:$0xf] %v4778
      %4782 = vst [vmem:[%s4780 + $0x4] sm:$0xf] %v4779
      %p4783 = scmp.lt.s32.totalorder %s18, 1
      %s4784 = scalar_select %p4783, %s18, 1
      %p4785 = scmp.lt.s32.totalorder %s19, 0
      %s4786 = scalar_select %p4785, %s19, 0
      %s4787 = smul.addr %s4784, 32
      %s4788 = sadd.s32 %s4786, %s4787
      %s4789 = smul.addr %s4788, 4
      %s4790 = scalar_lea.vmem %s3, %s4789
      // Predicated region
      $region33: #{bottleneck_forward.5} parent=31 // pred_check
        %p4791 = pneg %p124
      $region34: #{bottleneck_forward.5} parent=31 // pred_check_branch
        %4793 = sbr.rel (%p4791) target = $region36
      $region35: #{bottleneck_forward.5} parent=31 // pred_region
        _
      $region36: #{bottleneck_forward.5} parent=31 // pred_fallthru
        _
    $region32: #{bottleneck_forward.5} parent=5 // pred_fallthru
      _
    %p4794 = scmp.le.s32.totalorder 2, %s9
    // Predicated region
    $region37: #{bottleneck_forward.5} parent=5 // pred_check
      %p4795 = pneg %p4794
    $region38: #{bottleneck_forward.5} parent=5 // pred_check_branch
      %4797 = sbr.rel (%p4795) target = $region40
    $region39: #{bottleneck_forward.5} parent=5 // pred_region
      %s4798 = ssub.s32 %s9, 2
      // Predicated region
      $region41: #{bottleneck_forward.5} parent=39 // pred_check
        %p4799 = pneg %p130
      $region42: #{bottleneck_forward.5} parent=39 // pred_check_branch
        %4801 = sbr.rel (%p4799) target = $region44
      $region43: #{bottleneck_forward.5} parent=39 // pred_region
        %p4802 = scmp.lt.s32.totalorder %s20, 1
        %s4803 = scalar_select %p4802, %s20, 1
        %p4804 = scmp.lt.s32.totalorder %s21, 0
        %s4805 = scalar_select %p4804, %s21, 0
        %s4806 = smul.addr %s4803, 32
        %s4807 = sadd.s32 %s4805, %s4806
        %s4808 = smul.addr %s4807, 4
        %s4809 = scalar_lea.vmem %s3, %s4808
      $region44: #{bottleneck_forward.5} parent=39 // pred_fallthru
        _
    $region40: #{bottleneck_forward.5} parent=5 // pred_fallthru
      _
  $region6: #{bottleneck_forward.5} parent=0 // loop_footer
    %s13 = sadd.s32 1, %s9
  $region7: #{bottleneck_forward.5} parent=0 // loop_footer_branch
    %8 = sbr.rel target = $region3
  $region8: #{bottleneck_forward.5} parent=0 // loop_exit
    _

</llo_original>
